<compile_context>
chip_gen: v5e
topology: v5e:2x2
jax: 0.10.0
libtpu: 0.0.40
codegen_flags: <defaults>
</compile_context>

<pallas_src>
import functools

import jax
import jax.numpy as jnp
from jax.experimental import pallas as pl
from jax.experimental.pallas import tpu as pltpu

BN_EPS = 1e-5
LANE = 128


def _round_up(n, m):
    return (n + m - 1) // m * m


def _default_apply_dtype():
    # bf16 VPU exists on v6e / v7x; keep f32 elementwise math on v5e / older chips.
    try:
        kind = jax.devices()[0].device_kind.lower()
    except Exception:
        return jnp.float32
    return jnp.bfloat16 if ("v6" in kind or "v7" in kind) else jnp.float32


def _bn_relu(h, gamma, beta, inv_b, apply_dtype):
    """Training-mode BatchNorm1d (biased batch variance) + ReLU.

    Stats (sum/sumsq -> folded scale/shift) are computed in f32; the per-element apply
    runs in `apply_dtype` (bf16 where a bf16 VPU exists) and feeds the next MXU matmul.
    # TODO(synk): one-pass E[x^2]-E[x]^2 can cancel when |mean| >> std; switch to a
    # shifted/two-pass variant if hidden sizes or inits make that regime likely.
    """
    s1 = jnp.sum(h, axis=0, keepdims=True)
    s2 = jnp.sum(h * h, axis=0, keepdims=True)
    mean = s1 * inv_b
    var = jnp.maximum(s2 * inv_b - mean * mean, 0.0)
    scale = gamma * jax.lax.rsqrt(var + BN_EPS)   # rsqrt -> EUP slot (effectively free)
    shift = beta - mean * scale
    return jnp.maximum(
        h.astype(apply_dtype) * scale.astype(apply_dtype) + shift.astype(apply_dtype),
        0.0)


def rgan_g_kernel(x_ref, w1_ref, w2_ref, w3_ref, w4_ref, w5_ref,
                  gb_ref, b5_ref, o_ref, *, apply_dtype):
    inv_b = 1.0 / x_ref.shape[0]       # rows per independent BN batch (no padded rows)
    mxu_dtype = x_ref.dtype            # bf16 operands for the MXU
    gb = gb_ref[...]                   # [8, Hp] f32: rows 0..3 gamma1..4, rows 4..7 beta1..4

    # Layer 1 (bias dropped: exactly cancelled by BN mean subtraction).
    h = jnp.dot(x_ref[...], w1_ref[...], preferred_element_type=jnp.float32)
    h = _bn_relu(h, gb[0:1, :], gb[4:5, :], inv_b, apply_dtype)

    h = jnp.dot(h.astype(mxu_dtype), w2_ref[...], preferred_element_type=jnp.float32)
    h = _bn_relu(h, gb[1:2, :], gb[5:6, :], inv_b, apply_dtype)

    h = jnp.dot(h.astype(mxu_dtype), w3_ref[...], preferred_element_type=jnp.float32)
    h = _bn_relu(h, gb[2:3, :], gb[6:7, :], inv_b, apply_dtype)

    h = jnp.dot(h.astype(mxu_dtype), w4_ref[...], preferred_element_type=jnp.float32)
    h = _bn_relu(h, gb[3:4, :], gb[7:8, :], inv_b, apply_dtype)

    # Layer 5 keeps its bias, then Tanh (f32 on the EUP), stored as bf16 (tanh-bounded).
    h = jnp.dot(h.astype(mxu_dtype), w5_ref[...], preferred_element_type=jnp.float32)
    h = h + b5_ref[...]
    o_ref[...] = jnp.tanh(h).astype(o_ref.dtype)


def init_params(key, latent_size, hidden_size, out_size):
    """Deterministic synthetic init mimicking nn.Linear default (uniform +-1/sqrt(fan_in)),
    BatchNorm gamma=1, beta=0. PyTorch layout: w[i] is [out, in]."""
    sizes = [
        (hidden_size, latent_size),
        (hidden_size, hidden_size),
        (hidden_size, hidden_size),
        (hidden_size, hidden_size),
        (out_size, hidden_size),
    ]
    params = {}
    for i, (fan_out, fan_in) in enumerate(sizes, start=1):
        key, kw, kb = jax.random.split(key, 3)
        bound = 1.0 / jnp.sqrt(fan_in)
        params[f"w{i}"] = jax.random.uniform(kw, (fan_out, fan_in), jnp.float32, -bound, bound)
        params[f"b{i}"] = jax.random.uniform(kb, (fan_out,), jnp.float32, -bound, bound)
    for i in range(1, 5):
        params[f"g{i}"] = jnp.ones((hidden_size,), jnp.float32)
        params[f"be{i}"] = jnp.zeros((hidden_size,), jnp.float32)
    return params


def prepare_params(params, latent_size, hidden_size, out_size,
                   mxu_dtype=jnp.bfloat16, apply_dtype=None):
    """One-time conversion: transpose to [in,out], zero-pad lane dims to 128-multiples,
    cast weights to bf16, pack gamma/beta into one [8, Hp] array. b1..b4 are dropped
    (cancelled by BN mean subtraction)."""
    if apply_dtype is None:
        apply_dtype = _default_apply_dtype()
    lat_p = _round_up(latent_size, LANE)
    hid_p = _round_up(hidden_size, LANE)
    out_p = _round_up(out_size, LANE)

    def pad_w(w, in_p, out_pdim):
        wt = w.T  # [in, out]
        wt = jnp.pad(wt, ((0, in_p - wt.shape[0]), (0, out_pdim - wt.shape[1])))
        return wt.astype(mxu_dtype)

    prepared = {
        "w1": pad_w(params["w1"], lat_p, hid_p),
        "w2": pad_w(params["w2"], hid_p, hid_p),
        "w3": pad_w(params["w3"], hid_p, hid_p),
        "w4": pad_w(params["w4"], hid_p, hid_p),
        "w5": pad_w(params["w5"], hid_p, out_p),
    }
    # gamma padded with 0 -> padded hidden lanes stay exactly zero through every layer.
    gammas = [jnp.pad(params[f"g{i}"], (0, hid_p - hidden_size)) for i in range(1, 5)]
    betas = [jnp.pad(params[f"be{i}"], (0, hid_p - hidden_size)) for i in range(1, 5)]
    prepared["gb"] = jnp.stack(gammas + betas, axis=0).astype(jnp.float32)   # [8, Hp]
    prepared["b5"] = jnp.pad(params["b5"], (0, out_p - out_size)).reshape(1, -1).astype(jnp.float32)
    prepared["dims"] = (latent_size, lat_p, hid_p, out_size, out_p)
    prepared["mxu_dtype"] = mxu_dtype
    prepared["apply_dtype"] = apply_dtype
    return prepared


def rgan_g_forward(x, prepared, num_batches=1):
    """x: [B, latent] -> [B, out_size].

    `x` is treated as `num_batches` independent BN batches of size B//num_batches stacked
    along axis 0; each grid step computes one full RGAN_G.forward (BN stats per batch).
    num_batches=1 reproduces the exact semantics of a single module call. Fusing several
    batches loads the ~0.9 MiB of weights once (constant index_map), pipelines x/out DMA
    against compute, and gives v7x a "parallel" axis across its two TensorCores.
    """
    latent_size, lat_p, hid_p, out_size, out_p = prepared["dims"]
    mxu_dtype = prepared["mxu_dtype"]
    apply_dtype = prepared["apply_dtype"]
    B = x.shape[0]
    assert x.shape[1] == latent_size
    assert B % num_batches == 0
    tb = B // num_batches
    assert tb % 8 == 0, "per-batch rows must be a sublane multiple"

    if lat_p != latent_size:
        x = jnp.pad(x, ((0, 0), (0, lat_p - latent_size)))
    x = x.astype(mxu_dtype)

    w_keys = ("w1", "w2", "w3", "w4", "w5")
    weight_bytes = sum(prepared[k].size * prepared[k].dtype.itemsize for k in w_keys)
    flops = 2 * B * (lat_p * hid_p + 3 * hid_p * hid_p + hid_p * out_p)
    bytes_accessed = (x.size * x.dtype.itemsize
                      + weight_bytes                       # loaded once across the grid
                      + prepared["gb"].size * 4 + prepared["b5"].size * 4
                      + B * out_p * 2)                     # bf16 output store

    grid_spec = pltpu.PrefetchScalarGridSpec(
        num_scalar_prefetch=0,
        grid=(num_batches,),
        in_specs=[
            pl.BlockSpec((tb, lat_p), lambda g: (g, 0)),      # x: per-batch tile (pipelined)
            pl.BlockSpec((lat_p, hid_p), lambda g: (0, 0)),   # w1..w5: constant -> DMA'd once
            pl.BlockSpec((hid_p, hid_p), lambda g: (0, 0)),
            pl.BlockSpec((hid_p, hid_p), lambda g: (0, 0)),
            pl.BlockSpec((hid_p, hid_p), lambda g: (0, 0)),
            pl.BlockSpec((hid_p, out_p), lambda g: (0, 0)),
            pl.BlockSpec((8, hid_p), lambda g: (0, 0)),       # packed gamma/beta
            pl.BlockSpec((1, out_p), lambda g: (0, 0)),       # b5
        ],
        out_specs=pl.BlockSpec((tb, out_p), lambda g: (g, 0)),
    )

    fn = pl.pallas_call(
        functools.partial(rgan_g_kernel, apply_dtype=apply_dtype),
        out_shape=jax.ShapeDtypeStruct((B, out_p), jnp.bfloat16),
        grid_spec=grid_spec,
        compiler_params=pltpu.CompilerParams(
            dimension_semantics=("parallel",),        # v7x: batches shard across the 2 TCs
            vmem_limit_bytes=32 * 1024 * 1024,        # explicit; plenty of headroom on all gens
        ),
        cost_estimate=pl.CostEstimate(
            flops=flops,
            transcendentals=B * out_p + num_batches * 4 * hid_p,
            bytes_accessed=bytes_accessed,
        ),
    )
    out = fn(x, prepared["w1"], prepared["w2"], prepared["w3"], prepared["w4"],
             prepared["w5"], prepared["gb"], prepared["b5"])
    if out_p != out_size:
        # TODO(synk): downstream consumers could take the padded bf16 output directly and
        # skip this extra HBM read+write (separate XLA slice op).
        out = out[:, :out_size]
    return out


def rgan_g_reference_f32(x, params):
    """Full-f32 PyTorch-equivalent forward (with b1..b4, two-pass BN, train-mode stats)."""
    h = x
    for i in range(1, 5):
        h = h @ params[f"w{i}"].T + params[f"b{i}"]
        mean = jnp.mean(h, axis=0, keepdims=True)
        var = jnp.mean((h - mean) ** 2, axis=0, keepdims=True)
        h = (h - mean) * jax.lax.rsqrt(var + BN_EPS)
        h = h * params[f"g{i}"] + params[f"be{i}"]
        h = jnp.maximum(h, 0.0)
    h = h @ params["w5"].T + params["b5"]
    return jnp.tanh(h)


def rgan_g_reference_mixed(x, params, mxu_dtype=jnp.bfloat16, apply_dtype=jnp.float32):
    """Pure-JAX reference matching the kernel's mixed precision / fused-BN math."""
    inv_b = 1.0 / x.shape[0]
    h = x.astype(mxu_dtype)
    for i in range(1, 5):
        w = params[f"w{i}"].T.astype(mxu_dtype)
        h32 = jnp.dot(h, w, preferred_element_type=jnp.float32)
        s1 = jnp.sum(h32, axis=0, keepdims=True)
        s2 = jnp.sum(h32 * h32, axis=0, keepdims=True)
        mean = s1 * inv_b
        var = jnp.maximum(s2 * inv_b - mean * mean, 0.0)
        scale = params[f"g{i}"] * jax.lax.rsqrt(var + BN_EPS)
        shift = params[f"be{i}"] - mean * scale
        ha = jnp.maximum(
            h32.astype(apply_dtype) * scale.astype(apply_dtype) + shift.astype(apply_dtype),
            0.0)
        h = ha.astype(mxu_dtype)
    w5 = params["w5"].T.astype(mxu_dtype)
    h32 = jnp.dot(h, w5, preferred_element_type=jnp.float32) + params["b5"]
    return jnp.tanh(h32)


if __name__ == "__main__":
    # MNIST-generator-like: latent=100 (pads to 128), hidden=256, out=784 (pads to 896).
    latent_size, hidden_size, out_size = 100, 256, 784
    group_batch = 256     # per-step M >= 256 fills the 256-wide MXU on v6e/v7x
    num_batches = 4       # independent BN batches fused into one pallas_call
    total = group_batch * num_batches

    key = jax.random.PRNGKey(0)
    key, kx, kp = jax.random.split(key, 3)
    x = jax.random.normal(kx, (total, latent_size), jnp.float32)
    params = init_params(kp, latent_size, hidden_size, out_size)

    prepared = prepare_params(params, latent_size, hidden_size, out_size)
    apply_dtype = prepared["apply_dtype"]

    out = rgan_g_forward(x, prepared, num_batches=num_batches)
    out = jax.block_until_ready(out)
    assert out.shape == (total, out_size)
    out_f32 = out.astype(jnp.float32)

    # References computed per independent BN batch (same semantics as the kernel grid).
    refs_mixed, refs_f32 = [], []
    for g in range(num_batches):
        xg = x[g * group_batch:(g + 1) * group_batch]
        refs_mixed.append(rgan_g_reference_mixed(xg, params, apply_dtype=apply_dtype))
        refs_f32.append(rgan_g_reference_f32(xg, params))
    ref_mixed = jnp.concatenate(refs_mixed, axis=0)
    ref_f32 = jnp.concatenate(refs_f32, axis=0)

    # Tight check vs. a reference with matching mixed precision / BN formula
    # (tolerance covers bf16 output rounding + possible bf16-VALU fusion differences).
    tight_atol = 5e-2 if apply_dtype == jnp.bfloat16 else 1.5e-2
    assert jnp.allclose(out_f32, ref_mixed, atol=tight_atol, rtol=1e-2), \
        float(jnp.max(jnp.abs(out_f32 - ref_mixed)))

    # Loose sanity check vs. the full-f32 PyTorch-equivalent forward
    # (differences are bf16 MXU/elementwise rounding only; output is tanh-bounded).
    assert jnp.allclose(out_f32, ref_f32, atol=2e-1, rtol=0.0), \
        float(jnp.max(jnp.abs(out_f32 - ref_f32)))

    print("KERNEL_OK")
</pallas_src>

<mosaic_0001>
module attributes {stable_mosaic.version = 11 : i64} {
  func.func @rgan_g_kernel(%arg0: i32, %arg1: memref<256x128xbf16, #tpu.memory_space<vmem>>, %arg2: memref<128x256xbf16, #tpu.memory_space<vmem>>, %arg3: memref<256x256xbf16, #tpu.memory_space<vmem>>, %arg4: memref<256x256xbf16, #tpu.memory_space<vmem>>, %arg5: memref<256x256xbf16, #tpu.memory_space<vmem>>, %arg6: memref<256x896xbf16, #tpu.memory_space<vmem>>, %arg7: memref<8x256xf32, #tpu.memory_space<vmem>>, %arg8: memref<1x896xf32, #tpu.memory_space<vmem>>, %arg9: memref<256x896xbf16, #tpu.memory_space<vmem>>) attributes {dimension_semantics = [#tpu.dimension_semantics<parallel>], iteration_bounds = array<i64: 4>, scalar_prefetch = 0 : i64, scratch_operands = 0 : i64, tpu.core_type = #tpu.core_type<tc>, window_params = [{transform_indices = @transform_0, window_bounds = array<i64: 256, 128>}, {pipeline_mode = #tpu.pipeline_mode<synchronous>, transform_indices = @transform_1, window_bounds = array<i64: 128, 256>}, {pipeline_mode = #tpu.pipeline_mode<synchronous>, transform_indices = @transform_2, window_bounds = array<i64: 256, 256>}, {pipeline_mode = #tpu.pipeline_mode<synchronous>, transform_indices = @transform_3, window_bounds = array<i64: 256, 256>}, {pipeline_mode = #tpu.pipeline_mode<synchronous>, transform_indices = @transform_4, window_bounds = array<i64: 256, 256>}, {pipeline_mode = #tpu.pipeline_mode<synchronous>, transform_indices = @transform_5, window_bounds = array<i64: 256, 896>}, {pipeline_mode = #tpu.pipeline_mode<synchronous>, transform_indices = @transform_6, window_bounds = array<i64: 8, 256>}, {pipeline_mode = #tpu.pipeline_mode<synchronous>, transform_indices = @transform_7, window_bounds = array<i64: 1, 896>}, {transform_indices = @transform_8, window_bounds = array<i64: 256, 896>}]} {
    %c0 = arith.constant 0 : index
    %c0_0 = arith.constant 0 : index
    %0 = vector.load %arg7[%c0, %c0_0] : memref<8x256xf32, #tpu.memory_space<vmem>>, vector<8x256xf32>
    %c0_1 = arith.constant 0 : index
    %c0_2 = arith.constant 0 : index
    %1 = vector.load %arg1[%c0_1, %c0_2] : memref<256x128xbf16, #tpu.memory_space<vmem>>, vector<256x128xbf16>
    %c0_3 = arith.constant 0 : index
    %c0_4 = arith.constant 0 : index
    %2 = vector.load %arg2[%c0_3, %c0_4] : memref<128x256xbf16, #tpu.memory_space<vmem>>, vector<128x256xbf16>
    %cst = arith.constant dense<0.000000e+00> : vector<256x256xf32>
    %3 = tpu.matmul %1, %2, %cst {dimension_numbers = #tpu.dot_dimension_numbers<[1], [0], [0], [1], [0, 0, 1, 1], [], []>} : vector<256x128xbf16>, vector<128x256xbf16>, vector<256x256xf32> -> vector<256x256xf32>
    %4 = vector.extract_strided_slice %0 {offsets = [0, 0], sizes = [1, 256], strides = [1, 1]} : vector<8x256xf32> to vector<1x256xf32>
    %5 = vector.extract_strided_slice %0 {offsets = [4, 0], sizes = [1, 256], strides = [1, 1]} : vector<8x256xf32> to vector<1x256xf32>
    %cst_5 = arith.constant dense<0.000000e+00> : vector<256xf32>
    %6 = vector.multi_reduction <add>, %3, %cst_5 [0] : vector<256x256xf32> to vector<256xf32>
    %7 = vector.shape_cast %6 : vector<256xf32> to vector<1x256xf32>
    %8 = arith.mulf %3, %3 : vector<256x256xf32>
    %cst_6 = arith.constant dense<0.000000e+00> : vector<256xf32>
    %9 = vector.multi_reduction <add>, %8, %cst_6 [0] : vector<256x256xf32> to vector<256xf32>
    %10 = vector.shape_cast %9 : vector<256xf32> to vector<1x256xf32>
    %cst_7 = arith.constant 3.906250e-03 : f32
    %11 = vector.broadcast %cst_7 : f32 to vector<1x256xf32>
    %12 = arith.mulf %7, %11 : vector<1x256xf32>
    %cst_8 = arith.constant 3.906250e-03 : f32
    %13 = vector.broadcast %cst_8 : f32 to vector<1x256xf32>
    %14 = arith.mulf %10, %13 : vector<1x256xf32>
    %15 = arith.mulf %12, %12 : vector<1x256xf32>
    %16 = arith.subf %14, %15 : vector<1x256xf32>
    %cst_9 = arith.constant 0.000000e+00 : f32
    %17 = vector.broadcast %cst_9 : f32 to vector<1x256xf32>
    %18 = arith.maximumf %16, %17 : vector<1x256xf32>
    %cst_10 = arith.constant 9.99999974E-6 : f32
    %19 = vector.broadcast %cst_10 : f32 to vector<1x256xf32>
    %20 = arith.addf %18, %19 : vector<1x256xf32>
    %21 = math.rsqrt %20 : vector<1x256xf32>
    %22 = arith.mulf %4, %21 : vector<1x256xf32>
    %23 = arith.mulf %12, %22 : vector<1x256xf32>
    %24 = arith.subf %5, %23 : vector<1x256xf32>
    %25 = vector.broadcast %22 : vector<1x256xf32> to vector<256x256xf32>
    %26 = arith.mulf %3, %25 : vector<256x256xf32>
    %27 = vector.broadcast %24 : vector<1x256xf32> to vector<256x256xf32>
    %28 = arith.addf %26, %27 : vector<256x256xf32>
    %cst_11 = arith.constant 0.000000e+00 : f32
    %29 = vector.broadcast %cst_11 : f32 to vector<256x256xf32>
    %30 = arith.maximumf %28, %29 : vector<256x256xf32>
    %31 = arith.truncf %30 : vector<256x256xf32> to vector<256x256xbf16>
    %c0_12 = arith.constant 0 : index
    %c0_13 = arith.constant 0 : index
    %32 = vector.load %arg3[%c0_12, %c0_13] : memref<256x256xbf16, #tpu.memory_space<vmem>>, vector<256x256xbf16>
    %cst_14 = arith.constant dense<0.000000e+00> : vector<256x256xf32>
    %33 = tpu.matmul %31, %32, %cst_14 {dimension_numbers = #tpu.dot_dimension_numbers<[1], [0], [0], [1], [0, 0, 1, 1], [], []>} : vector<256x256xbf16>, vector<256x256xbf16>, vector<256x256xf32> -> vector<256x256xf32>
    %34 = vector.extract_strided_slice %0 {offsets = [1, 0], sizes = [1, 256], strides = [1, 1]} : vector<8x256xf32> to vector<1x256xf32>
    %35 = vector.extract_strided_slice %0 {offsets = [5, 0], sizes = [1, 256], strides = [1, 1]} : vector<8x256xf32> to vector<1x256xf32>
    %cst_15 = arith.constant dense<0.000000e+00> : vector<256xf32>
    %36 = vector.multi_reduction <add>, %33, %cst_15 [0] : vector<256x256xf32> to vector<256xf32>
    %37 = vector.shape_cast %36 : vector<256xf32> to vector<1x256xf32>
    %38 = arith.mulf %33, %33 : vector<256x256xf32>
    %cst_16 = arith.constant dense<0.000000e+00> : vector<256xf32>
    %39 = vector.multi_reduction <add>, %38, %cst_16 [0] : vector<256x256xf32> to vector<256xf32>
    %40 = vector.shape_cast %39 : vector<256xf32> to vector<1x256xf32>
    %cst_17 = arith.constant 3.906250e-03 : f32
    %41 = vector.broadcast %cst_17 : f32 to vector<1x256xf32>
    %42 = arith.mulf %37, %41 : vector<1x256xf32>
    %cst_18 = arith.constant 3.906250e-03 : f32
    %43 = vector.broadcast %cst_18 : f32 to vector<1x256xf32>
    %44 = arith.mulf %40, %43 : vector<1x256xf32>
    %45 = arith.mulf %42, %42 : vector<1x256xf32>
    %46 = arith.subf %44, %45 : vector<1x256xf32>
    %cst_19 = arith.constant 0.000000e+00 : f32
    %47 = vector.broadcast %cst_19 : f32 to vector<1x256xf32>
    %48 = arith.maximumf %46, %47 : vector<1x256xf32>
    %cst_20 = arith.constant 9.99999974E-6 : f32
    %49 = vector.broadcast %cst_20 : f32 to vector<1x256xf32>
    %50 = arith.addf %48, %49 : vector<1x256xf32>
    %51 = math.rsqrt %50 : vector<1x256xf32>
    %52 = arith.mulf %34, %51 : vector<1x256xf32>
    %53 = arith.mulf %42, %52 : vector<1x256xf32>
    %54 = arith.subf %35, %53 : vector<1x256xf32>
    %55 = vector.broadcast %52 : vector<1x256xf32> to vector<256x256xf32>
    %56 = arith.mulf %33, %55 : vector<256x256xf32>
    %57 = vector.broadcast %54 : vector<1x256xf32> to vector<256x256xf32>
    %58 = arith.addf %56, %57 : vector<256x256xf32>
    %cst_21 = arith.constant 0.000000e+00 : f32
    %59 = vector.broadcast %cst_21 : f32 to vector<256x256xf32>
    %60 = arith.maximumf %58, %59 : vector<256x256xf32>
    %61 = arith.truncf %60 : vector<256x256xf32> to vector<256x256xbf16>
    %c0_22 = arith.constant 0 : index
    %c0_23 = arith.constant 0 : index
    %62 = vector.load %arg4[%c0_22, %c0_23] : memref<256x256xbf16, #tpu.memory_space<vmem>>, vector<256x256xbf16>
    %cst_24 = arith.constant dense<0.000000e+00> : vector<256x256xf32>
    %63 = tpu.matmul %61, %62, %cst_24 {dimension_numbers = #tpu.dot_dimension_numbers<[1], [0], [0], [1], [0, 0, 1, 1], [], []>} : vector<256x256xbf16>, vector<256x256xbf16>, vector<256x256xf32> -> vector<256x256xf32>
    %64 = vector.extract_strided_slice %0 {offsets = [2, 0], sizes = [1, 256], strides = [1, 1]} : vector<8x256xf32> to vector<1x256xf32>
    %65 = vector.extract_strided_slice %0 {offsets = [6, 0], sizes = [1, 256], strides = [1, 1]} : vector<8x256xf32> to vector<1x256xf32>
    %cst_25 = arith.constant dense<0.000000e+00> : vector<256xf32>
    %66 = vector.multi_reduction <add>, %63, %cst_25 [0] : vector<256x256xf32> to vector<256xf32>
    %67 = vector.shape_cast %66 : vector<256xf32> to vector<1x256xf32>
    %68 = arith.mulf %63, %63 : vector<256x256xf32>
    %cst_26 = arith.constant dense<0.000000e+00> : vector<256xf32>
    %69 = vector.multi_reduction <add>, %68, %cst_26 [0] : vector<256x256xf32> to vector<256xf32>
    %70 = vector.shape_cast %69 : vector<256xf32> to vector<1x256xf32>
    %cst_27 = arith.constant 3.906250e-03 : f32
    %71 = vector.broadcast %cst_27 : f32 to vector<1x256xf32>
    %72 = arith.mulf %67, %71 : vector<1x256xf32>
    %cst_28 = arith.constant 3.906250e-03 : f32
    %73 = vector.broadcast %cst_28 : f32 to vector<1x256xf32>
    %74 = arith.mulf %70, %73 : vector<1x256xf32>
    %75 = arith.mulf %72, %72 : vector<1x256xf32>
    %76 = arith.subf %74, %75 : vector<1x256xf32>
    %cst_29 = arith.constant 0.000000e+00 : f32
    %77 = vector.broadcast %cst_29 : f32 to vector<1x256xf32>
    %78 = arith.maximumf %76, %77 : vector<1x256xf32>
    %cst_30 = arith.constant 9.99999974E-6 : f32
    %79 = vector.broadcast %cst_30 : f32 to vector<1x256xf32>
    %80 = arith.addf %78, %79 : vector<1x256xf32>
    %81 = math.rsqrt %80 : vector<1x256xf32>
    %82 = arith.mulf %64, %81 : vector<1x256xf32>
    %83 = arith.mulf %72, %82 : vector<1x256xf32>
    %84 = arith.subf %65, %83 : vector<1x256xf32>
    %85 = vector.broadcast %82 : vector<1x256xf32> to vector<256x256xf32>
    %86 = arith.mulf %63, %85 : vector<256x256xf32>
    %87 = vector.broadcast %84 : vector<1x256xf32> to vector<256x256xf32>
    %88 = arith.addf %86, %87 : vector<256x256xf32>
    %cst_31 = arith.constant 0.000000e+00 : f32
    %89 = vector.broadcast %cst_31 : f32 to vector<256x256xf32>
    %90 = arith.maximumf %88, %89 : vector<256x256xf32>
    %91 = arith.truncf %90 : vector<256x256xf32> to vector<256x256xbf16>
    %c0_32 = arith.constant 0 : index
    %c0_33 = arith.constant 0 : index
    %92 = vector.load %arg5[%c0_32, %c0_33] : memref<256x256xbf16, #tpu.memory_space<vmem>>, vector<256x256xbf16>
    %cst_34 = arith.constant dense<0.000000e+00> : vector<256x256xf32>
    %93 = tpu.matmul %91, %92, %cst_34 {dimension_numbers = #tpu.dot_dimension_numbers<[1], [0], [0], [1], [0, 0, 1, 1], [], []>} : vector<256x256xbf16>, vector<256x256xbf16>, vector<256x256xf32> -> vector<256x256xf32>
    %94 = vector.extract_strided_slice %0 {offsets = [3, 0], sizes = [1, 256], strides = [1, 1]} : vector<8x256xf32> to vector<1x256xf32>
    %95 = vector.extract_strided_slice %0 {offsets = [7, 0], sizes = [1, 256], strides = [1, 1]} : vector<8x256xf32> to vector<1x256xf32>
    %cst_35 = arith.constant dense<0.000000e+00> : vector<256xf32>
    %96 = vector.multi_reduction <add>, %93, %cst_35 [0] : vector<256x256xf32> to vector<256xf32>
    %97 = vector.shape_cast %96 : vector<256xf32> to vector<1x256xf32>
    %98 = arith.mulf %93, %93 : vector<256x256xf32>
    %cst_36 = arith.constant dense<0.000000e+00> : vector<256xf32>
    %99 = vector.multi_reduction <add>, %98, %cst_36 [0] : vector<256x256xf32> to vector<256xf32>
    %100 = vector.shape_cast %99 : vector<256xf32> to vector<1x256xf32>
    %cst_37 = arith.constant 3.906250e-03 : f32
    %101 = vector.broadcast %cst_37 : f32 to vector<1x256xf32>
    %102 = arith.mulf %97, %101 : vector<1x256xf32>
    %cst_38 = arith.constant 3.906250e-03 : f32
    %103 = vector.broadcast %cst_38 : f32 to vector<1x256xf32>
    %104 = arith.mulf %100, %103 : vector<1x256xf32>
    %105 = arith.mulf %102, %102 : vector<1x256xf32>
    %106 = arith.subf %104, %105 : vector<1x256xf32>
    %cst_39 = arith.constant 0.000000e+00 : f32
    %107 = vector.broadcast %cst_39 : f32 to vector<1x256xf32>
    %108 = arith.maximumf %106, %107 : vector<1x256xf32>
    %cst_40 = arith.constant 9.99999974E-6 : f32
    %109 = vector.broadcast %cst_40 : f32 to vector<1x256xf32>
    %110 = arith.addf %108, %109 : vector<1x256xf32>
    %111 = math.rsqrt %110 : vector<1x256xf32>
    %112 = arith.mulf %94, %111 : vector<1x256xf32>
    %113 = arith.mulf %102, %112 : vector<1x256xf32>
    %114 = arith.subf %95, %113 : vector<1x256xf32>
    %115 = vector.broadcast %112 : vector<1x256xf32> to vector<256x256xf32>
    %116 = arith.mulf %93, %115 : vector<256x256xf32>
    %117 = vector.broadcast %114 : vector<1x256xf32> to vector<256x256xf32>
    %118 = arith.addf %116, %117 : vector<256x256xf32>
    %cst_41 = arith.constant 0.000000e+00 : f32
    %119 = vector.broadcast %cst_41 : f32 to vector<256x256xf32>
    %120 = arith.maximumf %118, %119 : vector<256x256xf32>
    %121 = arith.truncf %120 : vector<256x256xf32> to vector<256x256xbf16>
    %c0_42 = arith.constant 0 : index
    %c0_43 = arith.constant 0 : index
    %122 = vector.load %arg6[%c0_42, %c0_43] : memref<256x896xbf16, #tpu.memory_space<vmem>>, vector<256x896xbf16>
    %cst_44 = arith.constant dense<0.000000e+00> : vector<256x896xf32>
    %123 = tpu.matmul %121, %122, %cst_44 {dimension_numbers = #tpu.dot_dimension_numbers<[1], [0], [0], [1], [0, 0, 1, 1], [], []>} : vector<256x256xbf16>, vector<256x896xbf16>, vector<256x896xf32> -> vector<256x896xf32>
    %c0_45 = arith.constant 0 : index
    %c0_46 = arith.constant 0 : index
    %124 = vector.load %arg8[%c0_45, %c0_46] : memref<1x896xf32, #tpu.memory_space<vmem>>, vector<1x896xf32>
    %125 = vector.broadcast %124 : vector<1x896xf32> to vector<256x896xf32>
    %126 = arith.addf %123, %125 : vector<256x896xf32>
    %127 = math.tanh %126 : vector<256x896xf32>
    %128 = arith.truncf %127 : vector<256x896xf32> to vector<256x896xbf16>
    %c0_47 = arith.constant 0 : index
    %c0_48 = arith.constant 0 : index
    %129 = vector.load %arg9[%c0_47, %c0_48] : memref<256x896xbf16, #tpu.memory_space<vmem>>, vector<256x896xbf16>
    tpu.vector_store %arg9[%c0_47, %c0_48], %128 {strides = array<i32>} : memref<256x896xbf16, #tpu.memory_space<vmem>>, vector<256x896xbf16>,
    return
  }
  func.func @transform_0(%arg0: i32) -> (i32, i32) {
    %c0_i32 = arith.constant 0 : i32
    %c0_i32_0 = arith.constant 0 : i32
    return %arg0, %c0_i32 : i32, i32
  }
  func.func @transform_1(%arg0: i32) -> (i32, i32) {
    %c0_i32 = arith.constant 0 : i32
    %c0_i32_0 = arith.constant 0 : i32
    %c0_i32_1 = arith.constant 0 : i32
    return %c0_i32, %c0_i32_0 : i32, i32
  }
  func.func @transform_2(%arg0: i32) -> (i32, i32) {
    %c0_i32 = arith.constant 0 : i32
    %c0_i32_0 = arith.constant 0 : i32
    %c0_i32_1 = arith.constant 0 : i32
    return %c0_i32, %c0_i32_0 : i32, i32
  }
  func.func @transform_3(%arg0: i32) -> (i32, i32) {
    %c0_i32 = arith.constant 0 : i32
    %c0_i32_0 = arith.constant 0 : i32
    %c0_i32_1 = arith.constant 0 : i32
    return %c0_i32, %c0_i32_0 : i32, i32
  }
  func.func @transform_4(%arg0: i32) -> (i32, i32) {
    %c0_i32 = arith.constant 0 : i32
    %c0_i32_0 = arith.constant 0 : i32
    %c0_i32_1 = arith.constant 0 : i32
    return %c0_i32, %c0_i32_0 : i32, i32
  }
  func.func @transform_5(%arg0: i32) -> (i32, i32) {
    %c0_i32 = arith.constant 0 : i32
    %c0_i32_0 = arith.constant 0 : i32
    %c0_i32_1 = arith.constant 0 : i32
    return %c0_i32, %c0_i32_0 : i32, i32
  }
  func.func @transform_6(%arg0: i32) -> (i32, i32) {
    %c0_i32 = arith.constant 0 : i32
    %c0_i32_0 = arith.constant 0 : i32
    %c0_i32_1 = arith.constant 0 : i32
    return %c0_i32, %c0_i32_0 : i32, i32
  }
  func.func @transform_7(%arg0: i32) -> (i32, i32) {
    %c0_i32 = arith.constant 0 : i32
    %c0_i32_0 = arith.constant 0 : i32
    %c0_i32_1 = arith.constant 0 : i32
    return %c0_i32, %c0_i32_0 : i32, i32
  }
  func.func @transform_8(%arg0: i32) -> (i32, i32) {
    %c0_i32 = arith.constant 0 : i32
    %c0_i32_0 = arith.constant 0 : i32
    return %arg0, %c0_i32 : i32, i32
  }
}

</mosaic_0001>

<llo_original>
// kernel: tpu_custom_call.1
$region0: #{tpu_custom_call.1}
  #allocation0 [shape = 'u32[]', space=smem, size = 0x4, offset = 0x4, fixed_abs, tag = 'smem constant byte address 0x4 - core index']
  #allocation1 [shape = 'u32[72,128]{1,0:T(1,128)}', space=vmem, size = 0x9000, scoped, tag = 'internal scratch']
  %s0 = inlined_call_operand.hbm [shape: bf16[1024,128], index: 0, kind: input, shape index: {}]
  %s1 = inlined_call_operand.hbm [shape: bf16[128,256], index: 1, kind: input, shape index: {}]
  %s2 = inlined_call_operand.hbm [shape: bf16[256,256], index: 2, kind: input, shape index: {}]
  %s3 = inlined_call_operand.hbm [shape: bf16[256,256], index: 3, kind: input, shape index: {}]
  %s4 = inlined_call_operand.hbm [shape: bf16[256,256], index: 4, kind: input, shape index: {}]
  %s5 = inlined_call_operand.hbm [shape: bf16[256,896], index: 5, kind: input, shape index: {}]
  %s6 = inlined_call_operand.hbm [shape: f32[8,256], index: 6, kind: input, shape index: {}]
  %s7 = inlined_call_operand.hbm [shape: f32[1,896], index: 7, kind: input, shape index: {}]
  %s8 = inlined_call_operand.hbm [shape: bf16[1024,896], index: 8, kind: output, shape index: {}]
  %s9 = sld [smem:[#allocation0]]
  $region97: #{tpu_custom_call.1} parent=0
    _
  %s11 = ssub.s32 1, %s9
  %s12 = scalar_select 0, %s11, %s9
  $region1: #{tpu_custom_call.1} parent=0
    #allocation2 [shape = 'u8[131072]{0}', space=vmem, size = 0x20000, scoped, tag = 'input window, operand 0']
    #allocation3 [shape = 's32[2]{0}', space=sflag, size = 0x8, scoped, tag = 'scoped memory for tpu_custom_call.1']
    #allocation4 [shape = 's32[2]{0}', space=sflag, size = 0x8, scoped, tag = 'scoped memory for tpu_custom_call.1']
    #allocation5 [shape = 'u8[65536]{0}', space=vmem, size = 0x10000, scoped, tag = 'input window, operand 1, single buffered']
    #allocation6 [shape = 's32[1]{0}', space=sflag, size = 0x4, scoped, tag = 'scoped memory for tpu_custom_call.1']
    #allocation7 [shape = 'u8[131072]{0}', space=vmem, size = 0x20000, scoped, tag = 'input window, operand 2, single buffered']
    #allocation8 [shape = 'u8[131072]{0}', space=vmem, size = 0x20000, scoped, tag = 'input window, operand 3, single buffered']
    #allocation9 [shape = 's32[1]{0}', space=sflag, size = 0x4, scoped, tag = 'scoped memory for tpu_custom_call.1']
    #allocation10 [shape = 'u8[131072]{0}', space=vmem, size = 0x20000, scoped, tag = 'input window, operand 4, single buffered']
    #allocation11 [shape = 'u8[458752]{0}', space=vmem, size = 0x70000, scoped, tag = 'input window, operand 5, single buffered']
    #allocation12 [shape = 's32[1]{0}', space=sflag, size = 0x4, scoped, tag = 'scoped memory for tpu_custom_call.1']
    #allocation13 [shape = 'u8[8192]{0}', space=vmem, size = 0x2000, scoped, tag = 'input window, operand 6, single buffered']
    #allocation14 [shape = 'u8[3584]{0}', space=vmem, size = 0x1000, scoped, tag = 'input window, operand 7, single buffered']
    #allocation15 [shape = 's32[1]{0}', space=sflag, size = 0x4, scoped, tag = 'scoped memory for tpu_custom_call.1']
    #allocation16 [shape = 'u8[917504]{0}', space=vmem, size = 0xe0000, scoped, tag = 'output window, operand 0']
    %13 = vsyncpa [#allocation3], 0
    %s14 = scalar_lea.sflag [#allocation3], 1
    %15 = vsyncpa %s14, 0
    %16 = vsyncpa [#allocation6], 0
    %17 = vsyncpa [#allocation9], 0
    %18 = vsyncpa [#allocation12], 0
    %19 = vsyncpa [#allocation15], 0
    %20 = vsyncpa [#allocation4], 0
    %s21 = scalar_lea.sflag [#allocation4], 1
    %22 = vsyncpa %s21, 0
    loop: start=0, step=1, limit=6
    $region2: #{tpu_custom_call.1} parent=1 // loop_pre_header
      _
    $region3: #{tpu_custom_call.1} parent=1 // loop_header
      %s24 = sphi 0, %s28
      %p25 = scmp.ge.s32.totalorder %s24, 6
      %s34 = sphi 0, %s36
      %s37 = sphi 0, %s34
      %s38 = sphi 0, %s37
      %s54 = sphi 0, %s38
      %s58 = sphi 0, %s58
      %s60 = sphi 0, %s58
      %s61 = sphi 0, %s60
      %s75 = sphi 0, %s61
      %s79 = sphi 0, %s79
      %s81 = sphi 0, %s79
      %s82 = sphi 0, %s81
      %s96 = sphi 0, %s82
      %s100 = sphi 0, %s100
      %s102 = sphi 0, %s100
      %s103 = sphi 0, %s102
      %s117 = sphi 0, %s103
      %s121 = sphi 0, %s121
      %s123 = sphi 0, %s121
      %s124 = sphi 0, %s123
      %s138 = sphi 0, %s124
      %s142 = sphi 0, %s142
      %s144 = sphi 0, %s142
      %s145 = sphi 0, %s144
      %s159 = sphi 0, %s145
      %s163 = sphi 0, %s163
      %s165 = sphi 0, %s163
      %s166 = sphi 0, %s165
      %s180 = sphi 0, %s166
      %s184 = sphi 0, %s184
      %s186 = sphi 0, %s184
      %s187 = sphi 0, %s186
      %s201 = sphi 0, %s187
      %s207 = sphi 0, %s209
      %s210 = sphi 0, %s207
      %s211 = sphi 0, %s210
      %s227 = sphi 0, %s211
    $region4: #{tpu_custom_call.1} parent=1 // loop_header_branch
      %27 = sbr.rel (%p25) target = $region8
    $region5: #{tpu_custom_call.1} parent=1 // loop_body
      %s29 = ssub.s32 %s24, 1
      %s30 = ssub.s32 %s24, 2
      %s31 = sadd.s32 %s24, 1
      %s32 = ssub.s32 %s24, %s31
      %p33 = scmp.eq.s32.totalorder %s32, 0
      %s35 = sadd.s32 %s34, 1
      %s36 = scalar_select %p33, %s34, %s35
      %p39 = pneg %p33
      %p40 = scmp.eq.s32.totalorder %s24, 3
      %p41 = por %p39, %p40
      %p42 = scmp.ne.s32.totalorder %s34, %s37
      %p43 = scmp.eq.s32.totalorder %s24, 0
      %p44 = por %p42, %p43
      %p45 = scmp.ne.s32.totalorder %s34, %s37
      %p46 = scmp.eq.s32.totalorder %s29, 3
      %p47 = por %p45, %p46
      %p48 = scmp.ne.s32.totalorder %s37, %s38
      %p49 = scmp.eq.s32.totalorder %s29, 0
      %p50 = por %p48, %p49
      %p51 = scmp.ne.s32.totalorder %s37, %s38
      %p52 = scmp.eq.s32.totalorder %s30, 3
      %p53 = por %p51, %p52
      %p55 = scmp.ne.s32.totalorder %s38, %s54
      %p56 = scmp.eq.s32.totalorder %s30, 0
      %p57 = por %p55, %p56
      %s59 = sadd.s32 %s58, 1
      %p62 = scmp.eq.s32.totalorder %s24, 3
      %p63 = scmp.ne.s32.totalorder %s58, %s60
      %p64 = scmp.eq.s32.totalorder %s24, 0
      %p65 = por %p63, %p64
      %p66 = scmp.ne.s32.totalorder %s58, %s60
      %p67 = scmp.eq.s32.totalorder %s29, 3
      %p68 = por %p66, %p67
      %p69 = scmp.ne.s32.totalorder %s60, %s61
      %p70 = scmp.eq.s32.totalorder %s29, 0
      %p71 = por %p69, %p70
      %p72 = scmp.ne.s32.totalorder %s60, %s61
      %p73 = scmp.eq.s32.totalorder %s30, 3
      %p74 = por %p72, %p73
      %p76 = scmp.ne.s32.totalorder %s61, %s75
      %p77 = scmp.eq.s32.totalorder %s30, 0
      %p78 = por %p76, %p77
      %s80 = sadd.s32 %s79, 1
      %p83 = scmp.eq.s32.totalorder %s24, 3
      %p84 = scmp.ne.s32.totalorder %s79, %s81
      %p85 = scmp.eq.s32.totalorder %s24, 0
      %p86 = por %p84, %p85
      %p87 = scmp.ne.s32.totalorder %s79, %s81
      %p88 = scmp.eq.s32.totalorder %s29, 3
      %p89 = por %p87, %p88
      %p90 = scmp.ne.s32.totalorder %s81, %s82
      %p91 = scmp.eq.s32.totalorder %s29, 0
      %p92 = por %p90, %p91
      %p93 = scmp.ne.s32.totalorder %s81, %s82
      %p94 = scmp.eq.s32.totalorder %s30, 3
      %p95 = por %p93, %p94
      %p97 = scmp.ne.s32.totalorder %s82, %s96
      %p98 = scmp.eq.s32.totalorder %s30, 0
      %p99 = por %p97, %p98
      %s101 = sadd.s32 %s100, 1
      %p104 = scmp.eq.s32.totalorder %s24, 3
      %p105 = scmp.ne.s32.totalorder %s100, %s102
      %p106 = scmp.eq.s32.totalorder %s24, 0
      %p107 = por %p105, %p106
      %p108 = scmp.ne.s32.totalorder %s100, %s102
      %p109 = scmp.eq.s32.totalorder %s29, 3
      %p110 = por %p108, %p109
      %p111 = scmp.ne.s32.totalorder %s102, %s103
      %p112 = scmp.eq.s32.totalorder %s29, 0
      %p113 = por %p111, %p112
      %p114 = scmp.ne.s32.totalorder %s102, %s103
      %p115 = scmp.eq.s32.totalorder %s30, 3
      %p116 = por %p114, %p115
      %p118 = scmp.ne.s32.totalorder %s103, %s117
      %p119 = scmp.eq.s32.totalorder %s30, 0
      %p120 = por %p118, %p119
      %s122 = sadd.s32 %s121, 1
      %p125 = scmp.eq.s32.totalorder %s24, 3
      %p126 = scmp.ne.s32.totalorder %s121, %s123
      %p127 = scmp.eq.s32.totalorder %s24, 0
      %p128 = por %p126, %p127
      %p129 = scmp.ne.s32.totalorder %s121, %s123
      %p130 = scmp.eq.s32.totalorder %s29, 3
      %p131 = por %p129, %p130
      %p132 = scmp.ne.s32.totalorder %s123, %s124
      %p133 = scmp.eq.s32.totalorder %s29, 0
      %p134 = por %p132, %p133
      %p135 = scmp.ne.s32.totalorder %s123, %s124
      %p136 = scmp.eq.s32.totalorder %s30, 3
      %p137 = por %p135, %p136
      %p139 = scmp.ne.s32.totalorder %s124, %s138
      %p140 = scmp.eq.s32.totalorder %s30, 0
      %p141 = por %p139, %p140
      %s143 = sadd.s32 %s142, 1
      %p146 = scmp.eq.s32.totalorder %s24, 3
      %p147 = scmp.ne.s32.totalorder %s142, %s144
      %p148 = scmp.eq.s32.totalorder %s24, 0
      %p149 = por %p147, %p148
      %p150 = scmp.ne.s32.totalorder %s142, %s144
      %p151 = scmp.eq.s32.totalorder %s29, 3
      %p152 = por %p150, %p151
      %p153 = scmp.ne.s32.totalorder %s144, %s145
      %p154 = scmp.eq.s32.totalorder %s29, 0
      %p155 = por %p153, %p154
      %p156 = scmp.ne.s32.totalorder %s144, %s145
      %p157 = scmp.eq.s32.totalorder %s30, 3
      %p158 = por %p156, %p157
      %p160 = scmp.ne.s32.totalorder %s145, %s159
      %p161 = scmp.eq.s32.totalorder %s30, 0
      %p162 = por %p160, %p161
      %s164 = sadd.s32 %s163, 1
      %p167 = scmp.eq.s32.totalorder %s24, 3
      %p168 = scmp.ne.s32.totalorder %s163, %s165
      %p169 = scmp.eq.s32.totalorder %s24, 0
      %p170 = por %p168, %p169
      %p171 = scmp.ne.s32.totalorder %s163, %s165
      %p172 = scmp.eq.s32.totalorder %s29, 3
      %p173 = por %p171, %p172
      %p174 = scmp.ne.s32.totalorder %s165, %s166
      %p175 = scmp.eq.s32.totalorder %s29, 0
      %p176 = por %p174, %p175
      %p177 = scmp.ne.s32.totalorder %s165, %s166
      %p178 = scmp.eq.s32.totalorder %s30, 3
      %p179 = por %p177, %p178
      %p181 = scmp.ne.s32.totalorder %s166, %s180
      %p182 = scmp.eq.s32.totalorder %s30, 0
      %p183 = por %p181, %p182
      %s185 = sadd.s32 %s184, 1
      %p188 = scmp.eq.s32.totalorder %s24, 3
      %p189 = scmp.ne.s32.totalorder %s184, %s186
      %p190 = scmp.eq.s32.totalorder %s24, 0
      %p191 = por %p189, %p190
      %p192 = scmp.ne.s32.totalorder %s184, %s186
      %p193 = scmp.eq.s32.totalorder %s29, 3
      %p194 = por %p192, %p193
      %p195 = scmp.ne.s32.totalorder %s186, %s187
      %p196 = scmp.eq.s32.totalorder %s29, 0
      %p197 = por %p195, %p196
      %p198 = scmp.ne.s32.totalorder %s186, %s187
      %p199 = scmp.eq.s32.totalorder %s30, 3
      %p200 = por %p198, %p199
      %p202 = scmp.ne.s32.totalorder %s187, %s201
      %p203 = scmp.eq.s32.totalorder %s30, 0
      %p204 = por %p202, %p203
      %s205 = ssub.s32 %s24, %s31
      %p206 = scmp.eq.s32.totalorder %s205, 0
      %s208 = sadd.s32 %s207, 1
      %s209 = scalar_select %p206, %s207, %s208
      %p212 = pneg %p206
      %p213 = scmp.eq.s32.totalorder %s24, 3
      %p214 = por %p212, %p213
      %p215 = scmp.ne.s32.totalorder %s207, %s210
      %p216 = scmp.eq.s32.totalorder %s24, 0
      %p217 = por %p215, %p216
      %p218 = scmp.ne.s32.totalorder %s207, %s210
      %p219 = scmp.eq.s32.totalorder %s29, 3
      %p220 = por %p218, %p219
      %p221 = scmp.ne.s32.totalorder %s210, %s211
      %p222 = scmp.eq.s32.totalorder %s29, 0
      %p223 = por %p221, %p222
      %p224 = scmp.ne.s32.totalorder %s210, %s211
      %p225 = scmp.eq.s32.totalorder %s30, 3
      %p226 = por %p224, %p225
      %p228 = scmp.ne.s32.totalorder %s211, %s227
      %p229 = scmp.eq.s32.totalorder %s30, 0
      %p230 = por %p228, %p229
      %p231 = scmp.le.s32.totalorder 1, %s24
      %p232 = scmp.lt.s32.totalorder %s24, 5
      %p233 = pnand %p231, %p232
      %p234 = pneg %p233
      // Predicated region
      $region9: #{tpu_custom_call.1} parent=5 // pred_check
        _
      $region10: #{tpu_custom_call.1} parent=5 // pred_check_branch
        %236 = sbr.rel (%p233) target = $region12
      $region11: #{tpu_custom_call.1} parent=5 // pred_region
        %s237 = ssub.s32 %s24, 1
        // Predicated region
        $region13: #{tpu_custom_call.1} parent=11 // pred_check
          %p238 = pneg %p71
        $region14: #{tpu_custom_call.1} parent=11 // pred_check_branch
          %240 = sbr.rel (%p238) target = $region16
        $region15: #{tpu_custom_call.1} parent=11 // pred_region
          %242 = vsyncadd [#allocation6], 0
          %s243 = sshll.u32 %s1, 4
          %s244 = int_to_ptr.hbm [resolvable:$true] %s243
          %s245 = sshll.u32 [#allocation5], 4
          %s246 = int_to_ptr.vmem [resolvable:$true] %s245
          %251 = dma.hbm_to_vmem [thread:$0]  %s244, 2048, %s246, [#allocation6], 128, 128, 8
        $region16: #{tpu_custom_call.1} parent=11 // pred_fallthru
          _
        // Predicated region
        $region17: #{tpu_custom_call.1} parent=11 // pred_check
          %p252 = pneg %p92
        $region18: #{tpu_custom_call.1} parent=11 // pred_check_branch
          %254 = sbr.rel (%p252) target = $region20
        $region19: #{tpu_custom_call.1} parent=11 // pred_region
          %256 = vsyncadd [#allocation6], 0
          %s257 = sshll.u32 %s2, 4
          %s258 = int_to_ptr.hbm [resolvable:$true] %s257
          %s259 = sshll.u32 [#allocation7], 4
          %s260 = int_to_ptr.vmem [resolvable:$true] %s259
          %265 = dma.hbm_to_vmem [thread:$0]  %s258, 4096, %s260, [#allocation6], 128, 128, 8
        $region20: #{tpu_custom_call.1} parent=11 // pred_fallthru
          _
        // Predicated region
        $region21: #{tpu_custom_call.1} parent=11 // pred_check
          %p266 = pneg %p113
        $region22: #{tpu_custom_call.1} parent=11 // pred_check_branch
          %268 = sbr.rel (%p266) target = $region24
        $region23: #{tpu_custom_call.1} parent=11 // pred_region
          %270 = vsyncadd [#allocation9], 0
          %s271 = sshll.u32 %s3, 4
          %s272 = int_to_ptr.hbm [resolvable:$true] %s271
          %s273 = sshll.u32 [#allocation8], 4
          %s274 = int_to_ptr.vmem [resolvable:$true] %s273
          %279 = dma.hbm_to_vmem [thread:$0]  %s272, 4096, %s274, [#allocation9], 128, 128, 8
        $region24: #{tpu_custom_call.1} parent=11 // pred_fallthru
          _
        // Predicated region
        $region25: #{tpu_custom_call.1} parent=11 // pred_check
          %p280 = pneg %p134
        $region26: #{tpu_custom_call.1} parent=11 // pred_check_branch
          %282 = sbr.rel (%p280) target = $region28
        $region27: #{tpu_custom_call.1} parent=11 // pred_region
          %284 = vsyncadd [#allocation9], 0
          %s285 = sshll.u32 %s4, 4
          %s286 = int_to_ptr.hbm [resolvable:$true] %s285
          %s287 = sshll.u32 [#allocation10], 4
          %s288 = int_to_ptr.vmem [resolvable:$true] %s287
          %293 = dma.hbm_to_vmem [thread:$0]  %s286, 4096, %s288, [#allocation9], 128, 128, 8
        $region28: #{tpu_custom_call.1} parent=11 // pred_fallthru
          _
        // Predicated region
        $region29: #{tpu_custom_call.1} parent=11 // pred_check
          %p294 = pneg %p155
        $region30: #{tpu_custom_call.1} parent=11 // pred_check_branch
          %296 = sbr.rel (%p294) target = $region32
        $region31: #{tpu_custom_call.1} parent=11 // pred_region
          %298 = vsyncadd [#allocation12], 0
          %s299 = sshll.u32 %s5, 4
          %s300 = int_to_ptr.hbm [resolvable:$true] %s299
          %s301 = sshll.u32 [#allocation11], 4
          %s302 = int_to_ptr.vmem [resolvable:$true] %s301
          %307 = dma.hbm_to_vmem [thread:$0]  %s300, 14336, %s302, [#allocation12], 448, 448, 28
        $region32: #{tpu_custom_call.1} parent=11 // pred_fallthru
          _
        // Predicated region
        $region33: #{tpu_custom_call.1} parent=11 // pred_check
          %p308 = pneg %p176
        $region34: #{tpu_custom_call.1} parent=11 // pred_check_branch
          %310 = sbr.rel (%p308) target = $region36
        $region35: #{tpu_custom_call.1} parent=11 // pred_region
          %312 = vsyncadd [#allocation12], 0
          %s314 = sshll.u32 %s6, 4
          %s315 = int_to_ptr.hbm [resolvable:$true] %s314
          %s316 = sshll.u32 [#allocation13], 4
          %s317 = int_to_ptr.vmem [resolvable:$true] %s316
          %319 = dma.hbm_to_vmem [thread:$0]  %s315, 256, %s317, [#allocation12]
        $region36: #{tpu_custom_call.1} parent=11 // pred_fallthru
          _
        // Predicated region
        $region37: #{tpu_custom_call.1} parent=11 // pred_check
          %p320 = pneg %p197
        $region38: #{tpu_custom_call.1} parent=11 // pred_check_branch
          %322 = sbr.rel (%p320) target = $region40
        $region39: #{tpu_custom_call.1} parent=11 // pred_region
          %324 = vsyncadd [#allocation15], 0
          %s326 = sshll.u32 %s7, 4
          %s327 = int_to_ptr.hbm [resolvable:$true] %s326
          %s328 = sshll.u32 [#allocation14], 4
          %s329 = int_to_ptr.vmem [resolvable:$true] %s328
          %331 = dma.hbm_to_vmem [thread:$0]  %s327, 112, %s329, [#allocation15]
        $region40: #{tpu_custom_call.1} parent=11 // pred_fallthru
          _
      $region12: #{tpu_custom_call.1} parent=5 // pred_fallthru
        _
      %p332 = scmp.lt.s32.totalorder %s24, 4
      // Predicated region
      $region41: #{tpu_custom_call.1} parent=5 // pred_check
        %p333 = pneg %p332
      $region42: #{tpu_custom_call.1} parent=5 // pred_check_branch
        %335 = sbr.rel (%p333) target = $region44
      $region43: #{tpu_custom_call.1} parent=5 // pred_region
        // Predicated region
        $region45: #{tpu_custom_call.1} parent=43 // pred_check
          %p336 = pneg %p44
        $region46: #{tpu_custom_call.1} parent=43 // pred_check_branch
          %338 = sbr.rel (%p336) target = $region48
        $region47: #{tpu_custom_call.1} parent=43 // pred_region
          %s339 = sand.u32 %s34, 1
          %s340 = scalar_lea.sflag [#allocation3], %s339
          %s341 = sand.u32 %s34, 1
          %s342 = smul.addr %s341, 128
          %s343 = scalar_lea.vmem [#allocation2], %s342
          %s344 = smul.u32 32, %s24
          %346 = vsyncadd %s340, 0
          %s347 = smul.addr %s344, 4
          %s348 = scalar_lea.hbm %s0, %s347
          %s349 = sshll.u32 %s348, 4
          %s350 = int_to_ptr.hbm [resolvable:$true] %s349
          %s351 = sshll.u32 %s343, 4
          %s352 = int_to_ptr.vmem [resolvable:$true] %s351
          %357 = dma.hbm_to_vmem [thread:$0]  %s350, 2048, %s352, %s340, 64, 64, 4
        $region48: #{tpu_custom_call.1} parent=43 // pred_fallthru
          _
      $region44: #{tpu_custom_call.1} parent=5 // pred_fallthru
        _
      %p358 = scmp.le.s32.totalorder 1, %s24
      %p359 = scmp.lt.s32.totalorder %s24, 5
      %p360 = pnand %p358, %p359
      %p361 = pneg %p360
      // Predicated region
      $region49: #{tpu_custom_call.1} parent=5 // pred_check
        _
      $region50: #{tpu_custom_call.1} parent=5 // pred_check_branch
        %363 = sbr.rel (%p360) target = $region52
      $region51: #{tpu_custom_call.1} parent=5 // pred_region
        %s364 = ssub.s32 %s24, 1
        %s365 = sand.u32 %s37, 1
        %s366 = scalar_lea.sflag [#allocation3], %s365
        %s367 = sand.u32 %s37, 1
        %s368 = smul.addr %s367, 128
        %s369 = scalar_lea.vmem [#allocation2], %s368
        // Predicated region
        $region53: #{tpu_custom_call.1} parent=51 // pred_check
          %p370 = pneg %p50
        $region54: #{tpu_custom_call.1} parent=51 // pred_check_branch
          %372 = sbr.rel (%p370) target = $region56
        $region55: #{tpu_custom_call.1} parent=51 // pred_region
          %374 = dma.done %s366, 2048
        $region56: #{tpu_custom_call.1} parent=51 // pred_fallthru
          _
        // Predicated region
        $region57: #{tpu_custom_call.1} parent=51 // pred_check
          %p375 = pneg %p71
        $region58: #{tpu_custom_call.1} parent=51 // pred_check_branch
          %377 = sbr.rel (%p375) target = $region60
        $region59: #{tpu_custom_call.1} parent=51 // pred_region
          %379 = dma.done [#allocation6], 2048
        $region60: #{tpu_custom_call.1} parent=51 // pred_fallthru
          _
        // Predicated region
        $region61: #{tpu_custom_call.1} parent=51 // pred_check
          %p380 = pneg %p92
        $region62: #{tpu_custom_call.1} parent=51 // pred_check_branch
          %382 = sbr.rel (%p380) target = $region64
        $region63: #{tpu_custom_call.1} parent=51 // pred_region
          %384 = dma.done [#allocation6], 4096
        $region64: #{tpu_custom_call.1} parent=51 // pred_fallthru
          _
        // Predicated region
        $region65: #{tpu_custom_call.1} parent=51 // pred_check
          %p385 = pneg %p113
        $region66: #{tpu_custom_call.1} parent=51 // pred_check_branch
          %387 = sbr.rel (%p385) target = $region68
        $region67: #{tpu_custom_call.1} parent=51 // pred_region
          %389 = dma.done [#allocation9], 4096
        $region68: #{tpu_custom_call.1} parent=51 // pred_fallthru
          _
        // Predicated region
        $region69: #{tpu_custom_call.1} parent=51 // pred_check
          %p390 = pneg %p134
        $region70: #{tpu_custom_call.1} parent=51 // pred_check_branch
          %392 = sbr.rel (%p390) target = $region72
        $region71: #{tpu_custom_call.1} parent=51 // pred_region
          %394 = dma.done [#allocation9], 4096
        $region72: #{tpu_custom_call.1} parent=51 // pred_fallthru
          _
        // Predicated region
        $region73: #{tpu_custom_call.1} parent=51 // pred_check
          %p395 = pneg %p155
        $region74: #{tpu_custom_call.1} parent=51 // pred_check_branch
          %397 = sbr.rel (%p395) target = $region76
        $region75: #{tpu_custom_call.1} parent=51 // pred_region
          %399 = dma.done [#allocation12], 14336
        $region76: #{tpu_custom_call.1} parent=51 // pred_fallthru
          _
        // Predicated region
        $region77: #{tpu_custom_call.1} parent=51 // pred_check
          %p400 = pneg %p176
        $region78: #{tpu_custom_call.1} parent=51 // pred_check_branch
          %402 = sbr.rel (%p400) target = $region80
        $region79: #{tpu_custom_call.1} parent=51 // pred_region
          %404 = dma.done [#allocation12], 256
        $region80: #{tpu_custom_call.1} parent=51 // pred_fallthru
          _
        // Predicated region
        $region81: #{tpu_custom_call.1} parent=51 // pred_check
          %p405 = pneg %p197
        $region82: #{tpu_custom_call.1} parent=51 // pred_check_branch
          %407 = sbr.rel (%p405) target = $region84
        $region83: #{tpu_custom_call.1} parent=51 // pred_region
          %409 = dma.done [#allocation15], 112
        $region84: #{tpu_custom_call.1} parent=51 // pred_fallthru
          _
        %s410 = sand.u32 %s37, 1
        %s411 = scalar_lea.sflag [#allocation3], %s410
        %s412 = sand.u32 %s37, 1
        %s413 = smul.addr %s412, 128
        %s414 = scalar_lea.vmem [#allocation2], %s413
        %p415 = pneg %p50
        %p416 = pneg %p47
        %p417 = pneg %p71
        %p418 = pneg %p68
        %p419 = pneg %p92
        %p420 = pneg %p89
        %p421 = pneg %p113
        %p422 = pneg %p110
        %p423 = pneg %p134
        %p424 = pneg %p131
        %p425 = pneg %p155
        %p426 = pneg %p152
        %p427 = pneg %p176
        %p428 = pneg %p173
        %p429 = pneg %p197
        %p430 = pneg %p194
        %p431 = pneg %p223
        %p432 = pneg %p220
        %s433 = sand.u32 %s210, 1
        %s434 = scalar_lea.sflag [#allocation4], %s433
        %s435 = sand.u32 %s210, 1
        %s436 = smul.addr %s435, 896
        %s437 = scalar_lea.vmem [#allocation16], %s436
        %s438 = smul.u32 32, %s29
        %s439 = smul.u32 32, %s29
        %v440 = vld [vmem:[#allocation13] sm:$0xff]
        %v441 = vld [vmem:[#allocation13 + $0x8] sm:$0xff]
        %v442 = vld [vmem:[%s369] sm:$0xf]
        %v443 = vld [vmem:[%s369 + $0x4] sm:$0xf]
        %v444 = vld [vmem:[%s369 + $0x8] sm:$0xf]
        %v445 = vld [vmem:[%s369 + $0xc] sm:$0xf]
        %v446 = vld [vmem:[%s369 + $0x10] sm:$0xf]
        %v447 = vld [vmem:[%s369 + $0x14] sm:$0xf]
        %v448 = vld [vmem:[%s369 + $0x18] sm:$0xf]
        %v449 = vld [vmem:[%s369 + $0x1c] sm:$0xf]
        %v450 = vld [vmem:[%s369 + $0x20] sm:$0xf]
        %v451 = vld [vmem:[%s369 + $0x24] sm:$0xf]
        %v452 = vld [vmem:[%s369 + $0x28] sm:$0xf]
        %v453 = vld [vmem:[%s369 + $0x2c] sm:$0xf]
        %v454 = vld [vmem:[%s369 + $0x30] sm:$0xf]
        %v455 = vld [vmem:[%s369 + $0x34] sm:$0xf]
        %v456 = vld [vmem:[%s369 + $0x38] sm:$0xf]
        %v457 = vld [vmem:[%s369 + $0x3c] sm:$0xf]
        %v458 = vld [vmem:[%s369 + $0x40] sm:$0xf]
        %v459 = vld [vmem:[%s369 + $0x44] sm:$0xf]
        %v460 = vld [vmem:[%s369 + $0x48] sm:$0xf]
        %v461 = vld [vmem:[%s369 + $0x4c] sm:$0xf]
        %v462 = vld [vmem:[%s369 + $0x50] sm:$0xf]
        %v463 = vld [vmem:[%s369 + $0x54] sm:$0xf]
        %v464 = vld [vmem:[%s369 + $0x58] sm:$0xf]
        %v465 = vld [vmem:[%s369 + $0x5c] sm:$0xf]
        %v466 = vld [vmem:[%s369 + $0x60] sm:$0xf]
        %v467 = vld [vmem:[%s369 + $0x64] sm:$0xf]
        %v468 = vld [vmem:[%s369 + $0x68] sm:$0xf]
        %v469 = vld [vmem:[%s369 + $0x6c] sm:$0xf]
        %v470 = vld [vmem:[%s369 + $0x70] sm:$0xf]
        %v471 = vld [vmem:[%s369 + $0x74] sm:$0xf]
        %v472 = vld [vmem:[%s369 + $0x78] sm:$0xf]
        %v473 = vld [vmem:[%s369 + $0x7c] sm:$0xf]
        %v474 = vld [vmem:[#allocation5] sm:$0xff]
        %v475 = vld [vmem:[#allocation5 + $0x8] sm:$0xff]
        %v476 = vld [vmem:[#allocation5 + $0x10] sm:$0xff]
        %v477 = vld [vmem:[#allocation5 + $0x18] sm:$0xff]
        %v478 = vld [vmem:[#allocation5 + $0x20] sm:$0xff]
        %v479 = vld [vmem:[#allocation5 + $0x28] sm:$0xff]
        %v480 = vld [vmem:[#allocation5 + $0x30] sm:$0xff]
        %v481 = vld [vmem:[#allocation5 + $0x38] sm:$0xff]
        %v482 = vld [vmem:[#allocation5 + $0x40] sm:$0xff]
        %v483 = vld [vmem:[#allocation5 + $0x48] sm:$0xff]
        %v484 = vld [vmem:[#allocation5 + $0x50] sm:$0xff]
        %v485 = vld [vmem:[#allocation5 + $0x58] sm:$0xff]
        %v486 = vld [vmem:[#allocation5 + $0x60] sm:$0xff]
        %v487 = vld [vmem:[#allocation5 + $0x68] sm:$0xff]
        %v488 = vld [vmem:[#allocation5 + $0x70] sm:$0xff]
        %v489 = vld [vmem:[#allocation5 + $0x78] sm:$0xff]
        %v522 = vunpack.c.l.b16 %v442
        %v523 = vunpack.c.l.b16 %v443
        %v524 = vunpack.c.l.b16 %v444
        %v525 = vunpack.c.l.b16 %v445
        %v526 = vunpack.c.l.b16 %v446
        %v527 = vunpack.c.l.b16 %v447
        %v528 = vunpack.c.l.b16 %v448
        %v529 = vunpack.c.l.b16 %v449
        %v530 = vunpack.c.l.b16 %v450
        %v531 = vunpack.c.l.b16 %v451
        %v532 = vunpack.c.l.b16 %v452
        %v533 = vunpack.c.l.b16 %v453
        %v534 = vunpack.c.l.b16 %v454
        %v535 = vunpack.c.l.b16 %v455
        %v536 = vunpack.c.l.b16 %v456
        %v537 = vunpack.c.l.b16 %v457
        %v538 = vunpack.c.l.b16 %v458
        %v539 = vunpack.c.l.b16 %v459
        %v540 = vunpack.c.l.b16 %v460
        %v541 = vunpack.c.l.b16 %v461
        %v542 = vunpack.c.l.b16 %v462
        %v543 = vunpack.c.l.b16 %v463
        %v544 = vunpack.c.l.b16 %v464
        %v545 = vunpack.c.l.b16 %v465
        %v546 = vunpack.c.l.b16 %v466
        %v547 = vunpack.c.l.b16 %v467
        %v548 = vunpack.c.l.b16 %v468
        %v549 = vunpack.c.l.b16 %v469
        %v550 = vunpack.c.l.b16 %v470
        %v551 = vunpack.c.l.b16 %v471
        %v552 = vunpack.c.l.b16 %v472
        %v553 = vunpack.c.l.b16 %v473
        %v554 = vpack.c.b16 %v523, %v522
        %v555 = vpack.c.b16 %v525, %v524
        %v556 = vpack.c.b16 %v527, %v526
        %v557 = vpack.c.b16 %v529, %v528
        %v558 = vpack.c.b16 %v531, %v530
        %v559 = vpack.c.b16 %v533, %v532
        %v560 = vpack.c.b16 %v535, %v534
        %v561 = vpack.c.b16 %v537, %v536
        %v562 = vpack.c.b16 %v539, %v538
        %v563 = vpack.c.b16 %v541, %v540
        %v564 = vpack.c.b16 %v543, %v542
        %v565 = vpack.c.b16 %v545, %v544
        %v566 = vpack.c.b16 %v547, %v546
        %v567 = vpack.c.b16 %v549, %v548
        %v568 = vpack.c.b16 %v551, %v550
        %v569 = vpack.c.b16 %v553, %v552
        %v602 = vunpack.c.l.b16 %v474
        %v603 = vunpack.c.h.b16 %v474
        %v604 = vunpack.c.l.b16 %v475
        %v605 = vunpack.c.h.b16 %v475
        %v606 = vunpack.c.l.b16 %v476
        %v607 = vunpack.c.h.b16 %v476
        %v608 = vunpack.c.l.b16 %v477
        %v609 = vunpack.c.h.b16 %v477
        %v610 = vunpack.c.l.b16 %v478
        %v611 = vunpack.c.h.b16 %v478
        %v612 = vunpack.c.l.b16 %v479
        %v613 = vunpack.c.h.b16 %v479
        %v614 = vunpack.c.l.b16 %v480
        %v615 = vunpack.c.h.b16 %v480
        %v616 = vunpack.c.l.b16 %v481
        %v617 = vunpack.c.h.b16 %v481
        %v618 = vunpack.c.l.b16 %v482
        %v619 = vunpack.c.h.b16 %v482
        %v620 = vunpack.c.l.b16 %v483
        %v621 = vunpack.c.h.b16 %v483
        %v622 = vunpack.c.l.b16 %v484
        %v623 = vunpack.c.h.b16 %v484
        %v624 = vunpack.c.l.b16 %v485
        %v625 = vunpack.c.h.b16 %v485
        %v626 = vunpack.c.l.b16 %v486
        %v627 = vunpack.c.h.b16 %v486
        %v628 = vunpack.c.l.b16 %v487
        %v629 = vunpack.c.h.b16 %v487
        %v630 = vunpack.c.l.b16 %v488
        %v631 = vunpack.c.h.b16 %v488
        %v632 = vunpack.c.l.b16 %v489
        %v633 = vunpack.c.h.b16 %v489
        %v634 = vpack.c.b16 %v604, %v602
        %v635 = vpack.c.b16 %v605, %v603
        %v636 = vpack.c.b16 %v608, %v606
        %v637 = vpack.c.b16 %v609, %v607
        %v638 = vpack.c.b16 %v612, %v610
        %v639 = vpack.c.b16 %v613, %v611
        %v640 = vpack.c.b16 %v616, %v614
        %v641 = vpack.c.b16 %v617, %v615
        %v642 = vpack.c.b16 %v620, %v618
        %v643 = vpack.c.b16 %v621, %v619
        %v644 = vpack.c.b16 %v624, %v622
        %v645 = vpack.c.b16 %v625, %v623
        %v646 = vpack.c.b16 %v628, %v626
        %v647 = vpack.c.b16 %v629, %v627
        %v648 = vpack.c.b16 %v632, %v630
        %v649 = vpack.c.b16 %v633, %v631
        %666 = vmatpush.bf16.msra.mxu0 %v648
        %667 = vmatpush.bf16.msra.mxu0 %v646
        %668 = vmatpush.bf16.msra.mxu0 %v644
        %669 = vmatpush.bf16.msra.mxu0 %v642
        %670 = vmatpush.bf16.msra.mxu0 %v640
        %671 = vmatpush.bf16.msra.mxu0 %v638
        %672 = vmatpush.bf16.msra.mxu0 %v636
        %673 = vmatpush.bf16.msra.mxu0 %v634
        %674 = vmatmul.bf16.gmra.mxu0 %v554
        %v675 = vpop.f32.mrf.mxu0
        %v676 = vadd.f32 0.0, %v675
        %v677 = vpop.f32.mrf.mxu0
        %v678 = vadd.f32 0.0, %v677
        %679 = vmatmul.bf16.gmra.mxu0 %v555
        %v680 = vpop.f32.mrf.mxu0
        %v681 = vadd.f32 0.0, %v680
        %v682 = vpop.f32.mrf.mxu0
        %v683 = vadd.f32 0.0, %v682
        %684 = vmatmul.bf16.gmra.mxu0 %v556
        %v685 = vpop.f32.mrf.mxu0
        %v686 = vadd.f32 0.0, %v685
        %v687 = vpop.f32.mrf.mxu0
        %v688 = vadd.f32 0.0, %v687
        %689 = vmatmul.bf16.gmra.mxu0 %v557
        %v690 = vpop.f32.mrf.mxu0
        %v691 = vadd.f32 0.0, %v690
        %v692 = vpop.f32.mrf.mxu0
        %v693 = vadd.f32 0.0, %v692
        %694 = vmatmul.bf16.gmra.mxu0 %v558
        %v695 = vpop.f32.mrf.mxu0
        %v696 = vadd.f32 0.0, %v695
        %v697 = vpop.f32.mrf.mxu0
        %v698 = vadd.f32 0.0, %v697
        %699 = vmatmul.bf16.gmra.mxu0 %v559
        %v700 = vpop.f32.mrf.mxu0
        %v701 = vadd.f32 0.0, %v700
        %v702 = vpop.f32.mrf.mxu0
        %v703 = vadd.f32 0.0, %v702
        %704 = vmatmul.bf16.gmra.mxu0 %v560
        %v705 = vpop.f32.mrf.mxu0
        %v706 = vadd.f32 0.0, %v705
        %v707 = vpop.f32.mrf.mxu0
        %v708 = vadd.f32 0.0, %v707
        %709 = vmatmul.bf16.gmra.mxu0 %v561
        %v710 = vpop.f32.mrf.mxu0
        %v711 = vadd.f32 0.0, %v710
        %v712 = vpop.f32.mrf.mxu0
        %v713 = vadd.f32 0.0, %v712
        %714 = vmatmul.bf16.gmra.mxu0 %v562
        %v715 = vpop.f32.mrf.mxu0
        %v716 = vadd.f32 0.0, %v715
        %v717 = vpop.f32.mrf.mxu0
        %v718 = vadd.f32 0.0, %v717
        %719 = vmatmul.bf16.gmra.mxu0 %v563
        %v720 = vpop.f32.mrf.mxu0
        %v721 = vadd.f32 0.0, %v720
        %v722 = vpop.f32.mrf.mxu0
        %v723 = vadd.f32 0.0, %v722
        %724 = vmatmul.bf16.gmra.mxu0 %v564
        %v725 = vpop.f32.mrf.mxu0
        %v726 = vadd.f32 0.0, %v725
        %v727 = vpop.f32.mrf.mxu0
        %v728 = vadd.f32 0.0, %v727
        %729 = vmatmul.bf16.gmra.mxu0 %v565
        %v730 = vpop.f32.mrf.mxu0
        %v731 = vadd.f32 0.0, %v730
        %v732 = vpop.f32.mrf.mxu0
        %v733 = vadd.f32 0.0, %v732
        %734 = vmatmul.bf16.gmra.mxu0 %v566
        %v735 = vpop.f32.mrf.mxu0
        %v736 = vadd.f32 0.0, %v735
        %v737 = vpop.f32.mrf.mxu0
        %v738 = vadd.f32 0.0, %v737
        %739 = vmatmul.bf16.gmra.mxu0 %v567
        %v740 = vpop.f32.mrf.mxu0
        %v741 = vadd.f32 0.0, %v740
        %v742 = vpop.f32.mrf.mxu0
        %v743 = vadd.f32 0.0, %v742
        %744 = vmatmul.bf16.gmra.mxu0 %v568
        %v745 = vpop.f32.mrf.mxu0
        %v746 = vadd.f32 0.0, %v745
        %v747 = vpop.f32.mrf.mxu0
        %v748 = vadd.f32 0.0, %v747
        %749 = vmatmul.bf16.gmra.mxu0 %v569
        %v750 = vpop.f32.mrf.mxu0
        %v751 = vadd.f32 0.0, %v750
        %v752 = vpop.f32.mrf.mxu0
        %v753 = vadd.f32 0.0, %v752
        %754 = vdwg.mxu0
        %755 = vmatpush.bf16.msra.mxu0 %v649
        %756 = vmatpush.bf16.msra.mxu0 %v647
        %757 = vmatpush.bf16.msra.mxu0 %v645
        %758 = vmatpush.bf16.msra.mxu0 %v643
        %759 = vmatpush.bf16.msra.mxu0 %v641
        %760 = vmatpush.bf16.msra.mxu0 %v639
        %761 = vmatpush.bf16.msra.mxu0 %v637
        %762 = vmatpush.bf16.msra.mxu0 %v635
        %763 = vmatmul.bf16.gmra.mxu0 %v554
        %v764 = vpop.f32.mrf.mxu0
        %v765 = vadd.f32 0.0, %v764
        %v766 = vpop.f32.mrf.mxu0
        %v767 = vadd.f32 0.0, %v766
        %768 = vmatmul.bf16.gmra.mxu0 %v555
        %v769 = vpop.f32.mrf.mxu0
        %v770 = vadd.f32 0.0, %v769
        %v771 = vpop.f32.mrf.mxu0
        %v772 = vadd.f32 0.0, %v771
        %773 = vmatmul.bf16.gmra.mxu0 %v556
        %v774 = vpop.f32.mrf.mxu0
        %v775 = vadd.f32 0.0, %v774
        %v776 = vpop.f32.mrf.mxu0
        %v777 = vadd.f32 0.0, %v776
        %778 = vmatmul.bf16.gmra.mxu0 %v557
        %v779 = vpop.f32.mrf.mxu0
        %v780 = vadd.f32 0.0, %v779
        %v781 = vpop.f32.mrf.mxu0
        %v782 = vadd.f32 0.0, %v781
        %783 = vmatmul.bf16.gmra.mxu0 %v558
        %v784 = vpop.f32.mrf.mxu0
        %v785 = vadd.f32 0.0, %v784
        %v786 = vpop.f32.mrf.mxu0
        %v787 = vadd.f32 0.0, %v786
        %788 = vmatmul.bf16.gmra.mxu0 %v559
        %v789 = vpop.f32.mrf.mxu0
        %v790 = vadd.f32 0.0, %v789
        %v791 = vpop.f32.mrf.mxu0
        %v792 = vadd.f32 0.0, %v791
        %793 = vmatmul.bf16.gmra.mxu0 %v560
        %v794 = vpop.f32.mrf.mxu0
        %v795 = vadd.f32 0.0, %v794
        %v796 = vpop.f32.mrf.mxu0
        %v797 = vadd.f32 0.0, %v796
        %798 = vmatmul.bf16.gmra.mxu0 %v561
        %v799 = vpop.f32.mrf.mxu0
        %v800 = vadd.f32 0.0, %v799
        %v801 = vpop.f32.mrf.mxu0
        %v802 = vadd.f32 0.0, %v801
        %803 = vmatmul.bf16.gmra.mxu0 %v562
        %v804 = vpop.f32.mrf.mxu0
        %v805 = vadd.f32 0.0, %v804
        %v806 = vpop.f32.mrf.mxu0
        %v807 = vadd.f32 0.0, %v806
        %808 = vmatmul.bf16.gmra.mxu0 %v563
        %v809 = vpop.f32.mrf.mxu0
        %v810 = vadd.f32 0.0, %v809
        %v811 = vpop.f32.mrf.mxu0
        %v812 = vadd.f32 0.0, %v811
        %813 = vmatmul.bf16.gmra.mxu0 %v564
        %v814 = vpop.f32.mrf.mxu0
        %v815 = vadd.f32 0.0, %v814
        %v816 = vpop.f32.mrf.mxu0
        %v817 = vadd.f32 0.0, %v816
        %818 = vmatmul.bf16.gmra.mxu0 %v565
        %v819 = vpop.f32.mrf.mxu0
        %v820 = vadd.f32 0.0, %v819
        %v821 = vpop.f32.mrf.mxu0
        %v822 = vadd.f32 0.0, %v821
        %823 = vmatmul.bf16.gmra.mxu0 %v566
        %v824 = vpop.f32.mrf.mxu0
        %v825 = vadd.f32 0.0, %v824
        %v826 = vpop.f32.mrf.mxu0
        %v827 = vadd.f32 0.0, %v826
        %828 = vmatmul.bf16.gmra.mxu0 %v567
        %v829 = vpop.f32.mrf.mxu0
        %v830 = vadd.f32 0.0, %v829
        %v831 = vpop.f32.mrf.mxu0
        %v832 = vadd.f32 0.0, %v831
        %833 = vmatmul.bf16.gmra.mxu0 %v568
        %v834 = vpop.f32.mrf.mxu0
        %v835 = vadd.f32 0.0, %v834
        %v836 = vpop.f32.mrf.mxu0
        %v837 = vadd.f32 0.0, %v836
        %838 = vmatmul.bf16.gmra.mxu0 %v569
        %v839 = vpop.f32.mrf.mxu0
        %v840 = vadd.f32 0.0, %v839
        %v841 = vpop.f32.mrf.mxu0
        %v842 = vadd.f32 0.0, %v841
        %843 = vdwg.mxu0
        %v844 = vadd.f32 %v676, %v678
        %v845 = vadd.f32 %v844, %v681
        %v846 = vadd.f32 %v845, %v683
        %v847 = vadd.f32 %v846, %v686
        %v848 = vadd.f32 %v847, %v688
        %v849 = vadd.f32 %v848, %v691
        %v850 = vadd.f32 %v849, %v693
        %v851 = vadd.f32 %v850, %v696
        %v852 = vadd.f32 %v851, %v698
        %v853 = vadd.f32 %v852, %v701
        %v854 = vadd.f32 %v853, %v703
        %v855 = vadd.f32 %v854, %v706
        %v856 = vadd.f32 %v855, %v708
        %v857 = vadd.f32 %v856, %v711
        %v858 = vadd.f32 %v857, %v713
        %v859 = vadd.f32 %v858, %v716
        %v860 = vadd.f32 %v859, %v718
        %v861 = vadd.f32 %v860, %v721
        %v862 = vadd.f32 %v861, %v723
        %v863 = vadd.f32 %v862, %v726
        %v864 = vadd.f32 %v863, %v728
        %v865 = vadd.f32 %v864, %v731
        %v866 = vadd.f32 %v865, %v733
        %v867 = vadd.f32 %v866, %v736
        %v868 = vadd.f32 %v867, %v738
        %v869 = vadd.f32 %v868, %v741
        %v870 = vadd.f32 %v869, %v743
        %v871 = vadd.f32 %v870, %v746
        %v872 = vadd.f32 %v871, %v748
        %v873 = vadd.f32 %v872, %v751
        %v874 = vadd.f32 %v873, %v753
        %v875 = vrot.slane %v874, 4
        %v876 = vadd.f32 %v874, %v875
        %v877 = vrot.slane %v876, 2
        %v878 = vadd.f32 %v876, %v877
        %v879 = vrot.slane %v878, 1
        %v880 = vadd.f32 %v878, %v879
        %v881 = vadd.f32 %v765, %v767
        %v882 = vadd.f32 %v881, %v770
        %v883 = vadd.f32 %v882, %v772
        %v884 = vadd.f32 %v883, %v775
        %v885 = vadd.f32 %v884, %v777
        %v886 = vadd.f32 %v885, %v780
        %v887 = vadd.f32 %v886, %v782
        %v888 = vadd.f32 %v887, %v785
        %v889 = vadd.f32 %v888, %v787
        %v890 = vadd.f32 %v889, %v790
        %v891 = vadd.f32 %v890, %v792
        %v892 = vadd.f32 %v891, %v795
        %v893 = vadd.f32 %v892, %v797
        %v894 = vadd.f32 %v893, %v800
        %v895 = vadd.f32 %v894, %v802
        %v896 = vadd.f32 %v895, %v805
        %v897 = vadd.f32 %v896, %v807
        %v898 = vadd.f32 %v897, %v810
        %v899 = vadd.f32 %v898, %v812
        %v900 = vadd.f32 %v899, %v815
        %v901 = vadd.f32 %v900, %v817
        %v902 = vadd.f32 %v901, %v820
        %v903 = vadd.f32 %v902, %v822
        %v904 = vadd.f32 %v903, %v825
        %v905 = vadd.f32 %v904, %v827
        %v906 = vadd.f32 %v905, %v830
        %v907 = vadd.f32 %v906, %v832
        %v908 = vadd.f32 %v907, %v835
        %v909 = vadd.f32 %v908, %v837
        %v910 = vadd.f32 %v909, %v840
        %v911 = vadd.f32 %v910, %v842
        %v912 = vrot.slane %v911, 4
        %v913 = vadd.f32 %v911, %v912
        %v914 = vrot.slane %v913, 2
        %v915 = vadd.f32 %v913, %v914
        %v916 = vrot.slane %v915, 1
        %v917 = vadd.f32 %v915, %v916
        %v918 = vmul.f32 %v676, %v676
        %v919 = vmul.f32 %v765, %v765
        %v920 = vmul.f32 %v678, %v678
        %v921 = vmul.f32 %v767, %v767
        %v922 = vmul.f32 %v681, %v681
        %v923 = vmul.f32 %v770, %v770
        %v924 = vmul.f32 %v683, %v683
        %v925 = vmul.f32 %v772, %v772
        %v926 = vmul.f32 %v686, %v686
        %v927 = vmul.f32 %v775, %v775
        %v928 = vmul.f32 %v688, %v688
        %v929 = vmul.f32 %v777, %v777
        %v930 = vmul.f32 %v691, %v691
        %v931 = vmul.f32 %v780, %v780
        %v932 = vmul.f32 %v693, %v693
        %v933 = vmul.f32 %v782, %v782
        %v934 = vmul.f32 %v696, %v696
        %v935 = vmul.f32 %v785, %v785
        %v936 = vmul.f32 %v698, %v698
        %v937 = vmul.f32 %v787, %v787
        %v938 = vmul.f32 %v701, %v701
        %v939 = vmul.f32 %v790, %v790
        %v940 = vmul.f32 %v703, %v703
        %v941 = vmul.f32 %v792, %v792
        %v942 = vmul.f32 %v706, %v706
        %v943 = vmul.f32 %v795, %v795
        %v944 = vmul.f32 %v708, %v708
        %v945 = vmul.f32 %v797, %v797
        %v946 = vmul.f32 %v711, %v711
        %v947 = vmul.f32 %v800, %v800
        %v948 = vmul.f32 %v713, %v713
        %v949 = vmul.f32 %v802, %v802
        %v950 = vmul.f32 %v716, %v716
        %v951 = vmul.f32 %v805, %v805
        %v952 = vmul.f32 %v718, %v718
        %v953 = vmul.f32 %v807, %v807
        %v954 = vmul.f32 %v721, %v721
        %v955 = vmul.f32 %v810, %v810
        %v956 = vmul.f32 %v723, %v723
        %v957 = vmul.f32 %v812, %v812
        %v958 = vmul.f32 %v726, %v726
        %v959 = vmul.f32 %v815, %v815
        %v960 = vmul.f32 %v728, %v728
        %v961 = vmul.f32 %v817, %v817
        %v962 = vmul.f32 %v731, %v731
        %v963 = vmul.f32 %v820, %v820
        %v964 = vmul.f32 %v733, %v733
        %v965 = vmul.f32 %v822, %v822
        %v966 = vmul.f32 %v736, %v736
        %v967 = vmul.f32 %v825, %v825
        %v968 = vmul.f32 %v738, %v738
        %v969 = vmul.f32 %v827, %v827
        %v970 = vmul.f32 %v741, %v741
        %v971 = vmul.f32 %v830, %v830
        %v972 = vmul.f32 %v743, %v743
        %v973 = vmul.f32 %v832, %v832
        %v974 = vmul.f32 %v746, %v746
        %v975 = vmul.f32 %v835, %v835
        %v976 = vmul.f32 %v748, %v748
        %v977 = vmul.f32 %v837, %v837
        %v978 = vmul.f32 %v751, %v751
        %v979 = vmul.f32 %v840, %v840
        %v980 = vmul.f32 %v753, %v753
        %v981 = vmul.f32 %v842, %v842
        %v982 = vadd.f32 %v918, %v920
        %v983 = vadd.f32 %v982, %v922
        %v984 = vadd.f32 %v983, %v924
        %v985 = vadd.f32 %v984, %v926
        %v986 = vadd.f32 %v985, %v928
        %v987 = vadd.f32 %v986, %v930
        %v988 = vadd.f32 %v987, %v932
        %v989 = vadd.f32 %v988, %v934
        %v990 = vadd.f32 %v989, %v936
        %v991 = vadd.f32 %v990, %v938
        %v992 = vadd.f32 %v991, %v940
        %v993 = vadd.f32 %v992, %v942
        %v994 = vadd.f32 %v993, %v944
        %v995 = vadd.f32 %v994, %v946
        %v996 = vadd.f32 %v995, %v948
        %v997 = vadd.f32 %v996, %v950
        %v998 = vadd.f32 %v997, %v952
        %v999 = vadd.f32 %v998, %v954
        %v1000 = vadd.f32 %v999, %v956
        %v1001 = vadd.f32 %v1000, %v958
        %v1002 = vadd.f32 %v1001, %v960
        %v1003 = vadd.f32 %v1002, %v962
        %v1004 = vadd.f32 %v1003, %v964
        %v1005 = vadd.f32 %v1004, %v966
        %v1006 = vadd.f32 %v1005, %v968
        %v1007 = vadd.f32 %v1006, %v970
        %v1008 = vadd.f32 %v1007, %v972
        %v1009 = vadd.f32 %v1008, %v974
        %v1010 = vadd.f32 %v1009, %v976
        %v1011 = vadd.f32 %v1010, %v978
        %v1012 = vadd.f32 %v1011, %v980
        %v1013 = vrot.slane %v1012, 4
        %v1014 = vadd.f32 %v1012, %v1013
        %v1015 = vrot.slane %v1014, 2
        %v1016 = vadd.f32 %v1014, %v1015
        %v1017 = vrot.slane %v1016, 1
        %v1018 = vadd.f32 %v1016, %v1017
        %v1019 = vadd.f32 %v919, %v921
        %v1020 = vadd.f32 %v1019, %v923
        %v1021 = vadd.f32 %v1020, %v925
        %v1022 = vadd.f32 %v1021, %v927
        %v1023 = vadd.f32 %v1022, %v929
        %v1024 = vadd.f32 %v1023, %v931
        %v1025 = vadd.f32 %v1024, %v933
        %v1026 = vadd.f32 %v1025, %v935
        %v1027 = vadd.f32 %v1026, %v937
        %v1028 = vadd.f32 %v1027, %v939
        %v1029 = vadd.f32 %v1028, %v941
        %v1030 = vadd.f32 %v1029, %v943
        %v1031 = vadd.f32 %v1030, %v945
        %v1032 = vadd.f32 %v1031, %v947
        %v1033 = vadd.f32 %v1032, %v949
        %v1034 = vadd.f32 %v1033, %v951
        %v1035 = vadd.f32 %v1034, %v953
        %v1036 = vadd.f32 %v1035, %v955
        %v1037 = vadd.f32 %v1036, %v957
        %v1038 = vadd.f32 %v1037, %v959
        %v1039 = vadd.f32 %v1038, %v961
        %v1040 = vadd.f32 %v1039, %v963
        %v1041 = vadd.f32 %v1040, %v965
        %v1042 = vadd.f32 %v1041, %v967
        %v1043 = vadd.f32 %v1042, %v969
        %v1044 = vadd.f32 %v1043, %v971
        %v1045 = vadd.f32 %v1044, %v973
        %v1046 = vadd.f32 %v1045, %v975
        %v1047 = vadd.f32 %v1046, %v977
        %v1048 = vadd.f32 %v1047, %v979
        %v1049 = vadd.f32 %v1048, %v981
        %v1050 = vrot.slane %v1049, 4
        %v1051 = vadd.f32 %v1049, %v1050
        %v1052 = vrot.slane %v1051, 2
        %v1053 = vadd.f32 %v1051, %v1052
        %v1054 = vrot.slane %v1053, 1
        %v1055 = vadd.f32 %v1053, %v1054
        %v1056 = vmul.f32 %v880, 0.00390625
        %v1057 = vmul.f32 %v917, 0.00390625
        %v1058 = vmul.f32 %v1018, 0.00390625
        %v1059 = vmul.f32 %v1055, 0.00390625
        %v1060 = vmul.f32 %v1056, %v1056
        %v1061 = vmul.f32 %v1057, %v1057
        %v1062 = vsub.f32 %v1058, %v1060
        %v1063 = vsub.f32 %v1059, %v1061
        %v1064 = vmax.f32 %v1062, 0.0
        %v1065 = vmax.f32 %v1063, 0.0
        %v1066 = vadd.f32 %v1064, 1e-05
        %v1067 = vadd.f32 %v1065, 1e-05
        %v1068 = vrsqrt.pop %v1066
        %v1069 = vmul.f32 %v1068, %v1066
        %v1070 = vmul.f32 %v1069, %v1068
        %v1071 = vmul.f32 0.5, %v1070
        %v1072 = vsub.f32 1.5, %v1071
        %v1073 = vmul.f32 %v1068, %v1072
        %vm1074 = vweird.f32 %v1066
        %vm1075 = vweird.f32 %v1068
        %vm1076 = vmor %vm1074, %vm1075
        %v1077 = vsel %vm1076, %v1068, %v1073
        %v1078 = vrsqrt.pop %v1067
        %v1079 = vmul.f32 %v1078, %v1067
        %v1080 = vmul.f32 %v1079, %v1078
        %v1081 = vmul.f32 0.5, %v1080
        %v1082 = vsub.f32 1.5, %v1081
        %v1083 = vmul.f32 %v1078, %v1082
        %vm1084 = vweird.f32 %v1067
        %vm1085 = vweird.f32 %v1078
        %vm1086 = vmor %vm1084, %vm1085
        %v1087 = vsel %vm1086, %v1078, %v1083
        %v1088 = vmul.f32 %v440, %v1077
        %v1089 = vmul.f32 %v441, %v1087
        %v1090 = vmul.f32 %v1056, %v1088
        %v1091 = vmul.f32 %v1057, %v1089
        %v1094 = vrot.slane %v1090, 4
        %v1095 = vrot.slane %v1091, 4
        %v1098 = vsub.f32 %v440, %v1094
        %v1099 = vsub.f32 %v441, %v1095
        %v1100 = vperm.slane %v1088, 0
        %v1101 = vperm.slane %v1089, 0
        %v1102 = vmul.f32 %v676, %v1100
        %v1103 = vmul.f32 %v765, %v1101
        %v1104 = vmul.f32 %v678, %v1100
        %v1105 = vmul.f32 %v767, %v1101
        %v1106 = vmul.f32 %v681, %v1100
        %v1107 = vmul.f32 %v770, %v1101
        %v1108 = vmul.f32 %v683, %v1100
        %v1109 = vmul.f32 %v772, %v1101
        %v1110 = vmul.f32 %v686, %v1100
        %v1111 = vmul.f32 %v775, %v1101
        %v1112 = vmul.f32 %v688, %v1100
        %v1113 = vmul.f32 %v777, %v1101
        %v1114 = vmul.f32 %v691, %v1100
        %v1115 = vmul.f32 %v780, %v1101
        %v1116 = vmul.f32 %v693, %v1100
        %v1117 = vmul.f32 %v782, %v1101
        %v1118 = vmul.f32 %v696, %v1100
        %v1119 = vmul.f32 %v785, %v1101
        %v1120 = vmul.f32 %v698, %v1100
        %v1121 = vmul.f32 %v787, %v1101
        %v1122 = vmul.f32 %v701, %v1100
        %v1123 = vmul.f32 %v790, %v1101
        %v1124 = vmul.f32 %v703, %v1100
        %v1125 = vmul.f32 %v792, %v1101
        %v1126 = vmul.f32 %v706, %v1100
        %v1127 = vmul.f32 %v795, %v1101
        %v1128 = vmul.f32 %v708, %v1100
        %v1129 = vmul.f32 %v797, %v1101
        %v1130 = vmul.f32 %v711, %v1100
        %v1131 = vmul.f32 %v800, %v1101
        %v1132 = vmul.f32 %v713, %v1100
        %v1133 = vmul.f32 %v802, %v1101
        %v1134 = vmul.f32 %v716, %v1100
        %v1135 = vmul.f32 %v805, %v1101
        %v1136 = vmul.f32 %v718, %v1100
        %v1137 = vmul.f32 %v807, %v1101
        %v1138 = vmul.f32 %v721, %v1100
        %v1139 = vmul.f32 %v810, %v1101
        %v1140 = vmul.f32 %v723, %v1100
        %v1141 = vmul.f32 %v812, %v1101
        %v1142 = vmul.f32 %v726, %v1100
        %v1143 = vmul.f32 %v815, %v1101
        %v1144 = vmul.f32 %v728, %v1100
        %v1145 = vmul.f32 %v817, %v1101
        %v1146 = vmul.f32 %v731, %v1100
        %v1147 = vmul.f32 %v820, %v1101
        %v1148 = vmul.f32 %v733, %v1100
        %v1149 = vmul.f32 %v822, %v1101
        %v1150 = vmul.f32 %v736, %v1100
        %v1151 = vmul.f32 %v825, %v1101
        %v1152 = vmul.f32 %v738, %v1100
        %v1153 = vmul.f32 %v827, %v1101
        %v1154 = vmul.f32 %v741, %v1100
        %v1155 = vmul.f32 %v830, %v1101
        %v1156 = vmul.f32 %v743, %v1100
        %v1157 = vmul.f32 %v832, %v1101
        %v1158 = vmul.f32 %v746, %v1100
        %v1159 = vmul.f32 %v835, %v1101
        %v1160 = vmul.f32 %v748, %v1100
        %v1161 = vmul.f32 %v837, %v1101
        %v1162 = vmul.f32 %v751, %v1100
        %v1163 = vmul.f32 %v840, %v1101
        %v1164 = vmul.f32 %v753, %v1100
        %v1165 = vmul.f32 %v842, %v1101
        %v1166 = vperm.slane %v1098, 4
        %v1167 = vperm.slane %v1099, 4
        %v1168 = vadd.f32 %v1102, %v1166
        %v1169 = vadd.f32 %v1103, %v1167
        %v1170 = vadd.f32 %v1104, %v1166
        %v1171 = vadd.f32 %v1105, %v1167
        %v1172 = vadd.f32 %v1106, %v1166
        %v1173 = vadd.f32 %v1107, %v1167
        %v1174 = vadd.f32 %v1108, %v1166
        %v1175 = vadd.f32 %v1109, %v1167
        %v1176 = vadd.f32 %v1110, %v1166
        %v1177 = vadd.f32 %v1111, %v1167
        %v1178 = vadd.f32 %v1112, %v1166
        %v1179 = vadd.f32 %v1113, %v1167
        %v1180 = vadd.f32 %v1114, %v1166
        %v1181 = vadd.f32 %v1115, %v1167
        %v1182 = vadd.f32 %v1116, %v1166
        %v1183 = vadd.f32 %v1117, %v1167
        %v1184 = vadd.f32 %v1118, %v1166
        %v1185 = vadd.f32 %v1119, %v1167
        %v1186 = vadd.f32 %v1120, %v1166
        %v1187 = vadd.f32 %v1121, %v1167
        %v1188 = vadd.f32 %v1122, %v1166
        %v1189 = vadd.f32 %v1123, %v1167
        %v1190 = vadd.f32 %v1124, %v1166
        %v1191 = vadd.f32 %v1125, %v1167
        %v1192 = vadd.f32 %v1126, %v1166
        %v1193 = vadd.f32 %v1127, %v1167
        %v1194 = vadd.f32 %v1128, %v1166
        %v1195 = vadd.f32 %v1129, %v1167
        %v1196 = vadd.f32 %v1130, %v1166
        %v1197 = vadd.f32 %v1131, %v1167
        %v1198 = vadd.f32 %v1132, %v1166
        %v1199 = vadd.f32 %v1133, %v1167
        %v1200 = vadd.f32 %v1134, %v1166
        %v1201 = vadd.f32 %v1135, %v1167
        %v1202 = vadd.f32 %v1136, %v1166
        %v1203 = vadd.f32 %v1137, %v1167
        %v1204 = vadd.f32 %v1138, %v1166
        %v1205 = vadd.f32 %v1139, %v1167
        %v1206 = vadd.f32 %v1140, %v1166
        %v1207 = vadd.f32 %v1141, %v1167
        %v1208 = vadd.f32 %v1142, %v1166
        %v1209 = vadd.f32 %v1143, %v1167
        %v1210 = vadd.f32 %v1144, %v1166
        %v1211 = vadd.f32 %v1145, %v1167
        %v1212 = vadd.f32 %v1146, %v1166
        %v1213 = vadd.f32 %v1147, %v1167
        %v1214 = vadd.f32 %v1148, %v1166
        %v1215 = vadd.f32 %v1149, %v1167
        %v1216 = vadd.f32 %v1150, %v1166
        %v1217 = vadd.f32 %v1151, %v1167
        %v1218 = vadd.f32 %v1152, %v1166
        %v1219 = vadd.f32 %v1153, %v1167
        %v1220 = vadd.f32 %v1154, %v1166
        %v1221 = vadd.f32 %v1155, %v1167
        %v1222 = vadd.f32 %v1156, %v1166
        %v1223 = vadd.f32 %v1157, %v1167
        %v1224 = vadd.f32 %v1158, %v1166
        %v1225 = vadd.f32 %v1159, %v1167
        %v1226 = vadd.f32 %v1160, %v1166
        %v1227 = vadd.f32 %v1161, %v1167
        %v1228 = vadd.f32 %v1162, %v1166
        %v1229 = vadd.f32 %v1163, %v1167
        %v1230 = vadd.f32 %v1164, %v1166
        %v1231 = vadd.f32 %v1165, %v1167
        %v1232 = vmax.f32 %v1168, 0.0
        %v1233 = vmax.f32 %v1169, 0.0
        %v1234 = vmax.f32 %v1170, 0.0
        %v1235 = vmax.f32 %v1171, 0.0
        %v1236 = vmax.f32 %v1172, 0.0
        %v1237 = vmax.f32 %v1173, 0.0
        %v1238 = vmax.f32 %v1174, 0.0
        %v1239 = vmax.f32 %v1175, 0.0
        %v1240 = vmax.f32 %v1176, 0.0
        %v1241 = vmax.f32 %v1177, 0.0
        %v1242 = vmax.f32 %v1178, 0.0
        %v1243 = vmax.f32 %v1179, 0.0
        %v1244 = vmax.f32 %v1180, 0.0
        %v1245 = vmax.f32 %v1181, 0.0
        %v1246 = vmax.f32 %v1182, 0.0
        %v1247 = vmax.f32 %v1183, 0.0
        %v1248 = vmax.f32 %v1184, 0.0
        %v1249 = vmax.f32 %v1185, 0.0
        %v1250 = vmax.f32 %v1186, 0.0
        %v1251 = vmax.f32 %v1187, 0.0
        %v1252 = vmax.f32 %v1188, 0.0
        %v1253 = vmax.f32 %v1189, 0.0
        %v1254 = vmax.f32 %v1190, 0.0
        %v1255 = vmax.f32 %v1191, 0.0
        %v1256 = vmax.f32 %v1192, 0.0
        %v1257 = vmax.f32 %v1193, 0.0
        %v1258 = vmax.f32 %v1194, 0.0
        %v1259 = vmax.f32 %v1195, 0.0
        %v1260 = vmax.f32 %v1196, 0.0
        %v1261 = vmax.f32 %v1197, 0.0
        %v1262 = vmax.f32 %v1198, 0.0
        %v1263 = vmax.f32 %v1199, 0.0
        %v1264 = vmax.f32 %v1200, 0.0
        %v1265 = vmax.f32 %v1201, 0.0
        %v1266 = vmax.f32 %v1202, 0.0
        %v1267 = vmax.f32 %v1203, 0.0
        %v1268 = vmax.f32 %v1204, 0.0
        %v1269 = vmax.f32 %v1205, 0.0
        %v1270 = vmax.f32 %v1206, 0.0
        %v1271 = vmax.f32 %v1207, 0.0
        %v1272 = vmax.f32 %v1208, 0.0
        %v1273 = vmax.f32 %v1209, 0.0
        %v1274 = vmax.f32 %v1210, 0.0
        %v1275 = vmax.f32 %v1211, 0.0
        %v1276 = vmax.f32 %v1212, 0.0
        %v1277 = vmax.f32 %v1213, 0.0
        %v1278 = vmax.f32 %v1214, 0.0
        %v1279 = vmax.f32 %v1215, 0.0
        %v1280 = vmax.f32 %v1216, 0.0
        %v1281 = vmax.f32 %v1217, 0.0
        %v1282 = vmax.f32 %v1218, 0.0
        %v1283 = vmax.f32 %v1219, 0.0
        %v1284 = vmax.f32 %v1220, 0.0
        %v1285 = vmax.f32 %v1221, 0.0
        %v1286 = vmax.f32 %v1222, 0.0
        %v1287 = vmax.f32 %v1223, 0.0
        %v1288 = vmax.f32 %v1224, 0.0
        %v1289 = vmax.f32 %v1225, 0.0
        %v1290 = vmax.f32 %v1226, 0.0
        %v1291 = vmax.f32 %v1227, 0.0
        %v1292 = vmax.f32 %v1228, 0.0
        %v1293 = vmax.f32 %v1229, 0.0
        %v1294 = vmax.f32 %v1230, 0.0
        %v1295 = vmax.f32 %v1231, 0.0
        %v1296 = vpack.c.bf16 %v1234, %v1232
        %v1297 = vpack.c.bf16 %v1235, %v1233
        %v1298 = vpack.c.bf16 %v1238, %v1236
        %v1299 = vpack.c.bf16 %v1239, %v1237
        %v1300 = vpack.c.bf16 %v1242, %v1240
        %v1301 = vpack.c.bf16 %v1243, %v1241
        %v1302 = vpack.c.bf16 %v1246, %v1244
        %v1303 = vpack.c.bf16 %v1247, %v1245
        %v1304 = vpack.c.bf16 %v1250, %v1248
        %v1305 = vpack.c.bf16 %v1251, %v1249
        %v1306 = vpack.c.bf16 %v1254, %v1252
        %v1307 = vpack.c.bf16 %v1255, %v1253
        %v1308 = vpack.c.bf16 %v1258, %v1256
        %v1309 = vpack.c.bf16 %v1259, %v1257
        %v1310 = vpack.c.bf16 %v1262, %v1260
        %v1311 = vpack.c.bf16 %v1263, %v1261
        %v1312 = vpack.c.bf16 %v1266, %v1264
        %v1313 = vpack.c.bf16 %v1267, %v1265
        %v1314 = vpack.c.bf16 %v1270, %v1268
        %v1315 = vpack.c.bf16 %v1271, %v1269
        %v1316 = vpack.c.bf16 %v1274, %v1272
        %v1317 = vpack.c.bf16 %v1275, %v1273
        %v1318 = vpack.c.bf16 %v1278, %v1276
        %v1319 = vpack.c.bf16 %v1279, %v1277
        %v1320 = vpack.c.bf16 %v1282, %v1280
        %v1321 = vpack.c.bf16 %v1283, %v1281
        %v1322 = vpack.c.bf16 %v1286, %v1284
        %v1323 = vpack.c.bf16 %v1287, %v1285
        %v1324 = vpack.c.bf16 %v1290, %v1288
        %v1325 = vpack.c.bf16 %v1291, %v1289
        %v1326 = vpack.c.bf16 %v1294, %v1292
        %v1327 = vpack.c.bf16 %v1295, %v1293
        %v1328 = vld [vmem:[#allocation7] sm:$0xff]
        %v1329 = vld [vmem:[#allocation7 + $0x8] sm:$0xff]
        %v1330 = vld [vmem:[#allocation7 + $0x10] sm:$0xff]
        %v1331 = vld [vmem:[#allocation7 + $0x18] sm:$0xff]
        %v1332 = vld [vmem:[#allocation7 + $0x20] sm:$0xff]
        %v1333 = vld [vmem:[#allocation7 + $0x28] sm:$0xff]
        %v1334 = vld [vmem:[#allocation7 + $0x30] sm:$0xff]
        %v1335 = vld [vmem:[#allocation7 + $0x38] sm:$0xff]
        %v1336 = vld [vmem:[#allocation7 + $0x40] sm:$0xff]
        %v1337 = vld [vmem:[#allocation7 + $0x48] sm:$0xff]
        %v1338 = vld [vmem:[#allocation7 + $0x50] sm:$0xff]
        %v1339 = vld [vmem:[#allocation7 + $0x58] sm:$0xff]
        %v1340 = vld [vmem:[#allocation7 + $0x60] sm:$0xff]
        %v1341 = vld [vmem:[#allocation7 + $0x68] sm:$0xff]
        %v1342 = vld [vmem:[#allocation7 + $0x70] sm:$0xff]
        %v1343 = vld [vmem:[#allocation7 + $0x78] sm:$0xff]
        %v1344 = vld [vmem:[#allocation7 + $0x80] sm:$0xff]
        %v1345 = vld [vmem:[#allocation7 + $0x88] sm:$0xff]
        %v1346 = vld [vmem:[#allocation7 + $0x90] sm:$0xff]
        %v1347 = vld [vmem:[#allocation7 + $0x98] sm:$0xff]
        %v1348 = vld [vmem:[#allocation7 + $0xa0] sm:$0xff]
        %v1349 = vld [vmem:[#allocation7 + $0xa8] sm:$0xff]
        %v1350 = vld [vmem:[#allocation7 + $0xb0] sm:$0xff]
        %v1351 = vld [vmem:[#allocation7 + $0xb8] sm:$0xff]
        %v1352 = vld [vmem:[#allocation7 + $0xc0] sm:$0xff]
        %v1353 = vld [vmem:[#allocation7 + $0xc8] sm:$0xff]
        %v1354 = vld [vmem:[#allocation7 + $0xd0] sm:$0xff]
        %v1355 = vld [vmem:[#allocation7 + $0xd8] sm:$0xff]
        %v1356 = vld [vmem:[#allocation7 + $0xe0] sm:$0xff]
        %v1357 = vld [vmem:[#allocation7 + $0xe8] sm:$0xff]
        %v1358 = vld [vmem:[#allocation7 + $0xf0] sm:$0xff]
        %v1359 = vld [vmem:[#allocation7 + $0xf8] sm:$0xff]
        %v1392 = vunpack.c.l.b16 %v1328
        %v1393 = vunpack.c.h.b16 %v1328
        %v1394 = vunpack.c.l.b16 %v1329
        %v1395 = vunpack.c.h.b16 %v1329
        %v1396 = vunpack.c.l.b16 %v1330
        %v1397 = vunpack.c.h.b16 %v1330
        %v1398 = vunpack.c.l.b16 %v1331
        %v1399 = vunpack.c.h.b16 %v1331
        %v1400 = vunpack.c.l.b16 %v1332
        %v1401 = vunpack.c.h.b16 %v1332
        %v1402 = vunpack.c.l.b16 %v1333
        %v1403 = vunpack.c.h.b16 %v1333
        %v1404 = vunpack.c.l.b16 %v1334
        %v1405 = vunpack.c.h.b16 %v1334
        %v1406 = vunpack.c.l.b16 %v1335
        %v1407 = vunpack.c.h.b16 %v1335
        %v1408 = vunpack.c.l.b16 %v1336
        %v1409 = vunpack.c.h.b16 %v1336
        %v1410 = vunpack.c.l.b16 %v1337
        %v1411 = vunpack.c.h.b16 %v1337
        %v1412 = vunpack.c.l.b16 %v1338
        %v1413 = vunpack.c.h.b16 %v1338
        %v1414 = vunpack.c.l.b16 %v1339
        %v1415 = vunpack.c.h.b16 %v1339
        %v1416 = vunpack.c.l.b16 %v1340
        %v1417 = vunpack.c.h.b16 %v1340
        %v1418 = vunpack.c.l.b16 %v1341
        %v1419 = vunpack.c.h.b16 %v1341
        %v1420 = vunpack.c.l.b16 %v1342
        %v1421 = vunpack.c.h.b16 %v1342
        %v1422 = vunpack.c.l.b16 %v1343
        %v1423 = vunpack.c.h.b16 %v1343
        %v1424 = vunpack.c.l.b16 %v1344
        %v1425 = vunpack.c.h.b16 %v1344
        %v1426 = vunpack.c.l.b16 %v1345
        %v1427 = vunpack.c.h.b16 %v1345
        %v1428 = vunpack.c.l.b16 %v1346
        %v1429 = vunpack.c.h.b16 %v1346
        %v1430 = vunpack.c.l.b16 %v1347
        %v1431 = vunpack.c.h.b16 %v1347
        %v1432 = vunpack.c.l.b16 %v1348
        %v1433 = vunpack.c.h.b16 %v1348
        %v1434 = vunpack.c.l.b16 %v1349
        %v1435 = vunpack.c.h.b16 %v1349
        %v1436 = vunpack.c.l.b16 %v1350
        %v1437 = vunpack.c.h.b16 %v1350
        %v1438 = vunpack.c.l.b16 %v1351
        %v1439 = vunpack.c.h.b16 %v1351
        %v1440 = vunpack.c.l.b16 %v1352
        %v1441 = vunpack.c.h.b16 %v1352
        %v1442 = vunpack.c.l.b16 %v1353
        %v1443 = vunpack.c.h.b16 %v1353
        %v1444 = vunpack.c.l.b16 %v1354
        %v1445 = vunpack.c.h.b16 %v1354
        %v1446 = vunpack.c.l.b16 %v1355
        %v1447 = vunpack.c.h.b16 %v1355
        %v1448 = vunpack.c.l.b16 %v1356
        %v1449 = vunpack.c.h.b16 %v1356
        %v1450 = vunpack.c.l.b16 %v1357
        %v1451 = vunpack.c.h.b16 %v1357
        %v1452 = vunpack.c.l.b16 %v1358
        %v1453 = vunpack.c.h.b16 %v1358
        %v1454 = vunpack.c.l.b16 %v1359
        %v1455 = vunpack.c.h.b16 %v1359
        %v1456 = vpack.c.b16 %v1394, %v1392
        %v1457 = vpack.c.b16 %v1395, %v1393
        %v1458 = vpack.c.b16 %v1398, %v1396
        %v1459 = vpack.c.b16 %v1399, %v1397
        %v1460 = vpack.c.b16 %v1402, %v1400
        %v1461 = vpack.c.b16 %v1403, %v1401
        %v1462 = vpack.c.b16 %v1406, %v1404
        %v1463 = vpack.c.b16 %v1407, %v1405
        %v1464 = vpack.c.b16 %v1410, %v1408
        %v1465 = vpack.c.b16 %v1411, %v1409
        %v1466 = vpack.c.b16 %v1414, %v1412
        %v1467 = vpack.c.b16 %v1415, %v1413
        %v1468 = vpack.c.b16 %v1418, %v1416
        %v1469 = vpack.c.b16 %v1419, %v1417
        %v1470 = vpack.c.b16 %v1422, %v1420
        %v1471 = vpack.c.b16 %v1423, %v1421
        %v1472 = vpack.c.b16 %v1426, %v1424
        %v1473 = vpack.c.b16 %v1427, %v1425
        %v1474 = vpack.c.b16 %v1430, %v1428
        %v1475 = vpack.c.b16 %v1431, %v1429
        %v1476 = vpack.c.b16 %v1434, %v1432
        %v1477 = vpack.c.b16 %v1435, %v1433
        %v1478 = vpack.c.b16 %v1438, %v1436
        %v1479 = vpack.c.b16 %v1439, %v1437
        %v1480 = vpack.c.b16 %v1442, %v1440
        %v1481 = vpack.c.b16 %v1443, %v1441
        %v1482 = vpack.c.b16 %v1446, %v1444
        %v1483 = vpack.c.b16 %v1447, %v1445
        %v1484 = vpack.c.b16 %v1450, %v1448
        %v1485 = vpack.c.b16 %v1451, %v1449
        %v1486 = vpack.c.b16 %v1454, %v1452
        %v1487 = vpack.c.b16 %v1455, %v1453
        %1520 = vmatpush.bf16.msra.mxu0 %v1470
        %1521 = vmatpush.bf16.msra.mxu0 %v1468
        %1522 = vmatpush.bf16.msra.mxu0 %v1466
        %1523 = vmatpush.bf16.msra.mxu0 %v1464
        %1524 = vmatpush.bf16.msra.mxu0 %v1462
        %1525 = vmatpush.bf16.msra.mxu0 %v1460
        %1526 = vmatpush.bf16.msra.mxu0 %v1458
        %1527 = vmatpush.bf16.msra.mxu0 %v1456
        %1528 = vmatmul.bf16.gmra.mxu0 %v1296
        %v1529 = vpop.f32.mrf.mxu0
        %v1530 = vadd.f32 0.0, %v1529
        %v1531 = vpop.f32.mrf.mxu0
        %v1532 = vadd.f32 0.0, %v1531
        %1533 = vmatmul.bf16.gmra.mxu0 %v1298
        %v1534 = vpop.f32.mrf.mxu0
        %v1535 = vadd.f32 0.0, %v1534
        %v1536 = vpop.f32.mrf.mxu0
        %v1537 = vadd.f32 0.0, %v1536
        %1538 = vmatmul.bf16.gmra.mxu0 %v1300
        %v1539 = vpop.f32.mrf.mxu0
        %v1540 = vadd.f32 0.0, %v1539
        %v1541 = vpop.f32.mrf.mxu0
        %v1542 = vadd.f32 0.0, %v1541
        %1543 = vmatmul.bf16.gmra.mxu0 %v1302
        %v1544 = vpop.f32.mrf.mxu0
        %v1545 = vadd.f32 0.0, %v1544
        %v1546 = vpop.f32.mrf.mxu0
        %v1547 = vadd.f32 0.0, %v1546
        %1548 = vmatmul.bf16.gmra.mxu0 %v1304
        %v1549 = vpop.f32.mrf.mxu0
        %v1550 = vadd.f32 0.0, %v1549
        %v1551 = vpop.f32.mrf.mxu0
        %v1552 = vadd.f32 0.0, %v1551
        %1553 = vmatmul.bf16.gmra.mxu0 %v1306
        %v1554 = vpop.f32.mrf.mxu0
        %v1555 = vadd.f32 0.0, %v1554
        %v1556 = vpop.f32.mrf.mxu0
        %v1557 = vadd.f32 0.0, %v1556
        %1558 = vmatmul.bf16.gmra.mxu0 %v1308
        %v1559 = vpop.f32.mrf.mxu0
        %v1560 = vadd.f32 0.0, %v1559
        %v1561 = vpop.f32.mrf.mxu0
        %v1562 = vadd.f32 0.0, %v1561
        %1563 = vmatmul.bf16.gmra.mxu0 %v1310
        %v1564 = vpop.f32.mrf.mxu0
        %v1565 = vadd.f32 0.0, %v1564
        %v1566 = vpop.f32.mrf.mxu0
        %v1567 = vadd.f32 0.0, %v1566
        %1568 = vmatmul.bf16.gmra.mxu0 %v1312
        %v1569 = vpop.f32.mrf.mxu0
        %v1570 = vadd.f32 0.0, %v1569
        %v1571 = vpop.f32.mrf.mxu0
        %v1572 = vadd.f32 0.0, %v1571
        %1573 = vmatmul.bf16.gmra.mxu0 %v1314
        %v1574 = vpop.f32.mrf.mxu0
        %v1575 = vadd.f32 0.0, %v1574
        %v1576 = vpop.f32.mrf.mxu0
        %v1577 = vadd.f32 0.0, %v1576
        %1578 = vmatmul.bf16.gmra.mxu0 %v1316
        %v1579 = vpop.f32.mrf.mxu0
        %v1580 = vadd.f32 0.0, %v1579
        %v1581 = vpop.f32.mrf.mxu0
        %v1582 = vadd.f32 0.0, %v1581
        %1583 = vmatmul.bf16.gmra.mxu0 %v1318
        %v1584 = vpop.f32.mrf.mxu0
        %v1585 = vadd.f32 0.0, %v1584
        %v1586 = vpop.f32.mrf.mxu0
        %v1587 = vadd.f32 0.0, %v1586
        %1588 = vmatmul.bf16.gmra.mxu0 %v1320
        %v1589 = vpop.f32.mrf.mxu0
        %v1590 = vadd.f32 0.0, %v1589
        %v1591 = vpop.f32.mrf.mxu0
        %v1592 = vadd.f32 0.0, %v1591
        %1593 = vmatmul.bf16.gmra.mxu0 %v1322
        %v1594 = vpop.f32.mrf.mxu0
        %v1595 = vadd.f32 0.0, %v1594
        %v1596 = vpop.f32.mrf.mxu0
        %v1597 = vadd.f32 0.0, %v1596
        %1598 = vmatmul.bf16.gmra.mxu0 %v1324
        %v1599 = vpop.f32.mrf.mxu0
        %v1600 = vadd.f32 0.0, %v1599
        %v1601 = vpop.f32.mrf.mxu0
        %v1602 = vadd.f32 0.0, %v1601
        %1603 = vmatmul.bf16.gmra.mxu0 %v1326
        %v1604 = vpop.f32.mrf.mxu0
        %v1605 = vadd.f32 0.0, %v1604
        %v1606 = vpop.f32.mrf.mxu0
        %v1607 = vadd.f32 0.0, %v1606
        %1608 = vdwg.mxu0
        %1609 = vmatpush.bf16.msra.mxu0 %v1486
        %1610 = vmatpush.bf16.msra.mxu0 %v1484
        %1611 = vmatpush.bf16.msra.mxu0 %v1482
        %1612 = vmatpush.bf16.msra.mxu0 %v1480
        %1613 = vmatpush.bf16.msra.mxu0 %v1478
        %1614 = vmatpush.bf16.msra.mxu0 %v1476
        %1615 = vmatpush.bf16.msra.mxu0 %v1474
        %1616 = vmatpush.bf16.msra.mxu0 %v1472
        %1617 = vmatmul.bf16.gmra.mxu0 %v1297
        %v1618 = vpop.f32.mrf.mxu0
        %v1619 = vadd.f32 %v1530, %v1618
        %v1620 = vpop.f32.mrf.mxu0
        %v1621 = vadd.f32 %v1532, %v1620
        %1622 = vmatmul.bf16.gmra.mxu0 %v1299
        %v1623 = vpop.f32.mrf.mxu0
        %v1624 = vadd.f32 %v1535, %v1623
        %v1625 = vpop.f32.mrf.mxu0
        %v1626 = vadd.f32 %v1537, %v1625
        %1627 = vmatmul.bf16.gmra.mxu0 %v1301
        %v1628 = vpop.f32.mrf.mxu0
        %v1629 = vadd.f32 %v1540, %v1628
        %v1630 = vpop.f32.mrf.mxu0
        %v1631 = vadd.f32 %v1542, %v1630
        %1632 = vmatmul.bf16.gmra.mxu0 %v1303
        %v1633 = vpop.f32.mrf.mxu0
        %v1634 = vadd.f32 %v1545, %v1633
        %v1635 = vpop.f32.mrf.mxu0
        %v1636 = vadd.f32 %v1547, %v1635
        %1637 = vmatmul.bf16.gmra.mxu0 %v1305
        %v1638 = vpop.f32.mrf.mxu0
        %v1639 = vadd.f32 %v1550, %v1638
        %v1640 = vpop.f32.mrf.mxu0
        %v1641 = vadd.f32 %v1552, %v1640
        %1642 = vmatmul.bf16.gmra.mxu0 %v1307
        %v1643 = vpop.f32.mrf.mxu0
        %v1644 = vadd.f32 %v1555, %v1643
        %v1645 = vpop.f32.mrf.mxu0
        %v1646 = vadd.f32 %v1557, %v1645
        %1647 = vmatmul.bf16.gmra.mxu0 %v1309
        %v1648 = vpop.f32.mrf.mxu0
        %v1649 = vadd.f32 %v1560, %v1648
        %v1650 = vpop.f32.mrf.mxu0
        %v1651 = vadd.f32 %v1562, %v1650
        %1652 = vmatmul.bf16.gmra.mxu0 %v1311
        %v1653 = vpop.f32.mrf.mxu0
        %v1654 = vadd.f32 %v1565, %v1653
        %v1655 = vpop.f32.mrf.mxu0
        %v1656 = vadd.f32 %v1567, %v1655
        %1657 = vmatmul.bf16.gmra.mxu0 %v1313
        %v1658 = vpop.f32.mrf.mxu0
        %v1659 = vadd.f32 %v1570, %v1658
        %v1660 = vpop.f32.mrf.mxu0
        %v1661 = vadd.f32 %v1572, %v1660
        %1662 = vmatmul.bf16.gmra.mxu0 %v1315
        %v1663 = vpop.f32.mrf.mxu0
        %v1664 = vadd.f32 %v1575, %v1663
        %v1665 = vpop.f32.mrf.mxu0
        %v1666 = vadd.f32 %v1577, %v1665
        %1667 = vmatmul.bf16.gmra.mxu0 %v1317
        %v1668 = vpop.f32.mrf.mxu0
        %v1669 = vadd.f32 %v1580, %v1668
        %v1670 = vpop.f32.mrf.mxu0
        %v1671 = vadd.f32 %v1582, %v1670
        %1672 = vmatmul.bf16.gmra.mxu0 %v1319
        %v1673 = vpop.f32.mrf.mxu0
        %v1674 = vadd.f32 %v1585, %v1673
        %v1675 = vpop.f32.mrf.mxu0
        %v1676 = vadd.f32 %v1587, %v1675
        %1677 = vmatmul.bf16.gmra.mxu0 %v1321
        %v1678 = vpop.f32.mrf.mxu0
        %v1679 = vadd.f32 %v1590, %v1678
        %v1680 = vpop.f32.mrf.mxu0
        %v1681 = vadd.f32 %v1592, %v1680
        %1682 = vmatmul.bf16.gmra.mxu0 %v1323
        %v1683 = vpop.f32.mrf.mxu0
        %v1684 = vadd.f32 %v1595, %v1683
        %v1685 = vpop.f32.mrf.mxu0
        %v1686 = vadd.f32 %v1597, %v1685
        %1687 = vmatmul.bf16.gmra.mxu0 %v1325
        %v1688 = vpop.f32.mrf.mxu0
        %v1689 = vadd.f32 %v1600, %v1688
        %v1690 = vpop.f32.mrf.mxu0
        %v1691 = vadd.f32 %v1602, %v1690
        %1692 = vmatmul.bf16.gmra.mxu0 %v1327
        %v1693 = vpop.f32.mrf.mxu0
        %v1694 = vadd.f32 %v1605, %v1693
        %v1695 = vpop.f32.mrf.mxu0
        %v1696 = vadd.f32 %v1607, %v1695
        %1697 = vdwg.mxu0
        %1698 = vmatpush.bf16.msra.mxu0 %v1471
        %1699 = vmatpush.bf16.msra.mxu0 %v1469
        %1700 = vmatpush.bf16.msra.mxu0 %v1467
        %1701 = vmatpush.bf16.msra.mxu0 %v1465
        %1702 = vmatpush.bf16.msra.mxu0 %v1463
        %1703 = vmatpush.bf16.msra.mxu0 %v1461
        %1704 = vmatpush.bf16.msra.mxu0 %v1459
        %1705 = vmatpush.bf16.msra.mxu0 %v1457
        %1706 = vmatmul.bf16.gmra.mxu0 %v1296
        %v1707 = vpop.f32.mrf.mxu0
        %v1708 = vadd.f32 0.0, %v1707
        %v1709 = vpop.f32.mrf.mxu0
        %v1710 = vadd.f32 0.0, %v1709
        %1711 = vmatmul.bf16.gmra.mxu0 %v1298
        %v1712 = vpop.f32.mrf.mxu0
        %v1713 = vadd.f32 0.0, %v1712
        %v1714 = vpop.f32.mrf.mxu0
        %v1715 = vadd.f32 0.0, %v1714
        %1716 = vmatmul.bf16.gmra.mxu0 %v1300
        %v1717 = vpop.f32.mrf.mxu0
        %v1718 = vadd.f32 0.0, %v1717
        %v1719 = vpop.f32.mrf.mxu0
        %v1720 = vadd.f32 0.0, %v1719
        %1721 = vmatmul.bf16.gmra.mxu0 %v1302
        %v1722 = vpop.f32.mrf.mxu0
        %v1723 = vadd.f32 0.0, %v1722
        %v1724 = vpop.f32.mrf.mxu0
        %v1725 = vadd.f32 0.0, %v1724
        %1726 = vmatmul.bf16.gmra.mxu0 %v1304
        %v1727 = vpop.f32.mrf.mxu0
        %v1728 = vadd.f32 0.0, %v1727
        %v1729 = vpop.f32.mrf.mxu0
        %v1730 = vadd.f32 0.0, %v1729
        %1731 = vmatmul.bf16.gmra.mxu0 %v1306
        %v1732 = vpop.f32.mrf.mxu0
        %v1733 = vadd.f32 0.0, %v1732
        %v1734 = vpop.f32.mrf.mxu0
        %v1735 = vadd.f32 0.0, %v1734
        %1736 = vmatmul.bf16.gmra.mxu0 %v1308
        %v1737 = vpop.f32.mrf.mxu0
        %v1738 = vadd.f32 0.0, %v1737
        %v1739 = vpop.f32.mrf.mxu0
        %v1740 = vadd.f32 0.0, %v1739
        %1741 = vmatmul.bf16.gmra.mxu0 %v1310
        %v1742 = vpop.f32.mrf.mxu0
        %v1743 = vadd.f32 0.0, %v1742
        %v1744 = vpop.f32.mrf.mxu0
        %v1745 = vadd.f32 0.0, %v1744
        %1746 = vmatmul.bf16.gmra.mxu0 %v1312
        %v1747 = vpop.f32.mrf.mxu0
        %v1748 = vadd.f32 0.0, %v1747
        %v1749 = vpop.f32.mrf.mxu0
        %v1750 = vadd.f32 0.0, %v1749
        %1751 = vmatmul.bf16.gmra.mxu0 %v1314
        %v1752 = vpop.f32.mrf.mxu0
        %v1753 = vadd.f32 0.0, %v1752
        %v1754 = vpop.f32.mrf.mxu0
        %v1755 = vadd.f32 0.0, %v1754
        %1756 = vmatmul.bf16.gmra.mxu0 %v1316
        %v1757 = vpop.f32.mrf.mxu0
        %v1758 = vadd.f32 0.0, %v1757
        %v1759 = vpop.f32.mrf.mxu0
        %v1760 = vadd.f32 0.0, %v1759
        %1761 = vmatmul.bf16.gmra.mxu0 %v1318
        %v1762 = vpop.f32.mrf.mxu0
        %v1763 = vadd.f32 0.0, %v1762
        %v1764 = vpop.f32.mrf.mxu0
        %v1765 = vadd.f32 0.0, %v1764
        %1766 = vmatmul.bf16.gmra.mxu0 %v1320
        %v1767 = vpop.f32.mrf.mxu0
        %v1768 = vadd.f32 0.0, %v1767
        %v1769 = vpop.f32.mrf.mxu0
        %v1770 = vadd.f32 0.0, %v1769
        %1771 = vmatmul.bf16.gmra.mxu0 %v1322
        %v1772 = vpop.f32.mrf.mxu0
        %v1773 = vadd.f32 0.0, %v1772
        %v1774 = vpop.f32.mrf.mxu0
        %v1775 = vadd.f32 0.0, %v1774
        %1776 = vmatmul.bf16.gmra.mxu0 %v1324
        %v1777 = vpop.f32.mrf.mxu0
        %v1778 = vadd.f32 0.0, %v1777
        %v1779 = vpop.f32.mrf.mxu0
        %v1780 = vadd.f32 0.0, %v1779
        %1781 = vmatmul.bf16.gmra.mxu0 %v1326
        %v1782 = vpop.f32.mrf.mxu0
        %v1783 = vadd.f32 0.0, %v1782
        %v1784 = vpop.f32.mrf.mxu0
        %v1785 = vadd.f32 0.0, %v1784
        %1786 = vdwg.mxu0
        %1787 = vmatpush.bf16.msra.mxu0 %v1487
        %1788 = vmatpush.bf16.msra.mxu0 %v1485
        %1789 = vmatpush.bf16.msra.mxu0 %v1483
        %1790 = vmatpush.bf16.msra.mxu0 %v1481
        %1791 = vmatpush.bf16.msra.mxu0 %v1479
        %1792 = vmatpush.bf16.msra.mxu0 %v1477
        %1793 = vmatpush.bf16.msra.mxu0 %v1475
        %1794 = vmatpush.bf16.msra.mxu0 %v1473
        %1795 = vmatmul.bf16.gmra.mxu0 %v1297
        %v1796 = vpop.f32.mrf.mxu0
        %v1797 = vadd.f32 %v1708, %v1796
        %v1798 = vpop.f32.mrf.mxu0
        %v1799 = vadd.f32 %v1710, %v1798
        %1800 = vmatmul.bf16.gmra.mxu0 %v1299
        %v1801 = vpop.f32.mrf.mxu0
        %v1802 = vadd.f32 %v1713, %v1801
        %v1803 = vpop.f32.mrf.mxu0
        %v1804 = vadd.f32 %v1715, %v1803
        %1805 = vmatmul.bf16.gmra.mxu0 %v1301
        %v1806 = vpop.f32.mrf.mxu0
        %v1807 = vadd.f32 %v1718, %v1806
        %v1808 = vpop.f32.mrf.mxu0
        %v1809 = vadd.f32 %v1720, %v1808
        %1810 = vmatmul.bf16.gmra.mxu0 %v1303
        %v1811 = vpop.f32.mrf.mxu0
        %v1812 = vadd.f32 %v1723, %v1811
        %v1813 = vpop.f32.mrf.mxu0
        %v1814 = vadd.f32 %v1725, %v1813
        %1815 = vmatmul.bf16.gmra.mxu0 %v1305
        %v1816 = vpop.f32.mrf.mxu0
        %v1817 = vadd.f32 %v1728, %v1816
        %v1818 = vpop.f32.mrf.mxu0
        %v1819 = vadd.f32 %v1730, %v1818
        %1820 = vmatmul.bf16.gmra.mxu0 %v1307
        %v1821 = vpop.f32.mrf.mxu0
        %v1822 = vadd.f32 %v1733, %v1821
        %v1823 = vpop.f32.mrf.mxu0
        %v1824 = vadd.f32 %v1735, %v1823
        %1825 = vmatmul.bf16.gmra.mxu0 %v1309
        %v1826 = vpop.f32.mrf.mxu0
        %v1827 = vadd.f32 %v1738, %v1826
        %v1828 = vpop.f32.mrf.mxu0
        %v1829 = vadd.f32 %v1740, %v1828
        %1830 = vmatmul.bf16.gmra.mxu0 %v1311
        %v1831 = vpop.f32.mrf.mxu0
        %v1832 = vadd.f32 %v1743, %v1831
        %v1833 = vpop.f32.mrf.mxu0
        %v1834 = vadd.f32 %v1745, %v1833
        %1835 = vmatmul.bf16.gmra.mxu0 %v1313
        %v1836 = vpop.f32.mrf.mxu0
        %v1837 = vadd.f32 %v1748, %v1836
        %v1838 = vpop.f32.mrf.mxu0
        %v1839 = vadd.f32 %v1750, %v1838
        %1840 = vmatmul.bf16.gmra.mxu0 %v1315
        %v1841 = vpop.f32.mrf.mxu0
        %v1842 = vadd.f32 %v1753, %v1841
        %v1843 = vpop.f32.mrf.mxu0
        %v1844 = vadd.f32 %v1755, %v1843
        %1845 = vmatmul.bf16.gmra.mxu0 %v1317
        %v1846 = vpop.f32.mrf.mxu0
        %v1847 = vadd.f32 %v1758, %v1846
        %v1848 = vpop.f32.mrf.mxu0
        %v1849 = vadd.f32 %v1760, %v1848
        %1850 = vmatmul.bf16.gmra.mxu0 %v1319
        %v1851 = vpop.f32.mrf.mxu0
        %v1852 = vadd.f32 %v1763, %v1851
        %v1853 = vpop.f32.mrf.mxu0
        %v1854 = vadd.f32 %v1765, %v1853
        %1855 = vmatmul.bf16.gmra.mxu0 %v1321
        %v1856 = vpop.f32.mrf.mxu0
        %v1857 = vadd.f32 %v1768, %v1856
        %v1858 = vpop.f32.mrf.mxu0
        %v1859 = vadd.f32 %v1770, %v1858
        %1860 = vmatmul.bf16.gmra.mxu0 %v1323
        %v1861 = vpop.f32.mrf.mxu0
        %v1862 = vadd.f32 %v1773, %v1861
        %v1863 = vpop.f32.mrf.mxu0
        %v1864 = vadd.f32 %v1775, %v1863
        %1865 = vmatmul.bf16.gmra.mxu0 %v1325
        %v1866 = vpop.f32.mrf.mxu0
        %v1867 = vadd.f32 %v1778, %v1866
        %v1868 = vpop.f32.mrf.mxu0
        %v1869 = vadd.f32 %v1780, %v1868
        %1870 = vmatmul.bf16.gmra.mxu0 %v1327
        %v1871 = vpop.f32.mrf.mxu0
        %v1872 = vadd.f32 %v1783, %v1871
        %v1873 = vpop.f32.mrf.mxu0
        %v1874 = vadd.f32 %v1785, %v1873
        %1875 = vdwg.mxu0
        %v1876 = vadd.f32 %v1619, %v1621
        %v1877 = vadd.f32 %v1876, %v1624
        %v1878 = vadd.f32 %v1877, %v1626
        %v1879 = vadd.f32 %v1878, %v1629
        %v1880 = vadd.f32 %v1879, %v1631
        %v1881 = vadd.f32 %v1880, %v1634
        %v1882 = vadd.f32 %v1881, %v1636
        %v1883 = vadd.f32 %v1882, %v1639
        %v1884 = vadd.f32 %v1883, %v1641
        %v1885 = vadd.f32 %v1884, %v1644
        %v1886 = vadd.f32 %v1885, %v1646
        %v1887 = vadd.f32 %v1886, %v1649
        %v1888 = vadd.f32 %v1887, %v1651
        %v1889 = vadd.f32 %v1888, %v1654
        %v1890 = vadd.f32 %v1889, %v1656
        %v1891 = vadd.f32 %v1890, %v1659
        %v1892 = vadd.f32 %v1891, %v1661
        %v1893 = vadd.f32 %v1892, %v1664
        %v1894 = vadd.f32 %v1893, %v1666
        %v1895 = vadd.f32 %v1894, %v1669
        %v1896 = vadd.f32 %v1895, %v1671
        %v1897 = vadd.f32 %v1896, %v1674
        %v1898 = vadd.f32 %v1897, %v1676
        %v1899 = vadd.f32 %v1898, %v1679
        %v1900 = vadd.f32 %v1899, %v1681
        %v1901 = vadd.f32 %v1900, %v1684
        %v1902 = vadd.f32 %v1901, %v1686
        %v1903 = vadd.f32 %v1902, %v1689
        %v1904 = vadd.f32 %v1903, %v1691
        %v1905 = vadd.f32 %v1904, %v1694
        %v1906 = vadd.f32 %v1905, %v1696
        %v1907 = vrot.slane %v1906, 4
        %v1908 = vadd.f32 %v1906, %v1907
        %v1909 = vrot.slane %v1908, 2
        %v1910 = vadd.f32 %v1908, %v1909
        %v1911 = vrot.slane %v1910, 1
        %v1912 = vadd.f32 %v1910, %v1911
        %v1913 = vadd.f32 %v1797, %v1799
        %v1914 = vadd.f32 %v1913, %v1802
        %v1915 = vadd.f32 %v1914, %v1804
        %v1916 = vadd.f32 %v1915, %v1807
        %v1917 = vadd.f32 %v1916, %v1809
        %v1918 = vadd.f32 %v1917, %v1812
        %v1919 = vadd.f32 %v1918, %v1814
        %v1920 = vadd.f32 %v1919, %v1817
        %v1921 = vadd.f32 %v1920, %v1819
        %v1922 = vadd.f32 %v1921, %v1822
        %v1923 = vadd.f32 %v1922, %v1824
        %v1924 = vadd.f32 %v1923, %v1827
        %v1925 = vadd.f32 %v1924, %v1829
        %v1926 = vadd.f32 %v1925, %v1832
        %v1927 = vadd.f32 %v1926, %v1834
        %v1928 = vadd.f32 %v1927, %v1837
        %v1929 = vadd.f32 %v1928, %v1839
        %v1930 = vadd.f32 %v1929, %v1842
        %v1931 = vadd.f32 %v1930, %v1844
        %v1932 = vadd.f32 %v1931, %v1847
        %v1933 = vadd.f32 %v1932, %v1849
        %v1934 = vadd.f32 %v1933, %v1852
        %v1935 = vadd.f32 %v1934, %v1854
        %v1936 = vadd.f32 %v1935, %v1857
        %v1937 = vadd.f32 %v1936, %v1859
        %v1938 = vadd.f32 %v1937, %v1862
        %v1939 = vadd.f32 %v1938, %v1864
        %v1940 = vadd.f32 %v1939, %v1867
        %v1941 = vadd.f32 %v1940, %v1869
        %v1942 = vadd.f32 %v1941, %v1872
        %v1943 = vadd.f32 %v1942, %v1874
        %v1944 = vrot.slane %v1943, 4
        %v1945 = vadd.f32 %v1943, %v1944
        %v1946 = vrot.slane %v1945, 2
        %v1947 = vadd.f32 %v1945, %v1946
        %v1948 = vrot.slane %v1947, 1
        %v1949 = vadd.f32 %v1947, %v1948
        %v1950 = vmul.f32 %v1619, %v1619
        %v1951 = vmul.f32 %v1797, %v1797
        %v1952 = vmul.f32 %v1621, %v1621
        %v1953 = vmul.f32 %v1799, %v1799
        %v1954 = vmul.f32 %v1624, %v1624
        %v1955 = vmul.f32 %v1802, %v1802
        %v1956 = vmul.f32 %v1626, %v1626
        %v1957 = vmul.f32 %v1804, %v1804
        %v1958 = vmul.f32 %v1629, %v1629
        %v1959 = vmul.f32 %v1807, %v1807
        %v1960 = vmul.f32 %v1631, %v1631
        %v1961 = vmul.f32 %v1809, %v1809
        %v1962 = vmul.f32 %v1634, %v1634
        %v1963 = vmul.f32 %v1812, %v1812
        %v1964 = vmul.f32 %v1636, %v1636
        %v1965 = vmul.f32 %v1814, %v1814
        %v1966 = vmul.f32 %v1639, %v1639
        %v1967 = vmul.f32 %v1817, %v1817
        %v1968 = vmul.f32 %v1641, %v1641
        %v1969 = vmul.f32 %v1819, %v1819
        %v1970 = vmul.f32 %v1644, %v1644
        %v1971 = vmul.f32 %v1822, %v1822
        %v1972 = vmul.f32 %v1646, %v1646
        %v1973 = vmul.f32 %v1824, %v1824
        %v1974 = vmul.f32 %v1649, %v1649
        %v1975 = vmul.f32 %v1827, %v1827
        %v1976 = vmul.f32 %v1651, %v1651
        %v1977 = vmul.f32 %v1829, %v1829
        %v1978 = vmul.f32 %v1654, %v1654
        %v1979 = vmul.f32 %v1832, %v1832
        %v1980 = vmul.f32 %v1656, %v1656
        %v1981 = vmul.f32 %v1834, %v1834
        %v1982 = vmul.f32 %v1659, %v1659
        %v1983 = vmul.f32 %v1837, %v1837
        %v1984 = vmul.f32 %v1661, %v1661
        %v1985 = vmul.f32 %v1839, %v1839
        %v1986 = vmul.f32 %v1664, %v1664
        %v1987 = vmul.f32 %v1842, %v1842
        %v1988 = vmul.f32 %v1666, %v1666
        %v1989 = vmul.f32 %v1844, %v1844
        %v1990 = vmul.f32 %v1669, %v1669
        %v1991 = vmul.f32 %v1847, %v1847
        %v1992 = vmul.f32 %v1671, %v1671
        %v1993 = vmul.f32 %v1849, %v1849
        %v1994 = vmul.f32 %v1674, %v1674
        %v1995 = vmul.f32 %v1852, %v1852
        %v1996 = vmul.f32 %v1676, %v1676
        %v1997 = vmul.f32 %v1854, %v1854
        %v1998 = vmul.f32 %v1679, %v1679
        %v1999 = vmul.f32 %v1857, %v1857
        %v2000 = vmul.f32 %v1681, %v1681
        %v2001 = vmul.f32 %v1859, %v1859
        %v2002 = vmul.f32 %v1684, %v1684
        %v2003 = vmul.f32 %v1862, %v1862
        %v2004 = vmul.f32 %v1686, %v1686
        %v2005 = vmul.f32 %v1864, %v1864
        %v2006 = vmul.f32 %v1689, %v1689
        %v2007 = vmul.f32 %v1867, %v1867
        %v2008 = vmul.f32 %v1691, %v1691
        %v2009 = vmul.f32 %v1869, %v1869
        %v2010 = vmul.f32 %v1694, %v1694
        %v2011 = vmul.f32 %v1872, %v1872
        %v2012 = vmul.f32 %v1696, %v1696
        %v2013 = vmul.f32 %v1874, %v1874
        %v2014 = vadd.f32 %v1950, %v1952
        %v2015 = vadd.f32 %v2014, %v1954
        %v2016 = vadd.f32 %v2015, %v1956
        %v2017 = vadd.f32 %v2016, %v1958
        %v2018 = vadd.f32 %v2017, %v1960
        %v2019 = vadd.f32 %v2018, %v1962
        %v2020 = vadd.f32 %v2019, %v1964
        %v2021 = vadd.f32 %v2020, %v1966
        %v2022 = vadd.f32 %v2021, %v1968
        %v2023 = vadd.f32 %v2022, %v1970
        %v2024 = vadd.f32 %v2023, %v1972
        %v2025 = vadd.f32 %v2024, %v1974
        %v2026 = vadd.f32 %v2025, %v1976
        %v2027 = vadd.f32 %v2026, %v1978
        %v2028 = vadd.f32 %v2027, %v1980
        %v2029 = vadd.f32 %v2028, %v1982
        %v2030 = vadd.f32 %v2029, %v1984
        %v2031 = vadd.f32 %v2030, %v1986
        %v2032 = vadd.f32 %v2031, %v1988
        %v2033 = vadd.f32 %v2032, %v1990
        %v2034 = vadd.f32 %v2033, %v1992
        %v2035 = vadd.f32 %v2034, %v1994
        %v2036 = vadd.f32 %v2035, %v1996
        %v2037 = vadd.f32 %v2036, %v1998
        %v2038 = vadd.f32 %v2037, %v2000
        %v2039 = vadd.f32 %v2038, %v2002
        %v2040 = vadd.f32 %v2039, %v2004
        %v2041 = vadd.f32 %v2040, %v2006
        %v2042 = vadd.f32 %v2041, %v2008
        %v2043 = vadd.f32 %v2042, %v2010
        %v2044 = vadd.f32 %v2043, %v2012
        %v2045 = vrot.slane %v2044, 4
        %v2046 = vadd.f32 %v2044, %v2045
        %v2047 = vrot.slane %v2046, 2
        %v2048 = vadd.f32 %v2046, %v2047
        %v2049 = vrot.slane %v2048, 1
        %v2050 = vadd.f32 %v2048, %v2049
        %v2051 = vadd.f32 %v1951, %v1953
        %v2052 = vadd.f32 %v2051, %v1955
        %v2053 = vadd.f32 %v2052, %v1957
        %v2054 = vadd.f32 %v2053, %v1959
        %v2055 = vadd.f32 %v2054, %v1961
        %v2056 = vadd.f32 %v2055, %v1963
        %v2057 = vadd.f32 %v2056, %v1965
        %v2058 = vadd.f32 %v2057, %v1967
        %v2059 = vadd.f32 %v2058, %v1969
        %v2060 = vadd.f32 %v2059, %v1971
        %v2061 = vadd.f32 %v2060, %v1973
        %v2062 = vadd.f32 %v2061, %v1975
        %v2063 = vadd.f32 %v2062, %v1977
        %v2064 = vadd.f32 %v2063, %v1979
        %v2065 = vadd.f32 %v2064, %v1981
        %v2066 = vadd.f32 %v2065, %v1983
        %v2067 = vadd.f32 %v2066, %v1985
        %v2068 = vadd.f32 %v2067, %v1987
        %v2069 = vadd.f32 %v2068, %v1989
        %v2070 = vadd.f32 %v2069, %v1991
        %v2071 = vadd.f32 %v2070, %v1993
        %v2072 = vadd.f32 %v2071, %v1995
        %v2073 = vadd.f32 %v2072, %v1997
        %v2074 = vadd.f32 %v2073, %v1999
        %v2075 = vadd.f32 %v2074, %v2001
        %v2076 = vadd.f32 %v2075, %v2003
        %v2077 = vadd.f32 %v2076, %v2005
        %v2078 = vadd.f32 %v2077, %v2007
        %v2079 = vadd.f32 %v2078, %v2009
        %v2080 = vadd.f32 %v2079, %v2011
        %v2081 = vadd.f32 %v2080, %v2013
        %v2082 = vrot.slane %v2081, 4
        %v2083 = vadd.f32 %v2081, %v2082
        %v2084 = vrot.slane %v2083, 2
        %v2085 = vadd.f32 %v2083, %v2084
        %v2086 = vrot.slane %v2085, 1
        %v2087 = vadd.f32 %v2085, %v2086
        %v2088 = vmul.f32 %v1912, 0.00390625
        %v2089 = vmul.f32 %v1949, 0.00390625
        %v2090 = vmul.f32 %v2050, 0.00390625
        %v2091 = vmul.f32 %v2087, 0.00390625
        %v2092 = vmul.f32 %v2088, %v2088
        %v2093 = vmul.f32 %v2089, %v2089
        %v2094 = vsub.f32 %v2090, %v2092
        %v2095 = vsub.f32 %v2091, %v2093
        %v2096 = vmax.f32 %v2094, 0.0
        %v2097 = vmax.f32 %v2095, 0.0
        %v2098 = vadd.f32 %v2096, 1e-05
        %v2099 = vadd.f32 %v2097, 1e-05
        %v2100 = vrsqrt.pop %v2098
        %v2101 = vmul.f32 %v2100, %v2098
        %v2102 = vmul.f32 %v2101, %v2100
        %v2103 = vmul.f32 0.5, %v2102
        %v2104 = vsub.f32 1.5, %v2103
        %v2105 = vmul.f32 %v2100, %v2104
        %vm2106 = vweird.f32 %v2098
        %vm2107 = vweird.f32 %v2100
        %vm2108 = vmor %vm2106, %vm2107
        %v2109 = vsel %vm2108, %v2100, %v2105
        %v2110 = vrsqrt.pop %v2099
        %v2111 = vmul.f32 %v2110, %v2099
        %v2112 = vmul.f32 %v2111, %v2110
        %v2113 = vmul.f32 0.5, %v2112
        %v2114 = vsub.f32 1.5, %v2113
        %v2115 = vmul.f32 %v2110, %v2114
        %vm2116 = vweird.f32 %v2099
        %vm2117 = vweird.f32 %v2110
        %vm2118 = vmor %vm2116, %vm2117
        %v2119 = vsel %vm2118, %v2110, %v2115
        %v2120 = vmul.f32 %v440, %v2109
        %v2121 = vmul.f32 %v441, %v2119
        %v2122 = vmul.f32 %v2088, %v2120
        %v2123 = vmul.f32 %v2089, %v2121
        %v2126 = vrot.slane %v2122, 4
        %v2127 = vrot.slane %v2123, 4
        %v2130 = vsub.f32 %v440, %v2126
        %v2131 = vsub.f32 %v441, %v2127
        %v2132 = vperm.slane %v2120, 1
        %v2133 = vperm.slane %v2121, 1
        %v2134 = vmul.f32 %v1619, %v2132
        %v2135 = vmul.f32 %v1797, %v2133
        %v2136 = vmul.f32 %v1621, %v2132
        %v2137 = vmul.f32 %v1799, %v2133
        %v2138 = vmul.f32 %v1624, %v2132
        %v2139 = vmul.f32 %v1802, %v2133
        %v2140 = vmul.f32 %v1626, %v2132
        %v2141 = vmul.f32 %v1804, %v2133
        %v2142 = vmul.f32 %v1629, %v2132
        %v2143 = vmul.f32 %v1807, %v2133
        %v2144 = vmul.f32 %v1631, %v2132
        %v2145 = vmul.f32 %v1809, %v2133
        %v2146 = vmul.f32 %v1634, %v2132
        %v2147 = vmul.f32 %v1812, %v2133
        %v2148 = vmul.f32 %v1636, %v2132
        %v2149 = vmul.f32 %v1814, %v2133
        %v2150 = vmul.f32 %v1639, %v2132
        %v2151 = vmul.f32 %v1817, %v2133
        %v2152 = vmul.f32 %v1641, %v2132
        %v2153 = vmul.f32 %v1819, %v2133
        %v2154 = vmul.f32 %v1644, %v2132
        %v2155 = vmul.f32 %v1822, %v2133
        %v2156 = vmul.f32 %v1646, %v2132
        %v2157 = vmul.f32 %v1824, %v2133
        %v2158 = vmul.f32 %v1649, %v2132
        %v2159 = vmul.f32 %v1827, %v2133
        %v2160 = vmul.f32 %v1651, %v2132
        %v2161 = vmul.f32 %v1829, %v2133
        %v2162 = vmul.f32 %v1654, %v2132
        %v2163 = vmul.f32 %v1832, %v2133
        %v2164 = vmul.f32 %v1656, %v2132
        %v2165 = vmul.f32 %v1834, %v2133
        %v2166 = vmul.f32 %v1659, %v2132
        %v2167 = vmul.f32 %v1837, %v2133
        %v2168 = vmul.f32 %v1661, %v2132
        %v2169 = vmul.f32 %v1839, %v2133
        %v2170 = vmul.f32 %v1664, %v2132
        %v2171 = vmul.f32 %v1842, %v2133
        %v2172 = vmul.f32 %v1666, %v2132
        %v2173 = vmul.f32 %v1844, %v2133
        %v2174 = vmul.f32 %v1669, %v2132
        %v2175 = vmul.f32 %v1847, %v2133
        %v2176 = vmul.f32 %v1671, %v2132
        %v2177 = vmul.f32 %v1849, %v2133
        %v2178 = vmul.f32 %v1674, %v2132
        %v2179 = vmul.f32 %v1852, %v2133
        %v2180 = vmul.f32 %v1676, %v2132
        %v2181 = vmul.f32 %v1854, %v2133
        %v2182 = vmul.f32 %v1679, %v2132
        %v2183 = vmul.f32 %v1857, %v2133
        %v2184 = vmul.f32 %v1681, %v2132
        %v2185 = vmul.f32 %v1859, %v2133
        %v2186 = vmul.f32 %v1684, %v2132
        %v2187 = vmul.f32 %v1862, %v2133
        %v2188 = vmul.f32 %v1686, %v2132
        %v2189 = vmul.f32 %v1864, %v2133
        %v2190 = vmul.f32 %v1689, %v2132
        %v2191 = vmul.f32 %v1867, %v2133
        %v2192 = vmul.f32 %v1691, %v2132
        %v2193 = vmul.f32 %v1869, %v2133
        %v2194 = vmul.f32 %v1694, %v2132
        %v2195 = vmul.f32 %v1872, %v2133
        %v2196 = vmul.f32 %v1696, %v2132
        %v2197 = vmul.f32 %v1874, %v2133
        %v2198 = vperm.slane %v2130, 5
        %v2199 = vperm.slane %v2131, 5
        %v2200 = vadd.f32 %v2134, %v2198
        %v2201 = vadd.f32 %v2135, %v2199
        %v2202 = vadd.f32 %v2136, %v2198
        %v2203 = vadd.f32 %v2137, %v2199
        %v2204 = vadd.f32 %v2138, %v2198
        %v2205 = vadd.f32 %v2139, %v2199
        %v2206 = vadd.f32 %v2140, %v2198
        %v2207 = vadd.f32 %v2141, %v2199
        %v2208 = vadd.f32 %v2142, %v2198
        %v2209 = vadd.f32 %v2143, %v2199
        %v2210 = vadd.f32 %v2144, %v2198
        %v2211 = vadd.f32 %v2145, %v2199
        %v2212 = vadd.f32 %v2146, %v2198
        %v2213 = vadd.f32 %v2147, %v2199
        %v2214 = vadd.f32 %v2148, %v2198
        %v2215 = vadd.f32 %v2149, %v2199
        %v2216 = vadd.f32 %v2150, %v2198
        %v2217 = vadd.f32 %v2151, %v2199
        %v2218 = vadd.f32 %v2152, %v2198
        %v2219 = vadd.f32 %v2153, %v2199
        %v2220 = vadd.f32 %v2154, %v2198
        %v2221 = vadd.f32 %v2155, %v2199
        %v2222 = vadd.f32 %v2156, %v2198
        %v2223 = vadd.f32 %v2157, %v2199
        %v2224 = vadd.f32 %v2158, %v2198
        %v2225 = vadd.f32 %v2159, %v2199
        %v2226 = vadd.f32 %v2160, %v2198
        %v2227 = vadd.f32 %v2161, %v2199
        %v2228 = vadd.f32 %v2162, %v2198
        %v2229 = vadd.f32 %v2163, %v2199
        %v2230 = vadd.f32 %v2164, %v2198
        %v2231 = vadd.f32 %v2165, %v2199
        %v2232 = vadd.f32 %v2166, %v2198
        %v2233 = vadd.f32 %v2167, %v2199
        %v2234 = vadd.f32 %v2168, %v2198
        %v2235 = vadd.f32 %v2169, %v2199
        %v2236 = vadd.f32 %v2170, %v2198
        %v2237 = vadd.f32 %v2171, %v2199
        %v2238 = vadd.f32 %v2172, %v2198
        %v2239 = vadd.f32 %v2173, %v2199
        %v2240 = vadd.f32 %v2174, %v2198
        %v2241 = vadd.f32 %v2175, %v2199
        %v2242 = vadd.f32 %v2176, %v2198
        %v2243 = vadd.f32 %v2177, %v2199
        %v2244 = vadd.f32 %v2178, %v2198
        %v2245 = vadd.f32 %v2179, %v2199
        %v2246 = vadd.f32 %v2180, %v2198
        %v2247 = vadd.f32 %v2181, %v2199
        %v2248 = vadd.f32 %v2182, %v2198
        %v2249 = vadd.f32 %v2183, %v2199
        %v2250 = vadd.f32 %v2184, %v2198
        %v2251 = vadd.f32 %v2185, %v2199
        %v2252 = vadd.f32 %v2186, %v2198
        %v2253 = vadd.f32 %v2187, %v2199
        %v2254 = vadd.f32 %v2188, %v2198
        %v2255 = vadd.f32 %v2189, %v2199
        %v2256 = vadd.f32 %v2190, %v2198
        %v2257 = vadd.f32 %v2191, %v2199
        %v2258 = vadd.f32 %v2192, %v2198
        %v2259 = vadd.f32 %v2193, %v2199
        %v2260 = vadd.f32 %v2194, %v2198
        %v2261 = vadd.f32 %v2195, %v2199
        %v2262 = vadd.f32 %v2196, %v2198
        %v2263 = vadd.f32 %v2197, %v2199
        %v2264 = vmax.f32 %v2200, 0.0
        %v2265 = vmax.f32 %v2201, 0.0
        %v2266 = vmax.f32 %v2202, 0.0
        %v2267 = vmax.f32 %v2203, 0.0
        %v2268 = vmax.f32 %v2204, 0.0
        %v2269 = vmax.f32 %v2205, 0.0
        %v2270 = vmax.f32 %v2206, 0.0
        %v2271 = vmax.f32 %v2207, 0.0
        %v2272 = vmax.f32 %v2208, 0.0
        %v2273 = vmax.f32 %v2209, 0.0
        %v2274 = vmax.f32 %v2210, 0.0
        %v2275 = vmax.f32 %v2211, 0.0
        %v2276 = vmax.f32 %v2212, 0.0
        %v2277 = vmax.f32 %v2213, 0.0
        %v2278 = vmax.f32 %v2214, 0.0
        %v2279 = vmax.f32 %v2215, 0.0
        %v2280 = vmax.f32 %v2216, 0.0
        %v2281 = vmax.f32 %v2217, 0.0
        %v2282 = vmax.f32 %v2218, 0.0
        %v2283 = vmax.f32 %v2219, 0.0
        %v2284 = vmax.f32 %v2220, 0.0
        %v2285 = vmax.f32 %v2221, 0.0
        %v2286 = vmax.f32 %v2222, 0.0
        %v2287 = vmax.f32 %v2223, 0.0
        %v2288 = vmax.f32 %v2224, 0.0
        %v2289 = vmax.f32 %v2225, 0.0
        %v2290 = vmax.f32 %v2226, 0.0
        %v2291 = vmax.f32 %v2227, 0.0
        %v2292 = vmax.f32 %v2228, 0.0
        %v2293 = vmax.f32 %v2229, 0.0
        %v2294 = vmax.f32 %v2230, 0.0
        %v2295 = vmax.f32 %v2231, 0.0
        %v2296 = vmax.f32 %v2232, 0.0
        %v2297 = vmax.f32 %v2233, 0.0
        %v2298 = vmax.f32 %v2234, 0.0
        %v2299 = vmax.f32 %v2235, 0.0
        %v2300 = vmax.f32 %v2236, 0.0
        %v2301 = vmax.f32 %v2237, 0.0
        %v2302 = vmax.f32 %v2238, 0.0
        %v2303 = vmax.f32 %v2239, 0.0
        %v2304 = vmax.f32 %v2240, 0.0
        %v2305 = vmax.f32 %v2241, 0.0
        %v2306 = vmax.f32 %v2242, 0.0
        %v2307 = vmax.f32 %v2243, 0.0
        %v2308 = vmax.f32 %v2244, 0.0
        %v2309 = vmax.f32 %v2245, 0.0
        %v2310 = vmax.f32 %v2246, 0.0
        %v2311 = vmax.f32 %v2247, 0.0
        %v2312 = vmax.f32 %v2248, 0.0
        %v2313 = vmax.f32 %v2249, 0.0
        %v2314 = vmax.f32 %v2250, 0.0
        %v2315 = vmax.f32 %v2251, 0.0
        %v2316 = vmax.f32 %v2252, 0.0
        %v2317 = vmax.f32 %v2253, 0.0
        %v2318 = vmax.f32 %v2254, 0.0
        %v2319 = vmax.f32 %v2255, 0.0
        %v2320 = vmax.f32 %v2256, 0.0
        %v2321 = vmax.f32 %v2257, 0.0
        %v2322 = vmax.f32 %v2258, 0.0
        %v2323 = vmax.f32 %v2259, 0.0
        %v2324 = vmax.f32 %v2260, 0.0
        %v2325 = vmax.f32 %v2261, 0.0
        %v2326 = vmax.f32 %v2262, 0.0
        %v2327 = vmax.f32 %v2263, 0.0
        %v2328 = vpack.c.bf16 %v2266, %v2264
        %v2329 = vpack.c.bf16 %v2267, %v2265
        %v2330 = vpack.c.bf16 %v2270, %v2268
        %v2331 = vpack.c.bf16 %v2271, %v2269
        %v2332 = vpack.c.bf16 %v2274, %v2272
        %v2333 = vpack.c.bf16 %v2275, %v2273
        %v2334 = vpack.c.bf16 %v2278, %v2276
        %v2335 = vpack.c.bf16 %v2279, %v2277
        %v2336 = vpack.c.bf16 %v2282, %v2280
        %v2337 = vpack.c.bf16 %v2283, %v2281
        %v2338 = vpack.c.bf16 %v2286, %v2284
        %v2339 = vpack.c.bf16 %v2287, %v2285
        %v2340 = vpack.c.bf16 %v2290, %v2288
        %v2341 = vpack.c.bf16 %v2291, %v2289
        %v2342 = vpack.c.bf16 %v2294, %v2292
        %v2343 = vpack.c.bf16 %v2295, %v2293
        %v2344 = vpack.c.bf16 %v2298, %v2296
        %v2345 = vpack.c.bf16 %v2299, %v2297
        %v2346 = vpack.c.bf16 %v2302, %v2300
        %v2347 = vpack.c.bf16 %v2303, %v2301
        %v2348 = vpack.c.bf16 %v2306, %v2304
        %v2349 = vpack.c.bf16 %v2307, %v2305
        %v2350 = vpack.c.bf16 %v2310, %v2308
        %v2351 = vpack.c.bf16 %v2311, %v2309
        %v2352 = vpack.c.bf16 %v2314, %v2312
        %v2353 = vpack.c.bf16 %v2315, %v2313
        %v2354 = vpack.c.bf16 %v2318, %v2316
        %v2355 = vpack.c.bf16 %v2319, %v2317
        %v2356 = vpack.c.bf16 %v2322, %v2320
        %v2357 = vpack.c.bf16 %v2323, %v2321
        %v2358 = vpack.c.bf16 %v2326, %v2324
        %v2359 = vpack.c.bf16 %v2327, %v2325
        %v2360 = vld [vmem:[#allocation8] sm:$0xff]
        %v2361 = vld [vmem:[#allocation8 + $0x8] sm:$0xff]
        %v2362 = vld [vmem:[#allocation8 + $0x10] sm:$0xff]
        %v2363 = vld [vmem:[#allocation8 + $0x18] sm:$0xff]
        %v2364 = vld [vmem:[#allocation8 + $0x20] sm:$0xff]
        %v2365 = vld [vmem:[#allocation8 + $0x28] sm:$0xff]
        %v2366 = vld [vmem:[#allocation8 + $0x30] sm:$0xff]
        %v2367 = vld [vmem:[#allocation8 + $0x38] sm:$0xff]
        %v2368 = vld [vmem:[#allocation8 + $0x40] sm:$0xff]
        %v2369 = vld [vmem:[#allocation8 + $0x48] sm:$0xff]
        %v2370 = vld [vmem:[#allocation8 + $0x50] sm:$0xff]
        %v2371 = vld [vmem:[#allocation8 + $0x58] sm:$0xff]
        %v2372 = vld [vmem:[#allocation8 + $0x60] sm:$0xff]
        %v2373 = vld [vmem:[#allocation8 + $0x68] sm:$0xff]
        %v2374 = vld [vmem:[#allocation8 + $0x70] sm:$0xff]
        %v2375 = vld [vmem:[#allocation8 + $0x78] sm:$0xff]
        %v2376 = vld [vmem:[#allocation8 + $0x80] sm:$0xff]
        %v2377 = vld [vmem:[#allocation8 + $0x88] sm:$0xff]
        %v2378 = vld [vmem:[#allocation8 + $0x90] sm:$0xff]
        %v2379 = vld [vmem:[#allocation8 + $0x98] sm:$0xff]
        %v2380 = vld [vmem:[#allocation8 + $0xa0] sm:$0xff]
        %v2381 = vld [vmem:[#allocation8 + $0xa8] sm:$0xff]
        %v2382 = vld [vmem:[#allocation8 + $0xb0] sm:$0xff]
        %v2383 = vld [vmem:[#allocation8 + $0xb8] sm:$0xff]
        %v2384 = vld [vmem:[#allocation8 + $0xc0] sm:$0xff]
        %v2385 = vld [vmem:[#allocation8 + $0xc8] sm:$0xff]
        %v2386 = vld [vmem:[#allocation8 + $0xd0] sm:$0xff]
        %v2387 = vld [vmem:[#allocation8 + $0xd8] sm:$0xff]
        %v2388 = vld [vmem:[#allocation8 + $0xe0] sm:$0xff]
        %v2389 = vld [vmem:[#allocation8 + $0xe8] sm:$0xff]
        %v2390 = vld [vmem:[#allocation8 + $0xf0] sm:$0xff]
        %v2391 = vld [vmem:[#allocation8 + $0xf8] sm:$0xff]
        %v2424 = vunpack.c.l.b16 %v2360
        %v2425 = vunpack.c.h.b16 %v2360
        %v2426 = vunpack.c.l.b16 %v2361
        %v2427 = vunpack.c.h.b16 %v2361
        %v2428 = vunpack.c.l.b16 %v2362
        %v2429 = vunpack.c.h.b16 %v2362
        %v2430 = vunpack.c.l.b16 %v2363
        %v2431 = vunpack.c.h.b16 %v2363
        %v2432 = vunpack.c.l.b16 %v2364
        %v2433 = vunpack.c.h.b16 %v2364
        %v2434 = vunpack.c.l.b16 %v2365
        %v2435 = vunpack.c.h.b16 %v2365
        %v2436 = vunpack.c.l.b16 %v2366
        %v2437 = vunpack.c.h.b16 %v2366
        %v2438 = vunpack.c.l.b16 %v2367
        %v2439 = vunpack.c.h.b16 %v2367
        %v2440 = vunpack.c.l.b16 %v2368
        %v2441 = vunpack.c.h.b16 %v2368
        %v2442 = vunpack.c.l.b16 %v2369
        %v2443 = vunpack.c.h.b16 %v2369
        %v2444 = vunpack.c.l.b16 %v2370
        %v2445 = vunpack.c.h.b16 %v2370
        %v2446 = vunpack.c.l.b16 %v2371
        %v2447 = vunpack.c.h.b16 %v2371
        %v2448 = vunpack.c.l.b16 %v2372
        %v2449 = vunpack.c.h.b16 %v2372
        %v2450 = vunpack.c.l.b16 %v2373
        %v2451 = vunpack.c.h.b16 %v2373
        %v2452 = vunpack.c.l.b16 %v2374
        %v2453 = vunpack.c.h.b16 %v2374
        %v2454 = vunpack.c.l.b16 %v2375
        %v2455 = vunpack.c.h.b16 %v2375
        %v2456 = vunpack.c.l.b16 %v2376
        %v2457 = vunpack.c.h.b16 %v2376
        %v2458 = vunpack.c.l.b16 %v2377
        %v2459 = vunpack.c.h.b16 %v2377
        %v2460 = vunpack.c.l.b16 %v2378
        %v2461 = vunpack.c.h.b16 %v2378
        %v2462 = vunpack.c.l.b16 %v2379
        %v2463 = vunpack.c.h.b16 %v2379
        %v2464 = vunpack.c.l.b16 %v2380
        %v2465 = vunpack.c.h.b16 %v2380
        %v2466 = vunpack.c.l.b16 %v2381
        %v2467 = vunpack.c.h.b16 %v2381
        %v2468 = vunpack.c.l.b16 %v2382
        %v2469 = vunpack.c.h.b16 %v2382
        %v2470 = vunpack.c.l.b16 %v2383
        %v2471 = vunpack.c.h.b16 %v2383
        %v2472 = vunpack.c.l.b16 %v2384
        %v2473 = vunpack.c.h.b16 %v2384
        %v2474 = vunpack.c.l.b16 %v2385
        %v2475 = vunpack.c.h.b16 %v2385
        %v2476 = vunpack.c.l.b16 %v2386
        %v2477 = vunpack.c.h.b16 %v2386
        %v2478 = vunpack.c.l.b16 %v2387
        %v2479 = vunpack.c.h.b16 %v2387
        %v2480 = vunpack.c.l.b16 %v2388
        %v2481 = vunpack.c.h.b16 %v2388
        %v2482 = vunpack.c.l.b16 %v2389
        %v2483 = vunpack.c.h.b16 %v2389
        %v2484 = vunpack.c.l.b16 %v2390
        %v2485 = vunpack.c.h.b16 %v2390
        %v2486 = vunpack.c.l.b16 %v2391
        %v2487 = vunpack.c.h.b16 %v2391
        %v2488 = vpack.c.b16 %v2426, %v2424
        %v2489 = vpack.c.b16 %v2427, %v2425
        %v2490 = vpack.c.b16 %v2430, %v2428
        %v2491 = vpack.c.b16 %v2431, %v2429
        %v2492 = vpack.c.b16 %v2434, %v2432
        %v2493 = vpack.c.b16 %v2435, %v2433
        %v2494 = vpack.c.b16 %v2438, %v2436
        %v2495 = vpack.c.b16 %v2439, %v2437
        %v2496 = vpack.c.b16 %v2442, %v2440
        %v2497 = vpack.c.b16 %v2443, %v2441
        %v2498 = vpack.c.b16 %v2446, %v2444
        %v2499 = vpack.c.b16 %v2447, %v2445
        %v2500 = vpack.c.b16 %v2450, %v2448
        %v2501 = vpack.c.b16 %v2451, %v2449
        %v2502 = vpack.c.b16 %v2454, %v2452
        %v2503 = vpack.c.b16 %v2455, %v2453
        %v2504 = vpack.c.b16 %v2458, %v2456
        %v2505 = vpack.c.b16 %v2459, %v2457
        %v2506 = vpack.c.b16 %v2462, %v2460
        %v2507 = vpack.c.b16 %v2463, %v2461
        %v2508 = vpack.c.b16 %v2466, %v2464
        %v2509 = vpack.c.b16 %v2467, %v2465
        %v2510 = vpack.c.b16 %v2470, %v2468
        %v2511 = vpack.c.b16 %v2471, %v2469
        %v2512 = vpack.c.b16 %v2474, %v2472
        %v2513 = vpack.c.b16 %v2475, %v2473
        %v2514 = vpack.c.b16 %v2478, %v2476
        %v2515 = vpack.c.b16 %v2479, %v2477
        %v2516 = vpack.c.b16 %v2482, %v2480
        %v2517 = vpack.c.b16 %v2483, %v2481
        %v2518 = vpack.c.b16 %v2486, %v2484
        %v2519 = vpack.c.b16 %v2487, %v2485
        %2552 = vmatpush.bf16.msra.mxu0 %v2502
        %2553 = vmatpush.bf16.msra.mxu0 %v2500
        %2554 = vmatpush.bf16.msra.mxu0 %v2498
        %2555 = vmatpush.bf16.msra.mxu0 %v2496
        %2556 = vmatpush.bf16.msra.mxu0 %v2494
        %2557 = vmatpush.bf16.msra.mxu0 %v2492
        %2558 = vmatpush.bf16.msra.mxu0 %v2490
        %2559 = vmatpush.bf16.msra.mxu0 %v2488
        %2560 = vmatmul.bf16.gmra.mxu0 %v2328
        %v2561 = vpop.f32.mrf.mxu0
        %v2562 = vadd.f32 0.0, %v2561
        %v2563 = vpop.f32.mrf.mxu0
        %v2564 = vadd.f32 0.0, %v2563
        %2565 = vmatmul.bf16.gmra.mxu0 %v2330
        %v2566 = vpop.f32.mrf.mxu0
        %v2567 = vadd.f32 0.0, %v2566
        %v2568 = vpop.f32.mrf.mxu0
        %v2569 = vadd.f32 0.0, %v2568
        %2570 = vmatmul.bf16.gmra.mxu0 %v2332
        %v2571 = vpop.f32.mrf.mxu0
        %v2572 = vadd.f32 0.0, %v2571
        %v2573 = vpop.f32.mrf.mxu0
        %v2574 = vadd.f32 0.0, %v2573
        %2575 = vmatmul.bf16.gmra.mxu0 %v2334
        %v2576 = vpop.f32.mrf.mxu0
        %v2577 = vadd.f32 0.0, %v2576
        %v2578 = vpop.f32.mrf.mxu0
        %v2579 = vadd.f32 0.0, %v2578
        %2580 = vmatmul.bf16.gmra.mxu0 %v2336
        %v2581 = vpop.f32.mrf.mxu0
        %v2582 = vadd.f32 0.0, %v2581
        %v2583 = vpop.f32.mrf.mxu0
        %v2584 = vadd.f32 0.0, %v2583
        %2585 = vmatmul.bf16.gmra.mxu0 %v2338
        %v2586 = vpop.f32.mrf.mxu0
        %v2587 = vadd.f32 0.0, %v2586
        %v2588 = vpop.f32.mrf.mxu0
        %v2589 = vadd.f32 0.0, %v2588
        %2590 = vmatmul.bf16.gmra.mxu0 %v2340
        %v2591 = vpop.f32.mrf.mxu0
        %v2592 = vadd.f32 0.0, %v2591
        %v2593 = vpop.f32.mrf.mxu0
        %v2594 = vadd.f32 0.0, %v2593
        %2595 = vmatmul.bf16.gmra.mxu0 %v2342
        %v2596 = vpop.f32.mrf.mxu0
        %v2597 = vadd.f32 0.0, %v2596
        %v2598 = vpop.f32.mrf.mxu0
        %v2599 = vadd.f32 0.0, %v2598
        %2600 = vmatmul.bf16.gmra.mxu0 %v2344
        %v2601 = vpop.f32.mrf.mxu0
        %v2602 = vadd.f32 0.0, %v2601
        %v2603 = vpop.f32.mrf.mxu0
        %v2604 = vadd.f32 0.0, %v2603
        %2605 = vmatmul.bf16.gmra.mxu0 %v2346
        %v2606 = vpop.f32.mrf.mxu0
        %v2607 = vadd.f32 0.0, %v2606
        %v2608 = vpop.f32.mrf.mxu0
        %v2609 = vadd.f32 0.0, %v2608
        %2610 = vmatmul.bf16.gmra.mxu0 %v2348
        %v2611 = vpop.f32.mrf.mxu0
        %v2612 = vadd.f32 0.0, %v2611
        %v2613 = vpop.f32.mrf.mxu0
        %v2614 = vadd.f32 0.0, %v2613
        %2615 = vmatmul.bf16.gmra.mxu0 %v2350
        %v2616 = vpop.f32.mrf.mxu0
        %v2617 = vadd.f32 0.0, %v2616
        %v2618 = vpop.f32.mrf.mxu0
        %v2619 = vadd.f32 0.0, %v2618
        %2620 = vmatmul.bf16.gmra.mxu0 %v2352
        %v2621 = vpop.f32.mrf.mxu0
        %v2622 = vadd.f32 0.0, %v2621
        %v2623 = vpop.f32.mrf.mxu0
        %v2624 = vadd.f32 0.0, %v2623
        %2625 = vmatmul.bf16.gmra.mxu0 %v2354
        %v2626 = vpop.f32.mrf.mxu0
        %v2627 = vadd.f32 0.0, %v2626
        %v2628 = vpop.f32.mrf.mxu0
        %v2629 = vadd.f32 0.0, %v2628
        %2630 = vmatmul.bf16.gmra.mxu0 %v2356
        %v2631 = vpop.f32.mrf.mxu0
        %v2632 = vadd.f32 0.0, %v2631
        %v2633 = vpop.f32.mrf.mxu0
        %v2634 = vadd.f32 0.0, %v2633
        %2635 = vmatmul.bf16.gmra.mxu0 %v2358
        %v2636 = vpop.f32.mrf.mxu0
        %v2637 = vadd.f32 0.0, %v2636
        %v2638 = vpop.f32.mrf.mxu0
        %v2639 = vadd.f32 0.0, %v2638
        %2640 = vdwg.mxu0
        %2641 = vmatpush.bf16.msra.mxu0 %v2518
        %2642 = vmatpush.bf16.msra.mxu0 %v2516
        %2643 = vmatpush.bf16.msra.mxu0 %v2514
        %2644 = vmatpush.bf16.msra.mxu0 %v2512
        %2645 = vmatpush.bf16.msra.mxu0 %v2510
        %2646 = vmatpush.bf16.msra.mxu0 %v2508
        %2647 = vmatpush.bf16.msra.mxu0 %v2506
        %2648 = vmatpush.bf16.msra.mxu0 %v2504
        %2649 = vmatmul.bf16.gmra.mxu0 %v2329
        %v2650 = vpop.f32.mrf.mxu0
        %v2651 = vadd.f32 %v2562, %v2650
        %v2652 = vpop.f32.mrf.mxu0
        %v2653 = vadd.f32 %v2564, %v2652
        %2654 = vmatmul.bf16.gmra.mxu0 %v2331
        %v2655 = vpop.f32.mrf.mxu0
        %v2656 = vadd.f32 %v2567, %v2655
        %v2657 = vpop.f32.mrf.mxu0
        %v2658 = vadd.f32 %v2569, %v2657
        %2659 = vmatmul.bf16.gmra.mxu0 %v2333
        %v2660 = vpop.f32.mrf.mxu0
        %v2661 = vadd.f32 %v2572, %v2660
        %v2662 = vpop.f32.mrf.mxu0
        %v2663 = vadd.f32 %v2574, %v2662
        %2664 = vmatmul.bf16.gmra.mxu0 %v2335
        %v2665 = vpop.f32.mrf.mxu0
        %v2666 = vadd.f32 %v2577, %v2665
        %v2667 = vpop.f32.mrf.mxu0
        %v2668 = vadd.f32 %v2579, %v2667
        %2669 = vmatmul.bf16.gmra.mxu0 %v2337
        %v2670 = vpop.f32.mrf.mxu0
        %v2671 = vadd.f32 %v2582, %v2670
        %v2672 = vpop.f32.mrf.mxu0
        %v2673 = vadd.f32 %v2584, %v2672
        %2674 = vmatmul.bf16.gmra.mxu0 %v2339
        %v2675 = vpop.f32.mrf.mxu0
        %v2676 = vadd.f32 %v2587, %v2675
        %v2677 = vpop.f32.mrf.mxu0
        %v2678 = vadd.f32 %v2589, %v2677
        %2679 = vmatmul.bf16.gmra.mxu0 %v2341
        %v2680 = vpop.f32.mrf.mxu0
        %v2681 = vadd.f32 %v2592, %v2680
        %v2682 = vpop.f32.mrf.mxu0
        %v2683 = vadd.f32 %v2594, %v2682
        %2684 = vmatmul.bf16.gmra.mxu0 %v2343
        %v2685 = vpop.f32.mrf.mxu0
        %v2686 = vadd.f32 %v2597, %v2685
        %v2687 = vpop.f32.mrf.mxu0
        %v2688 = vadd.f32 %v2599, %v2687
        %2689 = vmatmul.bf16.gmra.mxu0 %v2345
        %v2690 = vpop.f32.mrf.mxu0
        %v2691 = vadd.f32 %v2602, %v2690
        %v2692 = vpop.f32.mrf.mxu0
        %v2693 = vadd.f32 %v2604, %v2692
        %2694 = vmatmul.bf16.gmra.mxu0 %v2347
        %v2695 = vpop.f32.mrf.mxu0
        %v2696 = vadd.f32 %v2607, %v2695
        %v2697 = vpop.f32.mrf.mxu0
        %v2698 = vadd.f32 %v2609, %v2697
        %2699 = vmatmul.bf16.gmra.mxu0 %v2349
        %v2700 = vpop.f32.mrf.mxu0
        %v2701 = vadd.f32 %v2612, %v2700
        %v2702 = vpop.f32.mrf.mxu0
        %v2703 = vadd.f32 %v2614, %v2702
        %2704 = vmatmul.bf16.gmra.mxu0 %v2351
        %v2705 = vpop.f32.mrf.mxu0
        %v2706 = vadd.f32 %v2617, %v2705
        %v2707 = vpop.f32.mrf.mxu0
        %v2708 = vadd.f32 %v2619, %v2707
        %2709 = vmatmul.bf16.gmra.mxu0 %v2353
        %v2710 = vpop.f32.mrf.mxu0
        %v2711 = vadd.f32 %v2622, %v2710
        %v2712 = vpop.f32.mrf.mxu0
        %v2713 = vadd.f32 %v2624, %v2712
        %2714 = vmatmul.bf16.gmra.mxu0 %v2355
        %v2715 = vpop.f32.mrf.mxu0
        %v2716 = vadd.f32 %v2627, %v2715
        %v2717 = vpop.f32.mrf.mxu0
        %v2718 = vadd.f32 %v2629, %v2717
        %2719 = vmatmul.bf16.gmra.mxu0 %v2357
        %v2720 = vpop.f32.mrf.mxu0
        %v2721 = vadd.f32 %v2632, %v2720
        %v2722 = vpop.f32.mrf.mxu0
        %v2723 = vadd.f32 %v2634, %v2722
        %2724 = vmatmul.bf16.gmra.mxu0 %v2359
        %v2725 = vpop.f32.mrf.mxu0
        %v2726 = vadd.f32 %v2637, %v2725
        %v2727 = vpop.f32.mrf.mxu0
        %v2728 = vadd.f32 %v2639, %v2727
        %2729 = vdwg.mxu0
        %2730 = vmatpush.bf16.msra.mxu0 %v2503
        %2731 = vmatpush.bf16.msra.mxu0 %v2501
        %2732 = vmatpush.bf16.msra.mxu0 %v2499
        %2733 = vmatpush.bf16.msra.mxu0 %v2497
        %2734 = vmatpush.bf16.msra.mxu0 %v2495
        %2735 = vmatpush.bf16.msra.mxu0 %v2493
        %2736 = vmatpush.bf16.msra.mxu0 %v2491
        %2737 = vmatpush.bf16.msra.mxu0 %v2489
        %2738 = vmatmul.bf16.gmra.mxu0 %v2328
        %v2739 = vpop.f32.mrf.mxu0
        %v2740 = vadd.f32 0.0, %v2739
        %v2741 = vpop.f32.mrf.mxu0
        %v2742 = vadd.f32 0.0, %v2741
        %2743 = vmatmul.bf16.gmra.mxu0 %v2330
        %v2744 = vpop.f32.mrf.mxu0
        %v2745 = vadd.f32 0.0, %v2744
        %v2746 = vpop.f32.mrf.mxu0
        %v2747 = vadd.f32 0.0, %v2746
        %2748 = vmatmul.bf16.gmra.mxu0 %v2332
        %v2749 = vpop.f32.mrf.mxu0
        %v2750 = vadd.f32 0.0, %v2749
        %v2751 = vpop.f32.mrf.mxu0
        %v2752 = vadd.f32 0.0, %v2751
        %2753 = vmatmul.bf16.gmra.mxu0 %v2334
        %v2754 = vpop.f32.mrf.mxu0
        %v2755 = vadd.f32 0.0, %v2754
        %v2756 = vpop.f32.mrf.mxu0
        %v2757 = vadd.f32 0.0, %v2756
        %2758 = vmatmul.bf16.gmra.mxu0 %v2336
        %v2759 = vpop.f32.mrf.mxu0
        %v2760 = vadd.f32 0.0, %v2759
        %v2761 = vpop.f32.mrf.mxu0
        %v2762 = vadd.f32 0.0, %v2761
        %2763 = vmatmul.bf16.gmra.mxu0 %v2338
        %v2764 = vpop.f32.mrf.mxu0
        %v2765 = vadd.f32 0.0, %v2764
        %v2766 = vpop.f32.mrf.mxu0
        %v2767 = vadd.f32 0.0, %v2766
        %2768 = vmatmul.bf16.gmra.mxu0 %v2340
        %v2769 = vpop.f32.mrf.mxu0
        %v2770 = vadd.f32 0.0, %v2769
        %v2771 = vpop.f32.mrf.mxu0
        %v2772 = vadd.f32 0.0, %v2771
        %2773 = vmatmul.bf16.gmra.mxu0 %v2342
        %v2774 = vpop.f32.mrf.mxu0
        %v2775 = vadd.f32 0.0, %v2774
        %v2776 = vpop.f32.mrf.mxu0
        %v2777 = vadd.f32 0.0, %v2776
        %2778 = vmatmul.bf16.gmra.mxu0 %v2344
        %v2779 = vpop.f32.mrf.mxu0
        %v2780 = vadd.f32 0.0, %v2779
        %v2781 = vpop.f32.mrf.mxu0
        %v2782 = vadd.f32 0.0, %v2781
        %2783 = vmatmul.bf16.gmra.mxu0 %v2346
        %v2784 = vpop.f32.mrf.mxu0
        %v2785 = vadd.f32 0.0, %v2784
        %v2786 = vpop.f32.mrf.mxu0
        %v2787 = vadd.f32 0.0, %v2786
        %2788 = vmatmul.bf16.gmra.mxu0 %v2348
        %v2789 = vpop.f32.mrf.mxu0
        %v2790 = vadd.f32 0.0, %v2789
        %v2791 = vpop.f32.mrf.mxu0
        %v2792 = vadd.f32 0.0, %v2791
        %2793 = vmatmul.bf16.gmra.mxu0 %v2350
        %v2794 = vpop.f32.mrf.mxu0
        %v2795 = vadd.f32 0.0, %v2794
        %v2796 = vpop.f32.mrf.mxu0
        %v2797 = vadd.f32 0.0, %v2796
        %2798 = vmatmul.bf16.gmra.mxu0 %v2352
        %v2799 = vpop.f32.mrf.mxu0
        %v2800 = vadd.f32 0.0, %v2799
        %v2801 = vpop.f32.mrf.mxu0
        %v2802 = vadd.f32 0.0, %v2801
        %2803 = vmatmul.bf16.gmra.mxu0 %v2354
        %v2804 = vpop.f32.mrf.mxu0
        %v2805 = vadd.f32 0.0, %v2804
        %v2806 = vpop.f32.mrf.mxu0
        %v2807 = vadd.f32 0.0, %v2806
        %2808 = vmatmul.bf16.gmra.mxu0 %v2356
        %v2809 = vpop.f32.mrf.mxu0
        %v2810 = vadd.f32 0.0, %v2809
        %v2811 = vpop.f32.mrf.mxu0
        %v2812 = vadd.f32 0.0, %v2811
        %2813 = vmatmul.bf16.gmra.mxu0 %v2358
        %v2814 = vpop.f32.mrf.mxu0
        %v2815 = vadd.f32 0.0, %v2814
        %v2816 = vpop.f32.mrf.mxu0
        %v2817 = vadd.f32 0.0, %v2816
        %2818 = vdwg.mxu0
        %2819 = vmatpush.bf16.msra.mxu0 %v2519
        %2820 = vmatpush.bf16.msra.mxu0 %v2517
        %2821 = vmatpush.bf16.msra.mxu0 %v2515
        %2822 = vmatpush.bf16.msra.mxu0 %v2513
        %2823 = vmatpush.bf16.msra.mxu0 %v2511
        %2824 = vmatpush.bf16.msra.mxu0 %v2509
        %2825 = vmatpush.bf16.msra.mxu0 %v2507
        %2826 = vmatpush.bf16.msra.mxu0 %v2505
        %2827 = vmatmul.bf16.gmra.mxu0 %v2329
        %v2828 = vpop.f32.mrf.mxu0
        %v2829 = vadd.f32 %v2740, %v2828
        %v2830 = vpop.f32.mrf.mxu0
        %v2831 = vadd.f32 %v2742, %v2830
        %2832 = vmatmul.bf16.gmra.mxu0 %v2331
        %v2833 = vpop.f32.mrf.mxu0
        %v2834 = vadd.f32 %v2745, %v2833
        %v2835 = vpop.f32.mrf.mxu0
        %v2836 = vadd.f32 %v2747, %v2835
        %2837 = vmatmul.bf16.gmra.mxu0 %v2333
        %v2838 = vpop.f32.mrf.mxu0
        %v2839 = vadd.f32 %v2750, %v2838
        %v2840 = vpop.f32.mrf.mxu0
        %v2841 = vadd.f32 %v2752, %v2840
        %2842 = vmatmul.bf16.gmra.mxu0 %v2335
        %v2843 = vpop.f32.mrf.mxu0
        %v2844 = vadd.f32 %v2755, %v2843
        %v2845 = vpop.f32.mrf.mxu0
        %v2846 = vadd.f32 %v2757, %v2845
        %2847 = vmatmul.bf16.gmra.mxu0 %v2337
        %v2848 = vpop.f32.mrf.mxu0
        %v2849 = vadd.f32 %v2760, %v2848
        %v2850 = vpop.f32.mrf.mxu0
        %v2851 = vadd.f32 %v2762, %v2850
        %2852 = vmatmul.bf16.gmra.mxu0 %v2339
        %v2853 = vpop.f32.mrf.mxu0
        %v2854 = vadd.f32 %v2765, %v2853
        %v2855 = vpop.f32.mrf.mxu0
        %v2856 = vadd.f32 %v2767, %v2855
        %2857 = vmatmul.bf16.gmra.mxu0 %v2341
        %v2858 = vpop.f32.mrf.mxu0
        %v2859 = vadd.f32 %v2770, %v2858
        %v2860 = vpop.f32.mrf.mxu0
        %v2861 = vadd.f32 %v2772, %v2860
        %2862 = vmatmul.bf16.gmra.mxu0 %v2343
        %v2863 = vpop.f32.mrf.mxu0
        %v2864 = vadd.f32 %v2775, %v2863
        %v2865 = vpop.f32.mrf.mxu0
        %v2866 = vadd.f32 %v2777, %v2865
        %2867 = vmatmul.bf16.gmra.mxu0 %v2345
        %v2868 = vpop.f32.mrf.mxu0
        %v2869 = vadd.f32 %v2780, %v2868
        %v2870 = vpop.f32.mrf.mxu0
        %v2871 = vadd.f32 %v2782, %v2870
        %2872 = vmatmul.bf16.gmra.mxu0 %v2347
        %v2873 = vpop.f32.mrf.mxu0
        %v2874 = vadd.f32 %v2785, %v2873
        %v2875 = vpop.f32.mrf.mxu0
        %v2876 = vadd.f32 %v2787, %v2875
        %2877 = vmatmul.bf16.gmra.mxu0 %v2349
        %v2878 = vpop.f32.mrf.mxu0
        %v2879 = vadd.f32 %v2790, %v2878
        %v2880 = vpop.f32.mrf.mxu0
        %v2881 = vadd.f32 %v2792, %v2880
        %2882 = vmatmul.bf16.gmra.mxu0 %v2351
        %v2883 = vpop.f32.mrf.mxu0
        %v2884 = vadd.f32 %v2795, %v2883
        %v2885 = vpop.f32.mrf.mxu0
        %v2886 = vadd.f32 %v2797, %v2885
        %2887 = vmatmul.bf16.gmra.mxu0 %v2353
        %v2888 = vpop.f32.mrf.mxu0
        %v2889 = vadd.f32 %v2800, %v2888
        %v2890 = vpop.f32.mrf.mxu0
        %v2891 = vadd.f32 %v2802, %v2890
        %2892 = vmatmul.bf16.gmra.mxu0 %v2355
        %v2893 = vpop.f32.mrf.mxu0
        %v2894 = vadd.f32 %v2805, %v2893
        %v2895 = vpop.f32.mrf.mxu0
        %v2896 = vadd.f32 %v2807, %v2895
        %2897 = vmatmul.bf16.gmra.mxu0 %v2357
        %v2898 = vpop.f32.mrf.mxu0
        %v2899 = vadd.f32 %v2810, %v2898
        %v2900 = vpop.f32.mrf.mxu0
        %v2901 = vadd.f32 %v2812, %v2900
        %2902 = vmatmul.bf16.gmra.mxu0 %v2359
        %v2903 = vpop.f32.mrf.mxu0
        %v2904 = vadd.f32 %v2815, %v2903
        %v2905 = vpop.f32.mrf.mxu0
        %v2906 = vadd.f32 %v2817, %v2905
        %2907 = vdwg.mxu0
        %v2908 = vadd.f32 %v2651, %v2653
        %v2909 = vadd.f32 %v2908, %v2656
        %v2910 = vadd.f32 %v2909, %v2658
        %v2911 = vadd.f32 %v2910, %v2661
        %v2912 = vadd.f32 %v2911, %v2663
        %v2913 = vadd.f32 %v2912, %v2666
        %v2914 = vadd.f32 %v2913, %v2668
        %v2915 = vadd.f32 %v2914, %v2671
        %v2916 = vadd.f32 %v2915, %v2673
        %v2917 = vadd.f32 %v2916, %v2676
        %v2918 = vadd.f32 %v2917, %v2678
        %v2919 = vadd.f32 %v2918, %v2681
        %v2920 = vadd.f32 %v2919, %v2683
        %v2921 = vadd.f32 %v2920, %v2686
        %v2922 = vadd.f32 %v2921, %v2688
        %v2923 = vadd.f32 %v2922, %v2691
        %v2924 = vadd.f32 %v2923, %v2693
        %v2925 = vadd.f32 %v2924, %v2696
        %v2926 = vadd.f32 %v2925, %v2698
        %v2927 = vadd.f32 %v2926, %v2701
        %v2928 = vadd.f32 %v2927, %v2703
        %v2929 = vadd.f32 %v2928, %v2706
        %v2930 = vadd.f32 %v2929, %v2708
        %v2931 = vadd.f32 %v2930, %v2711
        %v2932 = vadd.f32 %v2931, %v2713
        %v2933 = vadd.f32 %v2932, %v2716
        %v2934 = vadd.f32 %v2933, %v2718
        %v2935 = vadd.f32 %v2934, %v2721
        %v2936 = vadd.f32 %v2935, %v2723
        %v2937 = vadd.f32 %v2936, %v2726
        %v2938 = vadd.f32 %v2937, %v2728
        %v2939 = vrot.slane %v2938, 4
        %v2940 = vadd.f32 %v2938, %v2939
        %v2941 = vrot.slane %v2940, 2
        %v2942 = vadd.f32 %v2940, %v2941
        %v2943 = vrot.slane %v2942, 1
        %v2944 = vadd.f32 %v2942, %v2943
        %v2945 = vadd.f32 %v2829, %v2831
        %v2946 = vadd.f32 %v2945, %v2834
        %v2947 = vadd.f32 %v2946, %v2836
        %v2948 = vadd.f32 %v2947, %v2839
        %v2949 = vadd.f32 %v2948, %v2841
        %v2950 = vadd.f32 %v2949, %v2844
        %v2951 = vadd.f32 %v2950, %v2846
        %v2952 = vadd.f32 %v2951, %v2849
        %v2953 = vadd.f32 %v2952, %v2851
        %v2954 = vadd.f32 %v2953, %v2854
        %v2955 = vadd.f32 %v2954, %v2856
        %v2956 = vadd.f32 %v2955, %v2859
        %v2957 = vadd.f32 %v2956, %v2861
        %v2958 = vadd.f32 %v2957, %v2864
        %v2959 = vadd.f32 %v2958, %v2866
        %v2960 = vadd.f32 %v2959, %v2869
        %v2961 = vadd.f32 %v2960, %v2871
        %v2962 = vadd.f32 %v2961, %v2874
        %v2963 = vadd.f32 %v2962, %v2876
        %v2964 = vadd.f32 %v2963, %v2879
        %v2965 = vadd.f32 %v2964, %v2881
        %v2966 = vadd.f32 %v2965, %v2884
        %v2967 = vadd.f32 %v2966, %v2886
        %v2968 = vadd.f32 %v2967, %v2889
        %v2969 = vadd.f32 %v2968, %v2891
        %v2970 = vadd.f32 %v2969, %v2894
        %v2971 = vadd.f32 %v2970, %v2896
        %v2972 = vadd.f32 %v2971, %v2899
        %v2973 = vadd.f32 %v2972, %v2901
        %v2974 = vadd.f32 %v2973, %v2904
        %v2975 = vadd.f32 %v2974, %v2906
        %v2976 = vrot.slane %v2975, 4
        %v2977 = vadd.f32 %v2975, %v2976
        %v2978 = vrot.slane %v2977, 2
        %v2979 = vadd.f32 %v2977, %v2978
        %v2980 = vrot.slane %v2979, 1
        %v2981 = vadd.f32 %v2979, %v2980
        %v2982 = vmul.f32 %v2651, %v2651
        %v2983 = vmul.f32 %v2829, %v2829
        %v2984 = vmul.f32 %v2653, %v2653
        %v2985 = vmul.f32 %v2831, %v2831
        %v2986 = vmul.f32 %v2656, %v2656
        %v2987 = vmul.f32 %v2834, %v2834
        %v2988 = vmul.f32 %v2658, %v2658
        %v2989 = vmul.f32 %v2836, %v2836
        %v2990 = vmul.f32 %v2661, %v2661
        %v2991 = vmul.f32 %v2839, %v2839
        %v2992 = vmul.f32 %v2663, %v2663
        %v2993 = vmul.f32 %v2841, %v2841
        %v2994 = vmul.f32 %v2666, %v2666
        %v2995 = vmul.f32 %v2844, %v2844
        %v2996 = vmul.f32 %v2668, %v2668
        %v2997 = vmul.f32 %v2846, %v2846
        %v2998 = vmul.f32 %v2671, %v2671
        %v2999 = vmul.f32 %v2849, %v2849
        %v3000 = vmul.f32 %v2673, %v2673
        %v3001 = vmul.f32 %v2851, %v2851
        %v3002 = vmul.f32 %v2676, %v2676
        %v3003 = vmul.f32 %v2854, %v2854
        %v3004 = vmul.f32 %v2678, %v2678
        %v3005 = vmul.f32 %v2856, %v2856
        %v3006 = vmul.f32 %v2681, %v2681
        %v3007 = vmul.f32 %v2859, %v2859
        %v3008 = vmul.f32 %v2683, %v2683
        %v3009 = vmul.f32 %v2861, %v2861
        %v3010 = vmul.f32 %v2686, %v2686
        %v3011 = vmul.f32 %v2864, %v2864
        %v3012 = vmul.f32 %v2688, %v2688
        %v3013 = vmul.f32 %v2866, %v2866
        %v3014 = vmul.f32 %v2691, %v2691
        %v3015 = vmul.f32 %v2869, %v2869
        %v3016 = vmul.f32 %v2693, %v2693
        %v3017 = vmul.f32 %v2871, %v2871
        %v3018 = vmul.f32 %v2696, %v2696
        %v3019 = vmul.f32 %v2874, %v2874
        %v3020 = vmul.f32 %v2698, %v2698
        %v3021 = vmul.f32 %v2876, %v2876
        %v3022 = vmul.f32 %v2701, %v2701
        %v3023 = vmul.f32 %v2879, %v2879
        %v3024 = vmul.f32 %v2703, %v2703
        %v3025 = vmul.f32 %v2881, %v2881
        %v3026 = vmul.f32 %v2706, %v2706
        %v3027 = vmul.f32 %v2884, %v2884
        %v3028 = vmul.f32 %v2708, %v2708
        %v3029 = vmul.f32 %v2886, %v2886
        %v3030 = vmul.f32 %v2711, %v2711
        %v3031 = vmul.f32 %v2889, %v2889
        %v3032 = vmul.f32 %v2713, %v2713
        %v3033 = vmul.f32 %v2891, %v2891
        %v3034 = vmul.f32 %v2716, %v2716
        %v3035 = vmul.f32 %v2894, %v2894
        %v3036 = vmul.f32 %v2718, %v2718
        %v3037 = vmul.f32 %v2896, %v2896
        %v3038 = vmul.f32 %v2721, %v2721
        %v3039 = vmul.f32 %v2899, %v2899
        %v3040 = vmul.f32 %v2723, %v2723
        %v3041 = vmul.f32 %v2901, %v2901
        %v3042 = vmul.f32 %v2726, %v2726
        %v3043 = vmul.f32 %v2904, %v2904
        %v3044 = vmul.f32 %v2728, %v2728
        %v3045 = vmul.f32 %v2906, %v2906
        %v3046 = vadd.f32 %v2982, %v2984
        %v3047 = vadd.f32 %v3046, %v2986
        %v3048 = vadd.f32 %v3047, %v2988
        %v3049 = vadd.f32 %v3048, %v2990
        %v3050 = vadd.f32 %v3049, %v2992
        %v3051 = vadd.f32 %v3050, %v2994
        %v3052 = vadd.f32 %v3051, %v2996
        %v3053 = vadd.f32 %v3052, %v2998
        %v3054 = vadd.f32 %v3053, %v3000
        %v3055 = vadd.f32 %v3054, %v3002
        %v3056 = vadd.f32 %v3055, %v3004
        %v3057 = vadd.f32 %v3056, %v3006
        %v3058 = vadd.f32 %v3057, %v3008
        %v3059 = vadd.f32 %v3058, %v3010
        %v3060 = vadd.f32 %v3059, %v3012
        %v3061 = vadd.f32 %v3060, %v3014
        %v3062 = vadd.f32 %v3061, %v3016
        %v3063 = vadd.f32 %v3062, %v3018
        %v3064 = vadd.f32 %v3063, %v3020
        %v3065 = vadd.f32 %v3064, %v3022
        %v3066 = vadd.f32 %v3065, %v3024
        %v3067 = vadd.f32 %v3066, %v3026
        %v3068 = vadd.f32 %v3067, %v3028
        %v3069 = vadd.f32 %v3068, %v3030
        %v3070 = vadd.f32 %v3069, %v3032
        %v3071 = vadd.f32 %v3070, %v3034
        %v3072 = vadd.f32 %v3071, %v3036
        %v3073 = vadd.f32 %v3072, %v3038
        %v3074 = vadd.f32 %v3073, %v3040
        %v3075 = vadd.f32 %v3074, %v3042
        %v3076 = vadd.f32 %v3075, %v3044
        %v3077 = vrot.slane %v3076, 4
        %v3078 = vadd.f32 %v3076, %v3077
        %v3079 = vrot.slane %v3078, 2
        %v3080 = vadd.f32 %v3078, %v3079
        %v3081 = vrot.slane %v3080, 1
        %v3082 = vadd.f32 %v3080, %v3081
        %v3083 = vadd.f32 %v2983, %v2985
        %v3084 = vadd.f32 %v3083, %v2987
        %v3085 = vadd.f32 %v3084, %v2989
        %v3086 = vadd.f32 %v3085, %v2991
        %v3087 = vadd.f32 %v3086, %v2993
        %v3088 = vadd.f32 %v3087, %v2995
        %v3089 = vadd.f32 %v3088, %v2997
        %v3090 = vadd.f32 %v3089, %v2999
        %v3091 = vadd.f32 %v3090, %v3001
        %v3092 = vadd.f32 %v3091, %v3003
        %v3093 = vadd.f32 %v3092, %v3005
        %v3094 = vadd.f32 %v3093, %v3007
        %v3095 = vadd.f32 %v3094, %v3009
        %v3096 = vadd.f32 %v3095, %v3011
        %v3097 = vadd.f32 %v3096, %v3013
        %v3098 = vadd.f32 %v3097, %v3015
        %v3099 = vadd.f32 %v3098, %v3017
        %v3100 = vadd.f32 %v3099, %v3019
        %v3101 = vadd.f32 %v3100, %v3021
        %v3102 = vadd.f32 %v3101, %v3023
        %v3103 = vadd.f32 %v3102, %v3025
        %v3104 = vadd.f32 %v3103, %v3027
        %v3105 = vadd.f32 %v3104, %v3029
        %v3106 = vadd.f32 %v3105, %v3031
        %v3107 = vadd.f32 %v3106, %v3033
        %v3108 = vadd.f32 %v3107, %v3035
        %v3109 = vadd.f32 %v3108, %v3037
        %v3110 = vadd.f32 %v3109, %v3039
        %v3111 = vadd.f32 %v3110, %v3041
        %v3112 = vadd.f32 %v3111, %v3043
        %v3113 = vadd.f32 %v3112, %v3045
        %v3114 = vrot.slane %v3113, 4
        %v3115 = vadd.f32 %v3113, %v3114
        %v3116 = vrot.slane %v3115, 2
        %v3117 = vadd.f32 %v3115, %v3116
        %v3118 = vrot.slane %v3117, 1
        %v3119 = vadd.f32 %v3117, %v3118
        %v3120 = vmul.f32 %v2944, 0.00390625
        %v3121 = vmul.f32 %v2981, 0.00390625
        %v3122 = vmul.f32 %v3082, 0.00390625
        %v3123 = vmul.f32 %v3119, 0.00390625
        %v3124 = vmul.f32 %v3120, %v3120
        %v3125 = vmul.f32 %v3121, %v3121
        %v3126 = vsub.f32 %v3122, %v3124
        %v3127 = vsub.f32 %v3123, %v3125
        %v3128 = vmax.f32 %v3126, 0.0
        %v3129 = vmax.f32 %v3127, 0.0
        %v3130 = vadd.f32 %v3128, 1e-05
        %v3131 = vadd.f32 %v3129, 1e-05
        %v3132 = vrsqrt.pop %v3130
        %v3133 = vmul.f32 %v3132, %v3130
        %v3134 = vmul.f32 %v3133, %v3132
        %v3135 = vmul.f32 0.5, %v3134
        %v3136 = vsub.f32 1.5, %v3135
        %v3137 = vmul.f32 %v3132, %v3136
        %vm3138 = vweird.f32 %v3130
        %vm3139 = vweird.f32 %v3132
        %vm3140 = vmor %vm3138, %vm3139
        %v3141 = vsel %vm3140, %v3132, %v3137
        %v3142 = vrsqrt.pop %v3131
        %v3143 = vmul.f32 %v3142, %v3131
        %v3144 = vmul.f32 %v3143, %v3142
        %v3145 = vmul.f32 0.5, %v3144
        %v3146 = vsub.f32 1.5, %v3145
        %v3147 = vmul.f32 %v3142, %v3146
        %vm3148 = vweird.f32 %v3131
        %vm3149 = vweird.f32 %v3142
        %vm3150 = vmor %vm3148, %vm3149
        %v3151 = vsel %vm3150, %v3142, %v3147
        %v3152 = vmul.f32 %v440, %v3141
        %v3153 = vmul.f32 %v441, %v3151
        %v3154 = vmul.f32 %v3120, %v3152
        %v3155 = vmul.f32 %v3121, %v3153
        %v3158 = vrot.slane %v3154, 4
        %v3159 = vrot.slane %v3155, 4
        %v3162 = vsub.f32 %v440, %v3158
        %v3163 = vsub.f32 %v441, %v3159
        %v3164 = vperm.slane %v3152, 2
        %v3165 = vperm.slane %v3153, 2
        %v3166 = vmul.f32 %v2651, %v3164
        %v3167 = vmul.f32 %v2829, %v3165
        %v3168 = vmul.f32 %v2653, %v3164
        %v3169 = vmul.f32 %v2831, %v3165
        %v3170 = vmul.f32 %v2656, %v3164
        %v3171 = vmul.f32 %v2834, %v3165
        %v3172 = vmul.f32 %v2658, %v3164
        %v3173 = vmul.f32 %v2836, %v3165
        %v3174 = vmul.f32 %v2661, %v3164
        %v3175 = vmul.f32 %v2839, %v3165
        %v3176 = vmul.f32 %v2663, %v3164
        %v3177 = vmul.f32 %v2841, %v3165
        %v3178 = vmul.f32 %v2666, %v3164
        %v3179 = vmul.f32 %v2844, %v3165
        %v3180 = vmul.f32 %v2668, %v3164
        %v3181 = vmul.f32 %v2846, %v3165
        %v3182 = vmul.f32 %v2671, %v3164
        %v3183 = vmul.f32 %v2849, %v3165
        %v3184 = vmul.f32 %v2673, %v3164
        %v3185 = vmul.f32 %v2851, %v3165
        %v3186 = vmul.f32 %v2676, %v3164
        %v3187 = vmul.f32 %v2854, %v3165
        %v3188 = vmul.f32 %v2678, %v3164
        %v3189 = vmul.f32 %v2856, %v3165
        %v3190 = vmul.f32 %v2681, %v3164
        %v3191 = vmul.f32 %v2859, %v3165
        %v3192 = vmul.f32 %v2683, %v3164
        %v3193 = vmul.f32 %v2861, %v3165
        %v3194 = vmul.f32 %v2686, %v3164
        %v3195 = vmul.f32 %v2864, %v3165
        %v3196 = vmul.f32 %v2688, %v3164
        %v3197 = vmul.f32 %v2866, %v3165
        %v3198 = vmul.f32 %v2691, %v3164
        %v3199 = vmul.f32 %v2869, %v3165
        %v3200 = vmul.f32 %v2693, %v3164
        %v3201 = vmul.f32 %v2871, %v3165
        %v3202 = vmul.f32 %v2696, %v3164
        %v3203 = vmul.f32 %v2874, %v3165
        %v3204 = vmul.f32 %v2698, %v3164
        %v3205 = vmul.f32 %v2876, %v3165
        %v3206 = vmul.f32 %v2701, %v3164
        %v3207 = vmul.f32 %v2879, %v3165
        %v3208 = vmul.f32 %v2703, %v3164
        %v3209 = vmul.f32 %v2881, %v3165
        %v3210 = vmul.f32 %v2706, %v3164
        %v3211 = vmul.f32 %v2884, %v3165
        %v3212 = vmul.f32 %v2708, %v3164
        %v3213 = vmul.f32 %v2886, %v3165
        %v3214 = vmul.f32 %v2711, %v3164
        %v3215 = vmul.f32 %v2889, %v3165
        %v3216 = vmul.f32 %v2713, %v3164
        %v3217 = vmul.f32 %v2891, %v3165
        %v3218 = vmul.f32 %v2716, %v3164
        %v3219 = vmul.f32 %v2894, %v3165
        %v3220 = vmul.f32 %v2718, %v3164
        %v3221 = vmul.f32 %v2896, %v3165
        %v3222 = vmul.f32 %v2721, %v3164
        %v3223 = vmul.f32 %v2899, %v3165
        %v3224 = vmul.f32 %v2723, %v3164
        %v3225 = vmul.f32 %v2901, %v3165
        %v3226 = vmul.f32 %v2726, %v3164
        %v3227 = vmul.f32 %v2904, %v3165
        %v3228 = vmul.f32 %v2728, %v3164
        %v3229 = vmul.f32 %v2906, %v3165
        %v3230 = vperm.slane %v3162, 6
        %v3231 = vperm.slane %v3163, 6
        %v3232 = vadd.f32 %v3166, %v3230
        %v3233 = vadd.f32 %v3167, %v3231
        %v3234 = vadd.f32 %v3168, %v3230
        %v3235 = vadd.f32 %v3169, %v3231
        %v3236 = vadd.f32 %v3170, %v3230
        %v3237 = vadd.f32 %v3171, %v3231
        %v3238 = vadd.f32 %v3172, %v3230
        %v3239 = vadd.f32 %v3173, %v3231
        %v3240 = vadd.f32 %v3174, %v3230
        %v3241 = vadd.f32 %v3175, %v3231
        %v3242 = vadd.f32 %v3176, %v3230
        %v3243 = vadd.f32 %v3177, %v3231
        %v3244 = vadd.f32 %v3178, %v3230
        %v3245 = vadd.f32 %v3179, %v3231
        %v3246 = vadd.f32 %v3180, %v3230
        %v3247 = vadd.f32 %v3181, %v3231
        %v3248 = vadd.f32 %v3182, %v3230
        %v3249 = vadd.f32 %v3183, %v3231
        %v3250 = vadd.f32 %v3184, %v3230
        %v3251 = vadd.f32 %v3185, %v3231
        %v3252 = vadd.f32 %v3186, %v3230
        %v3253 = vadd.f32 %v3187, %v3231
        %v3254 = vadd.f32 %v3188, %v3230
        %v3255 = vadd.f32 %v3189, %v3231
        %v3256 = vadd.f32 %v3190, %v3230
        %v3257 = vadd.f32 %v3191, %v3231
        %v3258 = vadd.f32 %v3192, %v3230
        %v3259 = vadd.f32 %v3193, %v3231
        %v3260 = vadd.f32 %v3194, %v3230
        %v3261 = vadd.f32 %v3195, %v3231
        %v3262 = vadd.f32 %v3196, %v3230
        %v3263 = vadd.f32 %v3197, %v3231
        %v3264 = vadd.f32 %v3198, %v3230
        %v3265 = vadd.f32 %v3199, %v3231
        %v3266 = vadd.f32 %v3200, %v3230
        %v3267 = vadd.f32 %v3201, %v3231
        %v3268 = vadd.f32 %v3202, %v3230
        %v3269 = vadd.f32 %v3203, %v3231
        %v3270 = vadd.f32 %v3204, %v3230
        %v3271 = vadd.f32 %v3205, %v3231
        %v3272 = vadd.f32 %v3206, %v3230
        %v3273 = vadd.f32 %v3207, %v3231
        %v3274 = vadd.f32 %v3208, %v3230
        %v3275 = vadd.f32 %v3209, %v3231
        %v3276 = vadd.f32 %v3210, %v3230
        %v3277 = vadd.f32 %v3211, %v3231
        %v3278 = vadd.f32 %v3212, %v3230
        %v3279 = vadd.f32 %v3213, %v3231
        %v3280 = vadd.f32 %v3214, %v3230
        %v3281 = vadd.f32 %v3215, %v3231
        %v3282 = vadd.f32 %v3216, %v3230
        %v3283 = vadd.f32 %v3217, %v3231
        %v3284 = vadd.f32 %v3218, %v3230
        %v3285 = vadd.f32 %v3219, %v3231
        %v3286 = vadd.f32 %v3220, %v3230
        %v3287 = vadd.f32 %v3221, %v3231
        %v3288 = vadd.f32 %v3222, %v3230
        %v3289 = vadd.f32 %v3223, %v3231
        %v3290 = vadd.f32 %v3224, %v3230
        %v3291 = vadd.f32 %v3225, %v3231
        %v3292 = vadd.f32 %v3226, %v3230
        %v3293 = vadd.f32 %v3227, %v3231
        %v3294 = vadd.f32 %v3228, %v3230
        %v3295 = vadd.f32 %v3229, %v3231
        %v3296 = vmax.f32 %v3232, 0.0
        %v3297 = vmax.f32 %v3233, 0.0
        %v3298 = vmax.f32 %v3234, 0.0
        %v3299 = vmax.f32 %v3235, 0.0
        %v3300 = vmax.f32 %v3236, 0.0
        %v3301 = vmax.f32 %v3237, 0.0
        %v3302 = vmax.f32 %v3238, 0.0
        %v3303 = vmax.f32 %v3239, 0.0
        %v3304 = vmax.f32 %v3240, 0.0
        %v3305 = vmax.f32 %v3241, 0.0
        %v3306 = vmax.f32 %v3242, 0.0
        %v3307 = vmax.f32 %v3243, 0.0
        %v3308 = vmax.f32 %v3244, 0.0
        %v3309 = vmax.f32 %v3245, 0.0
        %v3310 = vmax.f32 %v3246, 0.0
        %v3311 = vmax.f32 %v3247, 0.0
        %v3312 = vmax.f32 %v3248, 0.0
        %v3313 = vmax.f32 %v3249, 0.0
        %v3314 = vmax.f32 %v3250, 0.0
        %v3315 = vmax.f32 %v3251, 0.0
        %v3316 = vmax.f32 %v3252, 0.0
        %v3317 = vmax.f32 %v3253, 0.0
        %v3318 = vmax.f32 %v3254, 0.0
        %v3319 = vmax.f32 %v3255, 0.0
        %v3320 = vmax.f32 %v3256, 0.0
        %v3321 = vmax.f32 %v3257, 0.0
        %v3322 = vmax.f32 %v3258, 0.0
        %v3323 = vmax.f32 %v3259, 0.0
        %v3324 = vmax.f32 %v3260, 0.0
        %v3325 = vmax.f32 %v3261, 0.0
        %v3326 = vmax.f32 %v3262, 0.0
        %v3327 = vmax.f32 %v3263, 0.0
        %v3328 = vmax.f32 %v3264, 0.0
        %v3329 = vmax.f32 %v3265, 0.0
        %v3330 = vmax.f32 %v3266, 0.0
        %v3331 = vmax.f32 %v3267, 0.0
        %v3332 = vmax.f32 %v3268, 0.0
        %v3333 = vmax.f32 %v3269, 0.0
        %v3334 = vmax.f32 %v3270, 0.0
        %v3335 = vmax.f32 %v3271, 0.0
        %v3336 = vmax.f32 %v3272, 0.0
        %v3337 = vmax.f32 %v3273, 0.0
        %v3338 = vmax.f32 %v3274, 0.0
        %v3339 = vmax.f32 %v3275, 0.0
        %v3340 = vmax.f32 %v3276, 0.0
        %v3341 = vmax.f32 %v3277, 0.0
        %v3342 = vmax.f32 %v3278, 0.0
        %v3343 = vmax.f32 %v3279, 0.0
        %v3344 = vmax.f32 %v3280, 0.0
        %v3345 = vmax.f32 %v3281, 0.0
        %v3346 = vmax.f32 %v3282, 0.0
        %v3347 = vmax.f32 %v3283, 0.0
        %v3348 = vmax.f32 %v3284, 0.0
        %v3349 = vmax.f32 %v3285, 0.0
        %v3350 = vmax.f32 %v3286, 0.0
        %v3351 = vmax.f32 %v3287, 0.0
        %v3352 = vmax.f32 %v3288, 0.0
        %v3353 = vmax.f32 %v3289, 0.0
        %v3354 = vmax.f32 %v3290, 0.0
        %v3355 = vmax.f32 %v3291, 0.0
        %v3356 = vmax.f32 %v3292, 0.0
        %v3357 = vmax.f32 %v3293, 0.0
        %v3358 = vmax.f32 %v3294, 0.0
        %v3359 = vmax.f32 %v3295, 0.0
        %v3360 = vpack.c.bf16 %v3298, %v3296
        %v3361 = vpack.c.bf16 %v3299, %v3297
        %v3362 = vpack.c.bf16 %v3302, %v3300
        %v3363 = vpack.c.bf16 %v3303, %v3301
        %v3364 = vpack.c.bf16 %v3306, %v3304
        %v3365 = vpack.c.bf16 %v3307, %v3305
        %v3366 = vpack.c.bf16 %v3310, %v3308
        %v3367 = vpack.c.bf16 %v3311, %v3309
        %v3368 = vpack.c.bf16 %v3314, %v3312
        %v3369 = vpack.c.bf16 %v3315, %v3313
        %v3370 = vpack.c.bf16 %v3318, %v3316
        %v3371 = vpack.c.bf16 %v3319, %v3317
        %v3372 = vpack.c.bf16 %v3322, %v3320
        %v3373 = vpack.c.bf16 %v3323, %v3321
        %v3374 = vpack.c.bf16 %v3326, %v3324
        %v3375 = vpack.c.bf16 %v3327, %v3325
        %v3376 = vpack.c.bf16 %v3330, %v3328
        %v3377 = vpack.c.bf16 %v3331, %v3329
        %v3378 = vpack.c.bf16 %v3334, %v3332
        %v3379 = vpack.c.bf16 %v3335, %v3333
        %v3380 = vpack.c.bf16 %v3338, %v3336
        %v3381 = vpack.c.bf16 %v3339, %v3337
        %v3382 = vpack.c.bf16 %v3342, %v3340
        %v3383 = vpack.c.bf16 %v3343, %v3341
        %v3384 = vpack.c.bf16 %v3346, %v3344
        %v3385 = vpack.c.bf16 %v3347, %v3345
        %v3386 = vpack.c.bf16 %v3350, %v3348
        %v3387 = vpack.c.bf16 %v3351, %v3349
        %v3388 = vpack.c.bf16 %v3354, %v3352
        %v3389 = vpack.c.bf16 %v3355, %v3353
        %v3390 = vpack.c.bf16 %v3358, %v3356
        %v3391 = vpack.c.bf16 %v3359, %v3357
        %v3392 = vld [vmem:[#allocation10] sm:$0xff]
        %v3393 = vld [vmem:[#allocation10 + $0x8] sm:$0xff]
        %v3394 = vld [vmem:[#allocation10 + $0x10] sm:$0xff]
        %v3395 = vld [vmem:[#allocation10 + $0x18] sm:$0xff]
        %v3396 = vld [vmem:[#allocation10 + $0x20] sm:$0xff]
        %v3397 = vld [vmem:[#allocation10 + $0x28] sm:$0xff]
        %v3398 = vld [vmem:[#allocation10 + $0x30] sm:$0xff]
        %v3399 = vld [vmem:[#allocation10 + $0x38] sm:$0xff]
        %v3400 = vld [vmem:[#allocation10 + $0x40] sm:$0xff]
        %v3401 = vld [vmem:[#allocation10 + $0x48] sm:$0xff]
        %v3402 = vld [vmem:[#allocation10 + $0x50] sm:$0xff]
        %v3403 = vld [vmem:[#allocation10 + $0x58] sm:$0xff]
        %v3404 = vld [vmem:[#allocation10 + $0x60] sm:$0xff]
        %v3405 = vld [vmem:[#allocation10 + $0x68] sm:$0xff]
        %v3406 = vld [vmem:[#allocation10 + $0x70] sm:$0xff]
        %v3407 = vld [vmem:[#allocation10 + $0x78] sm:$0xff]
        %v3408 = vld [vmem:[#allocation10 + $0x80] sm:$0xff]
        %v3409 = vld [vmem:[#allocation10 + $0x88] sm:$0xff]
        %v3410 = vld [vmem:[#allocation10 + $0x90] sm:$0xff]
        %v3411 = vld [vmem:[#allocation10 + $0x98] sm:$0xff]
        %v3412 = vld [vmem:[#allocation10 + $0xa0] sm:$0xff]
        %v3413 = vld [vmem:[#allocation10 + $0xa8] sm:$0xff]
        %v3414 = vld [vmem:[#allocation10 + $0xb0] sm:$0xff]
        %v3415 = vld [vmem:[#allocation10 + $0xb8] sm:$0xff]
        %v3416 = vld [vmem:[#allocation10 + $0xc0] sm:$0xff]
        %v3417 = vld [vmem:[#allocation10 + $0xc8] sm:$0xff]
        %v3418 = vld [vmem:[#allocation10 + $0xd0] sm:$0xff]
        %v3419 = vld [vmem:[#allocation10 + $0xd8] sm:$0xff]
        %v3420 = vld [vmem:[#allocation10 + $0xe0] sm:$0xff]
        %v3421 = vld [vmem:[#allocation10 + $0xe8] sm:$0xff]
        %v3422 = vld [vmem:[#allocation10 + $0xf0] sm:$0xff]
        %v3423 = vld [vmem:[#allocation10 + $0xf8] sm:$0xff]
        %v3456 = vunpack.c.l.b16 %v3392
        %v3457 = vunpack.c.h.b16 %v3392
        %v3458 = vunpack.c.l.b16 %v3393
        %v3459 = vunpack.c.h.b16 %v3393
        %v3460 = vunpack.c.l.b16 %v3394
        %v3461 = vunpack.c.h.b16 %v3394
        %v3462 = vunpack.c.l.b16 %v3395
        %v3463 = vunpack.c.h.b16 %v3395
        %v3464 = vunpack.c.l.b16 %v3396
        %v3465 = vunpack.c.h.b16 %v3396
        %v3466 = vunpack.c.l.b16 %v3397
        %v3467 = vunpack.c.h.b16 %v3397
        %v3468 = vunpack.c.l.b16 %v3398
        %v3469 = vunpack.c.h.b16 %v3398
        %v3470 = vunpack.c.l.b16 %v3399
        %v3471 = vunpack.c.h.b16 %v3399
        %v3472 = vunpack.c.l.b16 %v3400
        %v3473 = vunpack.c.h.b16 %v3400
        %v3474 = vunpack.c.l.b16 %v3401
        %v3475 = vunpack.c.h.b16 %v3401
        %v3476 = vunpack.c.l.b16 %v3402
        %v3477 = vunpack.c.h.b16 %v3402
        %v3478 = vunpack.c.l.b16 %v3403
        %v3479 = vunpack.c.h.b16 %v3403
        %v3480 = vunpack.c.l.b16 %v3404
        %v3481 = vunpack.c.h.b16 %v3404
        %v3482 = vunpack.c.l.b16 %v3405
        %v3483 = vunpack.c.h.b16 %v3405
        %v3484 = vunpack.c.l.b16 %v3406
        %v3485 = vunpack.c.h.b16 %v3406
        %v3486 = vunpack.c.l.b16 %v3407
        %v3487 = vunpack.c.h.b16 %v3407
        %v3488 = vunpack.c.l.b16 %v3408
        %v3489 = vunpack.c.h.b16 %v3408
        %v3490 = vunpack.c.l.b16 %v3409
        %v3491 = vunpack.c.h.b16 %v3409
        %v3492 = vunpack.c.l.b16 %v3410
        %v3493 = vunpack.c.h.b16 %v3410
        %v3494 = vunpack.c.l.b16 %v3411
        %v3495 = vunpack.c.h.b16 %v3411
        %v3496 = vunpack.c.l.b16 %v3412
        %v3497 = vunpack.c.h.b16 %v3412
        %v3498 = vunpack.c.l.b16 %v3413
        %v3499 = vunpack.c.h.b16 %v3413
        %v3500 = vunpack.c.l.b16 %v3414
        %v3501 = vunpack.c.h.b16 %v3414
        %v3502 = vunpack.c.l.b16 %v3415
        %v3503 = vunpack.c.h.b16 %v3415
        %v3504 = vunpack.c.l.b16 %v3416
        %v3505 = vunpack.c.h.b16 %v3416
        %v3506 = vunpack.c.l.b16 %v3417
        %v3507 = vunpack.c.h.b16 %v3417
        %v3508 = vunpack.c.l.b16 %v3418
        %v3509 = vunpack.c.h.b16 %v3418
        %v3510 = vunpack.c.l.b16 %v3419
        %v3511 = vunpack.c.h.b16 %v3419
        %v3512 = vunpack.c.l.b16 %v3420
        %v3513 = vunpack.c.h.b16 %v3420
        %v3514 = vunpack.c.l.b16 %v3421
        %v3515 = vunpack.c.h.b16 %v3421
        %v3516 = vunpack.c.l.b16 %v3422
        %v3517 = vunpack.c.h.b16 %v3422
        %v3518 = vunpack.c.l.b16 %v3423
        %v3519 = vunpack.c.h.b16 %v3423
        %v3520 = vpack.c.b16 %v3458, %v3456
        %v3521 = vpack.c.b16 %v3459, %v3457
        %v3522 = vpack.c.b16 %v3462, %v3460
        %v3523 = vpack.c.b16 %v3463, %v3461
        %v3524 = vpack.c.b16 %v3466, %v3464
        %v3525 = vpack.c.b16 %v3467, %v3465
        %v3526 = vpack.c.b16 %v3470, %v3468
        %v3527 = vpack.c.b16 %v3471, %v3469
        %v3528 = vpack.c.b16 %v3474, %v3472
        %v3529 = vpack.c.b16 %v3475, %v3473
        %v3530 = vpack.c.b16 %v3478, %v3476
        %v3531 = vpack.c.b16 %v3479, %v3477
        %v3532 = vpack.c.b16 %v3482, %v3480
        %v3533 = vpack.c.b16 %v3483, %v3481
        %v3534 = vpack.c.b16 %v3486, %v3484
        %v3535 = vpack.c.b16 %v3487, %v3485
        %v3536 = vpack.c.b16 %v3490, %v3488
        %v3537 = vpack.c.b16 %v3491, %v3489
        %v3538 = vpack.c.b16 %v3494, %v3492
        %v3539 = vpack.c.b16 %v3495, %v3493
        %v3540 = vpack.c.b16 %v3498, %v3496
        %v3541 = vpack.c.b16 %v3499, %v3497
        %v3542 = vpack.c.b16 %v3502, %v3500
        %v3543 = vpack.c.b16 %v3503, %v3501
        %v3544 = vpack.c.b16 %v3506, %v3504
        %v3545 = vpack.c.b16 %v3507, %v3505
        %v3546 = vpack.c.b16 %v3510, %v3508
        %v3547 = vpack.c.b16 %v3511, %v3509
        %v3548 = vpack.c.b16 %v3514, %v3512
        %v3549 = vpack.c.b16 %v3515, %v3513
        %v3550 = vpack.c.b16 %v3518, %v3516
        %v3551 = vpack.c.b16 %v3519, %v3517
        %3584 = vmatpush.bf16.msra.mxu0 %v3534
        %3585 = vmatpush.bf16.msra.mxu0 %v3532
        %3586 = vmatpush.bf16.msra.mxu0 %v3530
        %3587 = vmatpush.bf16.msra.mxu0 %v3528
        %3588 = vmatpush.bf16.msra.mxu0 %v3526
        %3589 = vmatpush.bf16.msra.mxu0 %v3524
        %3590 = vmatpush.bf16.msra.mxu0 %v3522
        %3591 = vmatpush.bf16.msra.mxu0 %v3520
        %3592 = vmatmul.bf16.gmra.mxu0 %v3360
        %v3593 = vpop.f32.mrf.mxu0
        %v3594 = vadd.f32 0.0, %v3593
        %v3595 = vpop.f32.mrf.mxu0
        %v3596 = vadd.f32 0.0, %v3595
        %3597 = vmatmul.bf16.gmra.mxu0 %v3362
        %v3598 = vpop.f32.mrf.mxu0
        %v3599 = vadd.f32 0.0, %v3598
        %v3600 = vpop.f32.mrf.mxu0
        %v3601 = vadd.f32 0.0, %v3600
        %3602 = vmatmul.bf16.gmra.mxu0 %v3364
        %v3603 = vpop.f32.mrf.mxu0
        %v3604 = vadd.f32 0.0, %v3603
        %v3605 = vpop.f32.mrf.mxu0
        %v3606 = vadd.f32 0.0, %v3605
        %3607 = vmatmul.bf16.gmra.mxu0 %v3366
        %v3608 = vpop.f32.mrf.mxu0
        %v3609 = vadd.f32 0.0, %v3608
        %v3610 = vpop.f32.mrf.mxu0
        %v3611 = vadd.f32 0.0, %v3610
        %3612 = vmatmul.bf16.gmra.mxu0 %v3368
        %v3613 = vpop.f32.mrf.mxu0
        %v3614 = vadd.f32 0.0, %v3613
        %v3615 = vpop.f32.mrf.mxu0
        %v3616 = vadd.f32 0.0, %v3615
        %3617 = vmatmul.bf16.gmra.mxu0 %v3370
        %v3618 = vpop.f32.mrf.mxu0
        %v3619 = vadd.f32 0.0, %v3618
        %v3620 = vpop.f32.mrf.mxu0
        %v3621 = vadd.f32 0.0, %v3620
        %3622 = vmatmul.bf16.gmra.mxu0 %v3372
        %v3623 = vpop.f32.mrf.mxu0
        %v3624 = vadd.f32 0.0, %v3623
        %v3625 = vpop.f32.mrf.mxu0
        %v3626 = vadd.f32 0.0, %v3625
        %3627 = vmatmul.bf16.gmra.mxu0 %v3374
        %v3628 = vpop.f32.mrf.mxu0
        %v3629 = vadd.f32 0.0, %v3628
        %v3630 = vpop.f32.mrf.mxu0
        %v3631 = vadd.f32 0.0, %v3630
        %3632 = vmatmul.bf16.gmra.mxu0 %v3376
        %v3633 = vpop.f32.mrf.mxu0
        %v3634 = vadd.f32 0.0, %v3633
        %v3635 = vpop.f32.mrf.mxu0
        %v3636 = vadd.f32 0.0, %v3635
        %3637 = vmatmul.bf16.gmra.mxu0 %v3378
        %v3638 = vpop.f32.mrf.mxu0
        %v3639 = vadd.f32 0.0, %v3638
        %v3640 = vpop.f32.mrf.mxu0
        %v3641 = vadd.f32 0.0, %v3640
        %3642 = vmatmul.bf16.gmra.mxu0 %v3380
        %v3643 = vpop.f32.mrf.mxu0
        %v3644 = vadd.f32 0.0, %v3643
        %v3645 = vpop.f32.mrf.mxu0
        %v3646 = vadd.f32 0.0, %v3645
        %3647 = vmatmul.bf16.gmra.mxu0 %v3382
        %v3648 = vpop.f32.mrf.mxu0
        %v3649 = vadd.f32 0.0, %v3648
        %v3650 = vpop.f32.mrf.mxu0
        %v3651 = vadd.f32 0.0, %v3650
        %3652 = vmatmul.bf16.gmra.mxu0 %v3384
        %v3653 = vpop.f32.mrf.mxu0
        %v3654 = vadd.f32 0.0, %v3653
        %v3655 = vpop.f32.mrf.mxu0
        %v3656 = vadd.f32 0.0, %v3655
        %3657 = vmatmul.bf16.gmra.mxu0 %v3386
        %v3658 = vpop.f32.mrf.mxu0
        %v3659 = vadd.f32 0.0, %v3658
        %v3660 = vpop.f32.mrf.mxu0
        %v3661 = vadd.f32 0.0, %v3660
        %3662 = vmatmul.bf16.gmra.mxu0 %v3388
        %v3663 = vpop.f32.mrf.mxu0
        %v3664 = vadd.f32 0.0, %v3663
        %v3665 = vpop.f32.mrf.mxu0
        %v3666 = vadd.f32 0.0, %v3665
        %3667 = vmatmul.bf16.gmra.mxu0 %v3390
        %v3668 = vpop.f32.mrf.mxu0
        %v3669 = vadd.f32 0.0, %v3668
        %v3670 = vpop.f32.mrf.mxu0
        %v3671 = vadd.f32 0.0, %v3670
        %3672 = vdwg.mxu0
        %3673 = vmatpush.bf16.msra.mxu0 %v3550
        %3674 = vmatpush.bf16.msra.mxu0 %v3548
        %3675 = vmatpush.bf16.msra.mxu0 %v3546
        %3676 = vmatpush.bf16.msra.mxu0 %v3544
        %3677 = vmatpush.bf16.msra.mxu0 %v3542
        %3678 = vmatpush.bf16.msra.mxu0 %v3540
        %3679 = vmatpush.bf16.msra.mxu0 %v3538
        %3680 = vmatpush.bf16.msra.mxu0 %v3536
        %3681 = vmatmul.bf16.gmra.mxu0 %v3361
        %v3682 = vpop.f32.mrf.mxu0
        %v3683 = vadd.f32 %v3594, %v3682
        %v3684 = vpop.f32.mrf.mxu0
        %v3685 = vadd.f32 %v3596, %v3684
        %3686 = vmatmul.bf16.gmra.mxu0 %v3363
        %v3687 = vpop.f32.mrf.mxu0
        %v3688 = vadd.f32 %v3599, %v3687
        %v3689 = vpop.f32.mrf.mxu0
        %v3690 = vadd.f32 %v3601, %v3689
        %3691 = vmatmul.bf16.gmra.mxu0 %v3365
        %v3692 = vpop.f32.mrf.mxu0
        %v3693 = vadd.f32 %v3604, %v3692
        %v3694 = vpop.f32.mrf.mxu0
        %v3695 = vadd.f32 %v3606, %v3694
        %3696 = vmatmul.bf16.gmra.mxu0 %v3367
        %v3697 = vpop.f32.mrf.mxu0
        %v3698 = vadd.f32 %v3609, %v3697
        %v3699 = vpop.f32.mrf.mxu0
        %v3700 = vadd.f32 %v3611, %v3699
        %3701 = vmatmul.bf16.gmra.mxu0 %v3369
        %v3702 = vpop.f32.mrf.mxu0
        %v3703 = vadd.f32 %v3614, %v3702
        %v3704 = vpop.f32.mrf.mxu0
        %v3705 = vadd.f32 %v3616, %v3704
        %3706 = vmatmul.bf16.gmra.mxu0 %v3371
        %v3707 = vpop.f32.mrf.mxu0
        %v3708 = vadd.f32 %v3619, %v3707
        %v3709 = vpop.f32.mrf.mxu0
        %v3710 = vadd.f32 %v3621, %v3709
        %3711 = vmatmul.bf16.gmra.mxu0 %v3373
        %v3712 = vpop.f32.mrf.mxu0
        %v3713 = vadd.f32 %v3624, %v3712
        %v3714 = vpop.f32.mrf.mxu0
        %v3715 = vadd.f32 %v3626, %v3714
        %3716 = vmatmul.bf16.gmra.mxu0 %v3375
        %v3717 = vpop.f32.mrf.mxu0
        %v3718 = vadd.f32 %v3629, %v3717
        %v3719 = vpop.f32.mrf.mxu0
        %v3720 = vadd.f32 %v3631, %v3719
        %3721 = vmatmul.bf16.gmra.mxu0 %v3377
        %v3722 = vpop.f32.mrf.mxu0
        %v3723 = vadd.f32 %v3634, %v3722
        %v3724 = vpop.f32.mrf.mxu0
        %v3725 = vadd.f32 %v3636, %v3724
        %3726 = vmatmul.bf16.gmra.mxu0 %v3379
        %v3727 = vpop.f32.mrf.mxu0
        %v3728 = vadd.f32 %v3639, %v3727
        %v3729 = vpop.f32.mrf.mxu0
        %v3730 = vadd.f32 %v3641, %v3729
        %3731 = vmatmul.bf16.gmra.mxu0 %v3381
        %v3732 = vpop.f32.mrf.mxu0
        %v3733 = vadd.f32 %v3644, %v3732
        %v3734 = vpop.f32.mrf.mxu0
        %v3735 = vadd.f32 %v3646, %v3734
        %3736 = vmatmul.bf16.gmra.mxu0 %v3383
        %v3737 = vpop.f32.mrf.mxu0
        %v3738 = vadd.f32 %v3649, %v3737
        %v3739 = vpop.f32.mrf.mxu0
        %v3740 = vadd.f32 %v3651, %v3739
        %3741 = vmatmul.bf16.gmra.mxu0 %v3385
        %v3742 = vpop.f32.mrf.mxu0
        %v3743 = vadd.f32 %v3654, %v3742
        %v3744 = vpop.f32.mrf.mxu0
        %v3745 = vadd.f32 %v3656, %v3744
        %3746 = vmatmul.bf16.gmra.mxu0 %v3387
        %v3747 = vpop.f32.mrf.mxu0
        %v3748 = vadd.f32 %v3659, %v3747
        %v3749 = vpop.f32.mrf.mxu0
        %v3750 = vadd.f32 %v3661, %v3749
        %3751 = vmatmul.bf16.gmra.mxu0 %v3389
        %v3752 = vpop.f32.mrf.mxu0
        %v3753 = vadd.f32 %v3664, %v3752
        %v3754 = vpop.f32.mrf.mxu0
        %v3755 = vadd.f32 %v3666, %v3754
        %3756 = vmatmul.bf16.gmra.mxu0 %v3391
        %v3757 = vpop.f32.mrf.mxu0
        %v3758 = vadd.f32 %v3669, %v3757
        %v3759 = vpop.f32.mrf.mxu0
        %v3760 = vadd.f32 %v3671, %v3759
        %3761 = vdwg.mxu0
        %3762 = vmatpush.bf16.msra.mxu0 %v3535
        %3763 = vmatpush.bf16.msra.mxu0 %v3533
        %3764 = vmatpush.bf16.msra.mxu0 %v3531
        %3765 = vmatpush.bf16.msra.mxu0 %v3529
        %3766 = vmatpush.bf16.msra.mxu0 %v3527
        %3767 = vmatpush.bf16.msra.mxu0 %v3525
        %3768 = vmatpush.bf16.msra.mxu0 %v3523
        %3769 = vmatpush.bf16.msra.mxu0 %v3521
        %3770 = vmatmul.bf16.gmra.mxu0 %v3360
        %v3771 = vpop.f32.mrf.mxu0
        %v3772 = vadd.f32 0.0, %v3771
        %v3773 = vpop.f32.mrf.mxu0
        %v3774 = vadd.f32 0.0, %v3773
        %3775 = vmatmul.bf16.gmra.mxu0 %v3362
        %v3776 = vpop.f32.mrf.mxu0
        %v3777 = vadd.f32 0.0, %v3776
        %v3778 = vpop.f32.mrf.mxu0
        %v3779 = vadd.f32 0.0, %v3778
        %3780 = vmatmul.bf16.gmra.mxu0 %v3364
        %v3781 = vpop.f32.mrf.mxu0
        %v3782 = vadd.f32 0.0, %v3781
        %v3783 = vpop.f32.mrf.mxu0
        %v3784 = vadd.f32 0.0, %v3783
        %3785 = vmatmul.bf16.gmra.mxu0 %v3366
        %v3786 = vpop.f32.mrf.mxu0
        %v3787 = vadd.f32 0.0, %v3786
        %v3788 = vpop.f32.mrf.mxu0
        %v3789 = vadd.f32 0.0, %v3788
        %3790 = vmatmul.bf16.gmra.mxu0 %v3368
        %v3791 = vpop.f32.mrf.mxu0
        %v3792 = vadd.f32 0.0, %v3791
        %v3793 = vpop.f32.mrf.mxu0
        %v3794 = vadd.f32 0.0, %v3793
        %3795 = vmatmul.bf16.gmra.mxu0 %v3370
        %v3796 = vpop.f32.mrf.mxu0
        %v3797 = vadd.f32 0.0, %v3796
        %v3798 = vpop.f32.mrf.mxu0
        %v3799 = vadd.f32 0.0, %v3798
        %3800 = vmatmul.bf16.gmra.mxu0 %v3372
        %v3801 = vpop.f32.mrf.mxu0
        %v3802 = vadd.f32 0.0, %v3801
        %v3803 = vpop.f32.mrf.mxu0
        %v3804 = vadd.f32 0.0, %v3803
        %3805 = vmatmul.bf16.gmra.mxu0 %v3374
        %v3806 = vpop.f32.mrf.mxu0
        %v3807 = vadd.f32 0.0, %v3806
        %v3808 = vpop.f32.mrf.mxu0
        %v3809 = vadd.f32 0.0, %v3808
        %3810 = vmatmul.bf16.gmra.mxu0 %v3376
        %v3811 = vpop.f32.mrf.mxu0
        %v3812 = vadd.f32 0.0, %v3811
        %v3813 = vpop.f32.mrf.mxu0
        %v3814 = vadd.f32 0.0, %v3813
        %3815 = vmatmul.bf16.gmra.mxu0 %v3378
        %v3816 = vpop.f32.mrf.mxu0
        %v3817 = vadd.f32 0.0, %v3816
        %v3818 = vpop.f32.mrf.mxu0
        %v3819 = vadd.f32 0.0, %v3818
        %3820 = vmatmul.bf16.gmra.mxu0 %v3380
        %v3821 = vpop.f32.mrf.mxu0
        %v3822 = vadd.f32 0.0, %v3821
        %v3823 = vpop.f32.mrf.mxu0
        %v3824 = vadd.f32 0.0, %v3823
        %3825 = vmatmul.bf16.gmra.mxu0 %v3382
        %v3826 = vpop.f32.mrf.mxu0
        %v3827 = vadd.f32 0.0, %v3826
        %v3828 = vpop.f32.mrf.mxu0
        %v3829 = vadd.f32 0.0, %v3828
        %3830 = vmatmul.bf16.gmra.mxu0 %v3384
        %v3831 = vpop.f32.mrf.mxu0
        %v3832 = vadd.f32 0.0, %v3831
        %v3833 = vpop.f32.mrf.mxu0
        %v3834 = vadd.f32 0.0, %v3833
        %3835 = vmatmul.bf16.gmra.mxu0 %v3386
        %v3836 = vpop.f32.mrf.mxu0
        %v3837 = vadd.f32 0.0, %v3836
        %v3838 = vpop.f32.mrf.mxu0
        %v3839 = vadd.f32 0.0, %v3838
        %3840 = vmatmul.bf16.gmra.mxu0 %v3388
        %v3841 = vpop.f32.mrf.mxu0
        %v3842 = vadd.f32 0.0, %v3841
        %v3843 = vpop.f32.mrf.mxu0
        %v3844 = vadd.f32 0.0, %v3843
        %3845 = vmatmul.bf16.gmra.mxu0 %v3390
        %v3846 = vpop.f32.mrf.mxu0
        %v3847 = vadd.f32 0.0, %v3846
        %v3848 = vpop.f32.mrf.mxu0
        %v3849 = vadd.f32 0.0, %v3848
        %3850 = vdwg.mxu0
        %3851 = vmatpush.bf16.msra.mxu0 %v3551
        %3852 = vmatpush.bf16.msra.mxu0 %v3549
        %3853 = vmatpush.bf16.msra.mxu0 %v3547
        %3854 = vmatpush.bf16.msra.mxu0 %v3545
        %3855 = vmatpush.bf16.msra.mxu0 %v3543
        %3856 = vmatpush.bf16.msra.mxu0 %v3541
        %3857 = vmatpush.bf16.msra.mxu0 %v3539
        %3858 = vmatpush.bf16.msra.mxu0 %v3537
        %3859 = vmatmul.bf16.gmra.mxu0 %v3361
        %v3860 = vpop.f32.mrf.mxu0
        %v3861 = vadd.f32 %v3772, %v3860
        %v3862 = vpop.f32.mrf.mxu0
        %v3863 = vadd.f32 %v3774, %v3862
        %3864 = vmatmul.bf16.gmra.mxu0 %v3363
        %v3865 = vpop.f32.mrf.mxu0
        %v3866 = vadd.f32 %v3777, %v3865
        %v3867 = vpop.f32.mrf.mxu0
        %v3868 = vadd.f32 %v3779, %v3867
        %3869 = vmatmul.bf16.gmra.mxu0 %v3365
        %v3870 = vpop.f32.mrf.mxu0
        %v3871 = vadd.f32 %v3782, %v3870
        %v3872 = vpop.f32.mrf.mxu0
        %v3873 = vadd.f32 %v3784, %v3872
        %3874 = vmatmul.bf16.gmra.mxu0 %v3367
        %v3875 = vpop.f32.mrf.mxu0
        %v3876 = vadd.f32 %v3787, %v3875
        %v3877 = vpop.f32.mrf.mxu0
        %v3878 = vadd.f32 %v3789, %v3877
        %3879 = vmatmul.bf16.gmra.mxu0 %v3369
        %v3880 = vpop.f32.mrf.mxu0
        %v3881 = vadd.f32 %v3792, %v3880
        %v3882 = vpop.f32.mrf.mxu0
        %v3883 = vadd.f32 %v3794, %v3882
        %3884 = vmatmul.bf16.gmra.mxu0 %v3371
        %v3885 = vpop.f32.mrf.mxu0
        %v3886 = vadd.f32 %v3797, %v3885
        %v3887 = vpop.f32.mrf.mxu0
        %v3888 = vadd.f32 %v3799, %v3887
        %3889 = vmatmul.bf16.gmra.mxu0 %v3373
        %v3890 = vpop.f32.mrf.mxu0
        %v3891 = vadd.f32 %v3802, %v3890
        %v3892 = vpop.f32.mrf.mxu0
        %v3893 = vadd.f32 %v3804, %v3892
        %3894 = vmatmul.bf16.gmra.mxu0 %v3375
        %v3895 = vpop.f32.mrf.mxu0
        %v3896 = vadd.f32 %v3807, %v3895
        %v3897 = vpop.f32.mrf.mxu0
        %v3898 = vadd.f32 %v3809, %v3897
        %3899 = vmatmul.bf16.gmra.mxu0 %v3377
        %v3900 = vpop.f32.mrf.mxu0
        %v3901 = vadd.f32 %v3812, %v3900
        %v3902 = vpop.f32.mrf.mxu0
        %v3903 = vadd.f32 %v3814, %v3902
        %3904 = vmatmul.bf16.gmra.mxu0 %v3379
        %v3905 = vpop.f32.mrf.mxu0
        %v3906 = vadd.f32 %v3817, %v3905
        %v3907 = vpop.f32.mrf.mxu0
        %v3908 = vadd.f32 %v3819, %v3907
        %3909 = vmatmul.bf16.gmra.mxu0 %v3381
        %v3910 = vpop.f32.mrf.mxu0
        %v3911 = vadd.f32 %v3822, %v3910
        %v3912 = vpop.f32.mrf.mxu0
        %v3913 = vadd.f32 %v3824, %v3912
        %3914 = vmatmul.bf16.gmra.mxu0 %v3383
        %v3915 = vpop.f32.mrf.mxu0
        %v3916 = vadd.f32 %v3827, %v3915
        %v3917 = vpop.f32.mrf.mxu0
        %v3918 = vadd.f32 %v3829, %v3917
        %3919 = vmatmul.bf16.gmra.mxu0 %v3385
        %v3920 = vpop.f32.mrf.mxu0
        %v3921 = vadd.f32 %v3832, %v3920
        %v3922 = vpop.f32.mrf.mxu0
        %v3923 = vadd.f32 %v3834, %v3922
        %3924 = vmatmul.bf16.gmra.mxu0 %v3387
        %v3925 = vpop.f32.mrf.mxu0
        %v3926 = vadd.f32 %v3837, %v3925
        %v3927 = vpop.f32.mrf.mxu0
        %v3928 = vadd.f32 %v3839, %v3927
        %3929 = vmatmul.bf16.gmra.mxu0 %v3389
        %v3930 = vpop.f32.mrf.mxu0
        %v3931 = vadd.f32 %v3842, %v3930
        %v3932 = vpop.f32.mrf.mxu0
        %v3933 = vadd.f32 %v3844, %v3932
        %3934 = vmatmul.bf16.gmra.mxu0 %v3391
        %v3935 = vpop.f32.mrf.mxu0
        %v3936 = vadd.f32 %v3847, %v3935
        %v3937 = vpop.f32.mrf.mxu0
        %v3938 = vadd.f32 %v3849, %v3937
        %3939 = vdwg.mxu0
        %v3940 = vadd.f32 %v3683, %v3685
        %v3941 = vadd.f32 %v3940, %v3688
        %v3942 = vadd.f32 %v3941, %v3690
        %v3943 = vadd.f32 %v3942, %v3693
        %v3944 = vadd.f32 %v3943, %v3695
        %v3945 = vadd.f32 %v3944, %v3698
        %v3946 = vadd.f32 %v3945, %v3700
        %v3947 = vadd.f32 %v3946, %v3703
        %v3948 = vadd.f32 %v3947, %v3705
        %v3949 = vadd.f32 %v3948, %v3708
        %v3950 = vadd.f32 %v3949, %v3710
        %v3951 = vadd.f32 %v3950, %v3713
        %v3952 = vadd.f32 %v3951, %v3715
        %v3953 = vadd.f32 %v3952, %v3718
        %v3954 = vadd.f32 %v3953, %v3720
        %v3955 = vadd.f32 %v3954, %v3723
        %v3956 = vadd.f32 %v3955, %v3725
        %v3957 = vadd.f32 %v3956, %v3728
        %v3958 = vadd.f32 %v3957, %v3730
        %v3959 = vadd.f32 %v3958, %v3733
        %v3960 = vadd.f32 %v3959, %v3735
        %v3961 = vadd.f32 %v3960, %v3738
        %v3962 = vadd.f32 %v3961, %v3740
        %v3963 = vadd.f32 %v3962, %v3743
        %v3964 = vadd.f32 %v3963, %v3745
        %v3965 = vadd.f32 %v3964, %v3748
        %v3966 = vadd.f32 %v3965, %v3750
        %v3967 = vadd.f32 %v3966, %v3753
        %v3968 = vadd.f32 %v3967, %v3755
        %v3969 = vadd.f32 %v3968, %v3758
        %v3970 = vadd.f32 %v3969, %v3760
        %v3971 = vrot.slane %v3970, 4
        %v3972 = vadd.f32 %v3970, %v3971
        %v3973 = vrot.slane %v3972, 2
        %v3974 = vadd.f32 %v3972, %v3973
        %v3975 = vrot.slane %v3974, 1
        %v3976 = vadd.f32 %v3974, %v3975
        %v3977 = vadd.f32 %v3861, %v3863
        %v3978 = vadd.f32 %v3977, %v3866
        %v3979 = vadd.f32 %v3978, %v3868
        %v3980 = vadd.f32 %v3979, %v3871
        %v3981 = vadd.f32 %v3980, %v3873
        %v3982 = vadd.f32 %v3981, %v3876
        %v3983 = vadd.f32 %v3982, %v3878
        %v3984 = vadd.f32 %v3983, %v3881
        %v3985 = vadd.f32 %v3984, %v3883
        %v3986 = vadd.f32 %v3985, %v3886
        %v3987 = vadd.f32 %v3986, %v3888
        %v3988 = vadd.f32 %v3987, %v3891
        %v3989 = vadd.f32 %v3988, %v3893
        %v3990 = vadd.f32 %v3989, %v3896
        %v3991 = vadd.f32 %v3990, %v3898
        %v3992 = vadd.f32 %v3991, %v3901
        %v3993 = vadd.f32 %v3992, %v3903
        %v3994 = vadd.f32 %v3993, %v3906
        %v3995 = vadd.f32 %v3994, %v3908
        %v3996 = vadd.f32 %v3995, %v3911
        %v3997 = vadd.f32 %v3996, %v3913
        %v3998 = vadd.f32 %v3997, %v3916
        %v3999 = vadd.f32 %v3998, %v3918
        %v4000 = vadd.f32 %v3999, %v3921
        %v4001 = vadd.f32 %v4000, %v3923
        %v4002 = vadd.f32 %v4001, %v3926
        %v4003 = vadd.f32 %v4002, %v3928
        %v4004 = vadd.f32 %v4003, %v3931
        %v4005 = vadd.f32 %v4004, %v3933
        %v4006 = vadd.f32 %v4005, %v3936
        %v4007 = vadd.f32 %v4006, %v3938
        %v4008 = vrot.slane %v4007, 4
        %v4009 = vadd.f32 %v4007, %v4008
        %v4010 = vrot.slane %v4009, 2
        %v4011 = vadd.f32 %v4009, %v4010
        %v4012 = vrot.slane %v4011, 1
        %v4013 = vadd.f32 %v4011, %v4012
        %v4014 = vmul.f32 %v3683, %v3683
        %v4015 = vmul.f32 %v3861, %v3861
        %v4016 = vmul.f32 %v3685, %v3685
        %v4017 = vmul.f32 %v3863, %v3863
        %v4018 = vmul.f32 %v3688, %v3688
        %v4019 = vmul.f32 %v3866, %v3866
        %v4020 = vmul.f32 %v3690, %v3690
        %v4021 = vmul.f32 %v3868, %v3868
        %v4022 = vmul.f32 %v3693, %v3693
        %v4023 = vmul.f32 %v3871, %v3871
        %v4024 = vmul.f32 %v3695, %v3695
        %v4025 = vmul.f32 %v3873, %v3873
        %v4026 = vmul.f32 %v3698, %v3698
        %v4027 = vmul.f32 %v3876, %v3876
        %v4028 = vmul.f32 %v3700, %v3700
        %v4029 = vmul.f32 %v3878, %v3878
        %v4030 = vmul.f32 %v3703, %v3703
        %v4031 = vmul.f32 %v3881, %v3881
        %v4032 = vmul.f32 %v3705, %v3705
        %v4033 = vmul.f32 %v3883, %v3883
        %v4034 = vmul.f32 %v3708, %v3708
        %v4035 = vmul.f32 %v3886, %v3886
        %v4036 = vmul.f32 %v3710, %v3710
        %v4037 = vmul.f32 %v3888, %v3888
        %v4038 = vmul.f32 %v3713, %v3713
        %v4039 = vmul.f32 %v3891, %v3891
        %v4040 = vmul.f32 %v3715, %v3715
        %v4041 = vmul.f32 %v3893, %v3893
        %v4042 = vmul.f32 %v3718, %v3718
        %v4043 = vmul.f32 %v3896, %v3896
        %v4044 = vmul.f32 %v3720, %v3720
        %v4045 = vmul.f32 %v3898, %v3898
        %v4046 = vmul.f32 %v3723, %v3723
        %v4047 = vmul.f32 %v3901, %v3901
        %v4048 = vmul.f32 %v3725, %v3725
        %v4049 = vmul.f32 %v3903, %v3903
        %v4050 = vmul.f32 %v3728, %v3728
        %v4051 = vmul.f32 %v3906, %v3906
        %v4052 = vmul.f32 %v3730, %v3730
        %v4053 = vmul.f32 %v3908, %v3908
        %v4054 = vmul.f32 %v3733, %v3733
        %v4055 = vmul.f32 %v3911, %v3911
        %v4056 = vmul.f32 %v3735, %v3735
        %v4057 = vmul.f32 %v3913, %v3913
        %v4058 = vmul.f32 %v3738, %v3738
        %v4059 = vmul.f32 %v3916, %v3916
        %v4060 = vmul.f32 %v3740, %v3740
        %v4061 = vmul.f32 %v3918, %v3918
        %v4062 = vmul.f32 %v3743, %v3743
        %v4063 = vmul.f32 %v3921, %v3921
        %v4064 = vmul.f32 %v3745, %v3745
        %v4065 = vmul.f32 %v3923, %v3923
        %v4066 = vmul.f32 %v3748, %v3748
        %v4067 = vmul.f32 %v3926, %v3926
        %v4068 = vmul.f32 %v3750, %v3750
        %v4069 = vmul.f32 %v3928, %v3928
        %v4070 = vmul.f32 %v3753, %v3753
        %v4071 = vmul.f32 %v3931, %v3931
        %v4072 = vmul.f32 %v3755, %v3755
        %v4073 = vmul.f32 %v3933, %v3933
        %v4074 = vmul.f32 %v3758, %v3758
        %v4075 = vmul.f32 %v3936, %v3936
        %v4076 = vmul.f32 %v3760, %v3760
        %v4077 = vmul.f32 %v3938, %v3938
        %v4078 = vadd.f32 %v4014, %v4016
        %v4079 = vadd.f32 %v4078, %v4018
        %v4080 = vadd.f32 %v4079, %v4020
        %v4081 = vadd.f32 %v4080, %v4022
        %v4082 = vadd.f32 %v4081, %v4024
        %v4083 = vadd.f32 %v4082, %v4026
        %v4084 = vadd.f32 %v4083, %v4028
        %v4085 = vadd.f32 %v4084, %v4030
        %v4086 = vadd.f32 %v4085, %v4032
        %v4087 = vadd.f32 %v4086, %v4034
        %v4088 = vadd.f32 %v4087, %v4036
        %v4089 = vadd.f32 %v4088, %v4038
        %v4090 = vadd.f32 %v4089, %v4040
        %v4091 = vadd.f32 %v4090, %v4042
        %v4092 = vadd.f32 %v4091, %v4044
        %v4093 = vadd.f32 %v4092, %v4046
        %v4094 = vadd.f32 %v4093, %v4048
        %v4095 = vadd.f32 %v4094, %v4050
        %v4096 = vadd.f32 %v4095, %v4052
        %v4097 = vadd.f32 %v4096, %v4054
        %v4098 = vadd.f32 %v4097, %v4056
        %v4099 = vadd.f32 %v4098, %v4058
        %v4100 = vadd.f32 %v4099, %v4060
        %v4101 = vadd.f32 %v4100, %v4062
        %v4102 = vadd.f32 %v4101, %v4064
        %v4103 = vadd.f32 %v4102, %v4066
        %v4104 = vadd.f32 %v4103, %v4068
        %v4105 = vadd.f32 %v4104, %v4070
        %v4106 = vadd.f32 %v4105, %v4072
        %v4107 = vadd.f32 %v4106, %v4074
        %v4108 = vadd.f32 %v4107, %v4076
        %v4109 = vrot.slane %v4108, 4
        %v4110 = vadd.f32 %v4108, %v4109
        %v4111 = vrot.slane %v4110, 2
        %v4112 = vadd.f32 %v4110, %v4111
        %v4113 = vrot.slane %v4112, 1
        %v4114 = vadd.f32 %v4112, %v4113
        %v4115 = vadd.f32 %v4015, %v4017
        %v4116 = vadd.f32 %v4115, %v4019
        %v4117 = vadd.f32 %v4116, %v4021
        %v4118 = vadd.f32 %v4117, %v4023
        %v4119 = vadd.f32 %v4118, %v4025
        %v4120 = vadd.f32 %v4119, %v4027
        %v4121 = vadd.f32 %v4120, %v4029
        %v4122 = vadd.f32 %v4121, %v4031
        %v4123 = vadd.f32 %v4122, %v4033
        %v4124 = vadd.f32 %v4123, %v4035
        %v4125 = vadd.f32 %v4124, %v4037
        %v4126 = vadd.f32 %v4125, %v4039
        %v4127 = vadd.f32 %v4126, %v4041
        %v4128 = vadd.f32 %v4127, %v4043
        %v4129 = vadd.f32 %v4128, %v4045
        %v4130 = vadd.f32 %v4129, %v4047
        %v4131 = vadd.f32 %v4130, %v4049
        %v4132 = vadd.f32 %v4131, %v4051
        %v4133 = vadd.f32 %v4132, %v4053
        %v4134 = vadd.f32 %v4133, %v4055
        %v4135 = vadd.f32 %v4134, %v4057
        %v4136 = vadd.f32 %v4135, %v4059
        %v4137 = vadd.f32 %v4136, %v4061
        %v4138 = vadd.f32 %v4137, %v4063
        %v4139 = vadd.f32 %v4138, %v4065
        %v4140 = vadd.f32 %v4139, %v4067
        %v4141 = vadd.f32 %v4140, %v4069
        %v4142 = vadd.f32 %v4141, %v4071
        %v4143 = vadd.f32 %v4142, %v4073
        %v4144 = vadd.f32 %v4143, %v4075
        %v4145 = vadd.f32 %v4144, %v4077
        %v4146 = vrot.slane %v4145, 4
        %v4147 = vadd.f32 %v4145, %v4146
        %v4148 = vrot.slane %v4147, 2
        %v4149 = vadd.f32 %v4147, %v4148
        %v4150 = vrot.slane %v4149, 1
        %v4151 = vadd.f32 %v4149, %v4150
        %v4152 = vmul.f32 %v3976, 0.00390625
        %v4153 = vmul.f32 %v4013, 0.00390625
        %v4154 = vmul.f32 %v4114, 0.00390625
        %v4155 = vmul.f32 %v4151, 0.00390625
        %v4156 = vmul.f32 %v4152, %v4152
        %v4157 = vmul.f32 %v4153, %v4153
        %v4158 = vsub.f32 %v4154, %v4156
        %v4159 = vsub.f32 %v4155, %v4157
        %v4160 = vmax.f32 %v4158, 0.0
        %v4161 = vmax.f32 %v4159, 0.0
        %v4162 = vadd.f32 %v4160, 1e-05
        %v4163 = vadd.f32 %v4161, 1e-05
        %v4164 = vrsqrt.pop %v4162
        %v4165 = vmul.f32 %v4164, %v4162
        %v4166 = vmul.f32 %v4165, %v4164
        %v4167 = vmul.f32 0.5, %v4166
        %v4168 = vsub.f32 1.5, %v4167
        %v4169 = vmul.f32 %v4164, %v4168
        %vm4170 = vweird.f32 %v4162
        %vm4171 = vweird.f32 %v4164
        %vm4172 = vmor %vm4170, %vm4171
        %v4173 = vsel %vm4172, %v4164, %v4169
        %v4174 = vrsqrt.pop %v4163
        %v4175 = vmul.f32 %v4174, %v4163
        %v4176 = vmul.f32 %v4175, %v4174
        %v4177 = vmul.f32 0.5, %v4176
        %v4178 = vsub.f32 1.5, %v4177
        %v4179 = vmul.f32 %v4174, %v4178
        %vm4180 = vweird.f32 %v4163
        %vm4181 = vweird.f32 %v4174
        %vm4182 = vmor %vm4180, %vm4181
        %v4183 = vsel %vm4182, %v4174, %v4179
        %v4184 = vmul.f32 %v440, %v4173
        %v4185 = vmul.f32 %v441, %v4183
        %v4186 = vmul.f32 %v4152, %v4184
        %v4187 = vmul.f32 %v4153, %v4185
        %v4190 = vrot.slane %v4186, 4
        %v4191 = vrot.slane %v4187, 4
        %v4194 = vsub.f32 %v440, %v4190
        %v4195 = vsub.f32 %v441, %v4191
        %v4196 = vperm.slane %v4184, 3
        %v4197 = vperm.slane %v4185, 3
        %v4198 = vmul.f32 %v3683, %v4196
        %v4199 = vmul.f32 %v3861, %v4197
        %v4200 = vmul.f32 %v3685, %v4196
        %v4201 = vmul.f32 %v3863, %v4197
        %v4202 = vmul.f32 %v3688, %v4196
        %v4203 = vmul.f32 %v3866, %v4197
        %v4204 = vmul.f32 %v3690, %v4196
        %v4205 = vmul.f32 %v3868, %v4197
        %v4206 = vmul.f32 %v3693, %v4196
        %v4207 = vmul.f32 %v3871, %v4197
        %v4208 = vmul.f32 %v3695, %v4196
        %v4209 = vmul.f32 %v3873, %v4197
        %v4210 = vmul.f32 %v3698, %v4196
        %v4211 = vmul.f32 %v3876, %v4197
        %v4212 = vmul.f32 %v3700, %v4196
        %v4213 = vmul.f32 %v3878, %v4197
        %v4214 = vmul.f32 %v3703, %v4196
        %v4215 = vmul.f32 %v3881, %v4197
        %v4216 = vmul.f32 %v3705, %v4196
        %v4217 = vmul.f32 %v3883, %v4197
        %v4218 = vmul.f32 %v3708, %v4196
        %v4219 = vmul.f32 %v3886, %v4197
        %v4220 = vmul.f32 %v3710, %v4196
        %v4221 = vmul.f32 %v3888, %v4197
        %v4222 = vmul.f32 %v3713, %v4196
        %v4223 = vmul.f32 %v3891, %v4197
        %v4224 = vmul.f32 %v3715, %v4196
        %v4225 = vmul.f32 %v3893, %v4197
        %v4226 = vmul.f32 %v3718, %v4196
        %v4227 = vmul.f32 %v3896, %v4197
        %v4228 = vmul.f32 %v3720, %v4196
        %v4229 = vmul.f32 %v3898, %v4197
        %v4230 = vmul.f32 %v3723, %v4196
        %v4231 = vmul.f32 %v3901, %v4197
        %v4232 = vmul.f32 %v3725, %v4196
        %v4233 = vmul.f32 %v3903, %v4197
        %v4234 = vmul.f32 %v3728, %v4196
        %v4235 = vmul.f32 %v3906, %v4197
        %v4236 = vmul.f32 %v3730, %v4196
        %v4237 = vmul.f32 %v3908, %v4197
        %v4238 = vmul.f32 %v3733, %v4196
        %v4239 = vmul.f32 %v3911, %v4197
        %v4240 = vmul.f32 %v3735, %v4196
        %v4241 = vmul.f32 %v3913, %v4197
        %v4242 = vmul.f32 %v3738, %v4196
        %v4243 = vmul.f32 %v3916, %v4197
        %v4244 = vmul.f32 %v3740, %v4196
        %v4245 = vmul.f32 %v3918, %v4197
        %v4246 = vmul.f32 %v3743, %v4196
        %v4247 = vmul.f32 %v3921, %v4197
        %v4248 = vmul.f32 %v3745, %v4196
        %v4249 = vmul.f32 %v3923, %v4197
        %v4250 = vmul.f32 %v3748, %v4196
        %v4251 = vmul.f32 %v3926, %v4197
        %v4252 = vmul.f32 %v3750, %v4196
        %v4253 = vmul.f32 %v3928, %v4197
        %v4254 = vmul.f32 %v3753, %v4196
        %v4255 = vmul.f32 %v3931, %v4197
        %v4256 = vmul.f32 %v3755, %v4196
        %v4257 = vmul.f32 %v3933, %v4197
        %v4258 = vmul.f32 %v3758, %v4196
        %v4259 = vmul.f32 %v3936, %v4197
        %v4260 = vmul.f32 %v3760, %v4196
        %v4261 = vmul.f32 %v3938, %v4197
        %v4262 = vperm.slane %v4194, 7
        %v4263 = vperm.slane %v4195, 7
        %v4264 = vadd.f32 %v4198, %v4262
        %v4265 = vadd.f32 %v4199, %v4263
        %v4266 = vadd.f32 %v4200, %v4262
        %v4267 = vadd.f32 %v4201, %v4263
        %v4268 = vadd.f32 %v4202, %v4262
        %v4269 = vadd.f32 %v4203, %v4263
        %v4270 = vadd.f32 %v4204, %v4262
        %v4271 = vadd.f32 %v4205, %v4263
        %v4272 = vadd.f32 %v4206, %v4262
        %v4273 = vadd.f32 %v4207, %v4263
        %v4274 = vadd.f32 %v4208, %v4262
        %v4275 = vadd.f32 %v4209, %v4263
        %v4276 = vadd.f32 %v4210, %v4262
        %v4277 = vadd.f32 %v4211, %v4263
        %v4278 = vadd.f32 %v4212, %v4262
        %v4279 = vadd.f32 %v4213, %v4263
        %v4280 = vadd.f32 %v4214, %v4262
        %v4281 = vadd.f32 %v4215, %v4263
        %v4282 = vadd.f32 %v4216, %v4262
        %v4283 = vadd.f32 %v4217, %v4263
        %v4284 = vadd.f32 %v4218, %v4262
        %v4285 = vadd.f32 %v4219, %v4263
        %v4286 = vadd.f32 %v4220, %v4262
        %v4287 = vadd.f32 %v4221, %v4263
        %v4288 = vadd.f32 %v4222, %v4262
        %v4289 = vadd.f32 %v4223, %v4263
        %v4290 = vadd.f32 %v4224, %v4262
        %v4291 = vadd.f32 %v4225, %v4263
        %v4292 = vadd.f32 %v4226, %v4262
        %v4293 = vadd.f32 %v4227, %v4263
        %v4294 = vadd.f32 %v4228, %v4262
        %v4295 = vadd.f32 %v4229, %v4263
        %v4296 = vadd.f32 %v4230, %v4262
        %v4297 = vadd.f32 %v4231, %v4263
        %v4298 = vadd.f32 %v4232, %v4262
        %v4299 = vadd.f32 %v4233, %v4263
        %v4300 = vadd.f32 %v4234, %v4262
        %v4301 = vadd.f32 %v4235, %v4263
        %v4302 = vadd.f32 %v4236, %v4262
        %v4303 = vadd.f32 %v4237, %v4263
        %v4304 = vadd.f32 %v4238, %v4262
        %v4305 = vadd.f32 %v4239, %v4263
        %v4306 = vadd.f32 %v4240, %v4262
        %v4307 = vadd.f32 %v4241, %v4263
        %v4308 = vadd.f32 %v4242, %v4262
        %v4309 = vadd.f32 %v4243, %v4263
        %v4310 = vadd.f32 %v4244, %v4262
        %v4311 = vadd.f32 %v4245, %v4263
        %v4312 = vadd.f32 %v4246, %v4262
        %v4313 = vadd.f32 %v4247, %v4263
        %v4314 = vadd.f32 %v4248, %v4262
        %v4315 = vadd.f32 %v4249, %v4263
        %v4316 = vadd.f32 %v4250, %v4262
        %v4317 = vadd.f32 %v4251, %v4263
        %v4318 = vadd.f32 %v4252, %v4262
        %v4319 = vadd.f32 %v4253, %v4263
        %v4320 = vadd.f32 %v4254, %v4262
        %v4321 = vadd.f32 %v4255, %v4263
        %v4322 = vadd.f32 %v4256, %v4262
        %v4323 = vadd.f32 %v4257, %v4263
        %v4324 = vadd.f32 %v4258, %v4262
        %v4325 = vadd.f32 %v4259, %v4263
        %v4326 = vadd.f32 %v4260, %v4262
        %v4327 = vadd.f32 %v4261, %v4263
        %v4328 = vmax.f32 %v4264, 0.0
        %v4329 = vmax.f32 %v4265, 0.0
        %v4330 = vmax.f32 %v4266, 0.0
        %v4331 = vmax.f32 %v4267, 0.0
        %v4332 = vmax.f32 %v4268, 0.0
        %v4333 = vmax.f32 %v4269, 0.0
        %v4334 = vmax.f32 %v4270, 0.0
        %v4335 = vmax.f32 %v4271, 0.0
        %v4336 = vmax.f32 %v4272, 0.0
        %v4337 = vmax.f32 %v4273, 0.0
        %v4338 = vmax.f32 %v4274, 0.0
        %v4339 = vmax.f32 %v4275, 0.0
        %v4340 = vmax.f32 %v4276, 0.0
        %v4341 = vmax.f32 %v4277, 0.0
        %v4342 = vmax.f32 %v4278, 0.0
        %v4343 = vmax.f32 %v4279, 0.0
        %v4344 = vmax.f32 %v4280, 0.0
        %v4345 = vmax.f32 %v4281, 0.0
        %v4346 = vmax.f32 %v4282, 0.0
        %v4347 = vmax.f32 %v4283, 0.0
        %v4348 = vmax.f32 %v4284, 0.0
        %v4349 = vmax.f32 %v4285, 0.0
        %v4350 = vmax.f32 %v4286, 0.0
        %v4351 = vmax.f32 %v4287, 0.0
        %v4352 = vmax.f32 %v4288, 0.0
        %v4353 = vmax.f32 %v4289, 0.0
        %v4354 = vmax.f32 %v4290, 0.0
        %v4355 = vmax.f32 %v4291, 0.0
        %v4356 = vmax.f32 %v4292, 0.0
        %v4357 = vmax.f32 %v4293, 0.0
        %v4358 = vmax.f32 %v4294, 0.0
        %v4359 = vmax.f32 %v4295, 0.0
        %v4360 = vmax.f32 %v4296, 0.0
        %v4361 = vmax.f32 %v4297, 0.0
        %v4362 = vmax.f32 %v4298, 0.0
        %v4363 = vmax.f32 %v4299, 0.0
        %v4364 = vmax.f32 %v4300, 0.0
        %v4365 = vmax.f32 %v4301, 0.0
        %v4366 = vmax.f32 %v4302, 0.0
        %v4367 = vmax.f32 %v4303, 0.0
        %v4368 = vmax.f32 %v4304, 0.0
        %v4369 = vmax.f32 %v4305, 0.0
        %v4370 = vmax.f32 %v4306, 0.0
        %v4371 = vmax.f32 %v4307, 0.0
        %v4372 = vmax.f32 %v4308, 0.0
        %v4373 = vmax.f32 %v4309, 0.0
        %v4374 = vmax.f32 %v4310, 0.0
        %v4375 = vmax.f32 %v4311, 0.0
        %v4376 = vmax.f32 %v4312, 0.0
        %v4377 = vmax.f32 %v4313, 0.0
        %v4378 = vmax.f32 %v4314, 0.0
        %v4379 = vmax.f32 %v4315, 0.0
        %v4380 = vmax.f32 %v4316, 0.0
        %v4381 = vmax.f32 %v4317, 0.0
        %v4382 = vmax.f32 %v4318, 0.0
        %v4383 = vmax.f32 %v4319, 0.0
        %v4384 = vmax.f32 %v4320, 0.0
        %v4385 = vmax.f32 %v4321, 0.0
        %v4386 = vmax.f32 %v4322, 0.0
        %v4387 = vmax.f32 %v4323, 0.0
        %v4388 = vmax.f32 %v4324, 0.0
        %v4389 = vmax.f32 %v4325, 0.0
        %v4390 = vmax.f32 %v4326, 0.0
        %v4391 = vmax.f32 %v4327, 0.0
        %v4392 = vpack.c.bf16 %v4330, %v4328
        %v4393 = vpack.c.bf16 %v4331, %v4329
        %v4394 = vpack.c.bf16 %v4334, %v4332
        %v4395 = vpack.c.bf16 %v4335, %v4333
        %v4396 = vpack.c.bf16 %v4338, %v4336
        %v4397 = vpack.c.bf16 %v4339, %v4337
        %v4398 = vpack.c.bf16 %v4342, %v4340
        %v4399 = vpack.c.bf16 %v4343, %v4341
        %v4400 = vpack.c.bf16 %v4346, %v4344
        %v4401 = vpack.c.bf16 %v4347, %v4345
        %v4402 = vpack.c.bf16 %v4350, %v4348
        %v4403 = vpack.c.bf16 %v4351, %v4349
        %v4404 = vpack.c.bf16 %v4354, %v4352
        %v4405 = vpack.c.bf16 %v4355, %v4353
        %v4406 = vpack.c.bf16 %v4358, %v4356
        %v4407 = vpack.c.bf16 %v4359, %v4357
        %v4408 = vpack.c.bf16 %v4362, %v4360
        %v4409 = vpack.c.bf16 %v4363, %v4361
        %v4410 = vpack.c.bf16 %v4366, %v4364
        %v4411 = vpack.c.bf16 %v4367, %v4365
        %v4412 = vpack.c.bf16 %v4370, %v4368
        %v4413 = vpack.c.bf16 %v4371, %v4369
        %v4414 = vpack.c.bf16 %v4374, %v4372
        %v4415 = vpack.c.bf16 %v4375, %v4373
        %v4416 = vpack.c.bf16 %v4378, %v4376
        %v4417 = vpack.c.bf16 %v4379, %v4377
        %v4418 = vpack.c.bf16 %v4382, %v4380
        %v4419 = vpack.c.bf16 %v4383, %v4381
        %v4420 = vpack.c.bf16 %v4386, %v4384
        %v4421 = vpack.c.bf16 %v4387, %v4385
        %v4422 = vpack.c.bf16 %v4390, %v4388
        %v4423 = vpack.c.bf16 %v4391, %v4389
        %v4424 = vld [vmem:[#allocation11] sm:$0xff]
        %v4425 = vld [vmem:[#allocation11 + $0x8] sm:$0xff]
        %v4426 = vld [vmem:[#allocation11 + $0x10] sm:$0xff]
        %v4427 = vld [vmem:[#allocation11 + $0x18] sm:$0xf]
        %v4428 = vld [vmem:[#allocation11 + $0x1c] sm:$0xff]
        %v4429 = vld [vmem:[#allocation11 + $0x24] sm:$0xff]
        %v4430 = vld [vmem:[#allocation11 + $0x2c] sm:$0xff]
        %v4431 = vld [vmem:[#allocation11 + $0x34] sm:$0xf]
        %v4432 = vld [vmem:[#allocation11 + $0x38] sm:$0xff]
        %v4433 = vld [vmem:[#allocation11 + $0x40] sm:$0xff]
        %v4434 = vld [vmem:[#allocation11 + $0x48] sm:$0xff]
        %v4435 = vld [vmem:[#allocation11 + $0x50] sm:$0xf]
        %v4436 = vld [vmem:[#allocation11 + $0x54] sm:$0xff]
        %v4437 = vld [vmem:[#allocation11 + $0x5c] sm:$0xff]
        %v4438 = vld [vmem:[#allocation11 + $0x64] sm:$0xff]
        %v4439 = vld [vmem:[#allocation11 + $0x6c] sm:$0xf]
        %v4440 = vld [vmem:[#allocation11 + $0x70] sm:$0xff]
        %v4441 = vld [vmem:[#allocation11 + $0x78] sm:$0xff]
        %v4442 = vld [vmem:[#allocation11 + $0x80] sm:$0xff]
        %v4443 = vld [vmem:[#allocation11 + $0x88] sm:$0xf]
        %v4444 = vld [vmem:[#allocation11 + $0x8c] sm:$0xff]
        %v4445 = vld [vmem:[#allocation11 + $0x94] sm:$0xff]
        %v4446 = vld [vmem:[#allocation11 + $0x9c] sm:$0xff]
        %v4447 = vld [vmem:[#allocation11 + $0xa4] sm:$0xf]
        %v4448 = vld [vmem:[#allocation11 + $0xa8] sm:$0xff]
        %v4449 = vld [vmem:[#allocation11 + $0xb0] sm:$0xff]
        %v4450 = vld [vmem:[#allocation11 + $0xb8] sm:$0xff]
        %v4451 = vld [vmem:[#allocation11 + $0xc0] sm:$0xf]
        %v4452 = vld [vmem:[#allocation11 + $0xc4] sm:$0xff]
        %v4453 = vld [vmem:[#allocation11 + $0xcc] sm:$0xff]
        %v4454 = vld [vmem:[#allocation11 + $0xd4] sm:$0xff]
        %v4455 = vld [vmem:[#allocation11 + $0xdc] sm:$0xf]
        %v4456 = vld [vmem:[#allocation11 + $0xe0] sm:$0xff]
        %v4457 = vld [vmem:[#allocation11 + $0xe8] sm:$0xff]
        %v4458 = vld [vmem:[#allocation11 + $0xf0] sm:$0xff]
        %v4459 = vld [vmem:[#allocation11 + $0xf8] sm:$0xf]
        %v4460 = vld [vmem:[#allocation11 + $0xfc] sm:$0xff]
        %v4461 = vld [vmem:[#allocation11 + $0x104] sm:$0xff]
        %v4462 = vld [vmem:[#allocation11 + $0x10c] sm:$0xff]
        %v4463 = vld [vmem:[#allocation11 + $0x114] sm:$0xf]
        %v4464 = vld [vmem:[#allocation11 + $0x118] sm:$0xff]
        %v4465 = vld [vmem:[#allocation11 + $0x120] sm:$0xff]
        %v4466 = vld [vmem:[#allocation11 + $0x128] sm:$0xff]
        %v4467 = vld [vmem:[#allocation11 + $0x130] sm:$0xf]
        %v4468 = vld [vmem:[#allocation11 + $0x134] sm:$0xff]
        %v4469 = vld [vmem:[#allocation11 + $0x13c] sm:$0xff]
        %v4470 = vld [vmem:[#allocation11 + $0x144] sm:$0xff]
        %v4471 = vld [vmem:[#allocation11 + $0x14c] sm:$0xf]
        %v4472 = vld [vmem:[#allocation11 + $0x150] sm:$0xff]
        %v4473 = vld [vmem:[#allocation11 + $0x158] sm:$0xff]
        %v4474 = vld [vmem:[#allocation11 + $0x160] sm:$0xff]
        %v4475 = vld [vmem:[#allocation11 + $0x168] sm:$0xf]
        %v4476 = vld [vmem:[#allocation11 + $0x16c] sm:$0xff]
        %v4477 = vld [vmem:[#allocation11 + $0x174] sm:$0xff]
        %v4478 = vld [vmem:[#allocation11 + $0x17c] sm:$0xff]
        %v4479 = vld [vmem:[#allocation11 + $0x184] sm:$0xf]
        %v4480 = vld [vmem:[#allocation11 + $0x188] sm:$0xff]
        %v4481 = vld [vmem:[#allocation11 + $0x190] sm:$0xff]
        %v4482 = vld [vmem:[#allocation11 + $0x198] sm:$0xff]
        %v4483 = vld [vmem:[#allocation11 + $0x1a0] sm:$0xf]
        %v4484 = vld [vmem:[#allocation11 + $0x1a4] sm:$0xff]
        %v4485 = vld [vmem:[#allocation11 + $0x1ac] sm:$0xff]
        %v4486 = vld [vmem:[#allocation11 + $0x1b4] sm:$0xff]
        %v4487 = vld [vmem:[#allocation11 + $0x1bc] sm:$0xf]
        %v4488 = vld [vmem:[#allocation11 + $0x1c0] sm:$0xff]
        %v4489 = vld [vmem:[#allocation11 + $0x1c8] sm:$0xff]
        %v4490 = vld [vmem:[#allocation11 + $0x1d0] sm:$0xff]
        %v4491 = vld [vmem:[#allocation11 + $0x1d8] sm:$0xf]
        %v4492 = vld [vmem:[#allocation11 + $0x1dc] sm:$0xff]
        %v4493 = vld [vmem:[#allocation11 + $0x1e4] sm:$0xff]
        %v4494 = vld [vmem:[#allocation11 + $0x1ec] sm:$0xff]
        %v4495 = vld [vmem:[#allocation11 + $0x1f4] sm:$0xf]
        %v4496 = vld [vmem:[#allocation11 + $0x1f8] sm:$0xff]
        %v4497 = vld [vmem:[#allocation11 + $0x200] sm:$0xff]
        %v4498 = vld [vmem:[#allocation11 + $0x208] sm:$0xff]
        %v4499 = vld [vmem:[#allocation11 + $0x210] sm:$0xf]
        %v4500 = vld [vmem:[#allocation11 + $0x214] sm:$0xff]
        %v4501 = vld [vmem:[#allocation11 + $0x21c] sm:$0xff]
        %v4502 = vld [vmem:[#allocation11 + $0x224] sm:$0xff]
        %v4503 = vld [vmem:[#allocation11 + $0x22c] sm:$0xf]
        %v4504 = vld [vmem:[#allocation11 + $0x230] sm:$0xff]
        %v4505 = vld [vmem:[#allocation11 + $0x238] sm:$0xff]
        %v4506 = vld [vmem:[#allocation11 + $0x240] sm:$0xff]
        %v4507 = vld [vmem:[#allocation11 + $0x248] sm:$0xf]
        %v4508 = vld [vmem:[#allocation11 + $0x24c] sm:$0xff]
        %v4509 = vld [vmem:[#allocation11 + $0x254] sm:$0xff]
        %v4510 = vld [vmem:[#allocation11 + $0x25c] sm:$0xff]
        %v4511 = vld [vmem:[#allocation11 + $0x264] sm:$0xf]
        %v4512 = vld [vmem:[#allocation11 + $0x268] sm:$0xff]
        %v4513 = vld [vmem:[#allocation11 + $0x270] sm:$0xff]
        %v4514 = vld [vmem:[#allocation11 + $0x278] sm:$0xff]
        %v4515 = vld [vmem:[#allocation11 + $0x280] sm:$0xf]
        %v4516 = vld [vmem:[#allocation11 + $0x284] sm:$0xff]
        %v4517 = vld [vmem:[#allocation11 + $0x28c] sm:$0xff]
        %v4518 = vld [vmem:[#allocation11 + $0x294] sm:$0xff]
        %v4519 = vld [vmem:[#allocation11 + $0x29c] sm:$0xf]
        %v4520 = vld [vmem:[#allocation11 + $0x2a0] sm:$0xff]
        %v4521 = vld [vmem:[#allocation11 + $0x2a8] sm:$0xff]
        %v4522 = vld [vmem:[#allocation11 + $0x2b0] sm:$0xff]
        %v4523 = vld [vmem:[#allocation11 + $0x2b8] sm:$0xf]
        %v4524 = vld [vmem:[#allocation11 + $0x2bc] sm:$0xff]
        %v4525 = vld [vmem:[#allocation11 + $0x2c4] sm:$0xff]
        %v4526 = vld [vmem:[#allocation11 + $0x2cc] sm:$0xff]
        %v4527 = vld [vmem:[#allocation11 + $0x2d4] sm:$0xf]
        %v4528 = vld [vmem:[#allocation11 + $0x2d8] sm:$0xff]
        %v4529 = vld [vmem:[#allocation11 + $0x2e0] sm:$0xff]
        %v4530 = vld [vmem:[#allocation11 + $0x2e8] sm:$0xff]
        %v4531 = vld [vmem:[#allocation11 + $0x2f0] sm:$0xf]
        %v4532 = vld [vmem:[#allocation11 + $0x2f4] sm:$0xff]
        %v4533 = vld [vmem:[#allocation11 + $0x2fc] sm:$0xff]
        %v4534 = vld [vmem:[#allocation11 + $0x304] sm:$0xff]
        %v4535 = vld [vmem:[#allocation11 + $0x30c] sm:$0xf]
        %v4536 = vld [vmem:[#allocation11 + $0x310] sm:$0xff]
        %v4537 = vld [vmem:[#allocation11 + $0x318] sm:$0xff]
        %v4538 = vld [vmem:[#allocation11 + $0x320] sm:$0xff]
        %v4539 = vld [vmem:[#allocation11 + $0x328] sm:$0xf]
        %v4540 = vld [vmem:[#allocation11 + $0x32c] sm:$0xff]
        %v4541 = vld [vmem:[#allocation11 + $0x334] sm:$0xff]
        %v4542 = vld [vmem:[#allocation11 + $0x33c] sm:$0xff]
        %v4543 = vld [vmem:[#allocation11 + $0x344] sm:$0xf]
        %v4544 = vld [vmem:[#allocation11 + $0x348] sm:$0xff]
        %v4545 = vld [vmem:[#allocation11 + $0x350] sm:$0xff]
        %v4546 = vld [vmem:[#allocation11 + $0x358] sm:$0xff]
        %v4547 = vld [vmem:[#allocation11 + $0x360] sm:$0xf]
        %v4548 = vld [vmem:[#allocation11 + $0x364] sm:$0xff]
        %v4549 = vld [vmem:[#allocation11 + $0x36c] sm:$0xff]
        %v4550 = vld [vmem:[#allocation11 + $0x374] sm:$0xff]
        %v4551 = vld [vmem:[#allocation11 + $0x37c] sm:$0xf]
        %v4552 = vld [vmem:[#allocation14] sm:$0xff]
        %v4554 = vperm.slane %v4552, 0
        %v4555 = vperm.slane %v4552, 1
        %v4556 = vperm.slane %v4552, 2
        %v4557 = vperm.slane %v4552, 3
        %v4558 = vperm.slane %v4552, 4
        %v4559 = vperm.slane %v4552, 5
        %v4560 = vperm.slane %v4552, 6
        %v4696 = vunpack.c.l.b16 %v4424
        %v4697 = vunpack.c.h.b16 %v4424
        %v4698 = vunpack.c.l.b16 %v4425
        %v4699 = vunpack.c.h.b16 %v4425
        %v4700 = vunpack.c.l.b16 %v4426
        %v4701 = vunpack.c.h.b16 %v4426
        %v4702 = vunpack.c.l.b16 %v4427
        %v4703 = vunpack.c.l.b16 %v4428
        %v4704 = vunpack.c.h.b16 %v4428
        %v4705 = vunpack.c.l.b16 %v4429
        %v4706 = vunpack.c.h.b16 %v4429
        %v4707 = vunpack.c.l.b16 %v4430
        %v4708 = vunpack.c.h.b16 %v4430
        %v4709 = vunpack.c.l.b16 %v4431
        %v4710 = vunpack.c.l.b16 %v4432
        %v4711 = vunpack.c.h.b16 %v4432
        %v4712 = vunpack.c.l.b16 %v4433
        %v4713 = vunpack.c.h.b16 %v4433
        %v4714 = vunpack.c.l.b16 %v4434
        %v4715 = vunpack.c.h.b16 %v4434
        %v4716 = vunpack.c.l.b16 %v4435
        %v4717 = vunpack.c.l.b16 %v4436
        %v4718 = vunpack.c.h.b16 %v4436
        %v4719 = vunpack.c.l.b16 %v4437
        %v4720 = vunpack.c.h.b16 %v4437
        %v4721 = vunpack.c.l.b16 %v4438
        %v4722 = vunpack.c.h.b16 %v4438
        %v4723 = vunpack.c.l.b16 %v4439
        %v4724 = vunpack.c.l.b16 %v4440
        %v4725 = vunpack.c.h.b16 %v4440
        %v4726 = vunpack.c.l.b16 %v4441
        %v4727 = vunpack.c.h.b16 %v4441
        %v4728 = vunpack.c.l.b16 %v4442
        %v4729 = vunpack.c.h.b16 %v4442
        %v4730 = vunpack.c.l.b16 %v4443
        %v4731 = vunpack.c.l.b16 %v4444
        %v4732 = vunpack.c.h.b16 %v4444
        %v4733 = vunpack.c.l.b16 %v4445
        %v4734 = vunpack.c.h.b16 %v4445
        %v4735 = vunpack.c.l.b16 %v4446
        %v4736 = vunpack.c.h.b16 %v4446
        %v4737 = vunpack.c.l.b16 %v4447
        %v4738 = vunpack.c.l.b16 %v4448
        %v4739 = vunpack.c.h.b16 %v4448
        %v4740 = vunpack.c.l.b16 %v4449
        %v4741 = vunpack.c.h.b16 %v4449
        %v4742 = vunpack.c.l.b16 %v4450
        %v4743 = vunpack.c.h.b16 %v4450
        %v4744 = vunpack.c.l.b16 %v4451
        %v4745 = vunpack.c.l.b16 %v4452
        %v4746 = vunpack.c.h.b16 %v4452
        %v4747 = vunpack.c.l.b16 %v4453
        %v4748 = vunpack.c.h.b16 %v4453
        %v4749 = vunpack.c.l.b16 %v4454
        %v4750 = vunpack.c.h.b16 %v4454
        %v4751 = vunpack.c.l.b16 %v4455
        %v4752 = vunpack.c.l.b16 %v4456
        %v4753 = vunpack.c.h.b16 %v4456
        %v4754 = vunpack.c.l.b16 %v4457
        %v4755 = vunpack.c.h.b16 %v4457
        %v4756 = vunpack.c.l.b16 %v4458
        %v4757 = vunpack.c.h.b16 %v4458
        %v4758 = vunpack.c.l.b16 %v4459
        %v4759 = vunpack.c.l.b16 %v4460
        %v4760 = vunpack.c.h.b16 %v4460
        %v4761 = vunpack.c.l.b16 %v4461
        %v4762 = vunpack.c.h.b16 %v4461
        %v4763 = vunpack.c.l.b16 %v4462
        %v4764 = vunpack.c.h.b16 %v4462
        %v4765 = vunpack.c.l.b16 %v4463
        %v4766 = vunpack.c.l.b16 %v4464
        %v4767 = vunpack.c.h.b16 %v4464
        %v4768 = vunpack.c.l.b16 %v4465
        %v4769 = vunpack.c.h.b16 %v4465
        %v4770 = vunpack.c.l.b16 %v4466
        %v4771 = vunpack.c.h.b16 %v4466
        %v4772 = vunpack.c.l.b16 %v4467
        %v4773 = vunpack.c.l.b16 %v4468
        %v4774 = vunpack.c.h.b16 %v4468
        %v4775 = vunpack.c.l.b16 %v4469
        %v4776 = vunpack.c.h.b16 %v4469
        %v4777 = vunpack.c.l.b16 %v4470
        %v4778 = vunpack.c.h.b16 %v4470
        %v4779 = vunpack.c.l.b16 %v4471
        %v4780 = vunpack.c.l.b16 %v4472
        %v4781 = vunpack.c.h.b16 %v4472
        %v4782 = vunpack.c.l.b16 %v4473
        %v4783 = vunpack.c.h.b16 %v4473
        %v4784 = vunpack.c.l.b16 %v4474
        %v4785 = vunpack.c.h.b16 %v4474
        %v4786 = vunpack.c.l.b16 %v4475
        %v4787 = vunpack.c.l.b16 %v4476
        %v4788 = vunpack.c.h.b16 %v4476
        %v4789 = vunpack.c.l.b16 %v4477
        %v4790 = vunpack.c.h.b16 %v4477
        %v4791 = vunpack.c.l.b16 %v4478
        %v4792 = vunpack.c.h.b16 %v4478
        %v4793 = vunpack.c.l.b16 %v4479
        %v4794 = vunpack.c.l.b16 %v4480
        %v4795 = vunpack.c.h.b16 %v4480
        %v4796 = vunpack.c.l.b16 %v4481
        %v4797 = vunpack.c.h.b16 %v4481
        %v4798 = vunpack.c.l.b16 %v4482
        %v4799 = vunpack.c.h.b16 %v4482
        %v4800 = vunpack.c.l.b16 %v4483
        %v4801 = vunpack.c.l.b16 %v4484
        %v4802 = vunpack.c.h.b16 %v4484
        %v4803 = vunpack.c.l.b16 %v4485
        %v4804 = vunpack.c.h.b16 %v4485
        %v4805 = vunpack.c.l.b16 %v4486
        %v4806 = vunpack.c.h.b16 %v4486
        %v4807 = vunpack.c.l.b16 %v4487
        %v4808 = vunpack.c.l.b16 %v4488
        %v4809 = vunpack.c.h.b16 %v4488
        %v4810 = vunpack.c.l.b16 %v4489
        %v4811 = vunpack.c.h.b16 %v4489
        %v4812 = vunpack.c.l.b16 %v4490
        %v4813 = vunpack.c.h.b16 %v4490
        %v4814 = vunpack.c.l.b16 %v4491
        %v4815 = vunpack.c.l.b16 %v4492
        %v4816 = vunpack.c.h.b16 %v4492
        %v4817 = vunpack.c.l.b16 %v4493
        %v4818 = vunpack.c.h.b16 %v4493
        %v4819 = vunpack.c.l.b16 %v4494
        %v4820 = vunpack.c.h.b16 %v4494
        %v4821 = vunpack.c.l.b16 %v4495
        %v4822 = vunpack.c.l.b16 %v4496
        %v4823 = vunpack.c.h.b16 %v4496
        %v4824 = vunpack.c.l.b16 %v4497
        %v4825 = vunpack.c.h.b16 %v4497
        %v4826 = vunpack.c.l.b16 %v4498
        %v4827 = vunpack.c.h.b16 %v4498
        %v4828 = vunpack.c.l.b16 %v4499
        %v4829 = vunpack.c.l.b16 %v4500
        %v4830 = vunpack.c.h.b16 %v4500
        %v4831 = vunpack.c.l.b16 %v4501
        %v4832 = vunpack.c.h.b16 %v4501
        %v4833 = vunpack.c.l.b16 %v4502
        %v4834 = vunpack.c.h.b16 %v4502
        %v4835 = vunpack.c.l.b16 %v4503
        %v4836 = vunpack.c.l.b16 %v4504
        %v4837 = vunpack.c.h.b16 %v4504
        %v4838 = vunpack.c.l.b16 %v4505
        %v4839 = vunpack.c.h.b16 %v4505
        %v4840 = vunpack.c.l.b16 %v4506
        %v4841 = vunpack.c.h.b16 %v4506
        %v4842 = vunpack.c.l.b16 %v4507
        %v4843 = vunpack.c.l.b16 %v4508
        %v4844 = vunpack.c.h.b16 %v4508
        %v4845 = vunpack.c.l.b16 %v4509
        %v4846 = vunpack.c.h.b16 %v4509
        %v4847 = vunpack.c.l.b16 %v4510
        %v4848 = vunpack.c.h.b16 %v4510
        %v4849 = vunpack.c.l.b16 %v4511
        %v4850 = vunpack.c.l.b16 %v4512
        %v4851 = vunpack.c.h.b16 %v4512
        %v4852 = vunpack.c.l.b16 %v4513
        %v4853 = vunpack.c.h.b16 %v4513
        %v4854 = vunpack.c.l.b16 %v4514
        %v4855 = vunpack.c.h.b16 %v4514
        %v4856 = vunpack.c.l.b16 %v4515
        %v4857 = vunpack.c.l.b16 %v4516
        %v4858 = vunpack.c.h.b16 %v4516
        %v4859 = vunpack.c.l.b16 %v4517
        %v4860 = vunpack.c.h.b16 %v4517
        %v4861 = vunpack.c.l.b16 %v4518
        %v4862 = vunpack.c.h.b16 %v4518
        %v4863 = vunpack.c.l.b16 %v4519
        %v4864 = vunpack.c.l.b16 %v4520
        %v4865 = vunpack.c.h.b16 %v4520
        %v4866 = vunpack.c.l.b16 %v4521
        %v4867 = vunpack.c.h.b16 %v4521
        %v4868 = vunpack.c.l.b16 %v4522
        %v4869 = vunpack.c.h.b16 %v4522
        %v4870 = vunpack.c.l.b16 %v4523
        %v4871 = vunpack.c.l.b16 %v4524
        %v4872 = vunpack.c.h.b16 %v4524
        %v4873 = vunpack.c.l.b16 %v4525
        %v4874 = vunpack.c.h.b16 %v4525
        %v4875 = vunpack.c.l.b16 %v4526
        %v4876 = vunpack.c.h.b16 %v4526
        %v4877 = vunpack.c.l.b16 %v4527
        %v4878 = vunpack.c.l.b16 %v4528
        %v4879 = vunpack.c.h.b16 %v4528
        %v4880 = vunpack.c.l.b16 %v4529
        %v4881 = vunpack.c.h.b16 %v4529
        %v4882 = vunpack.c.l.b16 %v4530
        %v4883 = vunpack.c.h.b16 %v4530
        %v4884 = vunpack.c.l.b16 %v4531
        %v4885 = vunpack.c.l.b16 %v4532
        %v4886 = vunpack.c.h.b16 %v4532
        %v4887 = vunpack.c.l.b16 %v4533
        %v4888 = vunpack.c.h.b16 %v4533
        %v4889 = vunpack.c.l.b16 %v4534
        %v4890 = vunpack.c.h.b16 %v4534
        %v4891 = vunpack.c.l.b16 %v4535
        %v4892 = vunpack.c.l.b16 %v4536
        %v4893 = vunpack.c.h.b16 %v4536
        %v4894 = vunpack.c.l.b16 %v4537
        %v4895 = vunpack.c.h.b16 %v4537
        %v4896 = vunpack.c.l.b16 %v4538
        %v4897 = vunpack.c.h.b16 %v4538
        %v4898 = vunpack.c.l.b16 %v4539
        %v4899 = vunpack.c.l.b16 %v4540
        %v4900 = vunpack.c.h.b16 %v4540
        %v4901 = vunpack.c.l.b16 %v4541
        %v4902 = vunpack.c.h.b16 %v4541
        %v4903 = vunpack.c.l.b16 %v4542
        %v4904 = vunpack.c.h.b16 %v4542
        %v4905 = vunpack.c.l.b16 %v4543
        %v4906 = vunpack.c.l.b16 %v4544
        %v4907 = vunpack.c.h.b16 %v4544
        %v4908 = vunpack.c.l.b16 %v4545
        %v4909 = vunpack.c.h.b16 %v4545
        %v4910 = vunpack.c.l.b16 %v4546
        %v4911 = vunpack.c.h.b16 %v4546
        %v4912 = vunpack.c.l.b16 %v4547
        %v4913 = vunpack.c.l.b16 %v4548
        %v4914 = vunpack.c.h.b16 %v4548
        %v4915 = vunpack.c.l.b16 %v4549
        %v4916 = vunpack.c.h.b16 %v4549
        %v4917 = vunpack.c.l.b16 %v4550
        %v4918 = vunpack.c.h.b16 %v4550
        %v4919 = vunpack.c.l.b16 %v4551
        %v4920 = vpack.c.b16 %v4703, %v4696
        %v4921 = vpack.c.b16 %v4704, %v4697
        %v4922 = vpack.c.b16 %v4705, %v4698
        %v4923 = vpack.c.b16 %v4706, %v4699
        %v4924 = vpack.c.b16 %v4707, %v4700
        %v4925 = vpack.c.b16 %v4708, %v4701
        %v4926 = vpack.c.b16 %v4709, %v4702
        %v4927 = vpack.c.b16 %v4717, %v4710
        %v4928 = vpack.c.b16 %v4718, %v4711
        %v4929 = vpack.c.b16 %v4719, %v4712
        %v4930 = vpack.c.b16 %v4720, %v4713
        %v4931 = vpack.c.b16 %v4721, %v4714
        %v4932 = vpack.c.b16 %v4722, %v4715
        %v4933 = vpack.c.b16 %v4723, %v4716
        %v4934 = vpack.c.b16 %v4731, %v4724
        %v4935 = vpack.c.b16 %v4732, %v4725
        %v4936 = vpack.c.b16 %v4733, %v4726
        %v4937 = vpack.c.b16 %v4734, %v4727
        %v4938 = vpack.c.b16 %v4735, %v4728
        %v4939 = vpack.c.b16 %v4736, %v4729
        %v4940 = vpack.c.b16 %v4737, %v4730
        %v4941 = vpack.c.b16 %v4745, %v4738
        %v4942 = vpack.c.b16 %v4746, %v4739
        %v4943 = vpack.c.b16 %v4747, %v4740
        %v4944 = vpack.c.b16 %v4748, %v4741
        %v4945 = vpack.c.b16 %v4749, %v4742
        %v4946 = vpack.c.b16 %v4750, %v4743
        %v4947 = vpack.c.b16 %v4751, %v4744
        %v4948 = vpack.c.b16 %v4759, %v4752
        %v4949 = vpack.c.b16 %v4760, %v4753
        %v4950 = vpack.c.b16 %v4761, %v4754
        %v4951 = vpack.c.b16 %v4762, %v4755
        %v4952 = vpack.c.b16 %v4763, %v4756
        %v4953 = vpack.c.b16 %v4764, %v4757
        %v4954 = vpack.c.b16 %v4765, %v4758
        %v4955 = vpack.c.b16 %v4773, %v4766
        %v4956 = vpack.c.b16 %v4774, %v4767
        %v4957 = vpack.c.b16 %v4775, %v4768
        %v4958 = vpack.c.b16 %v4776, %v4769
        %v4959 = vpack.c.b16 %v4777, %v4770
        %v4960 = vpack.c.b16 %v4778, %v4771
        %v4961 = vpack.c.b16 %v4779, %v4772
        %v4962 = vpack.c.b16 %v4787, %v4780
        %v4963 = vpack.c.b16 %v4788, %v4781
        %v4964 = vpack.c.b16 %v4789, %v4782
        %v4965 = vpack.c.b16 %v4790, %v4783
        %v4966 = vpack.c.b16 %v4791, %v4784
        %v4967 = vpack.c.b16 %v4792, %v4785
        %v4968 = vpack.c.b16 %v4793, %v4786
        %v4969 = vpack.c.b16 %v4801, %v4794
        %v4970 = vpack.c.b16 %v4802, %v4795
        %v4971 = vpack.c.b16 %v4803, %v4796
        %v4972 = vpack.c.b16 %v4804, %v4797
        %v4973 = vpack.c.b16 %v4805, %v4798
        %v4974 = vpack.c.b16 %v4806, %v4799
        %v4975 = vpack.c.b16 %v4807, %v4800
        %v4976 = vpack.c.b16 %v4815, %v4808
        %v4977 = vpack.c.b16 %v4816, %v4809
        %v4978 = vpack.c.b16 %v4817, %v4810
        %v4979 = vpack.c.b16 %v4818, %v4811
        %v4980 = vpack.c.b16 %v4819, %v4812
        %v4981 = vpack.c.b16 %v4820, %v4813
        %v4982 = vpack.c.b16 %v4821, %v4814
        %v4983 = vpack.c.b16 %v4829, %v4822
        %v4984 = vpack.c.b16 %v4830, %v4823
        %v4985 = vpack.c.b16 %v4831, %v4824
        %v4986 = vpack.c.b16 %v4832, %v4825
        %v4987 = vpack.c.b16 %v4833, %v4826
        %v4988 = vpack.c.b16 %v4834, %v4827
        %v4989 = vpack.c.b16 %v4835, %v4828
        %v4990 = vpack.c.b16 %v4843, %v4836
        %v4991 = vpack.c.b16 %v4844, %v4837
        %v4992 = vpack.c.b16 %v4845, %v4838
        %v4993 = vpack.c.b16 %v4846, %v4839
        %v4994 = vpack.c.b16 %v4847, %v4840
        %v4995 = vpack.c.b16 %v4848, %v4841
        %v4996 = vpack.c.b16 %v4849, %v4842
        %v4997 = vpack.c.b16 %v4857, %v4850
        %v4998 = vpack.c.b16 %v4858, %v4851
        %v4999 = vpack.c.b16 %v4859, %v4852
        %v5000 = vpack.c.b16 %v4860, %v4853
        %v5001 = vpack.c.b16 %v4861, %v4854
        %v5002 = vpack.c.b16 %v4862, %v4855
        %v5003 = vpack.c.b16 %v4863, %v4856
        %v5004 = vpack.c.b16 %v4871, %v4864
        %v5005 = vpack.c.b16 %v4872, %v4865
        %v5006 = vpack.c.b16 %v4873, %v4866
        %v5007 = vpack.c.b16 %v4874, %v4867
        %v5008 = vpack.c.b16 %v4875, %v4868
        %v5009 = vpack.c.b16 %v4876, %v4869
        %v5010 = vpack.c.b16 %v4877, %v4870
        %v5011 = vpack.c.b16 %v4885, %v4878
        %v5012 = vpack.c.b16 %v4886, %v4879
        %v5013 = vpack.c.b16 %v4887, %v4880
        %v5014 = vpack.c.b16 %v4888, %v4881
        %v5015 = vpack.c.b16 %v4889, %v4882
        %v5016 = vpack.c.b16 %v4890, %v4883
        %v5017 = vpack.c.b16 %v4891, %v4884
        %v5018 = vpack.c.b16 %v4899, %v4892
        %v5019 = vpack.c.b16 %v4900, %v4893
        %v5020 = vpack.c.b16 %v4901, %v4894
        %v5021 = vpack.c.b16 %v4902, %v4895
        %v5022 = vpack.c.b16 %v4903, %v4896
        %v5023 = vpack.c.b16 %v4904, %v4897
        %v5024 = vpack.c.b16 %v4905, %v4898
        %v5025 = vpack.c.b16 %v4913, %v4906
        %v5026 = vpack.c.b16 %v4914, %v4907
        %v5027 = vpack.c.b16 %v4915, %v4908
        %v5028 = vpack.c.b16 %v4916, %v4909
        %v5029 = vpack.c.b16 %v4917, %v4910
        %v5030 = vpack.c.b16 %v4918, %v4911
        %v5031 = vpack.c.b16 %v4919, %v4912
        %5144 = vmatpush.bf16.msra.mxu0 %v4969
        %5145 = vmatpush.bf16.msra.mxu0 %v4962
        %5146 = vmatpush.bf16.msra.mxu0 %v4955
        %5147 = vmatpush.bf16.msra.mxu0 %v4948
        %5148 = vmatpush.bf16.msra.mxu0 %v4941
        %5149 = vmatpush.bf16.msra.mxu0 %v4934
        %5150 = vmatpush.bf16.msra.mxu0 %v4927
        %5151 = vmatpush.bf16.msra.mxu0 %v4920
        %5152 = vmatmul.bf16.gmra.mxu0 %v4392
        %v5153 = vpop.f32.mrf.mxu0
        %v5154 = vadd.f32 %v4554, %v5153
        %v5155 = vpop.f32.mrf.mxu0
        %v5156 = vadd.f32 %v4554, %v5155
        %5157 = vmatmul.bf16.gmra.mxu0 %v4394
        %v5158 = vpop.f32.mrf.mxu0
        %v5159 = vadd.f32 %v4554, %v5158
        %v5160 = vpop.f32.mrf.mxu0
        %v5161 = vadd.f32 %v4554, %v5160
        %5162 = vmatmul.bf16.gmra.mxu0 %v4396
        %v5163 = vpop.f32.mrf.mxu0
        %v5164 = vadd.f32 %v4554, %v5163
        %v5165 = vpop.f32.mrf.mxu0
        %v5166 = vadd.f32 %v4554, %v5165
        %5167 = vmatmul.bf16.gmra.mxu0 %v4398
        %v5168 = vpop.f32.mrf.mxu0
        %v5169 = vadd.f32 %v4554, %v5168
        %v5170 = vpop.f32.mrf.mxu0
        %v5171 = vadd.f32 %v4554, %v5170
        %5172 = vmatmul.bf16.gmra.mxu0 %v4400
        %v5173 = vpop.f32.mrf.mxu0
        %v5174 = vadd.f32 %v4554, %v5173
        %v5175 = vpop.f32.mrf.mxu0
        %v5176 = vadd.f32 %v4554, %v5175
        %5177 = vmatmul.bf16.gmra.mxu0 %v4402
        %v5178 = vpop.f32.mrf.mxu0
        %v5179 = vadd.f32 %v4554, %v5178
        %v5180 = vpop.f32.mrf.mxu0
        %v5181 = vadd.f32 %v4554, %v5180
        %5182 = vmatmul.bf16.gmra.mxu0 %v4404
        %v5183 = vpop.f32.mrf.mxu0
        %v5184 = vadd.f32 %v4554, %v5183
        %v5185 = vpop.f32.mrf.mxu0
        %v5186 = vadd.f32 %v4554, %v5185
        %5187 = vmatmul.bf16.gmra.mxu0 %v4406
        %v5188 = vpop.f32.mrf.mxu0
        %v5189 = vadd.f32 %v4554, %v5188
        %v5190 = vpop.f32.mrf.mxu0
        %v5191 = vadd.f32 %v4554, %v5190
        %5192 = vmatmul.bf16.gmra.mxu0 %v4408
        %v5193 = vpop.f32.mrf.mxu0
        %v5194 = vadd.f32 %v4554, %v5193
        %v5195 = vpop.f32.mrf.mxu0
        %v5196 = vadd.f32 %v4554, %v5195
        %5197 = vmatmul.bf16.gmra.mxu0 %v4410
        %v5198 = vpop.f32.mrf.mxu0
        %v5199 = vadd.f32 %v4554, %v5198
        %v5200 = vpop.f32.mrf.mxu0
        %v5201 = vadd.f32 %v4554, %v5200
        %5202 = vmatmul.bf16.gmra.mxu0 %v4412
        %v5203 = vpop.f32.mrf.mxu0
        %v5204 = vadd.f32 %v4554, %v5203
        %v5205 = vpop.f32.mrf.mxu0
        %v5206 = vadd.f32 %v4554, %v5205
        %5207 = vmatmul.bf16.gmra.mxu0 %v4414
        %v5208 = vpop.f32.mrf.mxu0
        %v5209 = vadd.f32 %v4554, %v5208
        %v5210 = vpop.f32.mrf.mxu0
        %v5211 = vadd.f32 %v4554, %v5210
        %5212 = vmatmul.bf16.gmra.mxu0 %v4416
        %v5213 = vpop.f32.mrf.mxu0
        %v5214 = vadd.f32 %v4554, %v5213
        %v5215 = vpop.f32.mrf.mxu0
        %v5216 = vadd.f32 %v4554, %v5215
        %5217 = vmatmul.bf16.gmra.mxu0 %v4418
        %v5218 = vpop.f32.mrf.mxu0
        %v5219 = vadd.f32 %v4554, %v5218
        %v5220 = vpop.f32.mrf.mxu0
        %v5221 = vadd.f32 %v4554, %v5220
        %5222 = vmatmul.bf16.gmra.mxu0 %v4420
        %v5223 = vpop.f32.mrf.mxu0
        %v5224 = vadd.f32 %v4554, %v5223
        %v5225 = vpop.f32.mrf.mxu0
        %v5226 = vadd.f32 %v4554, %v5225
        %5227 = vmatmul.bf16.gmra.mxu0 %v4422
        %v5228 = vpop.f32.mrf.mxu0
        %v5229 = vadd.f32 %v4554, %v5228
        %v5230 = vpop.f32.mrf.mxu0
        %v5231 = vadd.f32 %v4554, %v5230
        %5232 = vdwg.mxu0
        %5233 = vmatpush.bf16.msra.mxu0 %v5025
        %5234 = vmatpush.bf16.msra.mxu0 %v5018
        %5235 = vmatpush.bf16.msra.mxu0 %v5011
        %5236 = vmatpush.bf16.msra.mxu0 %v5004
        %5237 = vmatpush.bf16.msra.mxu0 %v4997
        %5238 = vmatpush.bf16.msra.mxu0 %v4990
        %5239 = vmatpush.bf16.msra.mxu0 %v4983
        %5240 = vmatpush.bf16.msra.mxu0 %v4976
        %5241 = vmatmul.bf16.gmra.mxu0 %v4393
        %v5242 = vpop.f32.mrf.mxu0
        %v5243 = vadd.f32 %v5154, %v5242
        %v5244 = vpop.f32.mrf.mxu0
        %v5245 = vadd.f32 %v5156, %v5244
        %5246 = vmatmul.bf16.gmra.mxu0 %v4395
        %v5247 = vpop.f32.mrf.mxu0
        %v5248 = vadd.f32 %v5159, %v5247
        %v5249 = vpop.f32.mrf.mxu0
        %v5250 = vadd.f32 %v5161, %v5249
        %5251 = vmatmul.bf16.gmra.mxu0 %v4397
        %v5252 = vpop.f32.mrf.mxu0
        %v5253 = vadd.f32 %v5164, %v5252
        %v5254 = vpop.f32.mrf.mxu0
        %v5255 = vadd.f32 %v5166, %v5254
        %5256 = vmatmul.bf16.gmra.mxu0 %v4399
        %v5257 = vpop.f32.mrf.mxu0
        %v5258 = vadd.f32 %v5169, %v5257
        %v5259 = vpop.f32.mrf.mxu0
        %v5260 = vadd.f32 %v5171, %v5259
        %5261 = vmatmul.bf16.gmra.mxu0 %v4401
        %v5262 = vpop.f32.mrf.mxu0
        %v5263 = vadd.f32 %v5174, %v5262
        %v5264 = vpop.f32.mrf.mxu0
        %v5265 = vadd.f32 %v5176, %v5264
        %5266 = vmatmul.bf16.gmra.mxu0 %v4403
        %v5267 = vpop.f32.mrf.mxu0
        %v5268 = vadd.f32 %v5179, %v5267
        %v5269 = vpop.f32.mrf.mxu0
        %v5270 = vadd.f32 %v5181, %v5269
        %5271 = vmatmul.bf16.gmra.mxu0 %v4405
        %v5272 = vpop.f32.mrf.mxu0
        %v5273 = vadd.f32 %v5184, %v5272
        %v5274 = vpop.f32.mrf.mxu0
        %v5275 = vadd.f32 %v5186, %v5274
        %5276 = vmatmul.bf16.gmra.mxu0 %v4407
        %v5277 = vpop.f32.mrf.mxu0
        %v5278 = vadd.f32 %v5189, %v5277
        %v5279 = vpop.f32.mrf.mxu0
        %v5280 = vadd.f32 %v5191, %v5279
        %5281 = vmatmul.bf16.gmra.mxu0 %v4409
        %v5282 = vpop.f32.mrf.mxu0
        %v5283 = vadd.f32 %v5194, %v5282
        %v5284 = vpop.f32.mrf.mxu0
        %v5285 = vadd.f32 %v5196, %v5284
        %5286 = vmatmul.bf16.gmra.mxu0 %v4411
        %v5287 = vpop.f32.mrf.mxu0
        %v5288 = vadd.f32 %v5199, %v5287
        %v5289 = vpop.f32.mrf.mxu0
        %v5290 = vadd.f32 %v5201, %v5289
        %5291 = vmatmul.bf16.gmra.mxu0 %v4413
        %v5292 = vpop.f32.mrf.mxu0
        %v5293 = vadd.f32 %v5204, %v5292
        %v5294 = vpop.f32.mrf.mxu0
        %v5295 = vadd.f32 %v5206, %v5294
        %5296 = vmatmul.bf16.gmra.mxu0 %v4415
        %v5297 = vpop.f32.mrf.mxu0
        %v5298 = vadd.f32 %v5209, %v5297
        %v5299 = vpop.f32.mrf.mxu0
        %v5300 = vadd.f32 %v5211, %v5299
        %5301 = vmatmul.bf16.gmra.mxu0 %v4417
        %v5302 = vpop.f32.mrf.mxu0
        %v5303 = vadd.f32 %v5214, %v5302
        %v5304 = vpop.f32.mrf.mxu0
        %v5305 = vadd.f32 %v5216, %v5304
        %5306 = vmatmul.bf16.gmra.mxu0 %v4419
        %v5307 = vpop.f32.mrf.mxu0
        %v5308 = vadd.f32 %v5219, %v5307
        %v5309 = vpop.f32.mrf.mxu0
        %v5310 = vadd.f32 %v5221, %v5309
        %5311 = vmatmul.bf16.gmra.mxu0 %v4421
        %v5312 = vpop.f32.mrf.mxu0
        %v5313 = vadd.f32 %v5224, %v5312
        %v5314 = vpop.f32.mrf.mxu0
        %v5315 = vadd.f32 %v5226, %v5314
        %5316 = vmatmul.bf16.gmra.mxu0 %v4423
        %v5317 = vpop.f32.mrf.mxu0
        %v5318 = vadd.f32 %v5229, %v5317
        %v5319 = vpop.f32.mrf.mxu0
        %v5320 = vadd.f32 %v5231, %v5319
        %5321 = vdwg.mxu0
        %5322 = vmatpush.bf16.msra.mxu0 %v4970
        %5323 = vmatpush.bf16.msra.mxu0 %v4963
        %5324 = vmatpush.bf16.msra.mxu0 %v4956
        %5325 = vmatpush.bf16.msra.mxu0 %v4949
        %5326 = vmatpush.bf16.msra.mxu0 %v4942
        %5327 = vmatpush.bf16.msra.mxu0 %v4935
        %5328 = vmatpush.bf16.msra.mxu0 %v4928
        %5329 = vmatpush.bf16.msra.mxu0 %v4921
        %5330 = vmatmul.bf16.gmra.mxu0 %v4392
        %v5331 = vpop.f32.mrf.mxu0
        %v5332 = vadd.f32 %v4555, %v5331
        %v5333 = vpop.f32.mrf.mxu0
        %v5334 = vadd.f32 %v4555, %v5333
        %5335 = vmatmul.bf16.gmra.mxu0 %v4394
        %v5336 = vpop.f32.mrf.mxu0
        %v5337 = vadd.f32 %v4555, %v5336
        %v5338 = vpop.f32.mrf.mxu0
        %v5339 = vadd.f32 %v4555, %v5338
        %5340 = vmatmul.bf16.gmra.mxu0 %v4396
        %v5341 = vpop.f32.mrf.mxu0
        %v5342 = vadd.f32 %v4555, %v5341
        %v5343 = vpop.f32.mrf.mxu0
        %v5344 = vadd.f32 %v4555, %v5343
        %5345 = vmatmul.bf16.gmra.mxu0 %v4398
        %v5346 = vpop.f32.mrf.mxu0
        %v5347 = vadd.f32 %v4555, %v5346
        %v5348 = vpop.f32.mrf.mxu0
        %v5349 = vadd.f32 %v4555, %v5348
        %5350 = vmatmul.bf16.gmra.mxu0 %v4400
        %v5351 = vpop.f32.mrf.mxu0
        %v5352 = vadd.f32 %v4555, %v5351
        %v5353 = vpop.f32.mrf.mxu0
        %v5354 = vadd.f32 %v4555, %v5353
        %5355 = vmatmul.bf16.gmra.mxu0 %v4402
        %v5356 = vpop.f32.mrf.mxu0
        %v5357 = vadd.f32 %v4555, %v5356
        %v5358 = vpop.f32.mrf.mxu0
        %v5359 = vadd.f32 %v4555, %v5358
        %5360 = vmatmul.bf16.gmra.mxu0 %v4404
        %v5361 = vpop.f32.mrf.mxu0
        %v5362 = vadd.f32 %v4555, %v5361
        %v5363 = vpop.f32.mrf.mxu0
        %v5364 = vadd.f32 %v4555, %v5363
        %5365 = vmatmul.bf16.gmra.mxu0 %v4406
        %v5366 = vpop.f32.mrf.mxu0
        %v5367 = vadd.f32 %v4555, %v5366
        %v5368 = vpop.f32.mrf.mxu0
        %v5369 = vadd.f32 %v4555, %v5368
        %5370 = vmatmul.bf16.gmra.mxu0 %v4408
        %v5371 = vpop.f32.mrf.mxu0
        %v5372 = vadd.f32 %v4555, %v5371
        %v5373 = vpop.f32.mrf.mxu0
        %v5374 = vadd.f32 %v4555, %v5373
        %5375 = vmatmul.bf16.gmra.mxu0 %v4410
        %v5376 = vpop.f32.mrf.mxu0
        %v5377 = vadd.f32 %v4555, %v5376
        %v5378 = vpop.f32.mrf.mxu0
        %v5379 = vadd.f32 %v4555, %v5378
        %5380 = vmatmul.bf16.gmra.mxu0 %v4412
        %v5381 = vpop.f32.mrf.mxu0
        %v5382 = vadd.f32 %v4555, %v5381
        %v5383 = vpop.f32.mrf.mxu0
        %v5384 = vadd.f32 %v4555, %v5383
        %5385 = vmatmul.bf16.gmra.mxu0 %v4414
        %v5386 = vpop.f32.mrf.mxu0
        %v5387 = vadd.f32 %v4555, %v5386
        %v5388 = vpop.f32.mrf.mxu0
        %v5389 = vadd.f32 %v4555, %v5388
        %5390 = vmatmul.bf16.gmra.mxu0 %v4416
        %v5391 = vpop.f32.mrf.mxu0
        %v5392 = vadd.f32 %v4555, %v5391
        %v5393 = vpop.f32.mrf.mxu0
        %v5394 = vadd.f32 %v4555, %v5393
        %5395 = vmatmul.bf16.gmra.mxu0 %v4418
        %v5396 = vpop.f32.mrf.mxu0
        %v5397 = vadd.f32 %v4555, %v5396
        %v5398 = vpop.f32.mrf.mxu0
        %v5399 = vadd.f32 %v4555, %v5398
        %5400 = vmatmul.bf16.gmra.mxu0 %v4420
        %v5401 = vpop.f32.mrf.mxu0
        %v5402 = vadd.f32 %v4555, %v5401
        %v5403 = vpop.f32.mrf.mxu0
        %v5404 = vadd.f32 %v4555, %v5403
        %5405 = vmatmul.bf16.gmra.mxu0 %v4422
        %v5406 = vpop.f32.mrf.mxu0
        %v5407 = vadd.f32 %v4555, %v5406
        %v5408 = vpop.f32.mrf.mxu0
        %v5409 = vadd.f32 %v4555, %v5408
        %5410 = vdwg.mxu0
        %5411 = vmatpush.bf16.msra.mxu0 %v5026
        %5412 = vmatpush.bf16.msra.mxu0 %v5019
        %5413 = vmatpush.bf16.msra.mxu0 %v5012
        %5414 = vmatpush.bf16.msra.mxu0 %v5005
        %5415 = vmatpush.bf16.msra.mxu0 %v4998
        %5416 = vmatpush.bf16.msra.mxu0 %v4991
        %5417 = vmatpush.bf16.msra.mxu0 %v4984
        %5418 = vmatpush.bf16.msra.mxu0 %v4977
        %5419 = vmatmul.bf16.gmra.mxu0 %v4393
        %v5420 = vpop.f32.mrf.mxu0
        %v5421 = vadd.f32 %v5332, %v5420
        %v5422 = vpop.f32.mrf.mxu0
        %v5423 = vadd.f32 %v5334, %v5422
        %5424 = vmatmul.bf16.gmra.mxu0 %v4395
        %v5425 = vpop.f32.mrf.mxu0
        %v5426 = vadd.f32 %v5337, %v5425
        %v5427 = vpop.f32.mrf.mxu0
        %v5428 = vadd.f32 %v5339, %v5427
        %5429 = vmatmul.bf16.gmra.mxu0 %v4397
        %v5430 = vpop.f32.mrf.mxu0
        %v5431 = vadd.f32 %v5342, %v5430
        %v5432 = vpop.f32.mrf.mxu0
        %v5433 = vadd.f32 %v5344, %v5432
        %5434 = vmatmul.bf16.gmra.mxu0 %v4399
        %v5435 = vpop.f32.mrf.mxu0
        %v5436 = vadd.f32 %v5347, %v5435
        %v5437 = vpop.f32.mrf.mxu0
        %v5438 = vadd.f32 %v5349, %v5437
        %5439 = vmatmul.bf16.gmra.mxu0 %v4401
        %v5440 = vpop.f32.mrf.mxu0
        %v5441 = vadd.f32 %v5352, %v5440
        %v5442 = vpop.f32.mrf.mxu0
        %v5443 = vadd.f32 %v5354, %v5442
        %5444 = vmatmul.bf16.gmra.mxu0 %v4403
        %v5445 = vpop.f32.mrf.mxu0
        %v5446 = vadd.f32 %v5357, %v5445
        %v5447 = vpop.f32.mrf.mxu0
        %v5448 = vadd.f32 %v5359, %v5447
        %5449 = vmatmul.bf16.gmra.mxu0 %v4405
        %v5450 = vpop.f32.mrf.mxu0
        %v5451 = vadd.f32 %v5362, %v5450
        %v5452 = vpop.f32.mrf.mxu0
        %v5453 = vadd.f32 %v5364, %v5452
        %5454 = vmatmul.bf16.gmra.mxu0 %v4407
        %v5455 = vpop.f32.mrf.mxu0
        %v5456 = vadd.f32 %v5367, %v5455
        %v5457 = vpop.f32.mrf.mxu0
        %v5458 = vadd.f32 %v5369, %v5457
        %5459 = vmatmul.bf16.gmra.mxu0 %v4409
        %v5460 = vpop.f32.mrf.mxu0
        %v5461 = vadd.f32 %v5372, %v5460
        %v5462 = vpop.f32.mrf.mxu0
        %v5463 = vadd.f32 %v5374, %v5462
        %5464 = vmatmul.bf16.gmra.mxu0 %v4411
        %v5465 = vpop.f32.mrf.mxu0
        %v5466 = vadd.f32 %v5377, %v5465
        %v5467 = vpop.f32.mrf.mxu0
        %v5468 = vadd.f32 %v5379, %v5467
        %5469 = vmatmul.bf16.gmra.mxu0 %v4413
        %v5470 = vpop.f32.mrf.mxu0
        %v5471 = vadd.f32 %v5382, %v5470
        %v5472 = vpop.f32.mrf.mxu0
        %v5473 = vadd.f32 %v5384, %v5472
        %5474 = vmatmul.bf16.gmra.mxu0 %v4415
        %v5475 = vpop.f32.mrf.mxu0
        %v5476 = vadd.f32 %v5387, %v5475
        %v5477 = vpop.f32.mrf.mxu0
        %v5478 = vadd.f32 %v5389, %v5477
        %5479 = vmatmul.bf16.gmra.mxu0 %v4417
        %v5480 = vpop.f32.mrf.mxu0
        %v5481 = vadd.f32 %v5392, %v5480
        %v5482 = vpop.f32.mrf.mxu0
        %v5483 = vadd.f32 %v5394, %v5482
        %5484 = vmatmul.bf16.gmra.mxu0 %v4419
        %v5485 = vpop.f32.mrf.mxu0
        %v5486 = vadd.f32 %v5397, %v5485
        %v5487 = vpop.f32.mrf.mxu0
        %v5488 = vadd.f32 %v5399, %v5487
        %5489 = vmatmul.bf16.gmra.mxu0 %v4421
        %v5490 = vpop.f32.mrf.mxu0
        %v5491 = vadd.f32 %v5402, %v5490
        %v5492 = vpop.f32.mrf.mxu0
        %v5493 = vadd.f32 %v5404, %v5492
        %5494 = vmatmul.bf16.gmra.mxu0 %v4423
        %v5495 = vpop.f32.mrf.mxu0
        %v5496 = vadd.f32 %v5407, %v5495
        %v5497 = vpop.f32.mrf.mxu0
        %v5498 = vadd.f32 %v5409, %v5497
        %5499 = vdwg.mxu0
        %5500 = vmatpush.bf16.msra.mxu0 %v4971
        %5501 = vmatpush.bf16.msra.mxu0 %v4964
        %5502 = vmatpush.bf16.msra.mxu0 %v4957
        %5503 = vmatpush.bf16.msra.mxu0 %v4950
        %5504 = vmatpush.bf16.msra.mxu0 %v4943
        %5505 = vmatpush.bf16.msra.mxu0 %v4936
        %5506 = vmatpush.bf16.msra.mxu0 %v4929
        %5507 = vmatpush.bf16.msra.mxu0 %v4922
        %5508 = vmatmul.bf16.gmra.mxu0 %v4392
        %v5509 = vpop.f32.mrf.mxu0
        %v5510 = vadd.f32 %v4556, %v5509
        %v5511 = vpop.f32.mrf.mxu0
        %v5512 = vadd.f32 %v4556, %v5511
        %5513 = vmatmul.bf16.gmra.mxu0 %v4394
        %v5514 = vpop.f32.mrf.mxu0
        %v5515 = vadd.f32 %v4556, %v5514
        %v5516 = vpop.f32.mrf.mxu0
        %v5517 = vadd.f32 %v4556, %v5516
        %5518 = vmatmul.bf16.gmra.mxu0 %v4396
        %v5519 = vpop.f32.mrf.mxu0
        %v5520 = vadd.f32 %v4556, %v5519
        %v5521 = vpop.f32.mrf.mxu0
        %v5522 = vadd.f32 %v4556, %v5521
        %5523 = vmatmul.bf16.gmra.mxu0 %v4398
        %v5524 = vpop.f32.mrf.mxu0
        %v5525 = vadd.f32 %v4556, %v5524
        %v5526 = vpop.f32.mrf.mxu0
        %v5527 = vadd.f32 %v4556, %v5526
        %5528 = vmatmul.bf16.gmra.mxu0 %v4400
        %v5529 = vpop.f32.mrf.mxu0
        %v5530 = vadd.f32 %v4556, %v5529
        %v5531 = vpop.f32.mrf.mxu0
        %v5532 = vadd.f32 %v4556, %v5531
        %5533 = vmatmul.bf16.gmra.mxu0 %v4402
        %v5534 = vpop.f32.mrf.mxu0
        %v5535 = vadd.f32 %v4556, %v5534
        %v5536 = vpop.f32.mrf.mxu0
        %v5537 = vadd.f32 %v4556, %v5536
        %5538 = vmatmul.bf16.gmra.mxu0 %v4404
        %v5539 = vpop.f32.mrf.mxu0
        %v5540 = vadd.f32 %v4556, %v5539
        %v5541 = vpop.f32.mrf.mxu0
        %v5542 = vadd.f32 %v4556, %v5541
        %5543 = vmatmul.bf16.gmra.mxu0 %v4406
        %v5544 = vpop.f32.mrf.mxu0
        %v5545 = vadd.f32 %v4556, %v5544
        %v5546 = vpop.f32.mrf.mxu0
        %v5547 = vadd.f32 %v4556, %v5546
        %5548 = vmatmul.bf16.gmra.mxu0 %v4408
        %v5549 = vpop.f32.mrf.mxu0
        %v5550 = vadd.f32 %v4556, %v5549
        %v5551 = vpop.f32.mrf.mxu0
        %v5552 = vadd.f32 %v4556, %v5551
        %5553 = vmatmul.bf16.gmra.mxu0 %v4410
        %v5554 = vpop.f32.mrf.mxu0
        %v5555 = vadd.f32 %v4556, %v5554
        %v5556 = vpop.f32.mrf.mxu0
        %v5557 = vadd.f32 %v4556, %v5556
        %5558 = vmatmul.bf16.gmra.mxu0 %v4412
        %v5559 = vpop.f32.mrf.mxu0
        %v5560 = vadd.f32 %v4556, %v5559
        %v5561 = vpop.f32.mrf.mxu0
        %v5562 = vadd.f32 %v4556, %v5561
        %5563 = vmatmul.bf16.gmra.mxu0 %v4414
        %v5564 = vpop.f32.mrf.mxu0
        %v5565 = vadd.f32 %v4556, %v5564
        %v5566 = vpop.f32.mrf.mxu0
        %v5567 = vadd.f32 %v4556, %v5566
        %5568 = vmatmul.bf16.gmra.mxu0 %v4416
        %v5569 = vpop.f32.mrf.mxu0
        %v5570 = vadd.f32 %v4556, %v5569
        %v5571 = vpop.f32.mrf.mxu0
        %v5572 = vadd.f32 %v4556, %v5571
        %5573 = vmatmul.bf16.gmra.mxu0 %v4418
        %v5574 = vpop.f32.mrf.mxu0
        %v5575 = vadd.f32 %v4556, %v5574
        %v5576 = vpop.f32.mrf.mxu0
        %v5577 = vadd.f32 %v4556, %v5576
        %5578 = vmatmul.bf16.gmra.mxu0 %v4420
        %v5579 = vpop.f32.mrf.mxu0
        %v5580 = vadd.f32 %v4556, %v5579
        %v5581 = vpop.f32.mrf.mxu0
        %v5582 = vadd.f32 %v4556, %v5581
        %5583 = vmatmul.bf16.gmra.mxu0 %v4422
        %v5584 = vpop.f32.mrf.mxu0
        %v5585 = vadd.f32 %v4556, %v5584
        %v5586 = vpop.f32.mrf.mxu0
        %v5587 = vadd.f32 %v4556, %v5586
        %5588 = vdwg.mxu0
        %5589 = vmatpush.bf16.msra.mxu0 %v5027
        %5590 = vmatpush.bf16.msra.mxu0 %v5020
        %5591 = vmatpush.bf16.msra.mxu0 %v5013
        %5592 = vmatpush.bf16.msra.mxu0 %v5006
        %5593 = vmatpush.bf16.msra.mxu0 %v4999
        %5594 = vmatpush.bf16.msra.mxu0 %v4992
        %5595 = vmatpush.bf16.msra.mxu0 %v4985
        %5596 = vmatpush.bf16.msra.mxu0 %v4978
        %5597 = vmatmul.bf16.gmra.mxu0 %v4393
        %v5598 = vpop.f32.mrf.mxu0
        %v5599 = vadd.f32 %v5510, %v5598
        %v5600 = vpop.f32.mrf.mxu0
        %v5601 = vadd.f32 %v5512, %v5600
        %5602 = vmatmul.bf16.gmra.mxu0 %v4395
        %v5603 = vpop.f32.mrf.mxu0
        %v5604 = vadd.f32 %v5515, %v5603
        %v5605 = vpop.f32.mrf.mxu0
        %v5606 = vadd.f32 %v5517, %v5605
        %5607 = vmatmul.bf16.gmra.mxu0 %v4397
        %v5608 = vpop.f32.mrf.mxu0
        %v5609 = vadd.f32 %v5520, %v5608
        %v5610 = vpop.f32.mrf.mxu0
        %v5611 = vadd.f32 %v5522, %v5610
        %5612 = vmatmul.bf16.gmra.mxu0 %v4399
        %v5613 = vpop.f32.mrf.mxu0
        %v5614 = vadd.f32 %v5525, %v5613
        %v5615 = vpop.f32.mrf.mxu0
        %v5616 = vadd.f32 %v5527, %v5615
        %5617 = vmatmul.bf16.gmra.mxu0 %v4401
        %v5618 = vpop.f32.mrf.mxu0
        %v5619 = vadd.f32 %v5530, %v5618
        %v5620 = vpop.f32.mrf.mxu0
        %v5621 = vadd.f32 %v5532, %v5620
        %5622 = vmatmul.bf16.gmra.mxu0 %v4403
        %v5623 = vpop.f32.mrf.mxu0
        %v5624 = vadd.f32 %v5535, %v5623
        %v5625 = vpop.f32.mrf.mxu0
        %v5626 = vadd.f32 %v5537, %v5625
        %5627 = vmatmul.bf16.gmra.mxu0 %v4405
        %v5628 = vpop.f32.mrf.mxu0
        %v5629 = vadd.f32 %v5540, %v5628
        %v5630 = vpop.f32.mrf.mxu0
        %v5631 = vadd.f32 %v5542, %v5630
        %5632 = vmatmul.bf16.gmra.mxu0 %v4407
        %v5633 = vpop.f32.mrf.mxu0
        %v5634 = vadd.f32 %v5545, %v5633
        %v5635 = vpop.f32.mrf.mxu0
        %v5636 = vadd.f32 %v5547, %v5635
        %5637 = vmatmul.bf16.gmra.mxu0 %v4409
        %v5638 = vpop.f32.mrf.mxu0
        %v5639 = vadd.f32 %v5550, %v5638
        %v5640 = vpop.f32.mrf.mxu0
        %v5641 = vadd.f32 %v5552, %v5640
        %5642 = vmatmul.bf16.gmra.mxu0 %v4411
        %v5643 = vpop.f32.mrf.mxu0
        %v5644 = vadd.f32 %v5555, %v5643
        %v5645 = vpop.f32.mrf.mxu0
        %v5646 = vadd.f32 %v5557, %v5645
        %5647 = vmatmul.bf16.gmra.mxu0 %v4413
        %v5648 = vpop.f32.mrf.mxu0
        %v5649 = vadd.f32 %v5560, %v5648
        %v5650 = vpop.f32.mrf.mxu0
        %v5651 = vadd.f32 %v5562, %v5650
        %5652 = vmatmul.bf16.gmra.mxu0 %v4415
        %v5653 = vpop.f32.mrf.mxu0
        %v5654 = vadd.f32 %v5565, %v5653
        %v5655 = vpop.f32.mrf.mxu0
        %v5656 = vadd.f32 %v5567, %v5655
        %5657 = vmatmul.bf16.gmra.mxu0 %v4417
        %v5658 = vpop.f32.mrf.mxu0
        %v5659 = vadd.f32 %v5570, %v5658
        %v5660 = vpop.f32.mrf.mxu0
        %v5661 = vadd.f32 %v5572, %v5660
        %5662 = vmatmul.bf16.gmra.mxu0 %v4419
        %v5663 = vpop.f32.mrf.mxu0
        %v5664 = vadd.f32 %v5575, %v5663
        %v5665 = vpop.f32.mrf.mxu0
        %v5666 = vadd.f32 %v5577, %v5665
        %5667 = vmatmul.bf16.gmra.mxu0 %v4421
        %v5668 = vpop.f32.mrf.mxu0
        %v5669 = vadd.f32 %v5580, %v5668
        %v5670 = vpop.f32.mrf.mxu0
        %v5671 = vadd.f32 %v5582, %v5670
        %5672 = vmatmul.bf16.gmra.mxu0 %v4423
        %v5673 = vpop.f32.mrf.mxu0
        %v5674 = vadd.f32 %v5585, %v5673
        %v5675 = vpop.f32.mrf.mxu0
        %v5676 = vadd.f32 %v5587, %v5675
        %5677 = vdwg.mxu0
        %5678 = vmatpush.bf16.msra.mxu0 %v4972
        %5679 = vmatpush.bf16.msra.mxu0 %v4965
        %5680 = vmatpush.bf16.msra.mxu0 %v4958
        %5681 = vmatpush.bf16.msra.mxu0 %v4951
        %5682 = vmatpush.bf16.msra.mxu0 %v4944
        %5683 = vmatpush.bf16.msra.mxu0 %v4937
        %5684 = vmatpush.bf16.msra.mxu0 %v4930
        %5685 = vmatpush.bf16.msra.mxu0 %v4923
        %5686 = vmatmul.bf16.gmra.mxu0 %v4392
        %v5687 = vpop.f32.mrf.mxu0
        %v5688 = vadd.f32 %v4557, %v5687
        %v5689 = vpop.f32.mrf.mxu0
        %v5690 = vadd.f32 %v4557, %v5689
        %5691 = vmatmul.bf16.gmra.mxu0 %v4394
        %v5692 = vpop.f32.mrf.mxu0
        %v5693 = vadd.f32 %v4557, %v5692
        %v5694 = vpop.f32.mrf.mxu0
        %v5695 = vadd.f32 %v4557, %v5694
        %5696 = vmatmul.bf16.gmra.mxu0 %v4396
        %v5697 = vpop.f32.mrf.mxu0
        %v5698 = vadd.f32 %v4557, %v5697
        %v5699 = vpop.f32.mrf.mxu0
        %v5700 = vadd.f32 %v4557, %v5699
        %5701 = vmatmul.bf16.gmra.mxu0 %v4398
        %v5702 = vpop.f32.mrf.mxu0
        %v5703 = vadd.f32 %v4557, %v5702
        %v5704 = vpop.f32.mrf.mxu0
        %v5705 = vadd.f32 %v4557, %v5704
        %5706 = vmatmul.bf16.gmra.mxu0 %v4400
        %v5707 = vpop.f32.mrf.mxu0
        %v5708 = vadd.f32 %v4557, %v5707
        %v5709 = vpop.f32.mrf.mxu0
        %v5710 = vadd.f32 %v4557, %v5709
        %5711 = vmatmul.bf16.gmra.mxu0 %v4402
        %v5712 = vpop.f32.mrf.mxu0
        %v5713 = vadd.f32 %v4557, %v5712
        %v5714 = vpop.f32.mrf.mxu0
        %v5715 = vadd.f32 %v4557, %v5714
        %5716 = vmatmul.bf16.gmra.mxu0 %v4404
        %v5717 = vpop.f32.mrf.mxu0
        %v5718 = vadd.f32 %v4557, %v5717
        %v5719 = vpop.f32.mrf.mxu0
        %v5720 = vadd.f32 %v4557, %v5719
        %5721 = vmatmul.bf16.gmra.mxu0 %v4406
        %v5722 = vpop.f32.mrf.mxu0
        %v5723 = vadd.f32 %v4557, %v5722
        %v5724 = vpop.f32.mrf.mxu0
        %v5725 = vadd.f32 %v4557, %v5724
        %5726 = vmatmul.bf16.gmra.mxu0 %v4408
        %v5727 = vpop.f32.mrf.mxu0
        %v5728 = vadd.f32 %v4557, %v5727
        %v5729 = vpop.f32.mrf.mxu0
        %v5730 = vadd.f32 %v4557, %v5729
        %5731 = vmatmul.bf16.gmra.mxu0 %v4410
        %v5732 = vpop.f32.mrf.mxu0
        %v5733 = vadd.f32 %v4557, %v5732
        %v5734 = vpop.f32.mrf.mxu0
        %v5735 = vadd.f32 %v4557, %v5734
        %5736 = vmatmul.bf16.gmra.mxu0 %v4412
        %v5737 = vpop.f32.mrf.mxu0
        %v5738 = vadd.f32 %v4557, %v5737
        %v5739 = vpop.f32.mrf.mxu0
        %v5740 = vadd.f32 %v4557, %v5739
        %5741 = vmatmul.bf16.gmra.mxu0 %v4414
        %v5742 = vpop.f32.mrf.mxu0
        %v5743 = vadd.f32 %v4557, %v5742
        %v5744 = vpop.f32.mrf.mxu0
        %v5745 = vadd.f32 %v4557, %v5744
        %5746 = vmatmul.bf16.gmra.mxu0 %v4416
        %v5747 = vpop.f32.mrf.mxu0
        %v5748 = vadd.f32 %v4557, %v5747
        %v5749 = vpop.f32.mrf.mxu0
        %v5750 = vadd.f32 %v4557, %v5749
        %5751 = vmatmul.bf16.gmra.mxu0 %v4418
        %v5752 = vpop.f32.mrf.mxu0
        %v5753 = vadd.f32 %v4557, %v5752
        %v5754 = vpop.f32.mrf.mxu0
        %v5755 = vadd.f32 %v4557, %v5754
        %5756 = vmatmul.bf16.gmra.mxu0 %v4420
        %v5757 = vpop.f32.mrf.mxu0
        %v5758 = vadd.f32 %v4557, %v5757
        %v5759 = vpop.f32.mrf.mxu0
        %v5760 = vadd.f32 %v4557, %v5759
        %5761 = vmatmul.bf16.gmra.mxu0 %v4422
        %v5762 = vpop.f32.mrf.mxu0
        %v5763 = vadd.f32 %v4557, %v5762
        %v5764 = vpop.f32.mrf.mxu0
        %v5765 = vadd.f32 %v4557, %v5764
        %5766 = vdwg.mxu0
        %5767 = vmatpush.bf16.msra.mxu0 %v5028
        %5768 = vmatpush.bf16.msra.mxu0 %v5021
        %5769 = vmatpush.bf16.msra.mxu0 %v5014
        %5770 = vmatpush.bf16.msra.mxu0 %v5007
        %5771 = vmatpush.bf16.msra.mxu0 %v5000
        %5772 = vmatpush.bf16.msra.mxu0 %v4993
        %5773 = vmatpush.bf16.msra.mxu0 %v4986
        %5774 = vmatpush.bf16.msra.mxu0 %v4979
        %5775 = vmatmul.bf16.gmra.mxu0 %v4393
        %v5776 = vpop.f32.mrf.mxu0
        %v5777 = vadd.f32 %v5688, %v5776
        %v5778 = vpop.f32.mrf.mxu0
        %v5779 = vadd.f32 %v5690, %v5778
        %5780 = vmatmul.bf16.gmra.mxu0 %v4395
        %v5781 = vpop.f32.mrf.mxu0
        %v5782 = vadd.f32 %v5693, %v5781
        %v5783 = vpop.f32.mrf.mxu0
        %v5784 = vadd.f32 %v5695, %v5783
        %5785 = vmatmul.bf16.gmra.mxu0 %v4397
        %v5786 = vpop.f32.mrf.mxu0
        %v5787 = vadd.f32 %v5698, %v5786
        %v5788 = vpop.f32.mrf.mxu0
        %v5789 = vadd.f32 %v5700, %v5788
        %5790 = vmatmul.bf16.gmra.mxu0 %v4399
        %v5791 = vpop.f32.mrf.mxu0
        %v5792 = vadd.f32 %v5703, %v5791
        %v5793 = vpop.f32.mrf.mxu0
        %v5794 = vadd.f32 %v5705, %v5793
        %5795 = vmatmul.bf16.gmra.mxu0 %v4401
        %v5796 = vpop.f32.mrf.mxu0
        %v5797 = vadd.f32 %v5708, %v5796
        %v5798 = vpop.f32.mrf.mxu0
        %v5799 = vadd.f32 %v5710, %v5798
        %5800 = vmatmul.bf16.gmra.mxu0 %v4403
        %v5801 = vpop.f32.mrf.mxu0
        %v5802 = vadd.f32 %v5713, %v5801
        %v5803 = vpop.f32.mrf.mxu0
        %v5804 = vadd.f32 %v5715, %v5803
        %5805 = vmatmul.bf16.gmra.mxu0 %v4405
        %v5806 = vpop.f32.mrf.mxu0
        %v5807 = vadd.f32 %v5718, %v5806
        %v5808 = vpop.f32.mrf.mxu0
        %v5809 = vadd.f32 %v5720, %v5808
        %5810 = vmatmul.bf16.gmra.mxu0 %v4407
        %v5811 = vpop.f32.mrf.mxu0
        %v5812 = vadd.f32 %v5723, %v5811
        %v5813 = vpop.f32.mrf.mxu0
        %v5814 = vadd.f32 %v5725, %v5813
        %5815 = vmatmul.bf16.gmra.mxu0 %v4409
        %v5816 = vpop.f32.mrf.mxu0
        %v5817 = vadd.f32 %v5728, %v5816
        %v5818 = vpop.f32.mrf.mxu0
        %v5819 = vadd.f32 %v5730, %v5818
        %5820 = vmatmul.bf16.gmra.mxu0 %v4411
        %v5821 = vpop.f32.mrf.mxu0
        %v5822 = vadd.f32 %v5733, %v5821
        %v5823 = vpop.f32.mrf.mxu0
        %v5824 = vadd.f32 %v5735, %v5823
        %5825 = vmatmul.bf16.gmra.mxu0 %v4413
        %v5826 = vpop.f32.mrf.mxu0
        %v5827 = vadd.f32 %v5738, %v5826
        %v5828 = vpop.f32.mrf.mxu0
        %v5829 = vadd.f32 %v5740, %v5828
        %5830 = vmatmul.bf16.gmra.mxu0 %v4415
        %v5831 = vpop.f32.mrf.mxu0
        %v5832 = vadd.f32 %v5743, %v5831
        %v5833 = vpop.f32.mrf.mxu0
        %v5834 = vadd.f32 %v5745, %v5833
        %5835 = vmatmul.bf16.gmra.mxu0 %v4417
        %v5836 = vpop.f32.mrf.mxu0
        %v5837 = vadd.f32 %v5748, %v5836
        %v5838 = vpop.f32.mrf.mxu0
        %v5839 = vadd.f32 %v5750, %v5838
        %5840 = vmatmul.bf16.gmra.mxu0 %v4419
        %v5841 = vpop.f32.mrf.mxu0
        %v5842 = vadd.f32 %v5753, %v5841
        %v5843 = vpop.f32.mrf.mxu0
        %v5844 = vadd.f32 %v5755, %v5843
        %5845 = vmatmul.bf16.gmra.mxu0 %v4421
        %v5846 = vpop.f32.mrf.mxu0
        %v5847 = vadd.f32 %v5758, %v5846
        %v5848 = vpop.f32.mrf.mxu0
        %v5849 = vadd.f32 %v5760, %v5848
        %5850 = vmatmul.bf16.gmra.mxu0 %v4423
        %v5851 = vpop.f32.mrf.mxu0
        %v5852 = vadd.f32 %v5763, %v5851
        %v5853 = vpop.f32.mrf.mxu0
        %v5854 = vadd.f32 %v5765, %v5853
        %5855 = vdwg.mxu0
        %5856 = vmatpush.bf16.msra.mxu0 %v4973
        %5857 = vmatpush.bf16.msra.mxu0 %v4966
        %5858 = vmatpush.bf16.msra.mxu0 %v4959
        %5859 = vmatpush.bf16.msra.mxu0 %v4952
        %5860 = vmatpush.bf16.msra.mxu0 %v4945
        %5861 = vmatpush.bf16.msra.mxu0 %v4938
        %5862 = vmatpush.bf16.msra.mxu0 %v4931
        %5863 = vmatpush.bf16.msra.mxu0 %v4924
        %5864 = vmatmul.bf16.gmra.mxu0 %v4392
        %v5865 = vpop.f32.mrf.mxu0
        %v5866 = vadd.f32 %v4558, %v5865
        %v5867 = vpop.f32.mrf.mxu0
        %v5868 = vadd.f32 %v4558, %v5867
        %5869 = vmatmul.bf16.gmra.mxu0 %v4394
        %v5870 = vpop.f32.mrf.mxu0
        %v5871 = vadd.f32 %v4558, %v5870
        %v5872 = vpop.f32.mrf.mxu0
        %v5873 = vadd.f32 %v4558, %v5872
        %5874 = vmatmul.bf16.gmra.mxu0 %v4396
        %v5875 = vpop.f32.mrf.mxu0
        %v5876 = vadd.f32 %v4558, %v5875
        %v5877 = vpop.f32.mrf.mxu0
        %v5878 = vadd.f32 %v4558, %v5877
        %5879 = vmatmul.bf16.gmra.mxu0 %v4398
        %v5880 = vpop.f32.mrf.mxu0
        %v5881 = vadd.f32 %v4558, %v5880
        %v5882 = vpop.f32.mrf.mxu0
        %v5883 = vadd.f32 %v4558, %v5882
        %5884 = vmatmul.bf16.gmra.mxu0 %v4400
        %v5885 = vpop.f32.mrf.mxu0
        %v5886 = vadd.f32 %v4558, %v5885
        %v5887 = vpop.f32.mrf.mxu0
        %v5888 = vadd.f32 %v4558, %v5887
        %5889 = vmatmul.bf16.gmra.mxu0 %v4402
        %v5890 = vpop.f32.mrf.mxu0
        %v5891 = vadd.f32 %v4558, %v5890
        %v5892 = vpop.f32.mrf.mxu0
        %v5893 = vadd.f32 %v4558, %v5892
        %5894 = vmatmul.bf16.gmra.mxu0 %v4404
        %v5895 = vpop.f32.mrf.mxu0
        %v5896 = vadd.f32 %v4558, %v5895
        %v5897 = vpop.f32.mrf.mxu0
        %v5898 = vadd.f32 %v4558, %v5897
        %5899 = vmatmul.bf16.gmra.mxu0 %v4406
        %v5900 = vpop.f32.mrf.mxu0
        %v5901 = vadd.f32 %v4558, %v5900
        %v5902 = vpop.f32.mrf.mxu0
        %v5903 = vadd.f32 %v4558, %v5902
        %5904 = vmatmul.bf16.gmra.mxu0 %v4408
        %v5905 = vpop.f32.mrf.mxu0
        %v5906 = vadd.f32 %v4558, %v5905
        %v5907 = vpop.f32.mrf.mxu0
        %v5908 = vadd.f32 %v4558, %v5907
        %5909 = vmatmul.bf16.gmra.mxu0 %v4410
        %v5910 = vpop.f32.mrf.mxu0
        %v5911 = vadd.f32 %v4558, %v5910
        %v5912 = vpop.f32.mrf.mxu0
        %v5913 = vadd.f32 %v4558, %v5912
        %5914 = vmatmul.bf16.gmra.mxu0 %v4412
        %v5915 = vpop.f32.mrf.mxu0
        %v5916 = vadd.f32 %v4558, %v5915
        %v5917 = vpop.f32.mrf.mxu0
        %v5918 = vadd.f32 %v4558, %v5917
        %5919 = vmatmul.bf16.gmra.mxu0 %v4414
        %v5920 = vpop.f32.mrf.mxu0
        %v5921 = vadd.f32 %v4558, %v5920
        %v5922 = vpop.f32.mrf.mxu0
        %v5923 = vadd.f32 %v4558, %v5922
        %5924 = vmatmul.bf16.gmra.mxu0 %v4416
        %v5925 = vpop.f32.mrf.mxu0
        %v5926 = vadd.f32 %v4558, %v5925
        %v5927 = vpop.f32.mrf.mxu0
        %v5928 = vadd.f32 %v4558, %v5927
        %5929 = vmatmul.bf16.gmra.mxu0 %v4418
        %v5930 = vpop.f32.mrf.mxu0
        %v5931 = vadd.f32 %v4558, %v5930
        %v5932 = vpop.f32.mrf.mxu0
        %v5933 = vadd.f32 %v4558, %v5932
        %5934 = vmatmul.bf16.gmra.mxu0 %v4420
        %v5935 = vpop.f32.mrf.mxu0
        %v5936 = vadd.f32 %v4558, %v5935
        %v5937 = vpop.f32.mrf.mxu0
        %v5938 = vadd.f32 %v4558, %v5937
        %5939 = vmatmul.bf16.gmra.mxu0 %v4422
        %v5940 = vpop.f32.mrf.mxu0
        %v5941 = vadd.f32 %v4558, %v5940
        %v5942 = vpop.f32.mrf.mxu0
        %v5943 = vadd.f32 %v4558, %v5942
        %5944 = vdwg.mxu0
        %5945 = vmatpush.bf16.msra.mxu0 %v5029
        %5946 = vmatpush.bf16.msra.mxu0 %v5022
        %5947 = vmatpush.bf16.msra.mxu0 %v5015
        %5948 = vmatpush.bf16.msra.mxu0 %v5008
        %5949 = vmatpush.bf16.msra.mxu0 %v5001
        %5950 = vmatpush.bf16.msra.mxu0 %v4994
        %5951 = vmatpush.bf16.msra.mxu0 %v4987
        %5952 = vmatpush.bf16.msra.mxu0 %v4980
        %5953 = vmatmul.bf16.gmra.mxu0 %v4393
        %v5954 = vpop.f32.mrf.mxu0
        %v5955 = vadd.f32 %v5866, %v5954
        %v5956 = vpop.f32.mrf.mxu0
        %v5957 = vadd.f32 %v5868, %v5956
        %5958 = vmatmul.bf16.gmra.mxu0 %v4395
        %v5959 = vpop.f32.mrf.mxu0
        %v5960 = vadd.f32 %v5871, %v5959
        %v5961 = vpop.f32.mrf.mxu0
        %v5962 = vadd.f32 %v5873, %v5961
        %5963 = vmatmul.bf16.gmra.mxu0 %v4397
        %v5964 = vpop.f32.mrf.mxu0
        %v5965 = vadd.f32 %v5876, %v5964
        %v5966 = vpop.f32.mrf.mxu0
        %v5967 = vadd.f32 %v5878, %v5966
        %5968 = vmatmul.bf16.gmra.mxu0 %v4399
        %v5969 = vpop.f32.mrf.mxu0
        %v5970 = vadd.f32 %v5881, %v5969
        %v5971 = vpop.f32.mrf.mxu0
        %v5972 = vadd.f32 %v5883, %v5971
        %5973 = vmatmul.bf16.gmra.mxu0 %v4401
        %v5974 = vpop.f32.mrf.mxu0
        %v5975 = vadd.f32 %v5886, %v5974
        %v5976 = vpop.f32.mrf.mxu0
        %v5977 = vadd.f32 %v5888, %v5976
        %5978 = vmatmul.bf16.gmra.mxu0 %v4403
        %v5979 = vpop.f32.mrf.mxu0
        %v5980 = vadd.f32 %v5891, %v5979
        %v5981 = vpop.f32.mrf.mxu0
        %v5982 = vadd.f32 %v5893, %v5981
        %5983 = vmatmul.bf16.gmra.mxu0 %v4405
        %v5984 = vpop.f32.mrf.mxu0
        %v5985 = vadd.f32 %v5896, %v5984
        %v5986 = vpop.f32.mrf.mxu0
        %v5987 = vadd.f32 %v5898, %v5986
        %5988 = vmatmul.bf16.gmra.mxu0 %v4407
        %v5989 = vpop.f32.mrf.mxu0
        %v5990 = vadd.f32 %v5901, %v5989
        %v5991 = vpop.f32.mrf.mxu0
        %v5992 = vadd.f32 %v5903, %v5991
        %5993 = vmatmul.bf16.gmra.mxu0 %v4409
        %v5994 = vpop.f32.mrf.mxu0
        %v5995 = vadd.f32 %v5906, %v5994
        %v5996 = vpop.f32.mrf.mxu0
        %v5997 = vadd.f32 %v5908, %v5996
        %5998 = vmatmul.bf16.gmra.mxu0 %v4411
        %v5999 = vpop.f32.mrf.mxu0
        %v6000 = vadd.f32 %v5911, %v5999
        %v6001 = vpop.f32.mrf.mxu0
        %v6002 = vadd.f32 %v5913, %v6001
        %6003 = vmatmul.bf16.gmra.mxu0 %v4413
        %v6004 = vpop.f32.mrf.mxu0
        %v6005 = vadd.f32 %v5916, %v6004
        %v6006 = vpop.f32.mrf.mxu0
        %v6007 = vadd.f32 %v5918, %v6006
        %6008 = vmatmul.bf16.gmra.mxu0 %v4415
        %v6009 = vpop.f32.mrf.mxu0
        %v6010 = vadd.f32 %v5921, %v6009
        %v6011 = vpop.f32.mrf.mxu0
        %v6012 = vadd.f32 %v5923, %v6011
        %6013 = vmatmul.bf16.gmra.mxu0 %v4417
        %v6014 = vpop.f32.mrf.mxu0
        %v6015 = vadd.f32 %v5926, %v6014
        %v6016 = vpop.f32.mrf.mxu0
        %v6017 = vadd.f32 %v5928, %v6016
        %6018 = vmatmul.bf16.gmra.mxu0 %v4419
        %v6019 = vpop.f32.mrf.mxu0
        %v6020 = vadd.f32 %v5931, %v6019
        %v6021 = vpop.f32.mrf.mxu0
        %v6022 = vadd.f32 %v5933, %v6021
        %6023 = vmatmul.bf16.gmra.mxu0 %v4421
        %v6024 = vpop.f32.mrf.mxu0
        %v6025 = vadd.f32 %v5936, %v6024
        %v6026 = vpop.f32.mrf.mxu0
        %v6027 = vadd.f32 %v5938, %v6026
        %6028 = vmatmul.bf16.gmra.mxu0 %v4423
        %v6029 = vpop.f32.mrf.mxu0
        %v6030 = vadd.f32 %v5941, %v6029
        %v6031 = vpop.f32.mrf.mxu0
        %v6032 = vadd.f32 %v5943, %v6031
        %6033 = vdwg.mxu0
        %6034 = vmatpush.bf16.msra.mxu0 %v4974
        %6035 = vmatpush.bf16.msra.mxu0 %v4967
        %6036 = vmatpush.bf16.msra.mxu0 %v4960
        %6037 = vmatpush.bf16.msra.mxu0 %v4953
        %6038 = vmatpush.bf16.msra.mxu0 %v4946
        %6039 = vmatpush.bf16.msra.mxu0 %v4939
        %6040 = vmatpush.bf16.msra.mxu0 %v4932
        %6041 = vmatpush.bf16.msra.mxu0 %v4925
        %6042 = vmatmul.bf16.gmra.mxu0 %v4392
        %v6043 = vpop.f32.mrf.mxu0
        %v6044 = vadd.f32 %v4559, %v6043
        %v6045 = vpop.f32.mrf.mxu0
        %v6046 = vadd.f32 %v4559, %v6045
        %6047 = vmatmul.bf16.gmra.mxu0 %v4394
        %v6048 = vpop.f32.mrf.mxu0
        %v6049 = vadd.f32 %v4559, %v6048
        %v6050 = vpop.f32.mrf.mxu0
        %v6051 = vadd.f32 %v4559, %v6050
        %6052 = vmatmul.bf16.gmra.mxu0 %v4396
        %v6053 = vpop.f32.mrf.mxu0
        %v6054 = vadd.f32 %v4559, %v6053
        %v6055 = vpop.f32.mrf.mxu0
        %v6056 = vadd.f32 %v4559, %v6055
        %6057 = vmatmul.bf16.gmra.mxu0 %v4398
        %v6058 = vpop.f32.mrf.mxu0
        %v6059 = vadd.f32 %v4559, %v6058
        %v6060 = vpop.f32.mrf.mxu0
        %v6061 = vadd.f32 %v4559, %v6060
        %6062 = vmatmul.bf16.gmra.mxu0 %v4400
        %v6063 = vpop.f32.mrf.mxu0
        %v6064 = vadd.f32 %v4559, %v6063
        %v6065 = vpop.f32.mrf.mxu0
        %v6066 = vadd.f32 %v4559, %v6065
        %6067 = vmatmul.bf16.gmra.mxu0 %v4402
        %v6068 = vpop.f32.mrf.mxu0
        %v6069 = vadd.f32 %v4559, %v6068
        %v6070 = vpop.f32.mrf.mxu0
        %v6071 = vadd.f32 %v4559, %v6070
        %6072 = vmatmul.bf16.gmra.mxu0 %v4404
        %v6073 = vpop.f32.mrf.mxu0
        %v6074 = vadd.f32 %v4559, %v6073
        %v6075 = vpop.f32.mrf.mxu0
        %v6076 = vadd.f32 %v4559, %v6075
        %6077 = vmatmul.bf16.gmra.mxu0 %v4406
        %v6078 = vpop.f32.mrf.mxu0
        %v6079 = vadd.f32 %v4559, %v6078
        %v6080 = vpop.f32.mrf.mxu0
        %v6081 = vadd.f32 %v4559, %v6080
        %6082 = vmatmul.bf16.gmra.mxu0 %v4408
        %v6083 = vpop.f32.mrf.mxu0
        %v6084 = vadd.f32 %v4559, %v6083
        %v6085 = vpop.f32.mrf.mxu0
        %v6086 = vadd.f32 %v4559, %v6085
        %6087 = vmatmul.bf16.gmra.mxu0 %v4410
        %v6088 = vpop.f32.mrf.mxu0
        %v6089 = vadd.f32 %v4559, %v6088
        %v6090 = vpop.f32.mrf.mxu0
        %v6091 = vadd.f32 %v4559, %v6090
        %6092 = vmatmul.bf16.gmra.mxu0 %v4412
        %v6093 = vpop.f32.mrf.mxu0
        %v6094 = vadd.f32 %v4559, %v6093
        %v6095 = vpop.f32.mrf.mxu0
        %v6096 = vadd.f32 %v4559, %v6095
        %6097 = vmatmul.bf16.gmra.mxu0 %v4414
        %v6098 = vpop.f32.mrf.mxu0
        %v6099 = vadd.f32 %v4559, %v6098
        %v6100 = vpop.f32.mrf.mxu0
        %v6101 = vadd.f32 %v4559, %v6100
        %6102 = vmatmul.bf16.gmra.mxu0 %v4416
        %v6103 = vpop.f32.mrf.mxu0
        %v6104 = vadd.f32 %v4559, %v6103
        %v6105 = vpop.f32.mrf.mxu0
        %v6106 = vadd.f32 %v4559, %v6105
        %6107 = vmatmul.bf16.gmra.mxu0 %v4418
        %v6108 = vpop.f32.mrf.mxu0
        %v6109 = vadd.f32 %v4559, %v6108
        %v6110 = vpop.f32.mrf.mxu0
        %v6111 = vadd.f32 %v4559, %v6110
        %6112 = vmatmul.bf16.gmra.mxu0 %v4420
        %v6113 = vpop.f32.mrf.mxu0
        %v6114 = vadd.f32 %v4559, %v6113
        %v6115 = vpop.f32.mrf.mxu0
        %v6116 = vadd.f32 %v4559, %v6115
        %6117 = vmatmul.bf16.gmra.mxu0 %v4422
        %v6118 = vpop.f32.mrf.mxu0
        %v6119 = vadd.f32 %v4559, %v6118
        %v6120 = vpop.f32.mrf.mxu0
        %v6121 = vadd.f32 %v4559, %v6120
        %6122 = vdwg.mxu0
        %6123 = vmatpush.bf16.msra.mxu0 %v5030
        %6124 = vmatpush.bf16.msra.mxu0 %v5023
        %6125 = vmatpush.bf16.msra.mxu0 %v5016
        %6126 = vmatpush.bf16.msra.mxu0 %v5009
        %6127 = vmatpush.bf16.msra.mxu0 %v5002
        %6128 = vmatpush.bf16.msra.mxu0 %v4995
        %6129 = vmatpush.bf16.msra.mxu0 %v4988
        %6130 = vmatpush.bf16.msra.mxu0 %v4981
        %6131 = vmatmul.bf16.gmra.mxu0 %v4393
        %v6132 = vpop.f32.mrf.mxu0
        %v6133 = vadd.f32 %v6044, %v6132
        %v6134 = vpop.f32.mrf.mxu0
        %v6135 = vadd.f32 %v6046, %v6134
        %6136 = vmatmul.bf16.gmra.mxu0 %v4395
        %v6137 = vpop.f32.mrf.mxu0
        %v6138 = vadd.f32 %v6049, %v6137
        %v6139 = vpop.f32.mrf.mxu0
        %v6140 = vadd.f32 %v6051, %v6139
        %6141 = vmatmul.bf16.gmra.mxu0 %v4397
        %v6142 = vpop.f32.mrf.mxu0
        %v6143 = vadd.f32 %v6054, %v6142
        %v6144 = vpop.f32.mrf.mxu0
        %v6145 = vadd.f32 %v6056, %v6144
        %6146 = vmatmul.bf16.gmra.mxu0 %v4399
        %v6147 = vpop.f32.mrf.mxu0
        %v6148 = vadd.f32 %v6059, %v6147
        %v6149 = vpop.f32.mrf.mxu0
        %v6150 = vadd.f32 %v6061, %v6149
        %6151 = vmatmul.bf16.gmra.mxu0 %v4401
        %v6152 = vpop.f32.mrf.mxu0
        %v6153 = vadd.f32 %v6064, %v6152
        %v6154 = vpop.f32.mrf.mxu0
        %v6155 = vadd.f32 %v6066, %v6154
        %6156 = vmatmul.bf16.gmra.mxu0 %v4403
        %v6157 = vpop.f32.mrf.mxu0
        %v6158 = vadd.f32 %v6069, %v6157
        %v6159 = vpop.f32.mrf.mxu0
        %v6160 = vadd.f32 %v6071, %v6159
        %6161 = vmatmul.bf16.gmra.mxu0 %v4405
        %v6162 = vpop.f32.mrf.mxu0
        %v6163 = vadd.f32 %v6074, %v6162
        %v6164 = vpop.f32.mrf.mxu0
        %v6165 = vadd.f32 %v6076, %v6164
        %6166 = vmatmul.bf16.gmra.mxu0 %v4407
        %v6167 = vpop.f32.mrf.mxu0
        %v6168 = vadd.f32 %v6079, %v6167
        %v6169 = vpop.f32.mrf.mxu0
        %v6170 = vadd.f32 %v6081, %v6169
        %6171 = vmatmul.bf16.gmra.mxu0 %v4409
        %v6172 = vpop.f32.mrf.mxu0
        %v6173 = vadd.f32 %v6084, %v6172
        %v6174 = vpop.f32.mrf.mxu0
        %v6175 = vadd.f32 %v6086, %v6174
        %6176 = vmatmul.bf16.gmra.mxu0 %v4411
        %v6177 = vpop.f32.mrf.mxu0
        %v6178 = vadd.f32 %v6089, %v6177
        %v6179 = vpop.f32.mrf.mxu0
        %v6180 = vadd.f32 %v6091, %v6179
        %6181 = vmatmul.bf16.gmra.mxu0 %v4413
        %v6182 = vpop.f32.mrf.mxu0
        %v6183 = vadd.f32 %v6094, %v6182
        %v6184 = vpop.f32.mrf.mxu0
        %v6185 = vadd.f32 %v6096, %v6184
        %6186 = vmatmul.bf16.gmra.mxu0 %v4415
        %v6187 = vpop.f32.mrf.mxu0
        %v6188 = vadd.f32 %v6099, %v6187
        %v6189 = vpop.f32.mrf.mxu0
        %v6190 = vadd.f32 %v6101, %v6189
        %6191 = vmatmul.bf16.gmra.mxu0 %v4417
        %v6192 = vpop.f32.mrf.mxu0
        %v6193 = vadd.f32 %v6104, %v6192
        %v6194 = vpop.f32.mrf.mxu0
        %v6195 = vadd.f32 %v6106, %v6194
        %6196 = vmatmul.bf16.gmra.mxu0 %v4419
        %v6197 = vpop.f32.mrf.mxu0
        %v6198 = vadd.f32 %v6109, %v6197
        %v6199 = vpop.f32.mrf.mxu0
        %v6200 = vadd.f32 %v6111, %v6199
        %6201 = vmatmul.bf16.gmra.mxu0 %v4421
        %v6202 = vpop.f32.mrf.mxu0
        %v6203 = vadd.f32 %v6114, %v6202
        %v6204 = vpop.f32.mrf.mxu0
        %v6205 = vadd.f32 %v6116, %v6204
        %6206 = vmatmul.bf16.gmra.mxu0 %v4423
        %v6207 = vpop.f32.mrf.mxu0
        %v6208 = vadd.f32 %v6119, %v6207
        %v6209 = vpop.f32.mrf.mxu0
        %v6210 = vadd.f32 %v6121, %v6209
        %6211 = vdwg.mxu0
        %6212 = vmatpush.bf16.msra.mxu0 %v4975
        %6213 = vmatpush.bf16.msra.mxu0 %v4968
        %6214 = vmatpush.bf16.msra.mxu0 %v4961
        %6215 = vmatpush.bf16.msra.mxu0 %v4954
        %6216 = vmatpush.bf16.msra.mxu0 %v4947
        %6217 = vmatpush.bf16.msra.mxu0 %v4940
        %6218 = vmatpush.bf16.msra.mxu0 %v4933
        %6219 = vmatpush.bf16.msra.mxu0 %v4926
        %6220 = vmatmul.bf16.gmra.mxu0 %v4392
        %v6221 = vpop.f32.mrf.mxu0
        %v6222 = vadd.f32 %v4560, %v6221
        %v6223 = vpop.f32.mrf.mxu0
        %v6224 = vadd.f32 %v4560, %v6223
        %6225 = vmatmul.bf16.gmra.mxu0 %v4394
        %v6226 = vpop.f32.mrf.mxu0
        %v6227 = vadd.f32 %v4560, %v6226
        %v6228 = vpop.f32.mrf.mxu0
        %v6229 = vadd.f32 %v4560, %v6228
        %6230 = vmatmul.bf16.gmra.mxu0 %v4396
        %v6231 = vpop.f32.mrf.mxu0
        %v6232 = vadd.f32 %v4560, %v6231
        %v6233 = vpop.f32.mrf.mxu0
        %v6234 = vadd.f32 %v4560, %v6233
        %6235 = vmatmul.bf16.gmra.mxu0 %v4398
        %v6236 = vpop.f32.mrf.mxu0
        %v6237 = vadd.f32 %v4560, %v6236
        %v6238 = vpop.f32.mrf.mxu0
        %v6239 = vadd.f32 %v4560, %v6238
        %6240 = vmatmul.bf16.gmra.mxu0 %v4400
        %v6241 = vpop.f32.mrf.mxu0
        %v6242 = vadd.f32 %v4560, %v6241
        %v6243 = vpop.f32.mrf.mxu0
        %v6244 = vadd.f32 %v4560, %v6243
        %6245 = vmatmul.bf16.gmra.mxu0 %v4402
        %v6246 = vpop.f32.mrf.mxu0
        %v6247 = vadd.f32 %v4560, %v6246
        %v6248 = vpop.f32.mrf.mxu0
        %v6249 = vadd.f32 %v4560, %v6248
        %6250 = vmatmul.bf16.gmra.mxu0 %v4404
        %v6251 = vpop.f32.mrf.mxu0
        %v6252 = vadd.f32 %v4560, %v6251
        %v6253 = vpop.f32.mrf.mxu0
        %v6254 = vadd.f32 %v4560, %v6253
        %6255 = vmatmul.bf16.gmra.mxu0 %v4406
        %v6256 = vpop.f32.mrf.mxu0
        %v6257 = vadd.f32 %v4560, %v6256
        %v6258 = vpop.f32.mrf.mxu0
        %v6259 = vadd.f32 %v4560, %v6258
        %6260 = vmatmul.bf16.gmra.mxu0 %v4408
        %v6261 = vpop.f32.mrf.mxu0
        %v6262 = vadd.f32 %v4560, %v6261
        %v6263 = vpop.f32.mrf.mxu0
        %v6264 = vadd.f32 %v4560, %v6263
        %6265 = vmatmul.bf16.gmra.mxu0 %v4410
        %v6266 = vpop.f32.mrf.mxu0
        %v6267 = vadd.f32 %v4560, %v6266
        %v6268 = vpop.f32.mrf.mxu0
        %v6269 = vadd.f32 %v4560, %v6268
        %6270 = vmatmul.bf16.gmra.mxu0 %v4412
        %v6271 = vpop.f32.mrf.mxu0
        %v6272 = vadd.f32 %v4560, %v6271
        %v6273 = vpop.f32.mrf.mxu0
        %v6274 = vadd.f32 %v4560, %v6273
        %6275 = vmatmul.bf16.gmra.mxu0 %v4414
        %v6276 = vpop.f32.mrf.mxu0
        %v6277 = vadd.f32 %v4560, %v6276
        %v6278 = vpop.f32.mrf.mxu0
        %v6279 = vadd.f32 %v4560, %v6278
        %6280 = vmatmul.bf16.gmra.mxu0 %v4416
        %v6281 = vpop.f32.mrf.mxu0
        %v6282 = vadd.f32 %v4560, %v6281
        %v6283 = vpop.f32.mrf.mxu0
        %v6284 = vadd.f32 %v4560, %v6283
        %6285 = vmatmul.bf16.gmra.mxu0 %v4418
        %v6286 = vpop.f32.mrf.mxu0
        %v6287 = vadd.f32 %v4560, %v6286
        %v6288 = vpop.f32.mrf.mxu0
        %v6289 = vadd.f32 %v4560, %v6288
        %6290 = vmatmul.bf16.gmra.mxu0 %v4420
        %v6291 = vpop.f32.mrf.mxu0
        %v6292 = vadd.f32 %v4560, %v6291
        %v6293 = vpop.f32.mrf.mxu0
        %v6294 = vadd.f32 %v4560, %v6293
        %6295 = vmatmul.bf16.gmra.mxu0 %v4422
        %v6296 = vpop.f32.mrf.mxu0
        %v6297 = vadd.f32 %v4560, %v6296
        %v6298 = vpop.f32.mrf.mxu0
        %v6299 = vadd.f32 %v4560, %v6298
        %6300 = vdwg.mxu0
        %6301 = vmatpush.bf16.msra.mxu0 %v5031
        %6302 = vmatpush.bf16.msra.mxu0 %v5024
        %6303 = vmatpush.bf16.msra.mxu0 %v5017
        %6304 = vmatpush.bf16.msra.mxu0 %v5010
        %6305 = vmatpush.bf16.msra.mxu0 %v5003
        %6306 = vmatpush.bf16.msra.mxu0 %v4996
        %6307 = vmatpush.bf16.msra.mxu0 %v4989
        %6308 = vmatpush.bf16.msra.mxu0 %v4982
        %6309 = vmatmul.bf16.gmra.mxu0 %v4393
        %v6310 = vpop.f32.mrf.mxu0
        %v6311 = vadd.f32 %v6222, %v6310
        %v6312 = vpop.f32.mrf.mxu0
        %v6313 = vadd.f32 %v6224, %v6312
        %6314 = vmatmul.bf16.gmra.mxu0 %v4395
        %v6315 = vpop.f32.mrf.mxu0
        %v6316 = vadd.f32 %v6227, %v6315
        %v6317 = vpop.f32.mrf.mxu0
        %v6318 = vadd.f32 %v6229, %v6317
        %6319 = vmatmul.bf16.gmra.mxu0 %v4397
        %v6320 = vpop.f32.mrf.mxu0
        %v6321 = vadd.f32 %v6232, %v6320
        %v6322 = vpop.f32.mrf.mxu0
        %v6323 = vadd.f32 %v6234, %v6322
        %6324 = vmatmul.bf16.gmra.mxu0 %v4399
        %v6325 = vpop.f32.mrf.mxu0
        %v6326 = vadd.f32 %v6237, %v6325
        %v6327 = vpop.f32.mrf.mxu0
        %v6328 = vadd.f32 %v6239, %v6327
        %6329 = vmatmul.bf16.gmra.mxu0 %v4401
        %v6330 = vpop.f32.mrf.mxu0
        %v6331 = vadd.f32 %v6242, %v6330
        %v6332 = vpop.f32.mrf.mxu0
        %v6333 = vadd.f32 %v6244, %v6332
        %6334 = vmatmul.bf16.gmra.mxu0 %v4403
        %v6335 = vpop.f32.mrf.mxu0
        %v6336 = vadd.f32 %v6247, %v6335
        %v6337 = vpop.f32.mrf.mxu0
        %v6338 = vadd.f32 %v6249, %v6337
        %6339 = vmatmul.bf16.gmra.mxu0 %v4405
        %v6340 = vpop.f32.mrf.mxu0
        %v6341 = vadd.f32 %v6252, %v6340
        %v6342 = vpop.f32.mrf.mxu0
        %v6343 = vadd.f32 %v6254, %v6342
        %6344 = vmatmul.bf16.gmra.mxu0 %v4407
        %v6345 = vpop.f32.mrf.mxu0
        %v6346 = vadd.f32 %v6257, %v6345
        %v6347 = vpop.f32.mrf.mxu0
        %v6348 = vadd.f32 %v6259, %v6347
        %6349 = vmatmul.bf16.gmra.mxu0 %v4409
        %v6350 = vpop.f32.mrf.mxu0
        %v6351 = vadd.f32 %v6262, %v6350
        %v6352 = vpop.f32.mrf.mxu0
        %v6353 = vadd.f32 %v6264, %v6352
        %6354 = vmatmul.bf16.gmra.mxu0 %v4411
        %v6355 = vpop.f32.mrf.mxu0
        %v6356 = vadd.f32 %v6267, %v6355
        %v6357 = vpop.f32.mrf.mxu0
        %v6358 = vadd.f32 %v6269, %v6357
        %6359 = vmatmul.bf16.gmra.mxu0 %v4413
        %v6360 = vpop.f32.mrf.mxu0
        %v6361 = vadd.f32 %v6272, %v6360
        %v6362 = vpop.f32.mrf.mxu0
        %v6363 = vadd.f32 %v6274, %v6362
        %6364 = vmatmul.bf16.gmra.mxu0 %v4415
        %v6365 = vpop.f32.mrf.mxu0
        %v6366 = vadd.f32 %v6277, %v6365
        %v6367 = vpop.f32.mrf.mxu0
        %v6368 = vadd.f32 %v6279, %v6367
        %6369 = vmatmul.bf16.gmra.mxu0 %v4417
        %v6370 = vpop.f32.mrf.mxu0
        %v6371 = vadd.f32 %v6282, %v6370
        %v6372 = vpop.f32.mrf.mxu0
        %v6373 = vadd.f32 %v6284, %v6372
        %6374 = vmatmul.bf16.gmra.mxu0 %v4419
        %v6375 = vpop.f32.mrf.mxu0
        %v6376 = vadd.f32 %v6287, %v6375
        %v6377 = vpop.f32.mrf.mxu0
        %v6378 = vadd.f32 %v6289, %v6377
        %6379 = vmatmul.bf16.gmra.mxu0 %v4421
        %v6380 = vpop.f32.mrf.mxu0
        %v6381 = vadd.f32 %v6292, %v6380
        %v6382 = vpop.f32.mrf.mxu0
        %v6383 = vadd.f32 %v6294, %v6382
        %6384 = vmatmul.bf16.gmra.mxu0 %v4423
        %v6385 = vpop.f32.mrf.mxu0
        %v6386 = vadd.f32 %v6297, %v6385
        %v6387 = vpop.f32.mrf.mxu0
        %v6388 = vadd.f32 %v6299, %v6387
        %6389 = vdwg.mxu0
        %v6390 = vtanh.pop %v5243
        %v6391 = vtanh.pop %v5421
        %v6392 = vtanh.pop %v5599
        %v6393 = vtanh.pop %v5777
        %v6394 = vtanh.pop %v5955
        %v6395 = vtanh.pop %v6133
        %v6396 = vtanh.pop %v6311
        %v6397 = vtanh.pop %v5245
        %v6398 = vtanh.pop %v5423
        %v6399 = vtanh.pop %v5601
        %v6400 = vtanh.pop %v5779
        %v6401 = vtanh.pop %v5957
        %v6402 = vtanh.pop %v6135
        %v6403 = vtanh.pop %v6313
        %v6404 = vtanh.pop %v5248
        %v6405 = vtanh.pop %v5426
        %v6406 = vtanh.pop %v5604
        %v6407 = vtanh.pop %v5782
        %v6408 = vtanh.pop %v5960
        %v6409 = vtanh.pop %v6138
        %v6410 = vtanh.pop %v6316
        %v6411 = vtanh.pop %v5250
        %v6412 = vtanh.pop %v5428
        %v6413 = vtanh.pop %v5606
        %v6414 = vtanh.pop %v5784
        %v6415 = vtanh.pop %v5962
        %v6416 = vtanh.pop %v6140
        %v6417 = vtanh.pop %v6318
        %v6418 = vtanh.pop %v5253
        %v6419 = vtanh.pop %v5431
        %v6420 = vtanh.pop %v5609
        %v6421 = vtanh.pop %v5787
        %v6422 = vtanh.pop %v5965
        %v6423 = vtanh.pop %v6143
        %v6424 = vtanh.pop %v6321
        %v6425 = vtanh.pop %v5255
        %v6426 = vtanh.pop %v5433
        %v6427 = vtanh.pop %v5611
        %v6428 = vtanh.pop %v5789
        %v6429 = vtanh.pop %v5967
        %v6430 = vtanh.pop %v6145
        %v6431 = vtanh.pop %v6323
        %v6432 = vtanh.pop %v5258
        %v6433 = vtanh.pop %v5436
        %v6434 = vtanh.pop %v5614
        %v6435 = vtanh.pop %v5792
        %v6436 = vtanh.pop %v5970
        %v6437 = vtanh.pop %v6148
        %v6438 = vtanh.pop %v6326
        %v6439 = vtanh.pop %v5260
        %v6440 = vtanh.pop %v5438
        %v6441 = vtanh.pop %v5616
        %v6442 = vtanh.pop %v5794
        %v6443 = vtanh.pop %v5972
        %v6444 = vtanh.pop %v6150
        %v6445 = vtanh.pop %v6328
        %v6446 = vtanh.pop %v5263
        %v6447 = vtanh.pop %v5441
        %v6448 = vtanh.pop %v5619
        %v6449 = vtanh.pop %v5797
        %v6450 = vtanh.pop %v5975
        %v6451 = vtanh.pop %v6153
        %v6452 = vtanh.pop %v6331
        %v6453 = vtanh.pop %v5265
        %v6454 = vtanh.pop %v5443
        %v6455 = vtanh.pop %v5621
        %v6456 = vtanh.pop %v5799
        %v6457 = vtanh.pop %v5977
        %v6458 = vtanh.pop %v6155
        %v6459 = vtanh.pop %v6333
        %v6460 = vtanh.pop %v5268
        %v6461 = vtanh.pop %v5446
        %v6462 = vtanh.pop %v5624
        %v6463 = vtanh.pop %v5802
        %v6464 = vtanh.pop %v5980
        %v6465 = vtanh.pop %v6158
        %v6466 = vtanh.pop %v6336
        %v6467 = vtanh.pop %v5270
        %v6468 = vtanh.pop %v5448
        %v6469 = vtanh.pop %v5626
        %v6470 = vtanh.pop %v5804
        %v6471 = vtanh.pop %v5982
        %v6472 = vtanh.pop %v6160
        %v6473 = vtanh.pop %v6338
        %v6474 = vtanh.pop %v5273
        %v6475 = vtanh.pop %v5451
        %v6476 = vtanh.pop %v5629
        %v6477 = vtanh.pop %v5807
        %v6478 = vtanh.pop %v5985
        %v6479 = vtanh.pop %v6163
        %v6480 = vtanh.pop %v6341
        %v6481 = vtanh.pop %v5275
        %v6482 = vtanh.pop %v5453
        %v6483 = vtanh.pop %v5631
        %v6484 = vtanh.pop %v5809
        %v6485 = vtanh.pop %v5987
        %v6486 = vtanh.pop %v6165
        %v6487 = vtanh.pop %v6343
        %v6488 = vtanh.pop %v5278
        %v6489 = vtanh.pop %v5456
        %v6490 = vtanh.pop %v5634
        %v6491 = vtanh.pop %v5812
        %v6492 = vtanh.pop %v5990
        %v6493 = vtanh.pop %v6168
        %v6494 = vtanh.pop %v6346
        %v6495 = vtanh.pop %v5280
        %v6496 = vtanh.pop %v5458
        %v6497 = vtanh.pop %v5636
        %v6498 = vtanh.pop %v5814
        %v6499 = vtanh.pop %v5992
        %v6500 = vtanh.pop %v6170
        %v6501 = vtanh.pop %v6348
        %v6502 = vtanh.pop %v5283
        %v6503 = vtanh.pop %v5461
        %v6504 = vtanh.pop %v5639
        %v6505 = vtanh.pop %v5817
        %v6506 = vtanh.pop %v5995
        %v6507 = vtanh.pop %v6173
        %v6508 = vtanh.pop %v6351
        %v6509 = vtanh.pop %v5285
        %v6510 = vtanh.pop %v5463
        %v6511 = vtanh.pop %v5641
        %v6512 = vtanh.pop %v5819
        %v6513 = vtanh.pop %v5997
        %v6514 = vtanh.pop %v6175
        %v6515 = vtanh.pop %v6353
        %v6516 = vtanh.pop %v5288
        %v6517 = vtanh.pop %v5466
        %v6518 = vtanh.pop %v5644
        %v6519 = vtanh.pop %v5822
        %v6520 = vtanh.pop %v6000
        %v6521 = vtanh.pop %v6178
        %v6522 = vtanh.pop %v6356
        %v6523 = vtanh.pop %v5290
        %v6524 = vtanh.pop %v5468
        %v6525 = vtanh.pop %v5646
        %v6526 = vtanh.pop %v5824
        %v6527 = vtanh.pop %v6002
        %v6528 = vtanh.pop %v6180
        %v6529 = vtanh.pop %v6358
        %v6530 = vtanh.pop %v5293
        %v6531 = vtanh.pop %v5471
        %v6532 = vtanh.pop %v5649
        %v6533 = vtanh.pop %v5827
        %v6534 = vtanh.pop %v6005
        %v6535 = vtanh.pop %v6183
        %v6536 = vtanh.pop %v6361
        %v6537 = vtanh.pop %v5295
        %v6538 = vtanh.pop %v5473
        %v6539 = vtanh.pop %v5651
        %v6540 = vtanh.pop %v5829
        %v6541 = vtanh.pop %v6007
        %v6542 = vtanh.pop %v6185
        %v6543 = vtanh.pop %v6363
        %v6544 = vtanh.pop %v5298
        %v6545 = vtanh.pop %v5476
        %v6546 = vtanh.pop %v5654
        %v6547 = vtanh.pop %v5832
        %v6548 = vtanh.pop %v6010
        %v6549 = vtanh.pop %v6188
        %v6550 = vtanh.pop %v6366
        %v6551 = vtanh.pop %v5300
        %v6552 = vtanh.pop %v5478
        %v6553 = vtanh.pop %v5656
        %v6554 = vtanh.pop %v5834
        %v6555 = vtanh.pop %v6012
        %v6556 = vtanh.pop %v6190
        %v6557 = vtanh.pop %v6368
        %v6558 = vtanh.pop %v5303
        %v6559 = vtanh.pop %v5481
        %v6560 = vtanh.pop %v5659
        %v6561 = vtanh.pop %v5837
        %v6562 = vtanh.pop %v6015
        %v6563 = vtanh.pop %v6193
        %v6564 = vtanh.pop %v6371
        %v6565 = vtanh.pop %v5305
        %v6566 = vtanh.pop %v5483
        %v6567 = vtanh.pop %v5661
        %v6568 = vtanh.pop %v5839
        %v6569 = vtanh.pop %v6017
        %v6570 = vtanh.pop %v6195
        %v6571 = vtanh.pop %v6373
        %v6572 = vtanh.pop %v5308
        %v6573 = vtanh.pop %v5486
        %v6574 = vtanh.pop %v5664
        %v6575 = vtanh.pop %v5842
        %v6576 = vtanh.pop %v6020
        %v6577 = vtanh.pop %v6198
        %v6578 = vtanh.pop %v6376
        %v6579 = vtanh.pop %v5310
        %v6580 = vtanh.pop %v5488
        %v6581 = vtanh.pop %v5666
        %v6582 = vtanh.pop %v5844
        %v6583 = vtanh.pop %v6022
        %v6584 = vtanh.pop %v6200
        %v6585 = vtanh.pop %v6378
        %v6586 = vtanh.pop %v5313
        %v6587 = vtanh.pop %v5491
        %v6588 = vtanh.pop %v5669
        %v6589 = vtanh.pop %v5847
        %v6590 = vtanh.pop %v6025
        %v6591 = vtanh.pop %v6203
        %v6592 = vtanh.pop %v6381
        %v6593 = vtanh.pop %v5315
        %v6594 = vtanh.pop %v5493
        %v6595 = vtanh.pop %v5671
        %v6596 = vtanh.pop %v5849
        %v6597 = vtanh.pop %v6027
        %v6598 = vtanh.pop %v6205
        %v6599 = vtanh.pop %v6383
        %v6600 = vtanh.pop %v5318
        %v6601 = vtanh.pop %v5496
        %v6602 = vtanh.pop %v5674
        %v6603 = vtanh.pop %v5852
        %v6604 = vtanh.pop %v6030
        %v6605 = vtanh.pop %v6208
        %v6606 = vtanh.pop %v6386
        %v6607 = vtanh.pop %v5320
        %v6608 = vtanh.pop %v5498
        %v6609 = vtanh.pop %v5676
        %v6610 = vtanh.pop %v5854
        %v6611 = vtanh.pop %v6032
        %v6612 = vtanh.pop %v6210
        %v6613 = vtanh.pop %v6388
        %v6614 = vpack.c.bf16 %v6391, %v6390
        %v6615 = vpack.c.bf16 %v6393, %v6392
        %v6616 = vpack.c.bf16 %v6395, %v6394
        %v6617 = vpack.c.bf16 %v6396, %v6396
        %v6618 = vpack.c.bf16 %v6398, %v6397
        %v6619 = vpack.c.bf16 %v6400, %v6399
        %v6620 = vpack.c.bf16 %v6402, %v6401
        %v6621 = vpack.c.bf16 %v6403, %v6403
        %v6622 = vpack.c.bf16 %v6405, %v6404
        %v6623 = vpack.c.bf16 %v6407, %v6406
        %v6624 = vpack.c.bf16 %v6409, %v6408
        %v6625 = vpack.c.bf16 %v6410, %v6410
        %v6626 = vpack.c.bf16 %v6412, %v6411
        %v6627 = vpack.c.bf16 %v6414, %v6413
        %v6628 = vpack.c.bf16 %v6416, %v6415
        %v6629 = vpack.c.bf16 %v6417, %v6417
        %v6630 = vpack.c.bf16 %v6419, %v6418
        %v6631 = vpack.c.bf16 %v6421, %v6420
        %v6632 = vpack.c.bf16 %v6423, %v6422
        %v6633 = vpack.c.bf16 %v6424, %v6424
        %v6634 = vpack.c.bf16 %v6426, %v6425
        %v6635 = vpack.c.bf16 %v6428, %v6427
        %v6636 = vpack.c.bf16 %v6430, %v6429
        %v6637 = vpack.c.bf16 %v6431, %v6431
        %v6638 = vpack.c.bf16 %v6433, %v6432
        %v6639 = vpack.c.bf16 %v6435, %v6434
        %v6640 = vpack.c.bf16 %v6437, %v6436
        %v6641 = vpack.c.bf16 %v6438, %v6438
        %v6642 = vpack.c.bf16 %v6440, %v6439
        %v6643 = vpack.c.bf16 %v6442, %v6441
        %v6644 = vpack.c.bf16 %v6444, %v6443
        %v6645 = vpack.c.bf16 %v6445, %v6445
        %v6646 = vpack.c.bf16 %v6447, %v6446
        %v6647 = vpack.c.bf16 %v6449, %v6448
        %v6648 = vpack.c.bf16 %v6451, %v6450
        %v6649 = vpack.c.bf16 %v6452, %v6452
        %v6650 = vpack.c.bf16 %v6454, %v6453
        %v6651 = vpack.c.bf16 %v6456, %v6455
        %v6652 = vpack.c.bf16 %v6458, %v6457
        %v6653 = vpack.c.bf16 %v6459, %v6459
        %v6654 = vpack.c.bf16 %v6461, %v6460
        %v6655 = vpack.c.bf16 %v6463, %v6462
        %v6656 = vpack.c.bf16 %v6465, %v6464
        %v6657 = vpack.c.bf16 %v6466, %v6466
        %v6658 = vpack.c.bf16 %v6468, %v6467
        %v6659 = vpack.c.bf16 %v6470, %v6469
        %v6660 = vpack.c.bf16 %v6472, %v6471
        %v6661 = vpack.c.bf16 %v6473, %v6473
        %v6662 = vpack.c.bf16 %v6475, %v6474
        %v6663 = vpack.c.bf16 %v6477, %v6476
        %v6664 = vpack.c.bf16 %v6479, %v6478
        %v6665 = vpack.c.bf16 %v6480, %v6480
        %v6666 = vpack.c.bf16 %v6482, %v6481
        %v6667 = vpack.c.bf16 %v6484, %v6483
        %v6668 = vpack.c.bf16 %v6486, %v6485
        %v6669 = vpack.c.bf16 %v6487, %v6487
        %v6670 = vpack.c.bf16 %v6489, %v6488
        %v6671 = vpack.c.bf16 %v6491, %v6490
        %v6672 = vpack.c.bf16 %v6493, %v6492
        %v6673 = vpack.c.bf16 %v6494, %v6494
        %v6674 = vpack.c.bf16 %v6496, %v6495
        %v6675 = vpack.c.bf16 %v6498, %v6497
        %v6676 = vpack.c.bf16 %v6500, %v6499
        %v6677 = vpack.c.bf16 %v6501, %v6501
        %v6678 = vpack.c.bf16 %v6503, %v6502
        %v6679 = vpack.c.bf16 %v6505, %v6504
        %v6680 = vpack.c.bf16 %v6507, %v6506
        %v6681 = vpack.c.bf16 %v6508, %v6508
        %v6682 = vpack.c.bf16 %v6510, %v6509
        %v6683 = vpack.c.bf16 %v6512, %v6511
        %v6684 = vpack.c.bf16 %v6514, %v6513
        %v6685 = vpack.c.bf16 %v6515, %v6515
        %v6686 = vpack.c.bf16 %v6517, %v6516
        %v6687 = vpack.c.bf16 %v6519, %v6518
        %v6688 = vpack.c.bf16 %v6521, %v6520
        %v6689 = vpack.c.bf16 %v6522, %v6522
        %v6690 = vpack.c.bf16 %v6524, %v6523
        %v6691 = vpack.c.bf16 %v6526, %v6525
        %v6692 = vpack.c.bf16 %v6528, %v6527
        %v6693 = vpack.c.bf16 %v6529, %v6529
        %v6694 = vpack.c.bf16 %v6531, %v6530
        %v6695 = vpack.c.bf16 %v6533, %v6532
        %v6696 = vpack.c.bf16 %v6535, %v6534
        %v6697 = vpack.c.bf16 %v6536, %v6536
        %v6698 = vpack.c.bf16 %v6538, %v6537
        %v6699 = vpack.c.bf16 %v6540, %v6539
        %v6700 = vpack.c.bf16 %v6542, %v6541
        %v6701 = vpack.c.bf16 %v6543, %v6543
        %v6702 = vpack.c.bf16 %v6545, %v6544
        %v6703 = vpack.c.bf16 %v6547, %v6546
        %v6704 = vpack.c.bf16 %v6549, %v6548
        %v6705 = vpack.c.bf16 %v6550, %v6550
        %v6706 = vpack.c.bf16 %v6552, %v6551
        %v6707 = vpack.c.bf16 %v6554, %v6553
        %v6708 = vpack.c.bf16 %v6556, %v6555
        %v6709 = vpack.c.bf16 %v6557, %v6557
        %v6710 = vpack.c.bf16 %v6559, %v6558
        %v6711 = vpack.c.bf16 %v6561, %v6560
        %v6712 = vpack.c.bf16 %v6563, %v6562
        %v6713 = vpack.c.bf16 %v6564, %v6564
        %v6714 = vpack.c.bf16 %v6566, %v6565
        %v6715 = vpack.c.bf16 %v6568, %v6567
        %v6716 = vpack.c.bf16 %v6570, %v6569
        %v6717 = vpack.c.bf16 %v6571, %v6571
        %v6718 = vpack.c.bf16 %v6573, %v6572
        %v6719 = vpack.c.bf16 %v6575, %v6574
        %v6720 = vpack.c.bf16 %v6577, %v6576
        %v6721 = vpack.c.bf16 %v6578, %v6578
        %v6722 = vpack.c.bf16 %v6580, %v6579
        %v6723 = vpack.c.bf16 %v6582, %v6581
        %v6724 = vpack.c.bf16 %v6584, %v6583
        %v6725 = vpack.c.bf16 %v6585, %v6585
        %v6726 = vpack.c.bf16 %v6587, %v6586
        %v6727 = vpack.c.bf16 %v6589, %v6588
        %v6728 = vpack.c.bf16 %v6591, %v6590
        %v6729 = vpack.c.bf16 %v6592, %v6592
        %v6730 = vpack.c.bf16 %v6594, %v6593
        %v6731 = vpack.c.bf16 %v6596, %v6595
        %v6732 = vpack.c.bf16 %v6598, %v6597
        %v6733 = vpack.c.bf16 %v6599, %v6599
        %v6734 = vpack.c.bf16 %v6601, %v6600
        %v6735 = vpack.c.bf16 %v6603, %v6602
        %v6736 = vpack.c.bf16 %v6605, %v6604
        %v6737 = vpack.c.bf16 %v6606, %v6606
        %v6738 = vpack.c.bf16 %v6608, %v6607
        %v6739 = vpack.c.bf16 %v6610, %v6609
        %v6740 = vpack.c.bf16 %v6612, %v6611
        %v6741 = vpack.c.bf16 %v6613, %v6613
        %6742 = vst [vmem:[%s437] sm:$0xff] %v6614
        %6743 = vst [vmem:[%s437 + $0x8] sm:$0xff] %v6615
        %6744 = vst [vmem:[%s437 + $0x10] sm:$0xff] %v6616
        %6745 = vst [vmem:[%s437 + $0x18] sm:$0xf] %v6617
        %6746 = vst [vmem:[%s437 + $0x1c] sm:$0xff] %v6618
        %6747 = vst [vmem:[%s437 + $0x24] sm:$0xff] %v6619
        %6748 = vst [vmem:[%s437 + $0x2c] sm:$0xff] %v6620
        %6749 = vst [vmem:[%s437 + $0x34] sm:$0xf] %v6621
        %6750 = vst [vmem:[%s437 + $0x38] sm:$0xff] %v6622
        %6751 = vst [vmem:[%s437 + $0x40] sm:$0xff] %v6623
        %6752 = vst [vmem:[%s437 + $0x48] sm:$0xff] %v6624
        %6753 = vst [vmem:[%s437 + $0x50] sm:$0xf] %v6625
        %6754 = vst [vmem:[%s437 + $0x54] sm:$0xff] %v6626
        %6755 = vst [vmem:[%s437 + $0x5c] sm:$0xff] %v6627
        %6756 = vst [vmem:[%s437 + $0x64] sm:$0xff] %v6628
        %6757 = vst [vmem:[%s437 + $0x6c] sm:$0xf] %v6629
        %6758 = vst [vmem:[%s437 + $0x70] sm:$0xff] %v6630
        %6759 = vst [vmem:[%s437 + $0x78] sm:$0xff] %v6631
        %6760 = vst [vmem:[%s437 + $0x80] sm:$0xff] %v6632
        %6761 = vst [vmem:[%s437 + $0x88] sm:$0xf] %v6633
        %6762 = vst [vmem:[%s437 + $0x8c] sm:$0xff] %v6634
        %6763 = vst [vmem:[%s437 + $0x94] sm:$0xff] %v6635
        %6764 = vst [vmem:[%s437 + $0x9c] sm:$0xff] %v6636
        %6765 = vst [vmem:[%s437 + $0xa4] sm:$0xf] %v6637
        %6766 = vst [vmem:[%s437 + $0xa8] sm:$0xff] %v6638
        %6767 = vst [vmem:[%s437 + $0xb0] sm:$0xff] %v6639
        %6768 = vst [vmem:[%s437 + $0xb8] sm:$0xff] %v6640
        %6769 = vst [vmem:[%s437 + $0xc0] sm:$0xf] %v6641
        %6770 = vst [vmem:[%s437 + $0xc4] sm:$0xff] %v6642
        %6771 = vst [vmem:[%s437 + $0xcc] sm:$0xff] %v6643
        %6772 = vst [vmem:[%s437 + $0xd4] sm:$0xff] %v6644
        %6773 = vst [vmem:[%s437 + $0xdc] sm:$0xf] %v6645
        %6774 = vst [vmem:[%s437 + $0xe0] sm:$0xff] %v6646
        %6775 = vst [vmem:[%s437 + $0xe8] sm:$0xff] %v6647
        %6776 = vst [vmem:[%s437 + $0xf0] sm:$0xff] %v6648
        %6777 = vst [vmem:[%s437 + $0xf8] sm:$0xf] %v6649
        %6778 = vst [vmem:[%s437 + $0xfc] sm:$0xff] %v6650
        %6779 = vst [vmem:[%s437 + $0x104] sm:$0xff] %v6651
        %6780 = vst [vmem:[%s437 + $0x10c] sm:$0xff] %v6652
        %6781 = vst [vmem:[%s437 + $0x114] sm:$0xf] %v6653
        %6782 = vst [vmem:[%s437 + $0x118] sm:$0xff] %v6654
        %6783 = vst [vmem:[%s437 + $0x120] sm:$0xff] %v6655
        %6784 = vst [vmem:[%s437 + $0x128] sm:$0xff] %v6656
        %6785 = vst [vmem:[%s437 + $0x130] sm:$0xf] %v6657
        %6786 = vst [vmem:[%s437 + $0x134] sm:$0xff] %v6658
        %6787 = vst [vmem:[%s437 + $0x13c] sm:$0xff] %v6659
        %6788 = vst [vmem:[%s437 + $0x144] sm:$0xff] %v6660
        %6789 = vst [vmem:[%s437 + $0x14c] sm:$0xf] %v6661
        %6790 = vst [vmem:[%s437 + $0x150] sm:$0xff] %v6662
        %6791 = vst [vmem:[%s437 + $0x158] sm:$0xff] %v6663
        %6792 = vst [vmem:[%s437 + $0x160] sm:$0xff] %v6664
        %6793 = vst [vmem:[%s437 + $0x168] sm:$0xf] %v6665
        %6794 = vst [vmem:[%s437 + $0x16c] sm:$0xff] %v6666
        %6795 = vst [vmem:[%s437 + $0x174] sm:$0xff] %v6667
        %6796 = vst [vmem:[%s437 + $0x17c] sm:$0xff] %v6668
        %6797 = vst [vmem:[%s437 + $0x184] sm:$0xf] %v6669
        %6798 = vst [vmem:[%s437 + $0x188] sm:$0xff] %v6670
        %6799 = vst [vmem:[%s437 + $0x190] sm:$0xff] %v6671
        %6800 = vst [vmem:[%s437 + $0x198] sm:$0xff] %v6672
        %6801 = vst [vmem:[%s437 + $0x1a0] sm:$0xf] %v6673
        %6802 = vst [vmem:[%s437 + $0x1a4] sm:$0xff] %v6674
        %6803 = vst [vmem:[%s437 + $0x1ac] sm:$0xff] %v6675
        %6804 = vst [vmem:[%s437 + $0x1b4] sm:$0xff] %v6676
        %6805 = vst [vmem:[%s437 + $0x1bc] sm:$0xf] %v6677
        %6806 = vst [vmem:[%s437 + $0x1c0] sm:$0xff] %v6678
        %6807 = vst [vmem:[%s437 + $0x1c8] sm:$0xff] %v6679
        %6808 = vst [vmem:[%s437 + $0x1d0] sm:$0xff] %v6680
        %6809 = vst [vmem:[%s437 + $0x1d8] sm:$0xf] %v6681
        %6810 = vst [vmem:[%s437 + $0x1dc] sm:$0xff] %v6682
        %6811 = vst [vmem:[%s437 + $0x1e4] sm:$0xff] %v6683
        %6812 = vst [vmem:[%s437 + $0x1ec] sm:$0xff] %v6684
        %6813 = vst [vmem:[%s437 + $0x1f4] sm:$0xf] %v6685
        %6814 = vst [vmem:[%s437 + $0x1f8] sm:$0xff] %v6686
        %6815 = vst [vmem:[%s437 + $0x200] sm:$0xff] %v6687
        %6816 = vst [vmem:[%s437 + $0x208] sm:$0xff] %v6688
        %6817 = vst [vmem:[%s437 + $0x210] sm:$0xf] %v6689
        %6818 = vst [vmem:[%s437 + $0x214] sm:$0xff] %v6690
        %6819 = vst [vmem:[%s437 + $0x21c] sm:$0xff] %v6691
        %6820 = vst [vmem:[%s437 + $0x224] sm:$0xff] %v6692
        %6821 = vst [vmem:[%s437 + $0x22c] sm:$0xf] %v6693
        %6822 = vst [vmem:[%s437 + $0x230] sm:$0xff] %v6694
        %6823 = vst [vmem:[%s437 + $0x238] sm:$0xff] %v6695
        %6824 = vst [vmem:[%s437 + $0x240] sm:$0xff] %v6696
        %6825 = vst [vmem:[%s437 + $0x248] sm:$0xf] %v6697
        %6826 = vst [vmem:[%s437 + $0x24c] sm:$0xff] %v6698
        %6827 = vst [vmem:[%s437 + $0x254] sm:$0xff] %v6699
        %6828 = vst [vmem:[%s437 + $0x25c] sm:$0xff] %v6700
        %6829 = vst [vmem:[%s437 + $0x264] sm:$0xf] %v6701
        %6830 = vst [vmem:[%s437 + $0x268] sm:$0xff] %v6702
        %6831 = vst [vmem:[%s437 + $0x270] sm:$0xff] %v6703
        %6832 = vst [vmem:[%s437 + $0x278] sm:$0xff] %v6704
        %6833 = vst [vmem:[%s437 + $0x280] sm:$0xf] %v6705
        %6834 = vst [vmem:[%s437 + $0x284] sm:$0xff] %v6706
        %6835 = vst [vmem:[%s437 + $0x28c] sm:$0xff] %v6707
        %6836 = vst [vmem:[%s437 + $0x294] sm:$0xff] %v6708
        %6837 = vst [vmem:[%s437 + $0x29c] sm:$0xf] %v6709
        %6838 = vst [vmem:[%s437 + $0x2a0] sm:$0xff] %v6710
        %6839 = vst [vmem:[%s437 + $0x2a8] sm:$0xff] %v6711
        %6840 = vst [vmem:[%s437 + $0x2b0] sm:$0xff] %v6712
        %6841 = vst [vmem:[%s437 + $0x2b8] sm:$0xf] %v6713
        %6842 = vst [vmem:[%s437 + $0x2bc] sm:$0xff] %v6714
        %6843 = vst [vmem:[%s437 + $0x2c4] sm:$0xff] %v6715
        %6844 = vst [vmem:[%s437 + $0x2cc] sm:$0xff] %v6716
        %6845 = vst [vmem:[%s437 + $0x2d4] sm:$0xf] %v6717
        %6846 = vst [vmem:[%s437 + $0x2d8] sm:$0xff] %v6718
        %6847 = vst [vmem:[%s437 + $0x2e0] sm:$0xff] %v6719
        %6848 = vst [vmem:[%s437 + $0x2e8] sm:$0xff] %v6720
        %6849 = vst [vmem:[%s437 + $0x2f0] sm:$0xf] %v6721
        %6850 = vst [vmem:[%s437 + $0x2f4] sm:$0xff] %v6722
        %6851 = vst [vmem:[%s437 + $0x2fc] sm:$0xff] %v6723
        %6852 = vst [vmem:[%s437 + $0x304] sm:$0xff] %v6724
        %6853 = vst [vmem:[%s437 + $0x30c] sm:$0xf] %v6725
        %6854 = vst [vmem:[%s437 + $0x310] sm:$0xff] %v6726
        %6855 = vst [vmem:[%s437 + $0x318] sm:$0xff] %v6727
        %6856 = vst [vmem:[%s437 + $0x320] sm:$0xff] %v6728
        %6857 = vst [vmem:[%s437 + $0x328] sm:$0xf] %v6729
        %6858 = vst [vmem:[%s437 + $0x32c] sm:$0xff] %v6730
        %6859 = vst [vmem:[%s437 + $0x334] sm:$0xff] %v6731
        %6860 = vst [vmem:[%s437 + $0x33c] sm:$0xff] %v6732
        %6861 = vst [vmem:[%s437 + $0x344] sm:$0xf] %v6733
        %6862 = vst [vmem:[%s437 + $0x348] sm:$0xff] %v6734
        %6863 = vst [vmem:[%s437 + $0x350] sm:$0xff] %v6735
        %6864 = vst [vmem:[%s437 + $0x358] sm:$0xff] %v6736
        %6865 = vst [vmem:[%s437 + $0x360] sm:$0xf] %v6737
        %6866 = vst [vmem:[%s437 + $0x364] sm:$0xff] %v6738
        %6867 = vst [vmem:[%s437 + $0x36c] sm:$0xff] %v6739
        %6868 = vst [vmem:[%s437 + $0x374] sm:$0xff] %v6740
        %6869 = vst [vmem:[%s437 + $0x37c] sm:$0xf] %v6741
        %s6870 = sand.u32 %s210, 1
        %s6871 = scalar_lea.sflag [#allocation4], %s6870
        %s6872 = sand.u32 %s210, 1
        %s6873 = smul.addr %s6872, 896
        %s6874 = scalar_lea.vmem [#allocation16], %s6873
        // Predicated region
        $region85: #{tpu_custom_call.1} parent=51 // pred_check
          %p6875 = pneg %p220
        $region86: #{tpu_custom_call.1} parent=51 // pred_check_branch
          %6877 = sbr.rel (%p6875) target = $region88
        $region87: #{tpu_custom_call.1} parent=51 // pred_region
          %s6878 = smul.u32 32, %s29
          %6880 = vsyncadd %s6871, 0
          %s6881 = smul.addr %s6878, 7
          %s6882 = smul.addr %s6881, 4
          %s6883 = scalar_lea.hbm %s8, %s6882
          %s6884 = sshll.u32 %s6874, 4
          %s6885 = int_to_ptr.vmem [resolvable:$true] %s6884
          %s6886 = sshll.u32 %s6883, 4
          %s6887 = int_to_ptr.hbm [resolvable:$true] %s6886
          %6892 = dma.vmem_to_hbm [thread:$0]  %s6885, 14336, %s6887, %s6871, 448, 448, 28
        $region88: #{tpu_custom_call.1} parent=51 // pred_fallthru
          _
      $region52: #{tpu_custom_call.1} parent=5 // pred_fallthru
        _
      %p6893 = scmp.le.s32.totalorder 2, %s24
      // Predicated region
      $region89: #{tpu_custom_call.1} parent=5 // pred_check
        %p6894 = pneg %p6893
      $region90: #{tpu_custom_call.1} parent=5 // pred_check_branch
        %6896 = sbr.rel (%p6894) target = $region92
      $region91: #{tpu_custom_call.1} parent=5 // pred_region
        %s6897 = ssub.s32 %s24, 2
        // Predicated region
        $region93: #{tpu_custom_call.1} parent=91 // pred_check
          %p6898 = pneg %p226
        $region94: #{tpu_custom_call.1} parent=91 // pred_check_branch
          %6900 = sbr.rel (%p6898) target = $region96
        $region95: #{tpu_custom_call.1} parent=91 // pred_region
          %s6901 = sand.u32 %s211, 1
          %s6902 = scalar_lea.sflag [#allocation4], %s6901
          %s6903 = sand.u32 %s211, 1
          %s6904 = smul.addr %s6903, 896
          %s6905 = scalar_lea.vmem [#allocation16], %s6904
          %6907 = dma.done %s6902, 14336
        $region96: #{tpu_custom_call.1} parent=91 // pred_fallthru
          _
      $region92: #{tpu_custom_call.1} parent=5 // pred_fallthru
        _
    $region6: #{tpu_custom_call.1} parent=1 // loop_footer
      %s28 = sadd.s32 1, %s24
    $region7: #{tpu_custom_call.1} parent=1 // loop_footer_branch
      %23 = sbr.rel target = $region3
    $region8: #{tpu_custom_call.1} parent=1 // loop_exit
      _
    %6908 = vsyncpa [#allocation3], 1
    %s6909 = scalar_lea.sflag [#allocation3], 1
    %6910 = vsyncpa %s6909, 1
    %6911 = vsyncpa [#allocation6], 1
    %6912 = vsyncpa [#allocation9], 1
    %6913 = vsyncpa [#allocation12], 1
    %6914 = vsyncpa [#allocation15], 1
    %6915 = vsyncpa [#allocation4], 1
    %s6916 = scalar_lea.sflag [#allocation4], 1
    %6917 = vsyncpa %s6916, 1

</llo_original>
